<compile_context>
chip_gen: v5e
topology: v5e:2x2
jax: 0.10.0
libtpu: 0.0.40
codegen_flags: <defaults>
</compile_context>

<pallas_src>
import functools

import jax
import jax.numpy as jnp
from jax.experimental import pallas as pl
from jax.experimental.pallas import tpu as pltpu


# ---------------------------------------------------------------------------
# Kernel 1: conv3x3+BN+ReLU -> [nearest2x + conv3x3+BN+ReLU] (phase-folded)
#           -> conv1x1(+bias), fully fused.  One grid step per batch element.
# ---------------------------------------------------------------------------
def _head_kernel(x_ref, w1_ref, b1_ref, w2_ref, b2_ref, w3_ref, b3_ref,
                 o_ref, xpad_ref, f1pad_ref):
    # x_ref:  (1, H, W, Cin)    NHWC input tile
    # w1_ref: (9*Cin, M)        im2col conv1 weights (BN1 scale folded in)
    # b1_ref: (1, M)            folded BN1 bias
    # w2_ref: (9*M, 4*C2)       4 phase-effective conv2 kernels (BN2 folded in)
    # b2_ref: (1, 4*C2)         BN2 bias tiled over the 4 phases
    # w3_ref: (4*C2, 4*ncls)    block-diagonal 1x1 classifier weights
    # b3_ref: (1, 4*ncls)       classifier bias tiled over the 4 phases
    # o_ref:  (1, 4*ncls, H*W)  per-(phase, class) logit planes, flattened
    H, W, Cin = x_ref.shape[1], x_ref.shape[2], x_ref.shape[3]
    M = b1_ref.shape[1]
    HW = H * W

    # ---- conv1: zero-pad into scratch, im2col, one MXU matmul ----
    xpad_ref[...] = jnp.zeros(xpad_ref.shape, xpad_ref.dtype)
    xpad_ref[1:H + 1, 1:W + 1, :] = x_ref[0]
    cols = []
    for dy in range(3):
        for dx in range(3):
            cols.append(xpad_ref[dy:dy + H, dx:dx + W, :].reshape(HW, Cin))
    p1 = jnp.concatenate(cols, axis=1)                          # (HW, 9*Cin)
    feat1 = jnp.dot(p1, w1_ref[...], preferred_element_type=jnp.float32)
    feat1 = jnp.maximum(feat1 + b1_ref[...], 0.0)               # (HW, M)
    # Dropout(0.1): eval-mode identity.
    # TODO(synk): training-mode dropout RNG masking not implemented.

    # ---- nearest-2x + conv2 folded into 4 phase convolutions on feat1 ----
    f1pad_ref[...] = jnp.zeros(f1pad_ref.shape, f1pad_ref.dtype)
    f1pad_ref[1:H + 1, 1:W + 1, :] = feat1.reshape(H, W, M)
    cols2 = []
    for dy in range(3):
        for dx in range(3):
            cols2.append(f1pad_ref[dy:dy + H, dx:dx + W, :].reshape(HW, M))
    p2 = jnp.concatenate(cols2, axis=1)                         # (HW, 9*M)
    z = jnp.dot(p2, w2_ref[...], preferred_element_type=jnp.float32)
    z = jnp.maximum(z + b2_ref[...], 0.0)                       # (HW, 4*C2)

    # ---- 1x1 classifier (block-diagonal over the 4 phases) ----
    logits = jnp.dot(z, w3_ref[...], preferred_element_type=jnp.float32)
    logits = logits + b3_ref[...]                               # (HW, 4*ncls)

    # Lane-dense store: planes in sublanes, H*W (=256) in lanes.
    o_ref[0] = logits.T


# ---------------------------------------------------------------------------
# Kernel 2: bilinear upsample (align_corners=False) of the phase-interleaved
# logits via per-plane interpolation matrices, summed over the 4 phases.
# ---------------------------------------------------------------------------
def _bilinear_phase_kernel(x_ref, a_ref, bt_ref, o_ref):
    # x_ref:  (1, P, H, W)   per-(phase, class) logit planes, P = 4*ncls
    # a_ref:  (P, Hout, H)   per-plane row-interpolation matrices
    # bt_ref: (P, W, Wout)   per-plane column-interpolation matrices (transposed)
    # o_ref:  (1, ncls, Hout, Wout)
    ncls = o_ref.shape[1]
    n_phases = x_ref.shape[1] // ncls
    x = x_ref[0]
    t = jnp.einsum('puh,phw->puw', a_ref[...], x,
                   preferred_element_type=jnp.float32)          # (P, Hout, W)
    y = jnp.einsum('puw,pwv->puv', t, bt_ref[...],
                   preferred_element_type=jnp.float32)          # (P, Hout, Wout)
    acc = y[0:ncls]
    for ph in range(1, n_phases):
        acc = acc + y[ph * ncls:(ph + 1) * ncls]
    o_ref[0] = acc                                              # (ncls, Hout, Wout)


# ---------------------------------------------------------------------------
# pallas_call wrappers
# ---------------------------------------------------------------------------
def _fused_head(x_nhwc, w1mat, b1, w2all, b2all, w3blk, b3all):
    N, H, W, Cin = x_nhwc.shape
    K1, M = w1mat.shape
    K2, C4 = w2all.shape
    P = w3blk.shape[1]
    HW = H * W
    return pl.pallas_call(
        _head_kernel,
        out_shape=jax.ShapeDtypeStruct((N, P, HW), jnp.float32),
        grid=(N,),
        in_specs=[
            pl.BlockSpec((1, H, W, Cin), lambda n: (n, 0, 0, 0)),
            pl.BlockSpec((K1, M), lambda n: (0, 0)),
            pl.BlockSpec((1, M), lambda n: (0, 0)),
            pl.BlockSpec((K2, C4), lambda n: (0, 0)),
            pl.BlockSpec((1, C4), lambda n: (0, 0)),
            pl.BlockSpec((C4, P), lambda n: (0, 0)),
            pl.BlockSpec((1, P), lambda n: (0, 0)),
        ],
        out_specs=pl.BlockSpec((1, P, HW), lambda n: (n, 0, 0)),
        scratch_shapes=[
            pltpu.VMEM((H + 2, W + 2, Cin), jnp.float32),   # zero-padded input
            pltpu.VMEM((H + 2, W + 2, M), jnp.float32),     # zero-padded feat1
        ],
        compiler_params=pltpu.CompilerParams(dimension_semantics=("parallel",)),
    )(x_nhwc, w1mat, b1, w2all, b2all, w3blk, b3all)


def _bilinear_phases(planes, a_all, bt_all, n_classes):
    N, P, H, W = planes.shape
    Hout = a_all.shape[1]
    Wout = bt_all.shape[2]
    return pl.pallas_call(
        _bilinear_phase_kernel,
        out_shape=jax.ShapeDtypeStruct((N, n_classes, Hout, Wout), jnp.float32),
        grid=(N,),
        in_specs=[
            pl.BlockSpec((1, P, H, W), lambda n: (n, 0, 0, 0)),
            pl.BlockSpec((P, Hout, H), lambda n: (0, 0, 0)),
            pl.BlockSpec((P, W, Wout), lambda n: (0, 0, 0)),
        ],
        out_specs=pl.BlockSpec((1, n_classes, Hout, Wout), lambda n: (n, 0, 0, 0)),
        compiler_params=pltpu.CompilerParams(dimension_semantics=("parallel",)),
    )(planes, a_all, bt_all)


# ---------------------------------------------------------------------------
# Host-side parameter folding & interpolation matrices
# ---------------------------------------------------------------------------
def _bilinear_matrix(out_size, in_size):
    # PyTorch Upsample(mode='bilinear', align_corners=False) weights as a matrix.
    scale = in_size / out_size
    i = jnp.arange(out_size, dtype=jnp.float32)
    src = jnp.maximum((i + 0.5) * scale - 0.5, 0.0)
    i0 = jnp.floor(src).astype(jnp.int32)
    lam = src - i0.astype(jnp.float32)
    i1 = jnp.minimum(i0 + 1, in_size - 1)
    rows = jnp.arange(out_size)
    m = jnp.zeros((out_size, in_size), jnp.float32)
    m = m.at[rows, i0].add(1.0 - lam)
    m = m.at[rows, i1].add(lam)
    return m


# Tap-merging matrices that fold the nearest-2x upsample into conv2: a 3x3 conv
# on the 2x-upsampled map equals, per output-row/col parity ("phase"), a 3x3
# conv on the original map with its taps merged as below.
_PHASE_FOLD = jnp.array(
    [[[1., 0., 0.], [0., 1., 1.], [0., 0., 0.]],      # even output row/col
     [[0., 0., 0.], [1., 1., 0.], [0., 0., 1.]]],     # odd output row/col
    jnp.float32)


def prepare_params(raw, *, eps=1e-5):
    """Fold eval-mode BN into conv weights and build the fused-kernel operands.

    `raw` uses PyTorch conventions: conv weights OIHW, BN gamma/beta/mean/var.
    """
    def bn_fold(bn):
        s = bn["gamma"] / jnp.sqrt(bn["var"] + eps)
        return s, bn["beta"] - bn["mean"] * s

    s1, bb1 = bn_fold(raw["bn1"])
    w1 = raw["w1"] * s1[:, None, None, None]               # (M, Cin, 3, 3)
    mid, cin = w1.shape[0], w1.shape[1]
    w1mat = jnp.transpose(w1, (2, 3, 1, 0)).reshape(9 * cin, mid)

    s2, bb2 = bn_fold(raw["bn2"])
    w2 = raw["w2"] * s2[:, None, None, None]               # (C2, M, 3, 3)
    c2 = w2.shape[0]
    mats = []
    for ry in range(2):
        for rx in range(2):
            weff = jnp.einsum('jd,ke,oide->oijk',
                              _PHASE_FOLD[ry], _PHASE_FOLD[rx], w2)
            mats.append(jnp.transpose(weff, (2, 3, 1, 0)).reshape(9 * mid, c2))
    w2all = jnp.concatenate(mats, axis=1)                  # (9M, 4*C2)
    b2all = jnp.tile(bb2.reshape(1, c2), (1, 4))

    ncls = raw["w3"].shape[0]
    w3m = raw["w3"].reshape(ncls, c2).T                    # (C2, ncls)
    w3blk = jnp.kron(jnp.eye(4, dtype=jnp.float32), w3m)   # (4*C2, 4*ncls)
    b3all = jnp.tile(raw["b3"].reshape(1, ncls), (1, 4))

    return {"w1mat": w1mat, "b1": bb1.reshape(1, mid),
            "w2all": w2all, "b2all": b2all,
            "w3blk": w3blk, "b3all": b3all}


@functools.partial(jax.jit, static_argnames=("up_factor", "aux"))
def segment_head_forward(x_nchw, params, *, up_factor=8, aux=True):
    # x_nchw: (N, in_chan, H, W) float32 — same convention as the nn.Module.
    assert aux, "aux=False path not implemented"
    # TODO(synk): aux=False variant (nn.Identity path, no 2x+conv2) not implemented.
    N, _, H, W = x_nchw.shape
    x_nhwc = jnp.transpose(x_nchw, (0, 2, 3, 1))    # tiny one-time input relayout

    inter = _fused_head(x_nhwc, params["w1mat"], params["b1"], params["w2all"],
                        params["b2all"], params["w3blk"], params["b3all"])
    P = inter.shape[1]
    ncls = P // 4
    planes = inter.reshape(N, P, H, W)              # contiguous -> free reshape

    final_up = up_factor // 2
    hin, win = 2 * H, 2 * W
    hout, wout = hin * final_up, win * final_up
    A = _bilinear_matrix(hout, hin)                 # (Hout, 2H)
    B = _bilinear_matrix(wout, win)                 # (Wout, 2W)
    # Plane p = (ry*2 + rx) * ncls + c: pick the row/col parity sub-matrix.
    a_all = jnp.stack([A[:, ((p // ncls) // 2)::2] for p in range(P)], axis=0)
    bt_all = jnp.stack([B[:, ((p // ncls) % 2)::2].T for p in range(P)], axis=0)
    return _bilinear_phases(planes, a_all, bt_all, ncls)


# ---------------------------------------------------------------------------
# Deterministic parameter init + run
# ---------------------------------------------------------------------------
if __name__ == "__main__":
    N, in_chan, H, W = 2, 4, 16, 16
    mid_chan, n_classes, up_factor, aux = 8, 4, 8, True
    mid_chan2 = up_factor * up_factor if aux else mid_chan    # 64

    key = jax.random.PRNGKey(0)
    ks = jax.random.split(key, 13)

    def bn_raw(kg, kb, km, kv, c):
        return {
            "gamma": 1.0 + 0.1 * jax.random.normal(kg, (c,), jnp.float32),
            "beta": 0.1 * jax.random.normal(kb, (c,), jnp.float32),
            "mean": 0.1 * jax.random.normal(km, (c,), jnp.float32),
            "var": jax.random.uniform(kv, (c,), jnp.float32, 0.5, 1.5),
        }

    raw = {
        # PyTorch conventions: conv weights are OIHW.
        "w1": 0.1 * jax.random.normal(ks[0], (mid_chan, in_chan, 3, 3), jnp.float32),
        "bn1": bn_raw(ks[1], ks[2], ks[3], ks[4], mid_chan),
        "w2": 0.1 * jax.random.normal(ks[5], (mid_chan2, mid_chan, 3, 3), jnp.float32),
        "bn2": bn_raw(ks[6], ks[7], ks[8], ks[9], mid_chan2),
        "w3": 0.1 * jax.random.normal(ks[10], (n_classes, mid_chan2, 1, 1), jnp.float32),
        "b3": 0.1 * jax.random.normal(ks[11], (n_classes,), jnp.float32),
    }
    params = prepare_params(raw)

    x = jax.random.normal(ks[12], (N, in_chan, H, W), jnp.float32)    # NCHW input
    out = segment_head_forward(x, params, up_factor=up_factor, aux=aux)
    out = jax.block_until_ready(out)
    assert out.shape == (N, n_classes, H * up_factor, W * up_factor), out.shape
    print("KERNEL_OK")
</pallas_src>

<mosaic_0001>
module attributes {stable_mosaic.version = 11 : i64} {
  func.func @_head_kernel(%arg0: i32, %arg1: memref<1x16x16x4xf32, #tpu.memory_space<vmem>>, %arg2: memref<36x8xf32, #tpu.memory_space<vmem>>, %arg3: memref<1x8xf32, #tpu.memory_space<vmem>>, %arg4: memref<72x256xf32, #tpu.memory_space<vmem>>, %arg5: memref<1x256xf32, #tpu.memory_space<vmem>>, %arg6: memref<256x16xf32, #tpu.memory_space<vmem>>, %arg7: memref<1x16xf32, #tpu.memory_space<vmem>>, %arg8: memref<1x16x256xf32, #tpu.memory_space<vmem>>, %arg9: memref<18x18x4xf32, #tpu.memory_space<vmem>>, %arg10: memref<18x18x8xf32, #tpu.memory_space<vmem>>) attributes {dimension_semantics = [#tpu.dimension_semantics<parallel>], iteration_bounds = array<i64: 2>, scalar_prefetch = 0 : i64, scratch_operands = 2 : i64, tpu.core_type = #tpu.core_type<tc>, window_params = [{transform_indices = @transform_0, window_bounds = array<i64: 1, 16, 16, 4>}, {pipeline_mode = #tpu.pipeline_mode<synchronous>, transform_indices = @transform_1, window_bounds = array<i64: 36, 8>}, {pipeline_mode = #tpu.pipeline_mode<synchronous>, transform_indices = @transform_2, window_bounds = array<i64: 1, 8>}, {pipeline_mode = #tpu.pipeline_mode<synchronous>, transform_indices = @transform_3, window_bounds = array<i64: 72, 256>}, {pipeline_mode = #tpu.pipeline_mode<synchronous>, transform_indices = @transform_4, window_bounds = array<i64: 1, 256>}, {pipeline_mode = #tpu.pipeline_mode<synchronous>, transform_indices = @transform_5, window_bounds = array<i64: 256, 16>}, {pipeline_mode = #tpu.pipeline_mode<synchronous>, transform_indices = @transform_6, window_bounds = array<i64: 1, 16>}, {transform_indices = @transform_7, window_bounds = array<i64: 1, 16, 256>}]} {
    %cst = arith.constant 0.000000e+00 : f32
    %0 = vector.broadcast %cst : f32 to vector<18x18x4xf32>
    %c0 = arith.constant 0 : index
    %c0_0 = arith.constant 0 : index
    %c0_1 = arith.constant 0 : index
    %1 = vector.load %arg9[%c0, %c0_0, %c0_1] : memref<18x18x4xf32, #tpu.memory_space<vmem>>, vector<18x18x4xf32>
    tpu.vector_store %arg9[%c0, %c0_0, %c0_1], %0 {strides = array<i32>} : memref<18x18x4xf32, #tpu.memory_space<vmem>>, vector<18x18x4xf32>,
    %c0_2 = arith.constant 0 : index
    %c0_3 = arith.constant 0 : index
    %c0_4 = arith.constant 0 : index
    %c0_5 = arith.constant 0 : index
    %2 = vector.load %arg1[%c0_2, %c0_3, %c0_4, %c0_5] : memref<1x16x16x4xf32, #tpu.memory_space<vmem>>, vector<1x16x16x4xf32>
    %3 = vector.shape_cast %2 : vector<1x16x16x4xf32> to vector<16x16x4xf32>
    %c1 = arith.constant 1 : index
    %c1_6 = arith.constant 1 : index
    %c0_7 = arith.constant 0 : index
    %4 = vector.load %arg9[%c1, %c1_6, %c0_7] : memref<18x18x4xf32, #tpu.memory_space<vmem>>, vector<16x16x4xf32>
    tpu.vector_store %arg9[%c1, %c1_6, %c0_7], %3 {strides = array<i32>} : memref<18x18x4xf32, #tpu.memory_space<vmem>>, vector<16x16x4xf32>,
    %c0_8 = arith.constant 0 : index
    %c0_9 = arith.constant 0 : index
    %c0_10 = arith.constant 0 : index
    %5 = vector.load %arg9[%c0_8, %c0_9, %c0_10] : memref<18x18x4xf32, #tpu.memory_space<vmem>>, vector<16x16x4xf32>
    %6 = vector.shape_cast %5 : vector<16x16x4xf32> to vector<256x4xf32>
    %c0_11 = arith.constant 0 : index
    %c1_12 = arith.constant 1 : index
    %c0_13 = arith.constant 0 : index
    %7 = vector.load %arg9[%c0_11, %c1_12, %c0_13] : memref<18x18x4xf32, #tpu.memory_space<vmem>>, vector<16x16x4xf32>
    %8 = vector.shape_cast %7 : vector<16x16x4xf32> to vector<256x4xf32>
    %c0_14 = arith.constant 0 : index
    %c2 = arith.constant 2 : index
    %c0_15 = arith.constant 0 : index
    %9 = vector.load %arg9[%c0_14, %c2, %c0_15] : memref<18x18x4xf32, #tpu.memory_space<vmem>>, vector<16x16x4xf32>
    %10 = vector.shape_cast %9 : vector<16x16x4xf32> to vector<256x4xf32>
    %c1_16 = arith.constant 1 : index
    %c0_17 = arith.constant 0 : index
    %c0_18 = arith.constant 0 : index
    %11 = vector.load %arg9[%c1_16, %c0_17, %c0_18] : memref<18x18x4xf32, #tpu.memory_space<vmem>>, vector<16x16x4xf32>
    %12 = vector.shape_cast %11 : vector<16x16x4xf32> to vector<256x4xf32>
    %c1_19 = arith.constant 1 : index
    %c1_20 = arith.constant 1 : index
    %c0_21 = arith.constant 0 : index
    %13 = vector.load %arg9[%c1_19, %c1_20, %c0_21] : memref<18x18x4xf32, #tpu.memory_space<vmem>>, vector<16x16x4xf32>
    %14 = vector.shape_cast %13 : vector<16x16x4xf32> to vector<256x4xf32>
    %c1_22 = arith.constant 1 : index
    %c2_23 = arith.constant 2 : index
    %c0_24 = arith.constant 0 : index
    %15 = vector.load %arg9[%c1_22, %c2_23, %c0_24] : memref<18x18x4xf32, #tpu.memory_space<vmem>>, vector<16x16x4xf32>
    %16 = vector.shape_cast %15 : vector<16x16x4xf32> to vector<256x4xf32>
    %c2_25 = arith.constant 2 : index
    %c0_26 = arith.constant 0 : index
    %c0_27 = arith.constant 0 : index
    %17 = vector.load %arg9[%c2_25, %c0_26, %c0_27] : memref<18x18x4xf32, #tpu.memory_space<vmem>>, vector<16x16x4xf32>
    %18 = vector.shape_cast %17 : vector<16x16x4xf32> to vector<256x4xf32>
    %c2_28 = arith.constant 2 : index
    %c1_29 = arith.constant 1 : index
    %c0_30 = arith.constant 0 : index
    %19 = vector.load %arg9[%c2_28, %c1_29, %c0_30] : memref<18x18x4xf32, #tpu.memory_space<vmem>>, vector<16x16x4xf32>
    %20 = vector.shape_cast %19 : vector<16x16x4xf32> to vector<256x4xf32>
    %c2_31 = arith.constant 2 : index
    %c2_32 = arith.constant 2 : index
    %c0_33 = arith.constant 0 : index
    %21 = vector.load %arg9[%c2_31, %c2_32, %c0_33] : memref<18x18x4xf32, #tpu.memory_space<vmem>>, vector<16x16x4xf32>
    %22 = vector.shape_cast %21 : vector<16x16x4xf32> to vector<256x4xf32>
    %23 = tpu.concatenate %6, %8, %10, %12, %14, %16, %18, %20, %22 in 1 : vector<256x4xf32>, vector<256x4xf32>, vector<256x4xf32>, vector<256x4xf32>, vector<256x4xf32>, vector<256x4xf32>, vector<256x4xf32>, vector<256x4xf32>, vector<256x4xf32> -> vector<256x36xf32>
    %c0_34 = arith.constant 0 : index
    %c0_35 = arith.constant 0 : index
    %24 = vector.load %arg2[%c0_34, %c0_35] : memref<36x8xf32, #tpu.memory_space<vmem>>, vector<36x8xf32>
    %cst_36 = arith.constant dense<0.000000e+00> : vector<256x8xf32>
    %25 = tpu.matmul %23, %24, %cst_36 {dimension_numbers = #tpu.dot_dimension_numbers<[1], [0], [0], [1], [0, 0, 1, 1], [], []>} : vector<256x36xf32>, vector<36x8xf32>, vector<256x8xf32> -> vector<256x8xf32>
    %c0_37 = arith.constant 0 : index
    %c0_38 = arith.constant 0 : index
    %26 = vector.load %arg3[%c0_37, %c0_38] : memref<1x8xf32, #tpu.memory_space<vmem>>, vector<1x8xf32>
    %27 = vector.broadcast %26 : vector<1x8xf32> to vector<256x8xf32>
    %28 = arith.addf %25, %27 : vector<256x8xf32>
    %cst_39 = arith.constant 0.000000e+00 : f32
    %29 = vector.broadcast %cst_39 : f32 to vector<256x8xf32>
    %30 = arith.maximumf %28, %29 : vector<256x8xf32>
    %cst_40 = arith.constant 0.000000e+00 : f32
    %31 = vector.broadcast %cst_40 : f32 to vector<18x18x8xf32>
    %c0_41 = arith.constant 0 : index
    %c0_42 = arith.constant 0 : index
    %c0_43 = arith.constant 0 : index
    %32 = vector.load %arg10[%c0_41, %c0_42, %c0_43] : memref<18x18x8xf32, #tpu.memory_space<vmem>>, vector<18x18x8xf32>
    tpu.vector_store %arg10[%c0_41, %c0_42, %c0_43], %31 {strides = array<i32>} : memref<18x18x8xf32, #tpu.memory_space<vmem>>, vector<18x18x8xf32>,
    %33 = vector.shape_cast %30 : vector<256x8xf32> to vector<16x16x8xf32>
    %c1_44 = arith.constant 1 : index
    %c1_45 = arith.constant 1 : index
    %c0_46 = arith.constant 0 : index
    %34 = vector.load %arg10[%c1_44, %c1_45, %c0_46] : memref<18x18x8xf32, #tpu.memory_space<vmem>>, vector<16x16x8xf32>
    tpu.vector_store %arg10[%c1_44, %c1_45, %c0_46], %33 {strides = array<i32>} : memref<18x18x8xf32, #tpu.memory_space<vmem>>, vector<16x16x8xf32>,
    %c0_47 = arith.constant 0 : index
    %c0_48 = arith.constant 0 : index
    %c0_49 = arith.constant 0 : index
    %35 = vector.load %arg10[%c0_47, %c0_48, %c0_49] : memref<18x18x8xf32, #tpu.memory_space<vmem>>, vector<16x16x8xf32>
    %36 = vector.shape_cast %35 : vector<16x16x8xf32> to vector<256x8xf32>
    %c0_50 = arith.constant 0 : index
    %c1_51 = arith.constant 1 : index
    %c0_52 = arith.constant 0 : index
    %37 = vector.load %arg10[%c0_50, %c1_51, %c0_52] : memref<18x18x8xf32, #tpu.memory_space<vmem>>, vector<16x16x8xf32>
    %38 = vector.shape_cast %37 : vector<16x16x8xf32> to vector<256x8xf32>
    %c0_53 = arith.constant 0 : index
    %c2_54 = arith.constant 2 : index
    %c0_55 = arith.constant 0 : index
    %39 = vector.load %arg10[%c0_53, %c2_54, %c0_55] : memref<18x18x8xf32, #tpu.memory_space<vmem>>, vector<16x16x8xf32>
    %40 = vector.shape_cast %39 : vector<16x16x8xf32> to vector<256x8xf32>
    %c1_56 = arith.constant 1 : index
    %c0_57 = arith.constant 0 : index
    %c0_58 = arith.constant 0 : index
    %41 = vector.load %arg10[%c1_56, %c0_57, %c0_58] : memref<18x18x8xf32, #tpu.memory_space<vmem>>, vector<16x16x8xf32>
    %42 = vector.shape_cast %41 : vector<16x16x8xf32> to vector<256x8xf32>
    %c1_59 = arith.constant 1 : index
    %c1_60 = arith.constant 1 : index
    %c0_61 = arith.constant 0 : index
    %43 = vector.load %arg10[%c1_59, %c1_60, %c0_61] : memref<18x18x8xf32, #tpu.memory_space<vmem>>, vector<16x16x8xf32>
    %44 = vector.shape_cast %43 : vector<16x16x8xf32> to vector<256x8xf32>
    %c1_62 = arith.constant 1 : index
    %c2_63 = arith.constant 2 : index
    %c0_64 = arith.constant 0 : index
    %45 = vector.load %arg10[%c1_62, %c2_63, %c0_64] : memref<18x18x8xf32, #tpu.memory_space<vmem>>, vector<16x16x8xf32>
    %46 = vector.shape_cast %45 : vector<16x16x8xf32> to vector<256x8xf32>
    %c2_65 = arith.constant 2 : index
    %c0_66 = arith.constant 0 : index
    %c0_67 = arith.constant 0 : index
    %47 = vector.load %arg10[%c2_65, %c0_66, %c0_67] : memref<18x18x8xf32, #tpu.memory_space<vmem>>, vector<16x16x8xf32>
    %48 = vector.shape_cast %47 : vector<16x16x8xf32> to vector<256x8xf32>
    %c2_68 = arith.constant 2 : index
    %c1_69 = arith.constant 1 : index
    %c0_70 = arith.constant 0 : index
    %49 = vector.load %arg10[%c2_68, %c1_69, %c0_70] : memref<18x18x8xf32, #tpu.memory_space<vmem>>, vector<16x16x8xf32>
    %50 = vector.shape_cast %49 : vector<16x16x8xf32> to vector<256x8xf32>
    %c2_71 = arith.constant 2 : index
    %c2_72 = arith.constant 2 : index
    %c0_73 = arith.constant 0 : index
    %51 = vector.load %arg10[%c2_71, %c2_72, %c0_73] : memref<18x18x8xf32, #tpu.memory_space<vmem>>, vector<16x16x8xf32>
    %52 = vector.shape_cast %51 : vector<16x16x8xf32> to vector<256x8xf32>
    %53 = tpu.concatenate %36, %38, %40, %42, %44, %46, %48, %50, %52 in 1 : vector<256x8xf32>, vector<256x8xf32>, vector<256x8xf32>, vector<256x8xf32>, vector<256x8xf32>, vector<256x8xf32>, vector<256x8xf32>, vector<256x8xf32>, vector<256x8xf32> -> vector<256x72xf32>
    %c0_74 = arith.constant 0 : index
    %c0_75 = arith.constant 0 : index
    %54 = vector.load %arg4[%c0_74, %c0_75] : memref<72x256xf32, #tpu.memory_space<vmem>>, vector<72x256xf32>
    %cst_76 = arith.constant dense<0.000000e+00> : vector<256x256xf32>
    %55 = tpu.matmul %53, %54, %cst_76 {dimension_numbers = #tpu.dot_dimension_numbers<[1], [0], [0], [1], [0, 0, 1, 1], [], []>} : vector<256x72xf32>, vector<72x256xf32>, vector<256x256xf32> -> vector<256x256xf32>
    %c0_77 = arith.constant 0 : index
    %c0_78 = arith.constant 0 : index
    %56 = vector.load %arg5[%c0_77, %c0_78] : memref<1x256xf32, #tpu.memory_space<vmem>>, vector<1x256xf32>
    %57 = vector.broadcast %56 : vector<1x256xf32> to vector<256x256xf32>
    %58 = arith.addf %55, %57 : vector<256x256xf32>
    %cst_79 = arith.constant 0.000000e+00 : f32
    %59 = vector.broadcast %cst_79 : f32 to vector<256x256xf32>
    %60 = arith.maximumf %58, %59 : vector<256x256xf32>
    %c0_80 = arith.constant 0 : index
    %c0_81 = arith.constant 0 : index
    %61 = vector.load %arg6[%c0_80, %c0_81] : memref<256x16xf32, #tpu.memory_space<vmem>>, vector<256x16xf32>
    %cst_82 = arith.constant dense<0.000000e+00> : vector<256x16xf32>
    %62 = tpu.matmul %60, %61, %cst_82 {dimension_numbers = #tpu.dot_dimension_numbers<[1], [0], [0], [1], [0, 0, 1, 1], [], []>} : vector<256x256xf32>, vector<256x16xf32>, vector<256x16xf32> -> vector<256x16xf32>
    %c0_83 = arith.constant 0 : index
    %c0_84 = arith.constant 0 : index
    %63 = vector.load %arg7[%c0_83, %c0_84] : memref<1x16xf32, #tpu.memory_space<vmem>>, vector<1x16xf32>
    %64 = vector.broadcast %63 : vector<1x16xf32> to vector<256x16xf32>
    %65 = arith.addf %62, %64 : vector<256x16xf32>
    %66 = tpu.transpose %65, [1, 0] : vector<256x16xf32> -> vector<16x256xf32>
    %c0_85 = arith.constant 0 : index
    %c0_86 = arith.constant 0 : index
    %c0_87 = arith.constant 0 : index
    %67 = vector.load %arg8[%c0_85, %c0_86, %c0_87] : memref<1x16x256xf32, #tpu.memory_space<vmem>>, vector<1x16x256xf32>
    %68 = vector.shape_cast %67 : vector<1x16x256xf32> to vector<16x256xf32>
    %69 = vector.shape_cast %66 : vector<16x256xf32> to vector<1x16x256xf32>
    tpu.vector_store %arg8[%c0_85, %c0_86, %c0_87], %69 {strides = array<i32>} : memref<1x16x256xf32, #tpu.memory_space<vmem>>, vector<1x16x256xf32>,
    return
  }
  func.func @transform_0(%arg0: i32) -> (i32, i32, i32, i32) {
    %c0_i32 = arith.constant 0 : i32
    %c0_i32_0 = arith.constant 0 : i32
    %c0_i32_1 = arith.constant 0 : i32
    %c0_i32_2 = arith.constant 0 : i32
    return %arg0, %c0_i32, %c0_i32_0, %c0_i32_1 : i32, i32, i32, i32
  }
  func.func @transform_1(%arg0: i32) -> (i32, i32) {
    %c0_i32 = arith.constant 0 : i32
    %c0_i32_0 = arith.constant 0 : i32
    %c0_i32_1 = arith.constant 0 : i32
    return %c0_i32, %c0_i32_0 : i32, i32
  }
  func.func @transform_2(%arg0: i32) -> (i32, i32) {
    %c0_i32 = arith.constant 0 : i32
    %c0_i32_0 = arith.constant 0 : i32
    %c0_i32_1 = arith.constant 0 : i32
    return %c0_i32, %c0_i32_0 : i32, i32
  }
  func.func @transform_3(%arg0: i32) -> (i32, i32) {
    %c0_i32 = arith.constant 0 : i32
    %c0_i32_0 = arith.constant 0 : i32
    %c0_i32_1 = arith.constant 0 : i32
    return %c0_i32, %c0_i32_0 : i32, i32
  }
  func.func @transform_4(%arg0: i32) -> (i32, i32) {
    %c0_i32 = arith.constant 0 : i32
    %c0_i32_0 = arith.constant 0 : i32
    %c0_i32_1 = arith.constant 0 : i32
    return %c0_i32, %c0_i32_0 : i32, i32
  }
  func.func @transform_5(%arg0: i32) -> (i32, i32) {
    %c0_i32 = arith.constant 0 : i32
    %c0_i32_0 = arith.constant 0 : i32
    %c0_i32_1 = arith.constant 0 : i32
    return %c0_i32, %c0_i32_0 : i32, i32
  }
  func.func @transform_6(%arg0: i32) -> (i32, i32) {
    %c0_i32 = arith.constant 0 : i32
    %c0_i32_0 = arith.constant 0 : i32
    %c0_i32_1 = arith.constant 0 : i32
    return %c0_i32, %c0_i32_0 : i32, i32
  }
  func.func @transform_7(%arg0: i32) -> (i32, i32, i32) {
    %c0_i32 = arith.constant 0 : i32
    %c0_i32_0 = arith.constant 0 : i32
    %c0_i32_1 = arith.constant 0 : i32
    return %arg0, %c0_i32, %c0_i32_0 : i32, i32, i32
  }
}

module attributes {stable_mosaic.version = 11 : i64} {
  func.func @_bilinear_phase_kernel(%arg0: i32, %arg1: memref<1x16x16x16xf32, #tpu.memory_space<vmem>>, %arg2: memref<16x128x16xf32, #tpu.memory_space<vmem>>, %arg3: memref<16x16x128xf32, #tpu.memory_space<vmem>>, %arg4: memref<1x4x128x128xf32, #tpu.memory_space<vmem>>) attributes {dimension_semantics = [#tpu.dimension_semantics<parallel>], iteration_bounds = array<i64: 2>, scalar_prefetch = 0 : i64, scratch_operands = 0 : i64, tpu.core_type = #tpu.core_type<tc>, window_params = [{transform_indices = @transform_0, window_bounds = array<i64: 1, 16, 16, 16>}, {pipeline_mode = #tpu.pipeline_mode<synchronous>, transform_indices = @transform_1, window_bounds = array<i64: 16, 128, 16>}, {pipeline_mode = #tpu.pipeline_mode<synchronous>, transform_indices = @transform_2, window_bounds = array<i64: 16, 16, 128>}, {transform_indices = @transform_3, window_bounds = array<i64: 1, 4, 128, 128>}]} {
    %c0 = arith.constant 0 : index
    %c0_0 = arith.constant 0 : index
    %c0_1 = arith.constant 0 : index
    %c0_2 = arith.constant 0 : index
    %0 = vector.load %arg1[%c0, %c0_0, %c0_1, %c0_2] : memref<1x16x16x16xf32, #tpu.memory_space<vmem>>, vector<1x16x16x16xf32>
    %1 = vector.shape_cast %0 : vector<1x16x16x16xf32> to vector<16x16x16xf32>
    %c0_3 = arith.constant 0 : index
    %c0_4 = arith.constant 0 : index
    %c0_5 = arith.constant 0 : index
    %2 = vector.load %arg2[%c0_3, %c0_4, %c0_5] : memref<16x128x16xf32, #tpu.memory_space<vmem>>, vector<16x128x16xf32>
    "tpu.trace_start"() <{level = 10 : i32, message = "puh,phw->puw"}> : () -> ()
    %cst = arith.constant dense<0.000000e+00> : vector<16x128x16xf32>
    %3 = tpu.matmul %2, %1, %cst {dimension_numbers = #tpu.dot_dimension_numbers<[2], [1], [1], [2], [0, 0, 0, 1, 1, 2], [0], [0]>} : vector<16x128x16xf32>, vector<16x16x16xf32>, vector<16x128x16xf32> -> vector<16x128x16xf32>
    "tpu.trace_stop"() : () -> ()
    %c0_6 = arith.constant 0 : index
    %c0_7 = arith.constant 0 : index
    %c0_8 = arith.constant 0 : index
    %4 = vector.load %arg3[%c0_6, %c0_7, %c0_8] : memref<16x16x128xf32, #tpu.memory_space<vmem>>, vector<16x16x128xf32>
    "tpu.trace_start"() <{level = 10 : i32, message = "puw,pwv->puv"}> : () -> ()
    %cst_9 = arith.constant dense<0.000000e+00> : vector<16x128x128xf32>
    %5 = tpu.matmul %3, %4, %cst_9 {dimension_numbers = #tpu.dot_dimension_numbers<[2], [1], [1], [2], [0, 0, 0, 1, 1, 2], [0], [0]>} : vector<16x128x16xf32>, vector<16x16x128xf32>, vector<16x128x128xf32> -> vector<16x128x128xf32>
    "tpu.trace_stop"() : () -> ()
    %6 = vector.extract_strided_slice %5 {offsets = [0, 0, 0], sizes = [4, 128, 128], strides = [1, 1, 1]} : vector<16x128x128xf32> to vector<4x128x128xf32>
    %7 = vector.extract_strided_slice %5 {offsets = [4, 0, 0], sizes = [4, 128, 128], strides = [1, 1, 1]} : vector<16x128x128xf32> to vector<4x128x128xf32>
    %8 = arith.addf %6, %7 : vector<4x128x128xf32>
    %9 = vector.extract_strided_slice %5 {offsets = [8, 0, 0], sizes = [4, 128, 128], strides = [1, 1, 1]} : vector<16x128x128xf32> to vector<4x128x128xf32>
    %10 = arith.addf %8, %9 : vector<4x128x128xf32>
    %11 = vector.extract_strided_slice %5 {offsets = [12, 0, 0], sizes = [4, 128, 128], strides = [1, 1, 1]} : vector<16x128x128xf32> to vector<4x128x128xf32>
    %12 = arith.addf %10, %11 : vector<4x128x128xf32>
    %c0_10 = arith.constant 0 : index
    %c0_11 = arith.constant 0 : index
    %c0_12 = arith.constant 0 : index
    %c0_13 = arith.constant 0 : index
    %13 = vector.load %arg4[%c0_10, %c0_11, %c0_12, %c0_13] : memref<1x4x128x128xf32, #tpu.memory_space<vmem>>, vector<1x4x128x128xf32>
    %14 = vector.shape_cast %13 : vector<1x4x128x128xf32> to vector<4x128x128xf32>
    %15 = vector.shape_cast %12 : vector<4x128x128xf32> to vector<1x4x128x128xf32>
    tpu.vector_store %arg4[%c0_10, %c0_11, %c0_12, %c0_13], %15 {strides = array<i32>} : memref<1x4x128x128xf32, #tpu.memory_space<vmem>>, vector<1x4x128x128xf32>,
    return
  }
  func.func @transform_0(%arg0: i32) -> (i32, i32, i32, i32) {
    %c0_i32 = arith.constant 0 : i32
    %c0_i32_0 = arith.constant 0 : i32
    %c0_i32_1 = arith.constant 0 : i32
    %c0_i32_2 = arith.constant 0 : i32
    return %arg0, %c0_i32, %c0_i32_0, %c0_i32_1 : i32, i32, i32, i32
  }
  func.func @transform_1(%arg0: i32) -> (i32, i32, i32) {
    %c0_i32 = arith.constant 0 : i32
    %c0_i32_0 = arith.constant 0 : i32
    %c0_i32_1 = arith.constant 0 : i32
    %c0_i32_2 = arith.constant 0 : i32
    return %c0_i32, %c0_i32_0, %c0_i32_1 : i32, i32, i32
  }
  func.func @transform_2(%arg0: i32) -> (i32, i32, i32) {
    %c0_i32 = arith.constant 0 : i32
    %c0_i32_0 = arith.constant 0 : i32
    %c0_i32_1 = arith.constant 0 : i32
    %c0_i32_2 = arith.constant 0 : i32
    return %c0_i32, %c0_i32_0, %c0_i32_1 : i32, i32, i32
  }
  func.func @transform_3(%arg0: i32) -> (i32, i32, i32, i32) {
    %c0_i32 = arith.constant 0 : i32
    %c0_i32_0 = arith.constant 0 : i32
    %c0_i32_1 = arith.constant 0 : i32
    %c0_i32_2 = arith.constant 0 : i32
    return %arg0, %c0_i32, %c0_i32_0, %c0_i32_1 : i32, i32, i32, i32
  }
}

</mosaic_0001>

<llo_original>
// kernel: segment_head_forward.3
$region0: #{segment_head_forward.3}
  #allocation0 [shape = 'u32[]', space=smem, size = 0x4, offset = 0x4, fixed_abs, tag = 'smem constant byte address 0x4 - core index']
  #allocation1 [shape = 'u32[72,128]{1,0:T(1,128)}', space=vmem, size = 0x9000, scoped, tag = 'internal scratch']
  %s0 = inlined_call_operand.vmem [shape: f32[2,16,16,16], index: 0, kind: input, shape index: {}]
  %s1 = inlined_call_operand.vmem [shape: f32[16,128,16], index: 1, kind: input, shape index: {}]
  %s2 = inlined_call_operand.vmem [shape: f32[16,16,128], index: 2, kind: input, shape index: {}]
  %s3 = inlined_call_operand.hbm [shape: f32[2,4,128,128], index: 3, kind: output, shape index: {}]
  %s4 = sld [smem:[#allocation0]]
  $region45: #{segment_head_forward.3} parent=0
    _
  %s6 = ssub.s32 1, %s4
  %s7 = scalar_select 0, %s6, %s4
  $region1: #{segment_head_forward.3} parent=0
    #allocation2 [shape = 'u8[524288]{0}', space=vmem, size = 0x80000, scoped, tag = 'output window, operand 0']
    #allocation3 [shape = 's32[2]{0}', space=sflag, size = 0x8, scoped, tag = 'scoped memory for segment_head_forward.3']
    %8 = vsyncpa [#allocation3], 0
    %s9 = scalar_lea.sflag [#allocation3], 1
    %10 = vsyncpa %s9, 0
    loop: start=0, step=1, limit=4
    $region2: #{segment_head_forward.3} parent=1 // loop_pre_header
      _
    $region3: #{segment_head_forward.3} parent=1 // loop_header
      %s12 = sphi 0, %s16
      %p13 = scmp.ge.s32.totalorder %s12, 4
      %s22 = sphi 0, %s24
      %s25 = sphi 0, %s22
      %s26 = sphi 0, %s25
      %s42 = sphi 0, %s26
      %s46 = sphi 0, %s46
      %s48 = sphi 0, %s46
      %s49 = sphi 0, %s48
      %s63 = sphi 0, %s49
      %s67 = sphi 0, %s67
      %s69 = sphi 0, %s67
      %s70 = sphi 0, %s69
      %s84 = sphi 0, %s70
      %s90 = sphi 0, %s92
      %s93 = sphi 0, %s90
      %s94 = sphi 0, %s93
      %s110 = sphi 0, %s94
    $region4: #{segment_head_forward.3} parent=1 // loop_header_branch
      %15 = sbr.rel (%p13) target = $region8
    $region5: #{segment_head_forward.3} parent=1 // loop_body
      %s17 = ssub.s32 %s12, 1
      %s18 = ssub.s32 %s12, 2
      %s19 = sadd.s32 %s12, 1
      %s20 = ssub.s32 %s12, %s19
      %p21 = scmp.eq.s32.totalorder %s20, 0
      %s23 = sadd.s32 %s22, 1
      %s24 = scalar_select %p21, %s22, %s23
      %p27 = pneg %p21
      %p28 = scmp.eq.s32.totalorder %s12, 1
      %p29 = por %p27, %p28
      %p30 = scmp.ne.s32.totalorder %s22, %s25
      %p31 = scmp.eq.s32.totalorder %s12, 0
      %p32 = por %p30, %p31
      %p33 = scmp.ne.s32.totalorder %s22, %s25
      %p34 = scmp.eq.s32.totalorder %s17, 1
      %p35 = por %p33, %p34
      %p36 = scmp.ne.s32.totalorder %s25, %s26
      %p37 = scmp.eq.s32.totalorder %s17, 0
      %p38 = por %p36, %p37
      %p39 = scmp.ne.s32.totalorder %s25, %s26
      %p40 = scmp.eq.s32.totalorder %s18, 1
      %p41 = por %p39, %p40
      %p43 = scmp.ne.s32.totalorder %s26, %s42
      %p44 = scmp.eq.s32.totalorder %s18, 0
      %p45 = por %p43, %p44
      %s47 = sadd.s32 %s46, 1
      %p50 = scmp.eq.s32.totalorder %s12, 1
      %p51 = scmp.ne.s32.totalorder %s46, %s48
      %p52 = scmp.eq.s32.totalorder %s12, 0
      %p53 = por %p51, %p52
      %p54 = scmp.ne.s32.totalorder %s46, %s48
      %p55 = scmp.eq.s32.totalorder %s17, 1
      %p56 = por %p54, %p55
      %p57 = scmp.ne.s32.totalorder %s48, %s49
      %p58 = scmp.eq.s32.totalorder %s17, 0
      %p59 = por %p57, %p58
      %p60 = scmp.ne.s32.totalorder %s48, %s49
      %p61 = scmp.eq.s32.totalorder %s18, 1
      %p62 = por %p60, %p61
      %p64 = scmp.ne.s32.totalorder %s49, %s63
      %p65 = scmp.eq.s32.totalorder %s18, 0
      %p66 = por %p64, %p65
      %s68 = sadd.s32 %s67, 1
      %p71 = scmp.eq.s32.totalorder %s12, 1
      %p72 = scmp.ne.s32.totalorder %s67, %s69
      %p73 = scmp.eq.s32.totalorder %s12, 0
      %p74 = por %p72, %p73
      %p75 = scmp.ne.s32.totalorder %s67, %s69
      %p76 = scmp.eq.s32.totalorder %s17, 1
      %p77 = por %p75, %p76
      %p78 = scmp.ne.s32.totalorder %s69, %s70
      %p79 = scmp.eq.s32.totalorder %s17, 0
      %p80 = por %p78, %p79
      %p81 = scmp.ne.s32.totalorder %s69, %s70
      %p82 = scmp.eq.s32.totalorder %s18, 1
      %p83 = por %p81, %p82
      %p85 = scmp.ne.s32.totalorder %s70, %s84
      %p86 = scmp.eq.s32.totalorder %s18, 0
      %p87 = por %p85, %p86
      %s88 = ssub.s32 %s12, %s19
      %p89 = scmp.eq.s32.totalorder %s88, 0
      %s91 = sadd.s32 %s90, 1
      %s92 = scalar_select %p89, %s90, %s91
      %p95 = pneg %p89
      %p96 = scmp.eq.s32.totalorder %s12, 1
      %p97 = por %p95, %p96
      %p98 = scmp.ne.s32.totalorder %s90, %s93
      %p99 = scmp.eq.s32.totalorder %s12, 0
      %p100 = por %p98, %p99
      %p101 = scmp.ne.s32.totalorder %s90, %s93
      %p102 = scmp.eq.s32.totalorder %s17, 1
      %p103 = por %p101, %p102
      %p104 = scmp.ne.s32.totalorder %s93, %s94
      %p105 = scmp.eq.s32.totalorder %s17, 0
      %p106 = por %p104, %p105
      %p107 = scmp.ne.s32.totalorder %s93, %s94
      %p108 = scmp.eq.s32.totalorder %s18, 1
      %p109 = por %p107, %p108
      %p111 = scmp.ne.s32.totalorder %s94, %s110
      %p112 = scmp.eq.s32.totalorder %s18, 0
      %p113 = por %p111, %p112
      %p114 = scmp.le.s32.totalorder 1, %s12
      %p115 = scmp.lt.s32.totalorder %s12, 3
      %p116 = pnand %p114, %p115
      %p117 = pneg %p116
      // Predicated region
      $region9: #{segment_head_forward.3} parent=5 // pred_check
        _
      $region10: #{segment_head_forward.3} parent=5 // pred_check_branch
        %119 = sbr.rel (%p116) target = $region12
      $region11: #{segment_head_forward.3} parent=5 // pred_region
        %s120 = ssub.s32 %s12, 1
        // Predicated region
        $region13: #{segment_head_forward.3} parent=11 // pred_check
          %p121 = pneg %p59
        $region14: #{segment_head_forward.3} parent=11 // pred_check_branch
          %123 = sbr.rel (%p121) target = $region16
        $region15: #{segment_head_forward.3} parent=11 // pred_region
          _
        $region16: #{segment_head_forward.3} parent=11 // pred_fallthru
          _
        // Predicated region
        $region17: #{segment_head_forward.3} parent=11 // pred_check
          %p124 = pneg %p80
        $region18: #{segment_head_forward.3} parent=11 // pred_check_branch
          %126 = sbr.rel (%p124) target = $region20
        $region19: #{segment_head_forward.3} parent=11 // pred_region
          _
        $region20: #{segment_head_forward.3} parent=11 // pred_fallthru
          _
      $region12: #{segment_head_forward.3} parent=5 // pred_fallthru
        _
      %p127 = scmp.lt.s32.totalorder %s12, 2
      // Predicated region
      $region21: #{segment_head_forward.3} parent=5 // pred_check
        %p128 = pneg %p127
      $region22: #{segment_head_forward.3} parent=5 // pred_check_branch
        %130 = sbr.rel (%p128) target = $region24
      $region23: #{segment_head_forward.3} parent=5 // pred_region
        // Predicated region
        $region25: #{segment_head_forward.3} parent=23 // pred_check
          %p131 = pneg %p32
        $region26: #{segment_head_forward.3} parent=23 // pred_check_branch
          %133 = sbr.rel (%p131) target = $region28
        $region27: #{segment_head_forward.3} parent=23 // pred_region
          %p134 = scmp.lt.s32.totalorder %s12, 1
          %s135 = scalar_select %p134, %s12, 1
          %s136 = smul.addr %s135, 32
          %s137 = smul.addr %s136, 8
          %s138 = scalar_lea.vmem %s0, %s137
        $region28: #{segment_head_forward.3} parent=23 // pred_fallthru
          _
      $region24: #{segment_head_forward.3} parent=5 // pred_fallthru
        _
      %p139 = scmp.le.s32.totalorder 1, %s12
      %p140 = scmp.lt.s32.totalorder %s12, 3
      %p141 = pnand %p139, %p140
      %p142 = pneg %p141
      // Predicated region
      $region29: #{segment_head_forward.3} parent=5 // pred_check
        _
      $region30: #{segment_head_forward.3} parent=5 // pred_check_branch
        %144 = sbr.rel (%p141) target = $region32
      $region31: #{segment_head_forward.3} parent=5 // pred_region
        %s145 = ssub.s32 %s12, 1
        %p146 = scmp.lt.s32.totalorder %s17, 1
        %s147 = scalar_select %p146, %s17, 1
        %s148 = smul.addr %s147, 32
        %s149 = smul.addr %s148, 8
        %s150 = scalar_lea.vmem %s0, %s149
        %p151 = pneg %p38
        %p152 = pneg %p35
        %p153 = pneg %p59
        %p154 = pneg %p56
        %p155 = pneg %p80
        %p156 = pneg %p77
        %p157 = pneg %p106
        %p158 = pneg %p103
        %s159 = sand.u32 %s93, 1
        %s160 = scalar_lea.sflag [#allocation3], %s159
        %s161 = sand.u32 %s93, 1
        %s162 = smul.addr %s161, 512
        %s163 = scalar_lea.vmem [#allocation2], %s162
        %p164 = scmp.lt.s32.totalorder %s17, 1
        %s165 = scalar_select %p164, %s17, 1
        %s166 = smul.addr %s165, 32
        %s167 = smul.addr %s166, 8
        %s168 = scalar_lea.vmem %s0, %s167
        %v169 = vld [vmem:[%s168] sm:$0xff]
        %v170 = vld [vmem:[%s168 + $0x8] sm:$0xff]
        %v171 = vld [vmem:[%s168 + $0x10] sm:$0xff]
        %v172 = vld [vmem:[%s168 + $0x18] sm:$0xff]
        %v173 = vld [vmem:[%s168 + $0x20] sm:$0xff]
        %v174 = vld [vmem:[%s168 + $0x28] sm:$0xff]
        %v175 = vld [vmem:[%s168 + $0x30] sm:$0xff]
        %v176 = vld [vmem:[%s168 + $0x38] sm:$0xff]
        %v177 = vld [vmem:[%s168 + $0x40] sm:$0xff]
        %v178 = vld [vmem:[%s168 + $0x48] sm:$0xff]
        %v179 = vld [vmem:[%s168 + $0x50] sm:$0xff]
        %v180 = vld [vmem:[%s168 + $0x58] sm:$0xff]
        %v181 = vld [vmem:[%s168 + $0x60] sm:$0xff]
        %v182 = vld [vmem:[%s168 + $0x68] sm:$0xff]
        %v183 = vld [vmem:[%s168 + $0x70] sm:$0xff]
        %v184 = vld [vmem:[%s168 + $0x78] sm:$0xff]
        %v185 = vld [vmem:[%s168 + $0x80] sm:$0xff]
        %v186 = vld [vmem:[%s168 + $0x88] sm:$0xff]
        %v187 = vld [vmem:[%s168 + $0x90] sm:$0xff]
        %v188 = vld [vmem:[%s168 + $0x98] sm:$0xff]
        %v189 = vld [vmem:[%s168 + $0xa0] sm:$0xff]
        %v190 = vld [vmem:[%s168 + $0xa8] sm:$0xff]
        %v191 = vld [vmem:[%s168 + $0xb0] sm:$0xff]
        %v192 = vld [vmem:[%s168 + $0xb8] sm:$0xff]
        %v193 = vld [vmem:[%s168 + $0xc0] sm:$0xff]
        %v194 = vld [vmem:[%s168 + $0xc8] sm:$0xff]
        %v195 = vld [vmem:[%s168 + $0xd0] sm:$0xff]
        %v196 = vld [vmem:[%s168 + $0xd8] sm:$0xff]
        %v197 = vld [vmem:[%s168 + $0xe0] sm:$0xff]
        %v198 = vld [vmem:[%s168 + $0xe8] sm:$0xff]
        %v199 = vld [vmem:[%s168 + $0xf0] sm:$0xff]
        %v200 = vld [vmem:[%s168 + $0xf8] sm:$0xff]
        %v201 = vld [vmem:[%s1] sm:$0xff]
        %v202 = vld [vmem:[%s1 + $0x8] sm:$0xff]
        %v203 = vld [vmem:[%s1 + $0x10] sm:$0xff]
        %v204 = vld [vmem:[%s1 + $0x18] sm:$0xff]
        %v205 = vld [vmem:[%s1 + $0x20] sm:$0xff]
        %v206 = vld [vmem:[%s1 + $0x28] sm:$0xff]
        %v207 = vld [vmem:[%s1 + $0x30] sm:$0xff]
        %v208 = vld [vmem:[%s1 + $0x38] sm:$0xff]
        %v209 = vld [vmem:[%s1 + $0x40] sm:$0xff]
        %v210 = vld [vmem:[%s1 + $0x48] sm:$0xff]
        %v211 = vld [vmem:[%s1 + $0x50] sm:$0xff]
        %v212 = vld [vmem:[%s1 + $0x58] sm:$0xff]
        %v213 = vld [vmem:[%s1 + $0x60] sm:$0xff]
        %v214 = vld [vmem:[%s1 + $0x68] sm:$0xff]
        %v215 = vld [vmem:[%s1 + $0x70] sm:$0xff]
        %v216 = vld [vmem:[%s1 + $0x78] sm:$0xff]
        %v217 = vld [vmem:[%s1 + $0x80] sm:$0xff]
        %v218 = vld [vmem:[%s1 + $0x88] sm:$0xff]
        %v219 = vld [vmem:[%s1 + $0x90] sm:$0xff]
        %v220 = vld [vmem:[%s1 + $0x98] sm:$0xff]
        %v221 = vld [vmem:[%s1 + $0xa0] sm:$0xff]
        %v222 = vld [vmem:[%s1 + $0xa8] sm:$0xff]
        %v223 = vld [vmem:[%s1 + $0xb0] sm:$0xff]
        %v224 = vld [vmem:[%s1 + $0xb8] sm:$0xff]
        %v225 = vld [vmem:[%s1 + $0xc0] sm:$0xff]
        %v226 = vld [vmem:[%s1 + $0xc8] sm:$0xff]
        %v227 = vld [vmem:[%s1 + $0xd0] sm:$0xff]
        %v228 = vld [vmem:[%s1 + $0xd8] sm:$0xff]
        %v229 = vld [vmem:[%s1 + $0xe0] sm:$0xff]
        %v230 = vld [vmem:[%s1 + $0xe8] sm:$0xff]
        %v231 = vld [vmem:[%s1 + $0xf0] sm:$0xff]
        %v232 = vld [vmem:[%s1 + $0xf8] sm:$0xff]
        %v233 = vld [vmem:[%s1 + $0x100] sm:$0xff]
        %v234 = vld [vmem:[%s1 + $0x108] sm:$0xff]
        %v235 = vld [vmem:[%s1 + $0x110] sm:$0xff]
        %v236 = vld [vmem:[%s1 + $0x118] sm:$0xff]
        %v237 = vld [vmem:[%s1 + $0x120] sm:$0xff]
        %v238 = vld [vmem:[%s1 + $0x128] sm:$0xff]
        %v239 = vld [vmem:[%s1 + $0x130] sm:$0xff]
        %v240 = vld [vmem:[%s1 + $0x138] sm:$0xff]
        %v241 = vld [vmem:[%s1 + $0x140] sm:$0xff]
        %v242 = vld [vmem:[%s1 + $0x148] sm:$0xff]
        %v243 = vld [vmem:[%s1 + $0x150] sm:$0xff]
        %v244 = vld [vmem:[%s1 + $0x158] sm:$0xff]
        %v245 = vld [vmem:[%s1 + $0x160] sm:$0xff]
        %v246 = vld [vmem:[%s1 + $0x168] sm:$0xff]
        %v247 = vld [vmem:[%s1 + $0x170] sm:$0xff]
        %v248 = vld [vmem:[%s1 + $0x178] sm:$0xff]
        %v249 = vld [vmem:[%s1 + $0x180] sm:$0xff]
        %v250 = vld [vmem:[%s1 + $0x188] sm:$0xff]
        %v251 = vld [vmem:[%s1 + $0x190] sm:$0xff]
        %v252 = vld [vmem:[%s1 + $0x198] sm:$0xff]
        %v253 = vld [vmem:[%s1 + $0x1a0] sm:$0xff]
        %v254 = vld [vmem:[%s1 + $0x1a8] sm:$0xff]
        %v255 = vld [vmem:[%s1 + $0x1b0] sm:$0xff]
        %v256 = vld [vmem:[%s1 + $0x1b8] sm:$0xff]
        %v257 = vld [vmem:[%s1 + $0x1c0] sm:$0xff]
        %v258 = vld [vmem:[%s1 + $0x1c8] sm:$0xff]
        %v259 = vld [vmem:[%s1 + $0x1d0] sm:$0xff]
        %v260 = vld [vmem:[%s1 + $0x1d8] sm:$0xff]
        %v261 = vld [vmem:[%s1 + $0x1e0] sm:$0xff]
        %v262 = vld [vmem:[%s1 + $0x1e8] sm:$0xff]
        %v263 = vld [vmem:[%s1 + $0x1f0] sm:$0xff]
        %v264 = vld [vmem:[%s1 + $0x1f8] sm:$0xff]
        %v265 = vld [vmem:[%s1 + $0x200] sm:$0xff]
        %v266 = vld [vmem:[%s1 + $0x208] sm:$0xff]
        %v267 = vld [vmem:[%s1 + $0x210] sm:$0xff]
        %v268 = vld [vmem:[%s1 + $0x218] sm:$0xff]
        %v269 = vld [vmem:[%s1 + $0x220] sm:$0xff]
        %v270 = vld [vmem:[%s1 + $0x228] sm:$0xff]
        %v271 = vld [vmem:[%s1 + $0x230] sm:$0xff]
        %v272 = vld [vmem:[%s1 + $0x238] sm:$0xff]
        %v273 = vld [vmem:[%s1 + $0x240] sm:$0xff]
        %v274 = vld [vmem:[%s1 + $0x248] sm:$0xff]
        %v275 = vld [vmem:[%s1 + $0x250] sm:$0xff]
        %v276 = vld [vmem:[%s1 + $0x258] sm:$0xff]
        %v277 = vld [vmem:[%s1 + $0x260] sm:$0xff]
        %v278 = vld [vmem:[%s1 + $0x268] sm:$0xff]
        %v279 = vld [vmem:[%s1 + $0x270] sm:$0xff]
        %v280 = vld [vmem:[%s1 + $0x278] sm:$0xff]
        %v281 = vld [vmem:[%s1 + $0x280] sm:$0xff]
        %v282 = vld [vmem:[%s1 + $0x288] sm:$0xff]
        %v283 = vld [vmem:[%s1 + $0x290] sm:$0xff]
        %v284 = vld [vmem:[%s1 + $0x298] sm:$0xff]
        %v285 = vld [vmem:[%s1 + $0x2a0] sm:$0xff]
        %v286 = vld [vmem:[%s1 + $0x2a8] sm:$0xff]
        %v287 = vld [vmem:[%s1 + $0x2b0] sm:$0xff]
        %v288 = vld [vmem:[%s1 + $0x2b8] sm:$0xff]
        %v289 = vld [vmem:[%s1 + $0x2c0] sm:$0xff]
        %v290 = vld [vmem:[%s1 + $0x2c8] sm:$0xff]
        %v291 = vld [vmem:[%s1 + $0x2d0] sm:$0xff]
        %v292 = vld [vmem:[%s1 + $0x2d8] sm:$0xff]
        %v293 = vld [vmem:[%s1 + $0x2e0] sm:$0xff]
        %v294 = vld [vmem:[%s1 + $0x2e8] sm:$0xff]
        %v295 = vld [vmem:[%s1 + $0x2f0] sm:$0xff]
        %v296 = vld [vmem:[%s1 + $0x2f8] sm:$0xff]
        %v297 = vld [vmem:[%s1 + $0x300] sm:$0xff]
        %v298 = vld [vmem:[%s1 + $0x308] sm:$0xff]
        %v299 = vld [vmem:[%s1 + $0x310] sm:$0xff]
        %v300 = vld [vmem:[%s1 + $0x318] sm:$0xff]
        %v301 = vld [vmem:[%s1 + $0x320] sm:$0xff]
        %v302 = vld [vmem:[%s1 + $0x328] sm:$0xff]
        %v303 = vld [vmem:[%s1 + $0x330] sm:$0xff]
        %v304 = vld [vmem:[%s1 + $0x338] sm:$0xff]
        %v305 = vld [vmem:[%s1 + $0x340] sm:$0xff]
        %v306 = vld [vmem:[%s1 + $0x348] sm:$0xff]
        %v307 = vld [vmem:[%s1 + $0x350] sm:$0xff]
        %v308 = vld [vmem:[%s1 + $0x358] sm:$0xff]
        %v309 = vld [vmem:[%s1 + $0x360] sm:$0xff]
        %v310 = vld [vmem:[%s1 + $0x368] sm:$0xff]
        %v311 = vld [vmem:[%s1 + $0x370] sm:$0xff]
        %v312 = vld [vmem:[%s1 + $0x378] sm:$0xff]
        %v313 = vld [vmem:[%s1 + $0x380] sm:$0xff]
        %v314 = vld [vmem:[%s1 + $0x388] sm:$0xff]
        %v315 = vld [vmem:[%s1 + $0x390] sm:$0xff]
        %v316 = vld [vmem:[%s1 + $0x398] sm:$0xff]
        %v317 = vld [vmem:[%s1 + $0x3a0] sm:$0xff]
        %v318 = vld [vmem:[%s1 + $0x3a8] sm:$0xff]
        %v319 = vld [vmem:[%s1 + $0x3b0] sm:$0xff]
        %v320 = vld [vmem:[%s1 + $0x3b8] sm:$0xff]
        %v321 = vld [vmem:[%s1 + $0x3c0] sm:$0xff]
        %v322 = vld [vmem:[%s1 + $0x3c8] sm:$0xff]
        %v323 = vld [vmem:[%s1 + $0x3d0] sm:$0xff]
        %v324 = vld [vmem:[%s1 + $0x3d8] sm:$0xff]
        %v325 = vld [vmem:[%s1 + $0x3e0] sm:$0xff]
        %v326 = vld [vmem:[%s1 + $0x3e8] sm:$0xff]
        %v327 = vld [vmem:[%s1 + $0x3f0] sm:$0xff]
        %v328 = vld [vmem:[%s1 + $0x3f8] sm:$0xff]
        %v329 = vld [vmem:[%s1 + $0x400] sm:$0xff]
        %v330 = vld [vmem:[%s1 + $0x408] sm:$0xff]
        %v331 = vld [vmem:[%s1 + $0x410] sm:$0xff]
        %v332 = vld [vmem:[%s1 + $0x418] sm:$0xff]
        %v333 = vld [vmem:[%s1 + $0x420] sm:$0xff]
        %v334 = vld [vmem:[%s1 + $0x428] sm:$0xff]
        %v335 = vld [vmem:[%s1 + $0x430] sm:$0xff]
        %v336 = vld [vmem:[%s1 + $0x438] sm:$0xff]
        %v337 = vld [vmem:[%s1 + $0x440] sm:$0xff]
        %v338 = vld [vmem:[%s1 + $0x448] sm:$0xff]
        %v339 = vld [vmem:[%s1 + $0x450] sm:$0xff]
        %v340 = vld [vmem:[%s1 + $0x458] sm:$0xff]
        %v341 = vld [vmem:[%s1 + $0x460] sm:$0xff]
        %v342 = vld [vmem:[%s1 + $0x468] sm:$0xff]
        %v343 = vld [vmem:[%s1 + $0x470] sm:$0xff]
        %v344 = vld [vmem:[%s1 + $0x478] sm:$0xff]
        %v345 = vld [vmem:[%s1 + $0x480] sm:$0xff]
        %v346 = vld [vmem:[%s1 + $0x488] sm:$0xff]
        %v347 = vld [vmem:[%s1 + $0x490] sm:$0xff]
        %v348 = vld [vmem:[%s1 + $0x498] sm:$0xff]
        %v349 = vld [vmem:[%s1 + $0x4a0] sm:$0xff]
        %v350 = vld [vmem:[%s1 + $0x4a8] sm:$0xff]
        %v351 = vld [vmem:[%s1 + $0x4b0] sm:$0xff]
        %v352 = vld [vmem:[%s1 + $0x4b8] sm:$0xff]
        %v353 = vld [vmem:[%s1 + $0x4c0] sm:$0xff]
        %v354 = vld [vmem:[%s1 + $0x4c8] sm:$0xff]
        %v355 = vld [vmem:[%s1 + $0x4d0] sm:$0xff]
        %v356 = vld [vmem:[%s1 + $0x4d8] sm:$0xff]
        %v357 = vld [vmem:[%s1 + $0x4e0] sm:$0xff]
        %v358 = vld [vmem:[%s1 + $0x4e8] sm:$0xff]
        %v359 = vld [vmem:[%s1 + $0x4f0] sm:$0xff]
        %v360 = vld [vmem:[%s1 + $0x4f8] sm:$0xff]
        %v361 = vld [vmem:[%s1 + $0x500] sm:$0xff]
        %v362 = vld [vmem:[%s1 + $0x508] sm:$0xff]
        %v363 = vld [vmem:[%s1 + $0x510] sm:$0xff]
        %v364 = vld [vmem:[%s1 + $0x518] sm:$0xff]
        %v365 = vld [vmem:[%s1 + $0x520] sm:$0xff]
        %v366 = vld [vmem:[%s1 + $0x528] sm:$0xff]
        %v367 = vld [vmem:[%s1 + $0x530] sm:$0xff]
        %v368 = vld [vmem:[%s1 + $0x538] sm:$0xff]
        %v369 = vld [vmem:[%s1 + $0x540] sm:$0xff]
        %v370 = vld [vmem:[%s1 + $0x548] sm:$0xff]
        %v371 = vld [vmem:[%s1 + $0x550] sm:$0xff]
        %v372 = vld [vmem:[%s1 + $0x558] sm:$0xff]
        %v373 = vld [vmem:[%s1 + $0x560] sm:$0xff]
        %v374 = vld [vmem:[%s1 + $0x568] sm:$0xff]
        %v375 = vld [vmem:[%s1 + $0x570] sm:$0xff]
        %v376 = vld [vmem:[%s1 + $0x578] sm:$0xff]
        %v377 = vld [vmem:[%s1 + $0x580] sm:$0xff]
        %v378 = vld [vmem:[%s1 + $0x588] sm:$0xff]
        %v379 = vld [vmem:[%s1 + $0x590] sm:$0xff]
        %v380 = vld [vmem:[%s1 + $0x598] sm:$0xff]
        %v381 = vld [vmem:[%s1 + $0x5a0] sm:$0xff]
        %v382 = vld [vmem:[%s1 + $0x5a8] sm:$0xff]
        %v383 = vld [vmem:[%s1 + $0x5b0] sm:$0xff]
        %v384 = vld [vmem:[%s1 + $0x5b8] sm:$0xff]
        %v385 = vld [vmem:[%s1 + $0x5c0] sm:$0xff]
        %v386 = vld [vmem:[%s1 + $0x5c8] sm:$0xff]
        %v387 = vld [vmem:[%s1 + $0x5d0] sm:$0xff]
        %v388 = vld [vmem:[%s1 + $0x5d8] sm:$0xff]
        %v389 = vld [vmem:[%s1 + $0x5e0] sm:$0xff]
        %v390 = vld [vmem:[%s1 + $0x5e8] sm:$0xff]
        %v391 = vld [vmem:[%s1 + $0x5f0] sm:$0xff]
        %v392 = vld [vmem:[%s1 + $0x5f8] sm:$0xff]
        %v393 = vld [vmem:[%s1 + $0x600] sm:$0xff]
        %v394 = vld [vmem:[%s1 + $0x608] sm:$0xff]
        %v395 = vld [vmem:[%s1 + $0x610] sm:$0xff]
        %v396 = vld [vmem:[%s1 + $0x618] sm:$0xff]
        %v397 = vld [vmem:[%s1 + $0x620] sm:$0xff]
        %v398 = vld [vmem:[%s1 + $0x628] sm:$0xff]
        %v399 = vld [vmem:[%s1 + $0x630] sm:$0xff]
        %v400 = vld [vmem:[%s1 + $0x638] sm:$0xff]
        %v401 = vld [vmem:[%s1 + $0x640] sm:$0xff]
        %v402 = vld [vmem:[%s1 + $0x648] sm:$0xff]
        %v403 = vld [vmem:[%s1 + $0x650] sm:$0xff]
        %v404 = vld [vmem:[%s1 + $0x658] sm:$0xff]
        %v405 = vld [vmem:[%s1 + $0x660] sm:$0xff]
        %v406 = vld [vmem:[%s1 + $0x668] sm:$0xff]
        %v407 = vld [vmem:[%s1 + $0x670] sm:$0xff]
        %v408 = vld [vmem:[%s1 + $0x678] sm:$0xff]
        %v409 = vld [vmem:[%s1 + $0x680] sm:$0xff]
        %v410 = vld [vmem:[%s1 + $0x688] sm:$0xff]
        %v411 = vld [vmem:[%s1 + $0x690] sm:$0xff]
        %v412 = vld [vmem:[%s1 + $0x698] sm:$0xff]
        %v413 = vld [vmem:[%s1 + $0x6a0] sm:$0xff]
        %v414 = vld [vmem:[%s1 + $0x6a8] sm:$0xff]
        %v415 = vld [vmem:[%s1 + $0x6b0] sm:$0xff]
        %v416 = vld [vmem:[%s1 + $0x6b8] sm:$0xff]
        %v417 = vld [vmem:[%s1 + $0x6c0] sm:$0xff]
        %v418 = vld [vmem:[%s1 + $0x6c8] sm:$0xff]
        %v419 = vld [vmem:[%s1 + $0x6d0] sm:$0xff]
        %v420 = vld [vmem:[%s1 + $0x6d8] sm:$0xff]
        %v421 = vld [vmem:[%s1 + $0x6e0] sm:$0xff]
        %v422 = vld [vmem:[%s1 + $0x6e8] sm:$0xff]
        %v423 = vld [vmem:[%s1 + $0x6f0] sm:$0xff]
        %v424 = vld [vmem:[%s1 + $0x6f8] sm:$0xff]
        %v425 = vld [vmem:[%s1 + $0x700] sm:$0xff]
        %v426 = vld [vmem:[%s1 + $0x708] sm:$0xff]
        %v427 = vld [vmem:[%s1 + $0x710] sm:$0xff]
        %v428 = vld [vmem:[%s1 + $0x718] sm:$0xff]
        %v429 = vld [vmem:[%s1 + $0x720] sm:$0xff]
        %v430 = vld [vmem:[%s1 + $0x728] sm:$0xff]
        %v431 = vld [vmem:[%s1 + $0x730] sm:$0xff]
        %v432 = vld [vmem:[%s1 + $0x738] sm:$0xff]
        %v433 = vld [vmem:[%s1 + $0x740] sm:$0xff]
        %v434 = vld [vmem:[%s1 + $0x748] sm:$0xff]
        %v435 = vld [vmem:[%s1 + $0x750] sm:$0xff]
        %v436 = vld [vmem:[%s1 + $0x758] sm:$0xff]
        %v437 = vld [vmem:[%s1 + $0x760] sm:$0xff]
        %v438 = vld [vmem:[%s1 + $0x768] sm:$0xff]
        %v439 = vld [vmem:[%s1 + $0x770] sm:$0xff]
        %v440 = vld [vmem:[%s1 + $0x778] sm:$0xff]
        %v441 = vld [vmem:[%s1 + $0x780] sm:$0xff]
        %v442 = vld [vmem:[%s1 + $0x788] sm:$0xff]
        %v443 = vld [vmem:[%s1 + $0x790] sm:$0xff]
        %v444 = vld [vmem:[%s1 + $0x798] sm:$0xff]
        %v445 = vld [vmem:[%s1 + $0x7a0] sm:$0xff]
        %v446 = vld [vmem:[%s1 + $0x7a8] sm:$0xff]
        %v447 = vld [vmem:[%s1 + $0x7b0] sm:$0xff]
        %v448 = vld [vmem:[%s1 + $0x7b8] sm:$0xff]
        %v449 = vld [vmem:[%s1 + $0x7c0] sm:$0xff]
        %v450 = vld [vmem:[%s1 + $0x7c8] sm:$0xff]
        %v451 = vld [vmem:[%s1 + $0x7d0] sm:$0xff]
        %v452 = vld [vmem:[%s1 + $0x7d8] sm:$0xff]
        %v453 = vld [vmem:[%s1 + $0x7e0] sm:$0xff]
        %v454 = vld [vmem:[%s1 + $0x7e8] sm:$0xff]
        %v455 = vld [vmem:[%s1 + $0x7f0] sm:$0xff]
        %v456 = vld [vmem:[%s1 + $0x7f8] sm:$0xff]
        %vm457 = vcmask 130048
        %v459 = vsel %vm457, %v201, 0
        %v462 = vsel %vm457, %v202, 0
        %v465 = vsel %vm457, %v203, 0
        %v468 = vsel %vm457, %v204, 0
        %v471 = vsel %vm457, %v205, 0
        %v474 = vsel %vm457, %v206, 0
        %v477 = vsel %vm457, %v207, 0
        %v480 = vsel %vm457, %v208, 0
        %v483 = vsel %vm457, %v209, 0
        %v486 = vsel %vm457, %v210, 0
        %v489 = vsel %vm457, %v211, 0
        %v492 = vsel %vm457, %v212, 0
        %v495 = vsel %vm457, %v213, 0
        %v498 = vsel %vm457, %v214, 0
        %v501 = vsel %vm457, %v215, 0
        %v504 = vsel %vm457, %v216, 0
        %506 = vmatpush.msra.mxu0 0.0
        %507 = vmatpush.msra.mxu0 0.0
        %508 = vmatpush.msra.mxu0 0.0
        %509 = vmatpush.msra.mxu0 0.0
        %510 = vmatpush.msra.mxu0 0.0
        %511 = vmatpush.msra.mxu0 0.0
        %512 = vmatpush.msra.mxu0 0.0
        %513 = vmatpush.msra.mxu0 0.0
        %514 = vmatpush.msra.mxu0 0.0
        %515 = vmatpush.msra.mxu0 0.0
        %516 = vmatpush.msra.mxu0 0.0
        %517 = vmatpush.msra.mxu0 0.0
        %518 = vmatpush.msra.mxu0 0.0
        %519 = vmatpush.msra.mxu0 0.0
        %520 = vmatpush.msra.mxu0 %v170
        %521 = vmatpush.msra.mxu0 %v169
        %522 = vmatmul.f32.gmra.mxu0 %v459
        %v523 = vpop.f32.mrf.mxu0
        %v524 = vadd.f32 0.0, %v523
        %525 = vmatmul.f32.gmra.mxu0 %v462
        %v526 = vpop.f32.mrf.mxu0
        %v527 = vadd.f32 0.0, %v526
        %528 = vmatmul.f32.gmra.mxu0 %v465
        %v529 = vpop.f32.mrf.mxu0
        %v530 = vadd.f32 0.0, %v529
        %531 = vmatmul.f32.gmra.mxu0 %v468
        %v532 = vpop.f32.mrf.mxu0
        %v533 = vadd.f32 0.0, %v532
        %534 = vmatmul.f32.gmra.mxu0 %v471
        %v535 = vpop.f32.mrf.mxu0
        %v536 = vadd.f32 0.0, %v535
        %537 = vmatmul.f32.gmra.mxu0 %v474
        %v538 = vpop.f32.mrf.mxu0
        %v539 = vadd.f32 0.0, %v538
        %540 = vmatmul.f32.gmra.mxu0 %v477
        %v541 = vpop.f32.mrf.mxu0
        %v542 = vadd.f32 0.0, %v541
        %543 = vmatmul.f32.gmra.mxu0 %v480
        %v544 = vpop.f32.mrf.mxu0
        %v545 = vadd.f32 0.0, %v544
        %546 = vmatmul.f32.gmra.mxu0 %v483
        %v547 = vpop.f32.mrf.mxu0
        %v548 = vadd.f32 0.0, %v547
        %549 = vmatmul.f32.gmra.mxu0 %v486
        %v550 = vpop.f32.mrf.mxu0
        %v551 = vadd.f32 0.0, %v550
        %552 = vmatmul.f32.gmra.mxu0 %v489
        %v553 = vpop.f32.mrf.mxu0
        %v554 = vadd.f32 0.0, %v553
        %555 = vmatmul.f32.gmra.mxu0 %v492
        %v556 = vpop.f32.mrf.mxu0
        %v557 = vadd.f32 0.0, %v556
        %558 = vmatmul.f32.gmra.mxu0 %v495
        %v559 = vpop.f32.mrf.mxu0
        %v560 = vadd.f32 0.0, %v559
        %561 = vmatmul.f32.gmra.mxu0 %v498
        %v562 = vpop.f32.mrf.mxu0
        %v563 = vadd.f32 0.0, %v562
        %564 = vmatmul.f32.gmra.mxu0 %v501
        %v565 = vpop.f32.mrf.mxu0
        %v566 = vadd.f32 0.0, %v565
        %567 = vmatmul.f32.gmra.mxu0 %v504
        %v568 = vpop.f32.mrf.mxu0
        %v569 = vadd.f32 0.0, %v568
        %570 = vdwg.mxu0
        %v572 = vsel %vm457, %v217, 0
        %v575 = vsel %vm457, %v218, 0
        %v578 = vsel %vm457, %v219, 0
        %v581 = vsel %vm457, %v220, 0
        %v584 = vsel %vm457, %v221, 0
        %v587 = vsel %vm457, %v222, 0
        %v590 = vsel %vm457, %v223, 0
        %v593 = vsel %vm457, %v224, 0
        %v596 = vsel %vm457, %v225, 0
        %v599 = vsel %vm457, %v226, 0
        %v602 = vsel %vm457, %v227, 0
        %v605 = vsel %vm457, %v228, 0
        %v608 = vsel %vm457, %v229, 0
        %v611 = vsel %vm457, %v230, 0
        %v614 = vsel %vm457, %v231, 0
        %v617 = vsel %vm457, %v232, 0
        %619 = vmatpush.msra.mxu0 0.0
        %620 = vmatpush.msra.mxu0 0.0
        %621 = vmatpush.msra.mxu0 0.0
        %622 = vmatpush.msra.mxu0 0.0
        %623 = vmatpush.msra.mxu0 0.0
        %624 = vmatpush.msra.mxu0 0.0
        %625 = vmatpush.msra.mxu0 0.0
        %626 = vmatpush.msra.mxu0 0.0
        %627 = vmatpush.msra.mxu0 0.0
        %628 = vmatpush.msra.mxu0 0.0
        %629 = vmatpush.msra.mxu0 0.0
        %630 = vmatpush.msra.mxu0 0.0
        %631 = vmatpush.msra.mxu0 0.0
        %632 = vmatpush.msra.mxu0 0.0
        %633 = vmatpush.msra.mxu0 %v172
        %634 = vmatpush.msra.mxu0 %v171
        %635 = vmatmul.f32.gmra.mxu0 %v572
        %v636 = vpop.f32.mrf.mxu0
        %v637 = vadd.f32 0.0, %v636
        %638 = vmatmul.f32.gmra.mxu0 %v575
        %v639 = vpop.f32.mrf.mxu0
        %v640 = vadd.f32 0.0, %v639
        %641 = vmatmul.f32.gmra.mxu0 %v578
        %v642 = vpop.f32.mrf.mxu0
        %v643 = vadd.f32 0.0, %v642
        %644 = vmatmul.f32.gmra.mxu0 %v581
        %v645 = vpop.f32.mrf.mxu0
        %v646 = vadd.f32 0.0, %v645
        %647 = vmatmul.f32.gmra.mxu0 %v584
        %v648 = vpop.f32.mrf.mxu0
        %v649 = vadd.f32 0.0, %v648
        %650 = vmatmul.f32.gmra.mxu0 %v587
        %v651 = vpop.f32.mrf.mxu0
        %v652 = vadd.f32 0.0, %v651
        %653 = vmatmul.f32.gmra.mxu0 %v590
        %v654 = vpop.f32.mrf.mxu0
        %v655 = vadd.f32 0.0, %v654
        %656 = vmatmul.f32.gmra.mxu0 %v593
        %v657 = vpop.f32.mrf.mxu0
        %v658 = vadd.f32 0.0, %v657
        %659 = vmatmul.f32.gmra.mxu0 %v596
        %v660 = vpop.f32.mrf.mxu0
        %v661 = vadd.f32 0.0, %v660
        %662 = vmatmul.f32.gmra.mxu0 %v599
        %v663 = vpop.f32.mrf.mxu0
        %v664 = vadd.f32 0.0, %v663
        %665 = vmatmul.f32.gmra.mxu0 %v602
        %v666 = vpop.f32.mrf.mxu0
        %v667 = vadd.f32 0.0, %v666
        %668 = vmatmul.f32.gmra.mxu0 %v605
        %v669 = vpop.f32.mrf.mxu0
        %v670 = vadd.f32 0.0, %v669
        %671 = vmatmul.f32.gmra.mxu0 %v608
        %v672 = vpop.f32.mrf.mxu0
        %v673 = vadd.f32 0.0, %v672
        %674 = vmatmul.f32.gmra.mxu0 %v611
        %v675 = vpop.f32.mrf.mxu0
        %v676 = vadd.f32 0.0, %v675
        %677 = vmatmul.f32.gmra.mxu0 %v614
        %v678 = vpop.f32.mrf.mxu0
        %v679 = vadd.f32 0.0, %v678
        %680 = vmatmul.f32.gmra.mxu0 %v617
        %v681 = vpop.f32.mrf.mxu0
        %v682 = vadd.f32 0.0, %v681
        %683 = vdwg.mxu0
        %v685 = vsel %vm457, %v233, 0
        %v688 = vsel %vm457, %v234, 0
        %v691 = vsel %vm457, %v235, 0
        %v694 = vsel %vm457, %v236, 0
        %v697 = vsel %vm457, %v237, 0
        %v700 = vsel %vm457, %v238, 0
        %v703 = vsel %vm457, %v239, 0
        %v706 = vsel %vm457, %v240, 0
        %v709 = vsel %vm457, %v241, 0
        %v712 = vsel %vm457, %v242, 0
        %v715 = vsel %vm457, %v243, 0
        %v718 = vsel %vm457, %v244, 0
        %v721 = vsel %vm457, %v245, 0
        %v724 = vsel %vm457, %v246, 0
        %v727 = vsel %vm457, %v247, 0
        %v730 = vsel %vm457, %v248, 0
        %732 = vmatpush.msra.mxu0 0.0
        %733 = vmatpush.msra.mxu0 0.0
        %734 = vmatpush.msra.mxu0 0.0
        %735 = vmatpush.msra.mxu0 0.0
        %736 = vmatpush.msra.mxu0 0.0
        %737 = vmatpush.msra.mxu0 0.0
        %738 = vmatpush.msra.mxu0 0.0
        %739 = vmatpush.msra.mxu0 0.0
        %740 = vmatpush.msra.mxu0 0.0
        %741 = vmatpush.msra.mxu0 0.0
        %742 = vmatpush.msra.mxu0 0.0
        %743 = vmatpush.msra.mxu0 0.0
        %744 = vmatpush.msra.mxu0 0.0
        %745 = vmatpush.msra.mxu0 0.0
        %746 = vmatpush.msra.mxu0 %v174
        %747 = vmatpush.msra.mxu0 %v173
        %748 = vmatmul.f32.gmra.mxu0 %v685
        %v749 = vpop.f32.mrf.mxu0
        %v750 = vadd.f32 0.0, %v749
        %751 = vmatmul.f32.gmra.mxu0 %v688
        %v752 = vpop.f32.mrf.mxu0
        %v753 = vadd.f32 0.0, %v752
        %754 = vmatmul.f32.gmra.mxu0 %v691
        %v755 = vpop.f32.mrf.mxu0
        %v756 = vadd.f32 0.0, %v755
        %757 = vmatmul.f32.gmra.mxu0 %v694
        %v758 = vpop.f32.mrf.mxu0
        %v759 = vadd.f32 0.0, %v758
        %760 = vmatmul.f32.gmra.mxu0 %v697
        %v761 = vpop.f32.mrf.mxu0
        %v762 = vadd.f32 0.0, %v761
        %763 = vmatmul.f32.gmra.mxu0 %v700
        %v764 = vpop.f32.mrf.mxu0
        %v765 = vadd.f32 0.0, %v764
        %766 = vmatmul.f32.gmra.mxu0 %v703
        %v767 = vpop.f32.mrf.mxu0
        %v768 = vadd.f32 0.0, %v767
        %769 = vmatmul.f32.gmra.mxu0 %v706
        %v770 = vpop.f32.mrf.mxu0
        %v771 = vadd.f32 0.0, %v770
        %772 = vmatmul.f32.gmra.mxu0 %v709
        %v773 = vpop.f32.mrf.mxu0
        %v774 = vadd.f32 0.0, %v773
        %775 = vmatmul.f32.gmra.mxu0 %v712
        %v776 = vpop.f32.mrf.mxu0
        %v777 = vadd.f32 0.0, %v776
        %778 = vmatmul.f32.gmra.mxu0 %v715
        %v779 = vpop.f32.mrf.mxu0
        %v780 = vadd.f32 0.0, %v779
        %781 = vmatmul.f32.gmra.mxu0 %v718
        %v782 = vpop.f32.mrf.mxu0
        %v783 = vadd.f32 0.0, %v782
        %784 = vmatmul.f32.gmra.mxu0 %v721
        %v785 = vpop.f32.mrf.mxu0
        %v786 = vadd.f32 0.0, %v785
        %787 = vmatmul.f32.gmra.mxu0 %v724
        %v788 = vpop.f32.mrf.mxu0
        %v789 = vadd.f32 0.0, %v788
        %790 = vmatmul.f32.gmra.mxu0 %v727
        %v791 = vpop.f32.mrf.mxu0
        %v792 = vadd.f32 0.0, %v791
        %793 = vmatmul.f32.gmra.mxu0 %v730
        %v794 = vpop.f32.mrf.mxu0
        %v795 = vadd.f32 0.0, %v794
        %796 = vdwg.mxu0
        %v798 = vsel %vm457, %v249, 0
        %v801 = vsel %vm457, %v250, 0
        %v804 = vsel %vm457, %v251, 0
        %v807 = vsel %vm457, %v252, 0
        %v810 = vsel %vm457, %v253, 0
        %v813 = vsel %vm457, %v254, 0
        %v816 = vsel %vm457, %v255, 0
        %v819 = vsel %vm457, %v256, 0
        %v822 = vsel %vm457, %v257, 0
        %v825 = vsel %vm457, %v258, 0
        %v828 = vsel %vm457, %v259, 0
        %v831 = vsel %vm457, %v260, 0
        %v834 = vsel %vm457, %v261, 0
        %v837 = vsel %vm457, %v262, 0
        %v840 = vsel %vm457, %v263, 0
        %v843 = vsel %vm457, %v264, 0
        %845 = vmatpush.msra.mxu0 0.0
        %846 = vmatpush.msra.mxu0 0.0
        %847 = vmatpush.msra.mxu0 0.0
        %848 = vmatpush.msra.mxu0 0.0
        %849 = vmatpush.msra.mxu0 0.0
        %850 = vmatpush.msra.mxu0 0.0
        %851 = vmatpush.msra.mxu0 0.0
        %852 = vmatpush.msra.mxu0 0.0
        %853 = vmatpush.msra.mxu0 0.0
        %854 = vmatpush.msra.mxu0 0.0
        %855 = vmatpush.msra.mxu0 0.0
        %856 = vmatpush.msra.mxu0 0.0
        %857 = vmatpush.msra.mxu0 0.0
        %858 = vmatpush.msra.mxu0 0.0
        %859 = vmatpush.msra.mxu0 %v176
        %860 = vmatpush.msra.mxu0 %v175
        %861 = vmatmul.f32.gmra.mxu0 %v798
        %v862 = vpop.f32.mrf.mxu0
        %v863 = vadd.f32 0.0, %v862
        %864 = vmatmul.f32.gmra.mxu0 %v801
        %v865 = vpop.f32.mrf.mxu0
        %v866 = vadd.f32 0.0, %v865
        %867 = vmatmul.f32.gmra.mxu0 %v804
        %v868 = vpop.f32.mrf.mxu0
        %v869 = vadd.f32 0.0, %v868
        %870 = vmatmul.f32.gmra.mxu0 %v807
        %v871 = vpop.f32.mrf.mxu0
        %v872 = vadd.f32 0.0, %v871
        %873 = vmatmul.f32.gmra.mxu0 %v810
        %v874 = vpop.f32.mrf.mxu0
        %v875 = vadd.f32 0.0, %v874
        %876 = vmatmul.f32.gmra.mxu0 %v813
        %v877 = vpop.f32.mrf.mxu0
        %v878 = vadd.f32 0.0, %v877
        %879 = vmatmul.f32.gmra.mxu0 %v816
        %v880 = vpop.f32.mrf.mxu0
        %v881 = vadd.f32 0.0, %v880
        %882 = vmatmul.f32.gmra.mxu0 %v819
        %v883 = vpop.f32.mrf.mxu0
        %v884 = vadd.f32 0.0, %v883
        %885 = vmatmul.f32.gmra.mxu0 %v822
        %v886 = vpop.f32.mrf.mxu0
        %v887 = vadd.f32 0.0, %v886
        %888 = vmatmul.f32.gmra.mxu0 %v825
        %v889 = vpop.f32.mrf.mxu0
        %v890 = vadd.f32 0.0, %v889
        %891 = vmatmul.f32.gmra.mxu0 %v828
        %v892 = vpop.f32.mrf.mxu0
        %v893 = vadd.f32 0.0, %v892
        %894 = vmatmul.f32.gmra.mxu0 %v831
        %v895 = vpop.f32.mrf.mxu0
        %v896 = vadd.f32 0.0, %v895
        %897 = vmatmul.f32.gmra.mxu0 %v834
        %v898 = vpop.f32.mrf.mxu0
        %v899 = vadd.f32 0.0, %v898
        %900 = vmatmul.f32.gmra.mxu0 %v837
        %v901 = vpop.f32.mrf.mxu0
        %v902 = vadd.f32 0.0, %v901
        %903 = vmatmul.f32.gmra.mxu0 %v840
        %v904 = vpop.f32.mrf.mxu0
        %v905 = vadd.f32 0.0, %v904
        %906 = vmatmul.f32.gmra.mxu0 %v843
        %v907 = vpop.f32.mrf.mxu0
        %v908 = vadd.f32 0.0, %v907
        %909 = vdwg.mxu0
        %v911 = vsel %vm457, %v265, 0
        %v914 = vsel %vm457, %v266, 0
        %v917 = vsel %vm457, %v267, 0
        %v920 = vsel %vm457, %v268, 0
        %v923 = vsel %vm457, %v269, 0
        %v926 = vsel %vm457, %v270, 0
        %v929 = vsel %vm457, %v271, 0
        %v932 = vsel %vm457, %v272, 0
        %v935 = vsel %vm457, %v273, 0
        %v938 = vsel %vm457, %v274, 0
        %v941 = vsel %vm457, %v275, 0
        %v944 = vsel %vm457, %v276, 0
        %v947 = vsel %vm457, %v277, 0
        %v950 = vsel %vm457, %v278, 0
        %v953 = vsel %vm457, %v279, 0
        %v956 = vsel %vm457, %v280, 0
        %958 = vmatpush.msra.mxu0 0.0
        %959 = vmatpush.msra.mxu0 0.0
        %960 = vmatpush.msra.mxu0 0.0
        %961 = vmatpush.msra.mxu0 0.0
        %962 = vmatpush.msra.mxu0 0.0
        %963 = vmatpush.msra.mxu0 0.0
        %964 = vmatpush.msra.mxu0 0.0
        %965 = vmatpush.msra.mxu0 0.0
        %966 = vmatpush.msra.mxu0 0.0
        %967 = vmatpush.msra.mxu0 0.0
        %968 = vmatpush.msra.mxu0 0.0
        %969 = vmatpush.msra.mxu0 0.0
        %970 = vmatpush.msra.mxu0 0.0
        %971 = vmatpush.msra.mxu0 0.0
        %972 = vmatpush.msra.mxu0 %v178
        %973 = vmatpush.msra.mxu0 %v177
        %974 = vmatmul.f32.gmra.mxu0 %v911
        %v975 = vpop.f32.mrf.mxu0
        %v976 = vadd.f32 0.0, %v975
        %977 = vmatmul.f32.gmra.mxu0 %v914
        %v978 = vpop.f32.mrf.mxu0
        %v979 = vadd.f32 0.0, %v978
        %980 = vmatmul.f32.gmra.mxu0 %v917
        %v981 = vpop.f32.mrf.mxu0
        %v982 = vadd.f32 0.0, %v981
        %983 = vmatmul.f32.gmra.mxu0 %v920
        %v984 = vpop.f32.mrf.mxu0
        %v985 = vadd.f32 0.0, %v984
        %986 = vmatmul.f32.gmra.mxu0 %v923
        %v987 = vpop.f32.mrf.mxu0
        %v988 = vadd.f32 0.0, %v987
        %989 = vmatmul.f32.gmra.mxu0 %v926
        %v990 = vpop.f32.mrf.mxu0
        %v991 = vadd.f32 0.0, %v990
        %992 = vmatmul.f32.gmra.mxu0 %v929
        %v993 = vpop.f32.mrf.mxu0
        %v994 = vadd.f32 0.0, %v993
        %995 = vmatmul.f32.gmra.mxu0 %v932
        %v996 = vpop.f32.mrf.mxu0
        %v997 = vadd.f32 0.0, %v996
        %998 = vmatmul.f32.gmra.mxu0 %v935
        %v999 = vpop.f32.mrf.mxu0
        %v1000 = vadd.f32 0.0, %v999
        %1001 = vmatmul.f32.gmra.mxu0 %v938
        %v1002 = vpop.f32.mrf.mxu0
        %v1003 = vadd.f32 0.0, %v1002
        %1004 = vmatmul.f32.gmra.mxu0 %v941
        %v1005 = vpop.f32.mrf.mxu0
        %v1006 = vadd.f32 0.0, %v1005
        %1007 = vmatmul.f32.gmra.mxu0 %v944
        %v1008 = vpop.f32.mrf.mxu0
        %v1009 = vadd.f32 0.0, %v1008
        %1010 = vmatmul.f32.gmra.mxu0 %v947
        %v1011 = vpop.f32.mrf.mxu0
        %v1012 = vadd.f32 0.0, %v1011
        %1013 = vmatmul.f32.gmra.mxu0 %v950
        %v1014 = vpop.f32.mrf.mxu0
        %v1015 = vadd.f32 0.0, %v1014
        %1016 = vmatmul.f32.gmra.mxu0 %v953
        %v1017 = vpop.f32.mrf.mxu0
        %v1018 = vadd.f32 0.0, %v1017
        %1019 = vmatmul.f32.gmra.mxu0 %v956
        %v1020 = vpop.f32.mrf.mxu0
        %v1021 = vadd.f32 0.0, %v1020
        %1022 = vdwg.mxu0
        %v1024 = vsel %vm457, %v281, 0
        %v1027 = vsel %vm457, %v282, 0
        %v1030 = vsel %vm457, %v283, 0
        %v1033 = vsel %vm457, %v284, 0
        %v1036 = vsel %vm457, %v285, 0
        %v1039 = vsel %vm457, %v286, 0
        %v1042 = vsel %vm457, %v287, 0
        %v1045 = vsel %vm457, %v288, 0
        %v1048 = vsel %vm457, %v289, 0
        %v1051 = vsel %vm457, %v290, 0
        %v1054 = vsel %vm457, %v291, 0
        %v1057 = vsel %vm457, %v292, 0
        %v1060 = vsel %vm457, %v293, 0
        %v1063 = vsel %vm457, %v294, 0
        %v1066 = vsel %vm457, %v295, 0
        %v1069 = vsel %vm457, %v296, 0
        %1071 = vmatpush.msra.mxu0 0.0
        %1072 = vmatpush.msra.mxu0 0.0
        %1073 = vmatpush.msra.mxu0 0.0
        %1074 = vmatpush.msra.mxu0 0.0
        %1075 = vmatpush.msra.mxu0 0.0
        %1076 = vmatpush.msra.mxu0 0.0
        %1077 = vmatpush.msra.mxu0 0.0
        %1078 = vmatpush.msra.mxu0 0.0
        %1079 = vmatpush.msra.mxu0 0.0
        %1080 = vmatpush.msra.mxu0 0.0
        %1081 = vmatpush.msra.mxu0 0.0
        %1082 = vmatpush.msra.mxu0 0.0
        %1083 = vmatpush.msra.mxu0 0.0
        %1084 = vmatpush.msra.mxu0 0.0
        %1085 = vmatpush.msra.mxu0 %v180
        %1086 = vmatpush.msra.mxu0 %v179
        %1087 = vmatmul.f32.gmra.mxu0 %v1024
        %v1088 = vpop.f32.mrf.mxu0
        %v1089 = vadd.f32 0.0, %v1088
        %1090 = vmatmul.f32.gmra.mxu0 %v1027
        %v1091 = vpop.f32.mrf.mxu0
        %v1092 = vadd.f32 0.0, %v1091
        %1093 = vmatmul.f32.gmra.mxu0 %v1030
        %v1094 = vpop.f32.mrf.mxu0
        %v1095 = vadd.f32 0.0, %v1094
        %1096 = vmatmul.f32.gmra.mxu0 %v1033
        %v1097 = vpop.f32.mrf.mxu0
        %v1098 = vadd.f32 0.0, %v1097
        %1099 = vmatmul.f32.gmra.mxu0 %v1036
        %v1100 = vpop.f32.mrf.mxu0
        %v1101 = vadd.f32 0.0, %v1100
        %1102 = vmatmul.f32.gmra.mxu0 %v1039
        %v1103 = vpop.f32.mrf.mxu0
        %v1104 = vadd.f32 0.0, %v1103
        %1105 = vmatmul.f32.gmra.mxu0 %v1042
        %v1106 = vpop.f32.mrf.mxu0
        %v1107 = vadd.f32 0.0, %v1106
        %1108 = vmatmul.f32.gmra.mxu0 %v1045
        %v1109 = vpop.f32.mrf.mxu0
        %v1110 = vadd.f32 0.0, %v1109
        %1111 = vmatmul.f32.gmra.mxu0 %v1048
        %v1112 = vpop.f32.mrf.mxu0
        %v1113 = vadd.f32 0.0, %v1112
        %1114 = vmatmul.f32.gmra.mxu0 %v1051
        %v1115 = vpop.f32.mrf.mxu0
        %v1116 = vadd.f32 0.0, %v1115
        %1117 = vmatmul.f32.gmra.mxu0 %v1054
        %v1118 = vpop.f32.mrf.mxu0
        %v1119 = vadd.f32 0.0, %v1118
        %1120 = vmatmul.f32.gmra.mxu0 %v1057
        %v1121 = vpop.f32.mrf.mxu0
        %v1122 = vadd.f32 0.0, %v1121
        %1123 = vmatmul.f32.gmra.mxu0 %v1060
        %v1124 = vpop.f32.mrf.mxu0
        %v1125 = vadd.f32 0.0, %v1124
        %1126 = vmatmul.f32.gmra.mxu0 %v1063
        %v1127 = vpop.f32.mrf.mxu0
        %v1128 = vadd.f32 0.0, %v1127
        %1129 = vmatmul.f32.gmra.mxu0 %v1066
        %v1130 = vpop.f32.mrf.mxu0
        %v1131 = vadd.f32 0.0, %v1130
        %1132 = vmatmul.f32.gmra.mxu0 %v1069
        %v1133 = vpop.f32.mrf.mxu0
        %v1134 = vadd.f32 0.0, %v1133
        %1135 = vdwg.mxu0
        %v1137 = vsel %vm457, %v297, 0
        %v1140 = vsel %vm457, %v298, 0
        %v1143 = vsel %vm457, %v299, 0
        %v1146 = vsel %vm457, %v300, 0
        %v1149 = vsel %vm457, %v301, 0
        %v1152 = vsel %vm457, %v302, 0
        %v1155 = vsel %vm457, %v303, 0
        %v1158 = vsel %vm457, %v304, 0
        %v1161 = vsel %vm457, %v305, 0
        %v1164 = vsel %vm457, %v306, 0
        %v1167 = vsel %vm457, %v307, 0
        %v1170 = vsel %vm457, %v308, 0
        %v1173 = vsel %vm457, %v309, 0
        %v1176 = vsel %vm457, %v310, 0
        %v1179 = vsel %vm457, %v311, 0
        %v1182 = vsel %vm457, %v312, 0
        %1184 = vmatpush.msra.mxu0 0.0
        %1185 = vmatpush.msra.mxu0 0.0
        %1186 = vmatpush.msra.mxu0 0.0
        %1187 = vmatpush.msra.mxu0 0.0
        %1188 = vmatpush.msra.mxu0 0.0
        %1189 = vmatpush.msra.mxu0 0.0
        %1190 = vmatpush.msra.mxu0 0.0
        %1191 = vmatpush.msra.mxu0 0.0
        %1192 = vmatpush.msra.mxu0 0.0
        %1193 = vmatpush.msra.mxu0 0.0
        %1194 = vmatpush.msra.mxu0 0.0
        %1195 = vmatpush.msra.mxu0 0.0
        %1196 = vmatpush.msra.mxu0 0.0
        %1197 = vmatpush.msra.mxu0 0.0
        %1198 = vmatpush.msra.mxu0 %v182
        %1199 = vmatpush.msra.mxu0 %v181
        %1200 = vmatmul.f32.gmra.mxu0 %v1137
        %v1201 = vpop.f32.mrf.mxu0
        %v1202 = vadd.f32 0.0, %v1201
        %1203 = vmatmul.f32.gmra.mxu0 %v1140
        %v1204 = vpop.f32.mrf.mxu0
        %v1205 = vadd.f32 0.0, %v1204
        %1206 = vmatmul.f32.gmra.mxu0 %v1143
        %v1207 = vpop.f32.mrf.mxu0
        %v1208 = vadd.f32 0.0, %v1207
        %1209 = vmatmul.f32.gmra.mxu0 %v1146
        %v1210 = vpop.f32.mrf.mxu0
        %v1211 = vadd.f32 0.0, %v1210
        %1212 = vmatmul.f32.gmra.mxu0 %v1149
        %v1213 = vpop.f32.mrf.mxu0
        %v1214 = vadd.f32 0.0, %v1213
        %1215 = vmatmul.f32.gmra.mxu0 %v1152
        %v1216 = vpop.f32.mrf.mxu0
        %v1217 = vadd.f32 0.0, %v1216
        %1218 = vmatmul.f32.gmra.mxu0 %v1155
        %v1219 = vpop.f32.mrf.mxu0
        %v1220 = vadd.f32 0.0, %v1219
        %1221 = vmatmul.f32.gmra.mxu0 %v1158
        %v1222 = vpop.f32.mrf.mxu0
        %v1223 = vadd.f32 0.0, %v1222
        %1224 = vmatmul.f32.gmra.mxu0 %v1161
        %v1225 = vpop.f32.mrf.mxu0
        %v1226 = vadd.f32 0.0, %v1225
        %1227 = vmatmul.f32.gmra.mxu0 %v1164
        %v1228 = vpop.f32.mrf.mxu0
        %v1229 = vadd.f32 0.0, %v1228
        %1230 = vmatmul.f32.gmra.mxu0 %v1167
        %v1231 = vpop.f32.mrf.mxu0
        %v1232 = vadd.f32 0.0, %v1231
        %1233 = vmatmul.f32.gmra.mxu0 %v1170
        %v1234 = vpop.f32.mrf.mxu0
        %v1235 = vadd.f32 0.0, %v1234
        %1236 = vmatmul.f32.gmra.mxu0 %v1173
        %v1237 = vpop.f32.mrf.mxu0
        %v1238 = vadd.f32 0.0, %v1237
        %1239 = vmatmul.f32.gmra.mxu0 %v1176
        %v1240 = vpop.f32.mrf.mxu0
        %v1241 = vadd.f32 0.0, %v1240
        %1242 = vmatmul.f32.gmra.mxu0 %v1179
        %v1243 = vpop.f32.mrf.mxu0
        %v1244 = vadd.f32 0.0, %v1243
        %1245 = vmatmul.f32.gmra.mxu0 %v1182
        %v1246 = vpop.f32.mrf.mxu0
        %v1247 = vadd.f32 0.0, %v1246
        %1248 = vdwg.mxu0
        %v1250 = vsel %vm457, %v313, 0
        %v1253 = vsel %vm457, %v314, 0
        %v1256 = vsel %vm457, %v315, 0
        %v1259 = vsel %vm457, %v316, 0
        %v1262 = vsel %vm457, %v317, 0
        %v1265 = vsel %vm457, %v318, 0
        %v1268 = vsel %vm457, %v319, 0
        %v1271 = vsel %vm457, %v320, 0
        %v1274 = vsel %vm457, %v321, 0
        %v1277 = vsel %vm457, %v322, 0
        %v1280 = vsel %vm457, %v323, 0
        %v1283 = vsel %vm457, %v324, 0
        %v1286 = vsel %vm457, %v325, 0
        %v1289 = vsel %vm457, %v326, 0
        %v1292 = vsel %vm457, %v327, 0
        %v1295 = vsel %vm457, %v328, 0
        %1297 = vmatpush.msra.mxu0 0.0
        %1298 = vmatpush.msra.mxu0 0.0
        %1299 = vmatpush.msra.mxu0 0.0
        %1300 = vmatpush.msra.mxu0 0.0
        %1301 = vmatpush.msra.mxu0 0.0
        %1302 = vmatpush.msra.mxu0 0.0
        %1303 = vmatpush.msra.mxu0 0.0
        %1304 = vmatpush.msra.mxu0 0.0
        %1305 = vmatpush.msra.mxu0 0.0
        %1306 = vmatpush.msra.mxu0 0.0
        %1307 = vmatpush.msra.mxu0 0.0
        %1308 = vmatpush.msra.mxu0 0.0
        %1309 = vmatpush.msra.mxu0 0.0
        %1310 = vmatpush.msra.mxu0 0.0
        %1311 = vmatpush.msra.mxu0 %v184
        %1312 = vmatpush.msra.mxu0 %v183
        %1313 = vmatmul.f32.gmra.mxu0 %v1250
        %v1314 = vpop.f32.mrf.mxu0
        %v1315 = vadd.f32 0.0, %v1314
        %1316 = vmatmul.f32.gmra.mxu0 %v1253
        %v1317 = vpop.f32.mrf.mxu0
        %v1318 = vadd.f32 0.0, %v1317
        %1319 = vmatmul.f32.gmra.mxu0 %v1256
        %v1320 = vpop.f32.mrf.mxu0
        %v1321 = vadd.f32 0.0, %v1320
        %1322 = vmatmul.f32.gmra.mxu0 %v1259
        %v1323 = vpop.f32.mrf.mxu0
        %v1324 = vadd.f32 0.0, %v1323
        %1325 = vmatmul.f32.gmra.mxu0 %v1262
        %v1326 = vpop.f32.mrf.mxu0
        %v1327 = vadd.f32 0.0, %v1326
        %1328 = vmatmul.f32.gmra.mxu0 %v1265
        %v1329 = vpop.f32.mrf.mxu0
        %v1330 = vadd.f32 0.0, %v1329
        %1331 = vmatmul.f32.gmra.mxu0 %v1268
        %v1332 = vpop.f32.mrf.mxu0
        %v1333 = vadd.f32 0.0, %v1332
        %1334 = vmatmul.f32.gmra.mxu0 %v1271
        %v1335 = vpop.f32.mrf.mxu0
        %v1336 = vadd.f32 0.0, %v1335
        %1337 = vmatmul.f32.gmra.mxu0 %v1274
        %v1338 = vpop.f32.mrf.mxu0
        %v1339 = vadd.f32 0.0, %v1338
        %1340 = vmatmul.f32.gmra.mxu0 %v1277
        %v1341 = vpop.f32.mrf.mxu0
        %v1342 = vadd.f32 0.0, %v1341
        %1343 = vmatmul.f32.gmra.mxu0 %v1280
        %v1344 = vpop.f32.mrf.mxu0
        %v1345 = vadd.f32 0.0, %v1344
        %1346 = vmatmul.f32.gmra.mxu0 %v1283
        %v1347 = vpop.f32.mrf.mxu0
        %v1348 = vadd.f32 0.0, %v1347
        %1349 = vmatmul.f32.gmra.mxu0 %v1286
        %v1350 = vpop.f32.mrf.mxu0
        %v1351 = vadd.f32 0.0, %v1350
        %1352 = vmatmul.f32.gmra.mxu0 %v1289
        %v1353 = vpop.f32.mrf.mxu0
        %v1354 = vadd.f32 0.0, %v1353
        %1355 = vmatmul.f32.gmra.mxu0 %v1292
        %v1356 = vpop.f32.mrf.mxu0
        %v1357 = vadd.f32 0.0, %v1356
        %1358 = vmatmul.f32.gmra.mxu0 %v1295
        %v1359 = vpop.f32.mrf.mxu0
        %v1360 = vadd.f32 0.0, %v1359
        %1361 = vdwg.mxu0
        %v1363 = vsel %vm457, %v329, 0
        %v1366 = vsel %vm457, %v330, 0
        %v1369 = vsel %vm457, %v331, 0
        %v1372 = vsel %vm457, %v332, 0
        %v1375 = vsel %vm457, %v333, 0
        %v1378 = vsel %vm457, %v334, 0
        %v1381 = vsel %vm457, %v335, 0
        %v1384 = vsel %vm457, %v336, 0
        %v1387 = vsel %vm457, %v337, 0
        %v1390 = vsel %vm457, %v338, 0
        %v1393 = vsel %vm457, %v339, 0
        %v1396 = vsel %vm457, %v340, 0
        %v1399 = vsel %vm457, %v341, 0
        %v1402 = vsel %vm457, %v342, 0
        %v1405 = vsel %vm457, %v343, 0
        %v1408 = vsel %vm457, %v344, 0
        %1410 = vmatpush.msra.mxu0 0.0
        %1411 = vmatpush.msra.mxu0 0.0
        %1412 = vmatpush.msra.mxu0 0.0
        %1413 = vmatpush.msra.mxu0 0.0
        %1414 = vmatpush.msra.mxu0 0.0
        %1415 = vmatpush.msra.mxu0 0.0
        %1416 = vmatpush.msra.mxu0 0.0
        %1417 = vmatpush.msra.mxu0 0.0
        %1418 = vmatpush.msra.mxu0 0.0
        %1419 = vmatpush.msra.mxu0 0.0
        %1420 = vmatpush.msra.mxu0 0.0
        %1421 = vmatpush.msra.mxu0 0.0
        %1422 = vmatpush.msra.mxu0 0.0
        %1423 = vmatpush.msra.mxu0 0.0
        %1424 = vmatpush.msra.mxu0 %v186
        %1425 = vmatpush.msra.mxu0 %v185
        %1426 = vmatmul.f32.gmra.mxu0 %v1363
        %v1427 = vpop.f32.mrf.mxu0
        %v1428 = vadd.f32 0.0, %v1427
        %1429 = vmatmul.f32.gmra.mxu0 %v1366
        %v1430 = vpop.f32.mrf.mxu0
        %v1431 = vadd.f32 0.0, %v1430
        %1432 = vmatmul.f32.gmra.mxu0 %v1369
        %v1433 = vpop.f32.mrf.mxu0
        %v1434 = vadd.f32 0.0, %v1433
        %1435 = vmatmul.f32.gmra.mxu0 %v1372
        %v1436 = vpop.f32.mrf.mxu0
        %v1437 = vadd.f32 0.0, %v1436
        %1438 = vmatmul.f32.gmra.mxu0 %v1375
        %v1439 = vpop.f32.mrf.mxu0
        %v1440 = vadd.f32 0.0, %v1439
        %1441 = vmatmul.f32.gmra.mxu0 %v1378
        %v1442 = vpop.f32.mrf.mxu0
        %v1443 = vadd.f32 0.0, %v1442
        %1444 = vmatmul.f32.gmra.mxu0 %v1381
        %v1445 = vpop.f32.mrf.mxu0
        %v1446 = vadd.f32 0.0, %v1445
        %1447 = vmatmul.f32.gmra.mxu0 %v1384
        %v1448 = vpop.f32.mrf.mxu0
        %v1449 = vadd.f32 0.0, %v1448
        %1450 = vmatmul.f32.gmra.mxu0 %v1387
        %v1451 = vpop.f32.mrf.mxu0
        %v1452 = vadd.f32 0.0, %v1451
        %1453 = vmatmul.f32.gmra.mxu0 %v1390
        %v1454 = vpop.f32.mrf.mxu0
        %v1455 = vadd.f32 0.0, %v1454
        %1456 = vmatmul.f32.gmra.mxu0 %v1393
        %v1457 = vpop.f32.mrf.mxu0
        %v1458 = vadd.f32 0.0, %v1457
        %1459 = vmatmul.f32.gmra.mxu0 %v1396
        %v1460 = vpop.f32.mrf.mxu0
        %v1461 = vadd.f32 0.0, %v1460
        %1462 = vmatmul.f32.gmra.mxu0 %v1399
        %v1463 = vpop.f32.mrf.mxu0
        %v1464 = vadd.f32 0.0, %v1463
        %1465 = vmatmul.f32.gmra.mxu0 %v1402
        %v1466 = vpop.f32.mrf.mxu0
        %v1467 = vadd.f32 0.0, %v1466
        %1468 = vmatmul.f32.gmra.mxu0 %v1405
        %v1469 = vpop.f32.mrf.mxu0
        %v1470 = vadd.f32 0.0, %v1469
        %1471 = vmatmul.f32.gmra.mxu0 %v1408
        %v1472 = vpop.f32.mrf.mxu0
        %v1473 = vadd.f32 0.0, %v1472
        %1474 = vdwg.mxu0
        %v1476 = vsel %vm457, %v345, 0
        %v1479 = vsel %vm457, %v346, 0
        %v1482 = vsel %vm457, %v347, 0
        %v1485 = vsel %vm457, %v348, 0
        %v1488 = vsel %vm457, %v349, 0
        %v1491 = vsel %vm457, %v350, 0
        %v1494 = vsel %vm457, %v351, 0
        %v1497 = vsel %vm457, %v352, 0
        %v1500 = vsel %vm457, %v353, 0
        %v1503 = vsel %vm457, %v354, 0
        %v1506 = vsel %vm457, %v355, 0
        %v1509 = vsel %vm457, %v356, 0
        %v1512 = vsel %vm457, %v357, 0
        %v1515 = vsel %vm457, %v358, 0
        %v1518 = vsel %vm457, %v359, 0
        %v1521 = vsel %vm457, %v360, 0
        %1523 = vmatpush.msra.mxu0 0.0
        %1524 = vmatpush.msra.mxu0 0.0
        %1525 = vmatpush.msra.mxu0 0.0
        %1526 = vmatpush.msra.mxu0 0.0
        %1527 = vmatpush.msra.mxu0 0.0
        %1528 = vmatpush.msra.mxu0 0.0
        %1529 = vmatpush.msra.mxu0 0.0
        %1530 = vmatpush.msra.mxu0 0.0
        %1531 = vmatpush.msra.mxu0 0.0
        %1532 = vmatpush.msra.mxu0 0.0
        %1533 = vmatpush.msra.mxu0 0.0
        %1534 = vmatpush.msra.mxu0 0.0
        %1535 = vmatpush.msra.mxu0 0.0
        %1536 = vmatpush.msra.mxu0 0.0
        %1537 = vmatpush.msra.mxu0 %v188
        %1538 = vmatpush.msra.mxu0 %v187
        %1539 = vmatmul.f32.gmra.mxu0 %v1476
        %v1540 = vpop.f32.mrf.mxu0
        %v1541 = vadd.f32 0.0, %v1540
        %1542 = vmatmul.f32.gmra.mxu0 %v1479
        %v1543 = vpop.f32.mrf.mxu0
        %v1544 = vadd.f32 0.0, %v1543
        %1545 = vmatmul.f32.gmra.mxu0 %v1482
        %v1546 = vpop.f32.mrf.mxu0
        %v1547 = vadd.f32 0.0, %v1546
        %1548 = vmatmul.f32.gmra.mxu0 %v1485
        %v1549 = vpop.f32.mrf.mxu0
        %v1550 = vadd.f32 0.0, %v1549
        %1551 = vmatmul.f32.gmra.mxu0 %v1488
        %v1552 = vpop.f32.mrf.mxu0
        %v1553 = vadd.f32 0.0, %v1552
        %1554 = vmatmul.f32.gmra.mxu0 %v1491
        %v1555 = vpop.f32.mrf.mxu0
        %v1556 = vadd.f32 0.0, %v1555
        %1557 = vmatmul.f32.gmra.mxu0 %v1494
        %v1558 = vpop.f32.mrf.mxu0
        %v1559 = vadd.f32 0.0, %v1558
        %1560 = vmatmul.f32.gmra.mxu0 %v1497
        %v1561 = vpop.f32.mrf.mxu0
        %v1562 = vadd.f32 0.0, %v1561
        %1563 = vmatmul.f32.gmra.mxu0 %v1500
        %v1564 = vpop.f32.mrf.mxu0
        %v1565 = vadd.f32 0.0, %v1564
        %1566 = vmatmul.f32.gmra.mxu0 %v1503
        %v1567 = vpop.f32.mrf.mxu0
        %v1568 = vadd.f32 0.0, %v1567
        %1569 = vmatmul.f32.gmra.mxu0 %v1506
        %v1570 = vpop.f32.mrf.mxu0
        %v1571 = vadd.f32 0.0, %v1570
        %1572 = vmatmul.f32.gmra.mxu0 %v1509
        %v1573 = vpop.f32.mrf.mxu0
        %v1574 = vadd.f32 0.0, %v1573
        %1575 = vmatmul.f32.gmra.mxu0 %v1512
        %v1576 = vpop.f32.mrf.mxu0
        %v1577 = vadd.f32 0.0, %v1576
        %1578 = vmatmul.f32.gmra.mxu0 %v1515
        %v1579 = vpop.f32.mrf.mxu0
        %v1580 = vadd.f32 0.0, %v1579
        %1581 = vmatmul.f32.gmra.mxu0 %v1518
        %v1582 = vpop.f32.mrf.mxu0
        %v1583 = vadd.f32 0.0, %v1582
        %1584 = vmatmul.f32.gmra.mxu0 %v1521
        %v1585 = vpop.f32.mrf.mxu0
        %v1586 = vadd.f32 0.0, %v1585
        %1587 = vdwg.mxu0
        %v1589 = vsel %vm457, %v361, 0
        %v1592 = vsel %vm457, %v362, 0
        %v1595 = vsel %vm457, %v363, 0
        %v1598 = vsel %vm457, %v364, 0
        %v1601 = vsel %vm457, %v365, 0
        %v1604 = vsel %vm457, %v366, 0
        %v1607 = vsel %vm457, %v367, 0
        %v1610 = vsel %vm457, %v368, 0
        %v1613 = vsel %vm457, %v369, 0
        %v1616 = vsel %vm457, %v370, 0
        %v1619 = vsel %vm457, %v371, 0
        %v1622 = vsel %vm457, %v372, 0
        %v1625 = vsel %vm457, %v373, 0
        %v1628 = vsel %vm457, %v374, 0
        %v1631 = vsel %vm457, %v375, 0
        %v1634 = vsel %vm457, %v376, 0
        %1636 = vmatpush.msra.mxu0 0.0
        %1637 = vmatpush.msra.mxu0 0.0
        %1638 = vmatpush.msra.mxu0 0.0
        %1639 = vmatpush.msra.mxu0 0.0
        %1640 = vmatpush.msra.mxu0 0.0
        %1641 = vmatpush.msra.mxu0 0.0
        %1642 = vmatpush.msra.mxu0 0.0
        %1643 = vmatpush.msra.mxu0 0.0
        %1644 = vmatpush.msra.mxu0 0.0
        %1645 = vmatpush.msra.mxu0 0.0
        %1646 = vmatpush.msra.mxu0 0.0
        %1647 = vmatpush.msra.mxu0 0.0
        %1648 = vmatpush.msra.mxu0 0.0
        %1649 = vmatpush.msra.mxu0 0.0
        %1650 = vmatpush.msra.mxu0 %v190
        %1651 = vmatpush.msra.mxu0 %v189
        %1652 = vmatmul.f32.gmra.mxu0 %v1589
        %v1653 = vpop.f32.mrf.mxu0
        %v1654 = vadd.f32 0.0, %v1653
        %1655 = vmatmul.f32.gmra.mxu0 %v1592
        %v1656 = vpop.f32.mrf.mxu0
        %v1657 = vadd.f32 0.0, %v1656
        %1658 = vmatmul.f32.gmra.mxu0 %v1595
        %v1659 = vpop.f32.mrf.mxu0
        %v1660 = vadd.f32 0.0, %v1659
        %1661 = vmatmul.f32.gmra.mxu0 %v1598
        %v1662 = vpop.f32.mrf.mxu0
        %v1663 = vadd.f32 0.0, %v1662
        %1664 = vmatmul.f32.gmra.mxu0 %v1601
        %v1665 = vpop.f32.mrf.mxu0
        %v1666 = vadd.f32 0.0, %v1665
        %1667 = vmatmul.f32.gmra.mxu0 %v1604
        %v1668 = vpop.f32.mrf.mxu0
        %v1669 = vadd.f32 0.0, %v1668
        %1670 = vmatmul.f32.gmra.mxu0 %v1607
        %v1671 = vpop.f32.mrf.mxu0
        %v1672 = vadd.f32 0.0, %v1671
        %1673 = vmatmul.f32.gmra.mxu0 %v1610
        %v1674 = vpop.f32.mrf.mxu0
        %v1675 = vadd.f32 0.0, %v1674
        %1676 = vmatmul.f32.gmra.mxu0 %v1613
        %v1677 = vpop.f32.mrf.mxu0
        %v1678 = vadd.f32 0.0, %v1677
        %1679 = vmatmul.f32.gmra.mxu0 %v1616
        %v1680 = vpop.f32.mrf.mxu0
        %v1681 = vadd.f32 0.0, %v1680
        %1682 = vmatmul.f32.gmra.mxu0 %v1619
        %v1683 = vpop.f32.mrf.mxu0
        %v1684 = vadd.f32 0.0, %v1683
        %1685 = vmatmul.f32.gmra.mxu0 %v1622
        %v1686 = vpop.f32.mrf.mxu0
        %v1687 = vadd.f32 0.0, %v1686
        %1688 = vmatmul.f32.gmra.mxu0 %v1625
        %v1689 = vpop.f32.mrf.mxu0
        %v1690 = vadd.f32 0.0, %v1689
        %1691 = vmatmul.f32.gmra.mxu0 %v1628
        %v1692 = vpop.f32.mrf.mxu0
        %v1693 = vadd.f32 0.0, %v1692
        %1694 = vmatmul.f32.gmra.mxu0 %v1631
        %v1695 = vpop.f32.mrf.mxu0
        %v1696 = vadd.f32 0.0, %v1695
        %1697 = vmatmul.f32.gmra.mxu0 %v1634
        %v1698 = vpop.f32.mrf.mxu0
        %v1699 = vadd.f32 0.0, %v1698
        %1700 = vdwg.mxu0
        %v1702 = vsel %vm457, %v377, 0
        %v1705 = vsel %vm457, %v378, 0
        %v1708 = vsel %vm457, %v379, 0
        %v1711 = vsel %vm457, %v380, 0
        %v1714 = vsel %vm457, %v381, 0
        %v1717 = vsel %vm457, %v382, 0
        %v1720 = vsel %vm457, %v383, 0
        %v1723 = vsel %vm457, %v384, 0
        %v1726 = vsel %vm457, %v385, 0
        %v1729 = vsel %vm457, %v386, 0
        %v1732 = vsel %vm457, %v387, 0
        %v1735 = vsel %vm457, %v388, 0
        %v1738 = vsel %vm457, %v389, 0
        %v1741 = vsel %vm457, %v390, 0
        %v1744 = vsel %vm457, %v391, 0
        %v1747 = vsel %vm457, %v392, 0
        %1749 = vmatpush.msra.mxu0 0.0
        %1750 = vmatpush.msra.mxu0 0.0
        %1751 = vmatpush.msra.mxu0 0.0
        %1752 = vmatpush.msra.mxu0 0.0
        %1753 = vmatpush.msra.mxu0 0.0
        %1754 = vmatpush.msra.mxu0 0.0
        %1755 = vmatpush.msra.mxu0 0.0
        %1756 = vmatpush.msra.mxu0 0.0
        %1757 = vmatpush.msra.mxu0 0.0
        %1758 = vmatpush.msra.mxu0 0.0
        %1759 = vmatpush.msra.mxu0 0.0
        %1760 = vmatpush.msra.mxu0 0.0
        %1761 = vmatpush.msra.mxu0 0.0
        %1762 = vmatpush.msra.mxu0 0.0
        %1763 = vmatpush.msra.mxu0 %v192
        %1764 = vmatpush.msra.mxu0 %v191
        %1765 = vmatmul.f32.gmra.mxu0 %v1702
        %v1766 = vpop.f32.mrf.mxu0
        %v1767 = vadd.f32 0.0, %v1766
        %1768 = vmatmul.f32.gmra.mxu0 %v1705
        %v1769 = vpop.f32.mrf.mxu0
        %v1770 = vadd.f32 0.0, %v1769
        %1771 = vmatmul.f32.gmra.mxu0 %v1708
        %v1772 = vpop.f32.mrf.mxu0
        %v1773 = vadd.f32 0.0, %v1772
        %1774 = vmatmul.f32.gmra.mxu0 %v1711
        %v1775 = vpop.f32.mrf.mxu0
        %v1776 = vadd.f32 0.0, %v1775
        %1777 = vmatmul.f32.gmra.mxu0 %v1714
        %v1778 = vpop.f32.mrf.mxu0
        %v1779 = vadd.f32 0.0, %v1778
        %1780 = vmatmul.f32.gmra.mxu0 %v1717
        %v1781 = vpop.f32.mrf.mxu0
        %v1782 = vadd.f32 0.0, %v1781
        %1783 = vmatmul.f32.gmra.mxu0 %v1720
        %v1784 = vpop.f32.mrf.mxu0
        %v1785 = vadd.f32 0.0, %v1784
        %1786 = vmatmul.f32.gmra.mxu0 %v1723
        %v1787 = vpop.f32.mrf.mxu0
        %v1788 = vadd.f32 0.0, %v1787
        %1789 = vmatmul.f32.gmra.mxu0 %v1726
        %v1790 = vpop.f32.mrf.mxu0
        %v1791 = vadd.f32 0.0, %v1790
        %1792 = vmatmul.f32.gmra.mxu0 %v1729
        %v1793 = vpop.f32.mrf.mxu0
        %v1794 = vadd.f32 0.0, %v1793
        %1795 = vmatmul.f32.gmra.mxu0 %v1732
        %v1796 = vpop.f32.mrf.mxu0
        %v1797 = vadd.f32 0.0, %v1796
        %1798 = vmatmul.f32.gmra.mxu0 %v1735
        %v1799 = vpop.f32.mrf.mxu0
        %v1800 = vadd.f32 0.0, %v1799
        %1801 = vmatmul.f32.gmra.mxu0 %v1738
        %v1802 = vpop.f32.mrf.mxu0
        %v1803 = vadd.f32 0.0, %v1802
        %1804 = vmatmul.f32.gmra.mxu0 %v1741
        %v1805 = vpop.f32.mrf.mxu0
        %v1806 = vadd.f32 0.0, %v1805
        %1807 = vmatmul.f32.gmra.mxu0 %v1744
        %v1808 = vpop.f32.mrf.mxu0
        %v1809 = vadd.f32 0.0, %v1808
        %1810 = vmatmul.f32.gmra.mxu0 %v1747
        %v1811 = vpop.f32.mrf.mxu0
        %v1812 = vadd.f32 0.0, %v1811
        %1813 = vdwg.mxu0
        %v1815 = vsel %vm457, %v393, 0
        %v1818 = vsel %vm457, %v394, 0
        %v1821 = vsel %vm457, %v395, 0
        %v1824 = vsel %vm457, %v396, 0
        %v1827 = vsel %vm457, %v397, 0
        %v1830 = vsel %vm457, %v398, 0
        %v1833 = vsel %vm457, %v399, 0
        %v1836 = vsel %vm457, %v400, 0
        %v1839 = vsel %vm457, %v401, 0
        %v1842 = vsel %vm457, %v402, 0
        %v1845 = vsel %vm457, %v403, 0
        %v1848 = vsel %vm457, %v404, 0
        %v1851 = vsel %vm457, %v405, 0
        %v1854 = vsel %vm457, %v406, 0
        %v1857 = vsel %vm457, %v407, 0
        %v1860 = vsel %vm457, %v408, 0
        %1862 = vmatpush.msra.mxu0 0.0
        %1863 = vmatpush.msra.mxu0 0.0
        %1864 = vmatpush.msra.mxu0 0.0
        %1865 = vmatpush.msra.mxu0 0.0
        %1866 = vmatpush.msra.mxu0 0.0
        %1867 = vmatpush.msra.mxu0 0.0
        %1868 = vmatpush.msra.mxu0 0.0
        %1869 = vmatpush.msra.mxu0 0.0
        %1870 = vmatpush.msra.mxu0 0.0
        %1871 = vmatpush.msra.mxu0 0.0
        %1872 = vmatpush.msra.mxu0 0.0
        %1873 = vmatpush.msra.mxu0 0.0
        %1874 = vmatpush.msra.mxu0 0.0
        %1875 = vmatpush.msra.mxu0 0.0
        %1876 = vmatpush.msra.mxu0 %v194
        %1877 = vmatpush.msra.mxu0 %v193
        %1878 = vmatmul.f32.gmra.mxu0 %v1815
        %v1879 = vpop.f32.mrf.mxu0
        %v1880 = vadd.f32 0.0, %v1879
        %1881 = vmatmul.f32.gmra.mxu0 %v1818
        %v1882 = vpop.f32.mrf.mxu0
        %v1883 = vadd.f32 0.0, %v1882
        %1884 = vmatmul.f32.gmra.mxu0 %v1821
        %v1885 = vpop.f32.mrf.mxu0
        %v1886 = vadd.f32 0.0, %v1885
        %1887 = vmatmul.f32.gmra.mxu0 %v1824
        %v1888 = vpop.f32.mrf.mxu0
        %v1889 = vadd.f32 0.0, %v1888
        %1890 = vmatmul.f32.gmra.mxu0 %v1827
        %v1891 = vpop.f32.mrf.mxu0
        %v1892 = vadd.f32 0.0, %v1891
        %1893 = vmatmul.f32.gmra.mxu0 %v1830
        %v1894 = vpop.f32.mrf.mxu0
        %v1895 = vadd.f32 0.0, %v1894
        %1896 = vmatmul.f32.gmra.mxu0 %v1833
        %v1897 = vpop.f32.mrf.mxu0
        %v1898 = vadd.f32 0.0, %v1897
        %1899 = vmatmul.f32.gmra.mxu0 %v1836
        %v1900 = vpop.f32.mrf.mxu0
        %v1901 = vadd.f32 0.0, %v1900
        %1902 = vmatmul.f32.gmra.mxu0 %v1839
        %v1903 = vpop.f32.mrf.mxu0
        %v1904 = vadd.f32 0.0, %v1903
        %1905 = vmatmul.f32.gmra.mxu0 %v1842
        %v1906 = vpop.f32.mrf.mxu0
        %v1907 = vadd.f32 0.0, %v1906
        %1908 = vmatmul.f32.gmra.mxu0 %v1845
        %v1909 = vpop.f32.mrf.mxu0
        %v1910 = vadd.f32 0.0, %v1909
        %1911 = vmatmul.f32.gmra.mxu0 %v1848
        %v1912 = vpop.f32.mrf.mxu0
        %v1913 = vadd.f32 0.0, %v1912
        %1914 = vmatmul.f32.gmra.mxu0 %v1851
        %v1915 = vpop.f32.mrf.mxu0
        %v1916 = vadd.f32 0.0, %v1915
        %1917 = vmatmul.f32.gmra.mxu0 %v1854
        %v1918 = vpop.f32.mrf.mxu0
        %v1919 = vadd.f32 0.0, %v1918
        %1920 = vmatmul.f32.gmra.mxu0 %v1857
        %v1921 = vpop.f32.mrf.mxu0
        %v1922 = vadd.f32 0.0, %v1921
        %1923 = vmatmul.f32.gmra.mxu0 %v1860
        %v1924 = vpop.f32.mrf.mxu0
        %v1925 = vadd.f32 0.0, %v1924
        %1926 = vdwg.mxu0
        %v1928 = vsel %vm457, %v409, 0
        %v1931 = vsel %vm457, %v410, 0
        %v1934 = vsel %vm457, %v411, 0
        %v1937 = vsel %vm457, %v412, 0
        %v1940 = vsel %vm457, %v413, 0
        %v1943 = vsel %vm457, %v414, 0
        %v1946 = vsel %vm457, %v415, 0
        %v1949 = vsel %vm457, %v416, 0
        %v1952 = vsel %vm457, %v417, 0
        %v1955 = vsel %vm457, %v418, 0
        %v1958 = vsel %vm457, %v419, 0
        %v1961 = vsel %vm457, %v420, 0
        %v1964 = vsel %vm457, %v421, 0
        %v1967 = vsel %vm457, %v422, 0
        %v1970 = vsel %vm457, %v423, 0
        %v1973 = vsel %vm457, %v424, 0
        %1975 = vmatpush.msra.mxu0 0.0
        %1976 = vmatpush.msra.mxu0 0.0
        %1977 = vmatpush.msra.mxu0 0.0
        %1978 = vmatpush.msra.mxu0 0.0
        %1979 = vmatpush.msra.mxu0 0.0
        %1980 = vmatpush.msra.mxu0 0.0
        %1981 = vmatpush.msra.mxu0 0.0
        %1982 = vmatpush.msra.mxu0 0.0
        %1983 = vmatpush.msra.mxu0 0.0
        %1984 = vmatpush.msra.mxu0 0.0
        %1985 = vmatpush.msra.mxu0 0.0
        %1986 = vmatpush.msra.mxu0 0.0
        %1987 = vmatpush.msra.mxu0 0.0
        %1988 = vmatpush.msra.mxu0 0.0
        %1989 = vmatpush.msra.mxu0 %v196
        %1990 = vmatpush.msra.mxu0 %v195
        %1991 = vmatmul.f32.gmra.mxu0 %v1928
        %v1992 = vpop.f32.mrf.mxu0
        %v1993 = vadd.f32 0.0, %v1992
        %1994 = vmatmul.f32.gmra.mxu0 %v1931
        %v1995 = vpop.f32.mrf.mxu0
        %v1996 = vadd.f32 0.0, %v1995
        %1997 = vmatmul.f32.gmra.mxu0 %v1934
        %v1998 = vpop.f32.mrf.mxu0
        %v1999 = vadd.f32 0.0, %v1998
        %2000 = vmatmul.f32.gmra.mxu0 %v1937
        %v2001 = vpop.f32.mrf.mxu0
        %v2002 = vadd.f32 0.0, %v2001
        %2003 = vmatmul.f32.gmra.mxu0 %v1940
        %v2004 = vpop.f32.mrf.mxu0
        %v2005 = vadd.f32 0.0, %v2004
        %2006 = vmatmul.f32.gmra.mxu0 %v1943
        %v2007 = vpop.f32.mrf.mxu0
        %v2008 = vadd.f32 0.0, %v2007
        %2009 = vmatmul.f32.gmra.mxu0 %v1946
        %v2010 = vpop.f32.mrf.mxu0
        %v2011 = vadd.f32 0.0, %v2010
        %2012 = vmatmul.f32.gmra.mxu0 %v1949
        %v2013 = vpop.f32.mrf.mxu0
        %v2014 = vadd.f32 0.0, %v2013
        %2015 = vmatmul.f32.gmra.mxu0 %v1952
        %v2016 = vpop.f32.mrf.mxu0
        %v2017 = vadd.f32 0.0, %v2016
        %2018 = vmatmul.f32.gmra.mxu0 %v1955
        %v2019 = vpop.f32.mrf.mxu0
        %v2020 = vadd.f32 0.0, %v2019
        %2021 = vmatmul.f32.gmra.mxu0 %v1958
        %v2022 = vpop.f32.mrf.mxu0
        %v2023 = vadd.f32 0.0, %v2022
        %2024 = vmatmul.f32.gmra.mxu0 %v1961
        %v2025 = vpop.f32.mrf.mxu0
        %v2026 = vadd.f32 0.0, %v2025
        %2027 = vmatmul.f32.gmra.mxu0 %v1964
        %v2028 = vpop.f32.mrf.mxu0
        %v2029 = vadd.f32 0.0, %v2028
        %2030 = vmatmul.f32.gmra.mxu0 %v1967
        %v2031 = vpop.f32.mrf.mxu0
        %v2032 = vadd.f32 0.0, %v2031
        %2033 = vmatmul.f32.gmra.mxu0 %v1970
        %v2034 = vpop.f32.mrf.mxu0
        %v2035 = vadd.f32 0.0, %v2034
        %2036 = vmatmul.f32.gmra.mxu0 %v1973
        %v2037 = vpop.f32.mrf.mxu0
        %v2038 = vadd.f32 0.0, %v2037
        %2039 = vdwg.mxu0
        %v2041 = vsel %vm457, %v425, 0
        %v2044 = vsel %vm457, %v426, 0
        %v2047 = vsel %vm457, %v427, 0
        %v2050 = vsel %vm457, %v428, 0
        %v2053 = vsel %vm457, %v429, 0
        %v2056 = vsel %vm457, %v430, 0
        %v2059 = vsel %vm457, %v431, 0
        %v2062 = vsel %vm457, %v432, 0
        %v2065 = vsel %vm457, %v433, 0
        %v2068 = vsel %vm457, %v434, 0
        %v2071 = vsel %vm457, %v435, 0
        %v2074 = vsel %vm457, %v436, 0
        %v2077 = vsel %vm457, %v437, 0
        %v2080 = vsel %vm457, %v438, 0
        %v2083 = vsel %vm457, %v439, 0
        %v2086 = vsel %vm457, %v440, 0
        %2088 = vmatpush.msra.mxu0 0.0
        %2089 = vmatpush.msra.mxu0 0.0
        %2090 = vmatpush.msra.mxu0 0.0
        %2091 = vmatpush.msra.mxu0 0.0
        %2092 = vmatpush.msra.mxu0 0.0
        %2093 = vmatpush.msra.mxu0 0.0
        %2094 = vmatpush.msra.mxu0 0.0
        %2095 = vmatpush.msra.mxu0 0.0
        %2096 = vmatpush.msra.mxu0 0.0
        %2097 = vmatpush.msra.mxu0 0.0
        %2098 = vmatpush.msra.mxu0 0.0
        %2099 = vmatpush.msra.mxu0 0.0
        %2100 = vmatpush.msra.mxu0 0.0
        %2101 = vmatpush.msra.mxu0 0.0
        %2102 = vmatpush.msra.mxu0 %v198
        %2103 = vmatpush.msra.mxu0 %v197
        %2104 = vmatmul.f32.gmra.mxu0 %v2041
        %v2105 = vpop.f32.mrf.mxu0
        %v2106 = vadd.f32 0.0, %v2105
        %2107 = vmatmul.f32.gmra.mxu0 %v2044
        %v2108 = vpop.f32.mrf.mxu0
        %v2109 = vadd.f32 0.0, %v2108
        %2110 = vmatmul.f32.gmra.mxu0 %v2047
        %v2111 = vpop.f32.mrf.mxu0
        %v2112 = vadd.f32 0.0, %v2111
        %2113 = vmatmul.f32.gmra.mxu0 %v2050
        %v2114 = vpop.f32.mrf.mxu0
        %v2115 = vadd.f32 0.0, %v2114
        %2116 = vmatmul.f32.gmra.mxu0 %v2053
        %v2117 = vpop.f32.mrf.mxu0
        %v2118 = vadd.f32 0.0, %v2117
        %2119 = vmatmul.f32.gmra.mxu0 %v2056
        %v2120 = vpop.f32.mrf.mxu0
        %v2121 = vadd.f32 0.0, %v2120
        %2122 = vmatmul.f32.gmra.mxu0 %v2059
        %v2123 = vpop.f32.mrf.mxu0
        %v2124 = vadd.f32 0.0, %v2123
        %2125 = vmatmul.f32.gmra.mxu0 %v2062
        %v2126 = vpop.f32.mrf.mxu0
        %v2127 = vadd.f32 0.0, %v2126
        %2128 = vmatmul.f32.gmra.mxu0 %v2065
        %v2129 = vpop.f32.mrf.mxu0
        %v2130 = vadd.f32 0.0, %v2129
        %2131 = vmatmul.f32.gmra.mxu0 %v2068
        %v2132 = vpop.f32.mrf.mxu0
        %v2133 = vadd.f32 0.0, %v2132
        %2134 = vmatmul.f32.gmra.mxu0 %v2071
        %v2135 = vpop.f32.mrf.mxu0
        %v2136 = vadd.f32 0.0, %v2135
        %2137 = vmatmul.f32.gmra.mxu0 %v2074
        %v2138 = vpop.f32.mrf.mxu0
        %v2139 = vadd.f32 0.0, %v2138
        %2140 = vmatmul.f32.gmra.mxu0 %v2077
        %v2141 = vpop.f32.mrf.mxu0
        %v2142 = vadd.f32 0.0, %v2141
        %2143 = vmatmul.f32.gmra.mxu0 %v2080
        %v2144 = vpop.f32.mrf.mxu0
        %v2145 = vadd.f32 0.0, %v2144
        %2146 = vmatmul.f32.gmra.mxu0 %v2083
        %v2147 = vpop.f32.mrf.mxu0
        %v2148 = vadd.f32 0.0, %v2147
        %2149 = vmatmul.f32.gmra.mxu0 %v2086
        %v2150 = vpop.f32.mrf.mxu0
        %v2151 = vadd.f32 0.0, %v2150
        %2152 = vdwg.mxu0
        %v2154 = vsel %vm457, %v441, 0
        %v2157 = vsel %vm457, %v442, 0
        %v2160 = vsel %vm457, %v443, 0
        %v2163 = vsel %vm457, %v444, 0
        %v2166 = vsel %vm457, %v445, 0
        %v2169 = vsel %vm457, %v446, 0
        %v2172 = vsel %vm457, %v447, 0
        %v2175 = vsel %vm457, %v448, 0
        %v2178 = vsel %vm457, %v449, 0
        %v2181 = vsel %vm457, %v450, 0
        %v2184 = vsel %vm457, %v451, 0
        %v2187 = vsel %vm457, %v452, 0
        %v2190 = vsel %vm457, %v453, 0
        %v2193 = vsel %vm457, %v454, 0
        %v2196 = vsel %vm457, %v455, 0
        %v2199 = vsel %vm457, %v456, 0
        %2201 = vmatpush.msra.mxu0 0.0
        %2202 = vmatpush.msra.mxu0 0.0
        %2203 = vmatpush.msra.mxu0 0.0
        %2204 = vmatpush.msra.mxu0 0.0
        %2205 = vmatpush.msra.mxu0 0.0
        %2206 = vmatpush.msra.mxu0 0.0
        %2207 = vmatpush.msra.mxu0 0.0
        %2208 = vmatpush.msra.mxu0 0.0
        %2209 = vmatpush.msra.mxu0 0.0
        %2210 = vmatpush.msra.mxu0 0.0
        %2211 = vmatpush.msra.mxu0 0.0
        %2212 = vmatpush.msra.mxu0 0.0
        %2213 = vmatpush.msra.mxu0 0.0
        %2214 = vmatpush.msra.mxu0 0.0
        %2215 = vmatpush.msra.mxu0 %v200
        %2216 = vmatpush.msra.mxu0 %v199
        %2217 = vmatmul.f32.gmra.mxu0 %v2154
        %v2218 = vpop.f32.mrf.mxu0
        %v2219 = vadd.f32 0.0, %v2218
        %2220 = vmatmul.f32.gmra.mxu0 %v2157
        %v2221 = vpop.f32.mrf.mxu0
        %v2222 = vadd.f32 0.0, %v2221
        %2223 = vmatmul.f32.gmra.mxu0 %v2160
        %v2224 = vpop.f32.mrf.mxu0
        %v2225 = vadd.f32 0.0, %v2224
        %2226 = vmatmul.f32.gmra.mxu0 %v2163
        %v2227 = vpop.f32.mrf.mxu0
        %v2228 = vadd.f32 0.0, %v2227
        %2229 = vmatmul.f32.gmra.mxu0 %v2166
        %v2230 = vpop.f32.mrf.mxu0
        %v2231 = vadd.f32 0.0, %v2230
        %2232 = vmatmul.f32.gmra.mxu0 %v2169
        %v2233 = vpop.f32.mrf.mxu0
        %v2234 = vadd.f32 0.0, %v2233
        %2235 = vmatmul.f32.gmra.mxu0 %v2172
        %v2236 = vpop.f32.mrf.mxu0
        %v2237 = vadd.f32 0.0, %v2236
        %2238 = vmatmul.f32.gmra.mxu0 %v2175
        %v2239 = vpop.f32.mrf.mxu0
        %v2240 = vadd.f32 0.0, %v2239
        %2241 = vmatmul.f32.gmra.mxu0 %v2178
        %v2242 = vpop.f32.mrf.mxu0
        %v2243 = vadd.f32 0.0, %v2242
        %2244 = vmatmul.f32.gmra.mxu0 %v2181
        %v2245 = vpop.f32.mrf.mxu0
        %v2246 = vadd.f32 0.0, %v2245
        %2247 = vmatmul.f32.gmra.mxu0 %v2184
        %v2248 = vpop.f32.mrf.mxu0
        %v2249 = vadd.f32 0.0, %v2248
        %2250 = vmatmul.f32.gmra.mxu0 %v2187
        %v2251 = vpop.f32.mrf.mxu0
        %v2252 = vadd.f32 0.0, %v2251
        %2253 = vmatmul.f32.gmra.mxu0 %v2190
        %v2254 = vpop.f32.mrf.mxu0
        %v2255 = vadd.f32 0.0, %v2254
        %2256 = vmatmul.f32.gmra.mxu0 %v2193
        %v2257 = vpop.f32.mrf.mxu0
        %v2258 = vadd.f32 0.0, %v2257
        %2259 = vmatmul.f32.gmra.mxu0 %v2196
        %v2260 = vpop.f32.mrf.mxu0
        %v2261 = vadd.f32 0.0, %v2260
        %2262 = vmatmul.f32.gmra.mxu0 %v2199
        %v2263 = vpop.f32.mrf.mxu0
        %v2264 = vadd.f32 0.0, %v2263
        %2265 = vdwg.mxu0
        %v2266 = vld [vmem:[%s2] sm:$0xff]
        %v2267 = vld [vmem:[%s2 + $0x8] sm:$0xff]
        %v2268 = vld [vmem:[%s2 + $0x10] sm:$0xff]
        %v2269 = vld [vmem:[%s2 + $0x18] sm:$0xff]
        %v2270 = vld [vmem:[%s2 + $0x20] sm:$0xff]
        %v2271 = vld [vmem:[%s2 + $0x28] sm:$0xff]
        %v2272 = vld [vmem:[%s2 + $0x30] sm:$0xff]
        %v2273 = vld [vmem:[%s2 + $0x38] sm:$0xff]
        %v2274 = vld [vmem:[%s2 + $0x40] sm:$0xff]
        %v2275 = vld [vmem:[%s2 + $0x48] sm:$0xff]
        %v2276 = vld [vmem:[%s2 + $0x50] sm:$0xff]
        %v2277 = vld [vmem:[%s2 + $0x58] sm:$0xff]
        %v2278 = vld [vmem:[%s2 + $0x60] sm:$0xff]
        %v2279 = vld [vmem:[%s2 + $0x68] sm:$0xff]
        %v2280 = vld [vmem:[%s2 + $0x70] sm:$0xff]
        %v2281 = vld [vmem:[%s2 + $0x78] sm:$0xff]
        %v2282 = vld [vmem:[%s2 + $0x80] sm:$0xff]
        %v2283 = vld [vmem:[%s2 + $0x88] sm:$0xff]
        %v2284 = vld [vmem:[%s2 + $0x90] sm:$0xff]
        %v2285 = vld [vmem:[%s2 + $0x98] sm:$0xff]
        %v2286 = vld [vmem:[%s2 + $0xa0] sm:$0xff]
        %v2287 = vld [vmem:[%s2 + $0xa8] sm:$0xff]
        %v2288 = vld [vmem:[%s2 + $0xb0] sm:$0xff]
        %v2289 = vld [vmem:[%s2 + $0xb8] sm:$0xff]
        %v2290 = vld [vmem:[%s2 + $0xc0] sm:$0xff]
        %v2291 = vld [vmem:[%s2 + $0xc8] sm:$0xff]
        %v2292 = vld [vmem:[%s2 + $0xd0] sm:$0xff]
        %v2293 = vld [vmem:[%s2 + $0xd8] sm:$0xff]
        %v2294 = vld [vmem:[%s2 + $0xe0] sm:$0xff]
        %v2295 = vld [vmem:[%s2 + $0xe8] sm:$0xff]
        %v2296 = vld [vmem:[%s2 + $0xf0] sm:$0xff]
        %v2297 = vld [vmem:[%s2 + $0xf8] sm:$0xff]
        %v2299 = vsel %vm457, %v524, 0
        %v2302 = vsel %vm457, %v527, 0
        %v2305 = vsel %vm457, %v530, 0
        %v2308 = vsel %vm457, %v533, 0
        %v2311 = vsel %vm457, %v536, 0
        %v2314 = vsel %vm457, %v539, 0
        %v2317 = vsel %vm457, %v542, 0
        %v2320 = vsel %vm457, %v545, 0
        %v2323 = vsel %vm457, %v548, 0
        %v2326 = vsel %vm457, %v551, 0
        %v2329 = vsel %vm457, %v554, 0
        %v2332 = vsel %vm457, %v557, 0
        %v2335 = vsel %vm457, %v560, 0
        %v2338 = vsel %vm457, %v563, 0
        %v2341 = vsel %vm457, %v566, 0
        %v2344 = vsel %vm457, %v569, 0
        %2346 = vmatpush.msra.mxu0 0.0
        %2347 = vmatpush.msra.mxu0 0.0
        %2348 = vmatpush.msra.mxu0 0.0
        %2349 = vmatpush.msra.mxu0 0.0
        %2350 = vmatpush.msra.mxu0 0.0
        %2351 = vmatpush.msra.mxu0 0.0
        %2352 = vmatpush.msra.mxu0 0.0
        %2353 = vmatpush.msra.mxu0 0.0
        %2354 = vmatpush.msra.mxu0 0.0
        %2355 = vmatpush.msra.mxu0 0.0
        %2356 = vmatpush.msra.mxu0 0.0
        %2357 = vmatpush.msra.mxu0 0.0
        %2358 = vmatpush.msra.mxu0 0.0
        %2359 = vmatpush.msra.mxu0 0.0
        %2360 = vmatpush.msra.mxu0 %v2267
        %2361 = vmatpush.msra.mxu0 %v2266
        %2362 = vmatmul.f32.gmra.mxu0 %v2299
        %v2363 = vpop.f32.mrf.mxu0
        %v2364 = vadd.f32 0.0, %v2363
        %2365 = vmatmul.f32.gmra.mxu0 %v2302
        %v2366 = vpop.f32.mrf.mxu0
        %v2367 = vadd.f32 0.0, %v2366
        %2368 = vmatmul.f32.gmra.mxu0 %v2305
        %v2369 = vpop.f32.mrf.mxu0
        %v2370 = vadd.f32 0.0, %v2369
        %2371 = vmatmul.f32.gmra.mxu0 %v2308
        %v2372 = vpop.f32.mrf.mxu0
        %v2373 = vadd.f32 0.0, %v2372
        %2374 = vmatmul.f32.gmra.mxu0 %v2311
        %v2375 = vpop.f32.mrf.mxu0
        %v2376 = vadd.f32 0.0, %v2375
        %2377 = vmatmul.f32.gmra.mxu0 %v2314
        %v2378 = vpop.f32.mrf.mxu0
        %v2379 = vadd.f32 0.0, %v2378
        %2380 = vmatmul.f32.gmra.mxu0 %v2317
        %v2381 = vpop.f32.mrf.mxu0
        %v2382 = vadd.f32 0.0, %v2381
        %2383 = vmatmul.f32.gmra.mxu0 %v2320
        %v2384 = vpop.f32.mrf.mxu0
        %v2385 = vadd.f32 0.0, %v2384
        %2386 = vmatmul.f32.gmra.mxu0 %v2323
        %v2387 = vpop.f32.mrf.mxu0
        %v2388 = vadd.f32 0.0, %v2387
        %2389 = vmatmul.f32.gmra.mxu0 %v2326
        %v2390 = vpop.f32.mrf.mxu0
        %v2391 = vadd.f32 0.0, %v2390
        %2392 = vmatmul.f32.gmra.mxu0 %v2329
        %v2393 = vpop.f32.mrf.mxu0
        %v2394 = vadd.f32 0.0, %v2393
        %2395 = vmatmul.f32.gmra.mxu0 %v2332
        %v2396 = vpop.f32.mrf.mxu0
        %v2397 = vadd.f32 0.0, %v2396
        %2398 = vmatmul.f32.gmra.mxu0 %v2335
        %v2399 = vpop.f32.mrf.mxu0
        %v2400 = vadd.f32 0.0, %v2399
        %2401 = vmatmul.f32.gmra.mxu0 %v2338
        %v2402 = vpop.f32.mrf.mxu0
        %v2403 = vadd.f32 0.0, %v2402
        %2404 = vmatmul.f32.gmra.mxu0 %v2341
        %v2405 = vpop.f32.mrf.mxu0
        %v2406 = vadd.f32 0.0, %v2405
        %2407 = vmatmul.f32.gmra.mxu0 %v2344
        %v2408 = vpop.f32.mrf.mxu0
        %v2409 = vadd.f32 0.0, %v2408
        %2410 = vdwg.mxu0
        %v2412 = vsel %vm457, %v637, 0
        %v2415 = vsel %vm457, %v640, 0
        %v2418 = vsel %vm457, %v643, 0
        %v2421 = vsel %vm457, %v646, 0
        %v2424 = vsel %vm457, %v649, 0
        %v2427 = vsel %vm457, %v652, 0
        %v2430 = vsel %vm457, %v655, 0
        %v2433 = vsel %vm457, %v658, 0
        %v2436 = vsel %vm457, %v661, 0
        %v2439 = vsel %vm457, %v664, 0
        %v2442 = vsel %vm457, %v667, 0
        %v2445 = vsel %vm457, %v670, 0
        %v2448 = vsel %vm457, %v673, 0
        %v2451 = vsel %vm457, %v676, 0
        %v2454 = vsel %vm457, %v679, 0
        %v2457 = vsel %vm457, %v682, 0
        %2459 = vmatpush.msra.mxu0 0.0
        %2460 = vmatpush.msra.mxu0 0.0
        %2461 = vmatpush.msra.mxu0 0.0
        %2462 = vmatpush.msra.mxu0 0.0
        %2463 = vmatpush.msra.mxu0 0.0
        %2464 = vmatpush.msra.mxu0 0.0
        %2465 = vmatpush.msra.mxu0 0.0
        %2466 = vmatpush.msra.mxu0 0.0
        %2467 = vmatpush.msra.mxu0 0.0
        %2468 = vmatpush.msra.mxu0 0.0
        %2469 = vmatpush.msra.mxu0 0.0
        %2470 = vmatpush.msra.mxu0 0.0
        %2471 = vmatpush.msra.mxu0 0.0
        %2472 = vmatpush.msra.mxu0 0.0
        %2473 = vmatpush.msra.mxu0 %v2269
        %2474 = vmatpush.msra.mxu0 %v2268
        %2475 = vmatmul.f32.gmra.mxu0 %v2412
        %v2476 = vpop.f32.mrf.mxu0
        %v2477 = vadd.f32 0.0, %v2476
        %2478 = vmatmul.f32.gmra.mxu0 %v2415
        %v2479 = vpop.f32.mrf.mxu0
        %v2480 = vadd.f32 0.0, %v2479
        %2481 = vmatmul.f32.gmra.mxu0 %v2418
        %v2482 = vpop.f32.mrf.mxu0
        %v2483 = vadd.f32 0.0, %v2482
        %2484 = vmatmul.f32.gmra.mxu0 %v2421
        %v2485 = vpop.f32.mrf.mxu0
        %v2486 = vadd.f32 0.0, %v2485
        %2487 = vmatmul.f32.gmra.mxu0 %v2424
        %v2488 = vpop.f32.mrf.mxu0
        %v2489 = vadd.f32 0.0, %v2488
        %2490 = vmatmul.f32.gmra.mxu0 %v2427
        %v2491 = vpop.f32.mrf.mxu0
        %v2492 = vadd.f32 0.0, %v2491
        %2493 = vmatmul.f32.gmra.mxu0 %v2430
        %v2494 = vpop.f32.mrf.mxu0
        %v2495 = vadd.f32 0.0, %v2494
        %2496 = vmatmul.f32.gmra.mxu0 %v2433
        %v2497 = vpop.f32.mrf.mxu0
        %v2498 = vadd.f32 0.0, %v2497
        %2499 = vmatmul.f32.gmra.mxu0 %v2436
        %v2500 = vpop.f32.mrf.mxu0
        %v2501 = vadd.f32 0.0, %v2500
        %2502 = vmatmul.f32.gmra.mxu0 %v2439
        %v2503 = vpop.f32.mrf.mxu0
        %v2504 = vadd.f32 0.0, %v2503
        %2505 = vmatmul.f32.gmra.mxu0 %v2442
        %v2506 = vpop.f32.mrf.mxu0
        %v2507 = vadd.f32 0.0, %v2506
        %2508 = vmatmul.f32.gmra.mxu0 %v2445
        %v2509 = vpop.f32.mrf.mxu0
        %v2510 = vadd.f32 0.0, %v2509
        %2511 = vmatmul.f32.gmra.mxu0 %v2448
        %v2512 = vpop.f32.mrf.mxu0
        %v2513 = vadd.f32 0.0, %v2512
        %2514 = vmatmul.f32.gmra.mxu0 %v2451
        %v2515 = vpop.f32.mrf.mxu0
        %v2516 = vadd.f32 0.0, %v2515
        %2517 = vmatmul.f32.gmra.mxu0 %v2454
        %v2518 = vpop.f32.mrf.mxu0
        %v2519 = vadd.f32 0.0, %v2518
        %2520 = vmatmul.f32.gmra.mxu0 %v2457
        %v2521 = vpop.f32.mrf.mxu0
        %v2522 = vadd.f32 0.0, %v2521
        %2523 = vdwg.mxu0
        %v2525 = vsel %vm457, %v750, 0
        %v2528 = vsel %vm457, %v753, 0
        %v2531 = vsel %vm457, %v756, 0
        %v2534 = vsel %vm457, %v759, 0
        %v2537 = vsel %vm457, %v762, 0
        %v2540 = vsel %vm457, %v765, 0
        %v2543 = vsel %vm457, %v768, 0
        %v2546 = vsel %vm457, %v771, 0
        %v2549 = vsel %vm457, %v774, 0
        %v2552 = vsel %vm457, %v777, 0
        %v2555 = vsel %vm457, %v780, 0
        %v2558 = vsel %vm457, %v783, 0
        %v2561 = vsel %vm457, %v786, 0
        %v2564 = vsel %vm457, %v789, 0
        %v2567 = vsel %vm457, %v792, 0
        %v2570 = vsel %vm457, %v795, 0
        %2572 = vmatpush.msra.mxu0 0.0
        %2573 = vmatpush.msra.mxu0 0.0
        %2574 = vmatpush.msra.mxu0 0.0
        %2575 = vmatpush.msra.mxu0 0.0
        %2576 = vmatpush.msra.mxu0 0.0
        %2577 = vmatpush.msra.mxu0 0.0
        %2578 = vmatpush.msra.mxu0 0.0
        %2579 = vmatpush.msra.mxu0 0.0
        %2580 = vmatpush.msra.mxu0 0.0
        %2581 = vmatpush.msra.mxu0 0.0
        %2582 = vmatpush.msra.mxu0 0.0
        %2583 = vmatpush.msra.mxu0 0.0
        %2584 = vmatpush.msra.mxu0 0.0
        %2585 = vmatpush.msra.mxu0 0.0
        %2586 = vmatpush.msra.mxu0 %v2271
        %2587 = vmatpush.msra.mxu0 %v2270
        %2588 = vmatmul.f32.gmra.mxu0 %v2525
        %v2589 = vpop.f32.mrf.mxu0
        %v2590 = vadd.f32 0.0, %v2589
        %2591 = vmatmul.f32.gmra.mxu0 %v2528
        %v2592 = vpop.f32.mrf.mxu0
        %v2593 = vadd.f32 0.0, %v2592
        %2594 = vmatmul.f32.gmra.mxu0 %v2531
        %v2595 = vpop.f32.mrf.mxu0
        %v2596 = vadd.f32 0.0, %v2595
        %2597 = vmatmul.f32.gmra.mxu0 %v2534
        %v2598 = vpop.f32.mrf.mxu0
        %v2599 = vadd.f32 0.0, %v2598
        %2600 = vmatmul.f32.gmra.mxu0 %v2537
        %v2601 = vpop.f32.mrf.mxu0
        %v2602 = vadd.f32 0.0, %v2601
        %2603 = vmatmul.f32.gmra.mxu0 %v2540
        %v2604 = vpop.f32.mrf.mxu0
        %v2605 = vadd.f32 0.0, %v2604
        %2606 = vmatmul.f32.gmra.mxu0 %v2543
        %v2607 = vpop.f32.mrf.mxu0
        %v2608 = vadd.f32 0.0, %v2607
        %2609 = vmatmul.f32.gmra.mxu0 %v2546
        %v2610 = vpop.f32.mrf.mxu0
        %v2611 = vadd.f32 0.0, %v2610
        %2612 = vmatmul.f32.gmra.mxu0 %v2549
        %v2613 = vpop.f32.mrf.mxu0
        %v2614 = vadd.f32 0.0, %v2613
        %2615 = vmatmul.f32.gmra.mxu0 %v2552
        %v2616 = vpop.f32.mrf.mxu0
        %v2617 = vadd.f32 0.0, %v2616
        %2618 = vmatmul.f32.gmra.mxu0 %v2555
        %v2619 = vpop.f32.mrf.mxu0
        %v2620 = vadd.f32 0.0, %v2619
        %2621 = vmatmul.f32.gmra.mxu0 %v2558
        %v2622 = vpop.f32.mrf.mxu0
        %v2623 = vadd.f32 0.0, %v2622
        %2624 = vmatmul.f32.gmra.mxu0 %v2561
        %v2625 = vpop.f32.mrf.mxu0
        %v2626 = vadd.f32 0.0, %v2625
        %2627 = vmatmul.f32.gmra.mxu0 %v2564
        %v2628 = vpop.f32.mrf.mxu0
        %v2629 = vadd.f32 0.0, %v2628
        %2630 = vmatmul.f32.gmra.mxu0 %v2567
        %v2631 = vpop.f32.mrf.mxu0
        %v2632 = vadd.f32 0.0, %v2631
        %2633 = vmatmul.f32.gmra.mxu0 %v2570
        %v2634 = vpop.f32.mrf.mxu0
        %v2635 = vadd.f32 0.0, %v2634
        %2636 = vdwg.mxu0
        %v2638 = vsel %vm457, %v863, 0
        %v2641 = vsel %vm457, %v866, 0
        %v2644 = vsel %vm457, %v869, 0
        %v2647 = vsel %vm457, %v872, 0
        %v2650 = vsel %vm457, %v875, 0
        %v2653 = vsel %vm457, %v878, 0
        %v2656 = vsel %vm457, %v881, 0
        %v2659 = vsel %vm457, %v884, 0
        %v2662 = vsel %vm457, %v887, 0
        %v2665 = vsel %vm457, %v890, 0
        %v2668 = vsel %vm457, %v893, 0
        %v2671 = vsel %vm457, %v896, 0
        %v2674 = vsel %vm457, %v899, 0
        %v2677 = vsel %vm457, %v902, 0
        %v2680 = vsel %vm457, %v905, 0
        %v2683 = vsel %vm457, %v908, 0
        %2685 = vmatpush.msra.mxu0 0.0
        %2686 = vmatpush.msra.mxu0 0.0
        %2687 = vmatpush.msra.mxu0 0.0
        %2688 = vmatpush.msra.mxu0 0.0
        %2689 = vmatpush.msra.mxu0 0.0
        %2690 = vmatpush.msra.mxu0 0.0
        %2691 = vmatpush.msra.mxu0 0.0
        %2692 = vmatpush.msra.mxu0 0.0
        %2693 = vmatpush.msra.mxu0 0.0
        %2694 = vmatpush.msra.mxu0 0.0
        %2695 = vmatpush.msra.mxu0 0.0
        %2696 = vmatpush.msra.mxu0 0.0
        %2697 = vmatpush.msra.mxu0 0.0
        %2698 = vmatpush.msra.mxu0 0.0
        %2699 = vmatpush.msra.mxu0 %v2273
        %2700 = vmatpush.msra.mxu0 %v2272
        %2701 = vmatmul.f32.gmra.mxu0 %v2638
        %v2702 = vpop.f32.mrf.mxu0
        %v2703 = vadd.f32 0.0, %v2702
        %2704 = vmatmul.f32.gmra.mxu0 %v2641
        %v2705 = vpop.f32.mrf.mxu0
        %v2706 = vadd.f32 0.0, %v2705
        %2707 = vmatmul.f32.gmra.mxu0 %v2644
        %v2708 = vpop.f32.mrf.mxu0
        %v2709 = vadd.f32 0.0, %v2708
        %2710 = vmatmul.f32.gmra.mxu0 %v2647
        %v2711 = vpop.f32.mrf.mxu0
        %v2712 = vadd.f32 0.0, %v2711
        %2713 = vmatmul.f32.gmra.mxu0 %v2650
        %v2714 = vpop.f32.mrf.mxu0
        %v2715 = vadd.f32 0.0, %v2714
        %2716 = vmatmul.f32.gmra.mxu0 %v2653
        %v2717 = vpop.f32.mrf.mxu0
        %v2718 = vadd.f32 0.0, %v2717
        %2719 = vmatmul.f32.gmra.mxu0 %v2656
        %v2720 = vpop.f32.mrf.mxu0
        %v2721 = vadd.f32 0.0, %v2720
        %2722 = vmatmul.f32.gmra.mxu0 %v2659
        %v2723 = vpop.f32.mrf.mxu0
        %v2724 = vadd.f32 0.0, %v2723
        %2725 = vmatmul.f32.gmra.mxu0 %v2662
        %v2726 = vpop.f32.mrf.mxu0
        %v2727 = vadd.f32 0.0, %v2726
        %2728 = vmatmul.f32.gmra.mxu0 %v2665
        %v2729 = vpop.f32.mrf.mxu0
        %v2730 = vadd.f32 0.0, %v2729
        %2731 = vmatmul.f32.gmra.mxu0 %v2668
        %v2732 = vpop.f32.mrf.mxu0
        %v2733 = vadd.f32 0.0, %v2732
        %2734 = vmatmul.f32.gmra.mxu0 %v2671
        %v2735 = vpop.f32.mrf.mxu0
        %v2736 = vadd.f32 0.0, %v2735
        %2737 = vmatmul.f32.gmra.mxu0 %v2674
        %v2738 = vpop.f32.mrf.mxu0
        %v2739 = vadd.f32 0.0, %v2738
        %2740 = vmatmul.f32.gmra.mxu0 %v2677
        %v2741 = vpop.f32.mrf.mxu0
        %v2742 = vadd.f32 0.0, %v2741
        %2743 = vmatmul.f32.gmra.mxu0 %v2680
        %v2744 = vpop.f32.mrf.mxu0
        %v2745 = vadd.f32 0.0, %v2744
        %2746 = vmatmul.f32.gmra.mxu0 %v2683
        %v2747 = vpop.f32.mrf.mxu0
        %v2748 = vadd.f32 0.0, %v2747
        %2749 = vdwg.mxu0
        %v2751 = vsel %vm457, %v976, 0
        %v2754 = vsel %vm457, %v979, 0
        %v2757 = vsel %vm457, %v982, 0
        %v2760 = vsel %vm457, %v985, 0
        %v2763 = vsel %vm457, %v988, 0
        %v2766 = vsel %vm457, %v991, 0
        %v2769 = vsel %vm457, %v994, 0
        %v2772 = vsel %vm457, %v997, 0
        %v2775 = vsel %vm457, %v1000, 0
        %v2778 = vsel %vm457, %v1003, 0
        %v2781 = vsel %vm457, %v1006, 0
        %v2784 = vsel %vm457, %v1009, 0
        %v2787 = vsel %vm457, %v1012, 0
        %v2790 = vsel %vm457, %v1015, 0
        %v2793 = vsel %vm457, %v1018, 0
        %v2796 = vsel %vm457, %v1021, 0
        %2798 = vmatpush.msra.mxu0 0.0
        %2799 = vmatpush.msra.mxu0 0.0
        %2800 = vmatpush.msra.mxu0 0.0
        %2801 = vmatpush.msra.mxu0 0.0
        %2802 = vmatpush.msra.mxu0 0.0
        %2803 = vmatpush.msra.mxu0 0.0
        %2804 = vmatpush.msra.mxu0 0.0
        %2805 = vmatpush.msra.mxu0 0.0
        %2806 = vmatpush.msra.mxu0 0.0
        %2807 = vmatpush.msra.mxu0 0.0
        %2808 = vmatpush.msra.mxu0 0.0
        %2809 = vmatpush.msra.mxu0 0.0
        %2810 = vmatpush.msra.mxu0 0.0
        %2811 = vmatpush.msra.mxu0 0.0
        %2812 = vmatpush.msra.mxu0 %v2275
        %2813 = vmatpush.msra.mxu0 %v2274
        %2814 = vmatmul.f32.gmra.mxu0 %v2751
        %v2815 = vpop.f32.mrf.mxu0
        %v2816 = vadd.f32 0.0, %v2815
        %2817 = vmatmul.f32.gmra.mxu0 %v2754
        %v2818 = vpop.f32.mrf.mxu0
        %v2819 = vadd.f32 0.0, %v2818
        %2820 = vmatmul.f32.gmra.mxu0 %v2757
        %v2821 = vpop.f32.mrf.mxu0
        %v2822 = vadd.f32 0.0, %v2821
        %2823 = vmatmul.f32.gmra.mxu0 %v2760
        %v2824 = vpop.f32.mrf.mxu0
        %v2825 = vadd.f32 0.0, %v2824
        %2826 = vmatmul.f32.gmra.mxu0 %v2763
        %v2827 = vpop.f32.mrf.mxu0
        %v2828 = vadd.f32 0.0, %v2827
        %2829 = vmatmul.f32.gmra.mxu0 %v2766
        %v2830 = vpop.f32.mrf.mxu0
        %v2831 = vadd.f32 0.0, %v2830
        %2832 = vmatmul.f32.gmra.mxu0 %v2769
        %v2833 = vpop.f32.mrf.mxu0
        %v2834 = vadd.f32 0.0, %v2833
        %2835 = vmatmul.f32.gmra.mxu0 %v2772
        %v2836 = vpop.f32.mrf.mxu0
        %v2837 = vadd.f32 0.0, %v2836
        %2838 = vmatmul.f32.gmra.mxu0 %v2775
        %v2839 = vpop.f32.mrf.mxu0
        %v2840 = vadd.f32 0.0, %v2839
        %2841 = vmatmul.f32.gmra.mxu0 %v2778
        %v2842 = vpop.f32.mrf.mxu0
        %v2843 = vadd.f32 0.0, %v2842
        %2844 = vmatmul.f32.gmra.mxu0 %v2781
        %v2845 = vpop.f32.mrf.mxu0
        %v2846 = vadd.f32 0.0, %v2845
        %2847 = vmatmul.f32.gmra.mxu0 %v2784
        %v2848 = vpop.f32.mrf.mxu0
        %v2849 = vadd.f32 0.0, %v2848
        %2850 = vmatmul.f32.gmra.mxu0 %v2787
        %v2851 = vpop.f32.mrf.mxu0
        %v2852 = vadd.f32 0.0, %v2851
        %2853 = vmatmul.f32.gmra.mxu0 %v2790
        %v2854 = vpop.f32.mrf.mxu0
        %v2855 = vadd.f32 0.0, %v2854
        %2856 = vmatmul.f32.gmra.mxu0 %v2793
        %v2857 = vpop.f32.mrf.mxu0
        %v2858 = vadd.f32 0.0, %v2857
        %2859 = vmatmul.f32.gmra.mxu0 %v2796
        %v2860 = vpop.f32.mrf.mxu0
        %v2861 = vadd.f32 0.0, %v2860
        %2862 = vdwg.mxu0
        %v2864 = vsel %vm457, %v1089, 0
        %v2867 = vsel %vm457, %v1092, 0
        %v2870 = vsel %vm457, %v1095, 0
        %v2873 = vsel %vm457, %v1098, 0
        %v2876 = vsel %vm457, %v1101, 0
        %v2879 = vsel %vm457, %v1104, 0
        %v2882 = vsel %vm457, %v1107, 0
        %v2885 = vsel %vm457, %v1110, 0
        %v2888 = vsel %vm457, %v1113, 0
        %v2891 = vsel %vm457, %v1116, 0
        %v2894 = vsel %vm457, %v1119, 0
        %v2897 = vsel %vm457, %v1122, 0
        %v2900 = vsel %vm457, %v1125, 0
        %v2903 = vsel %vm457, %v1128, 0
        %v2906 = vsel %vm457, %v1131, 0
        %v2909 = vsel %vm457, %v1134, 0
        %2911 = vmatpush.msra.mxu0 0.0
        %2912 = vmatpush.msra.mxu0 0.0
        %2913 = vmatpush.msra.mxu0 0.0
        %2914 = vmatpush.msra.mxu0 0.0
        %2915 = vmatpush.msra.mxu0 0.0
        %2916 = vmatpush.msra.mxu0 0.0
        %2917 = vmatpush.msra.mxu0 0.0
        %2918 = vmatpush.msra.mxu0 0.0
        %2919 = vmatpush.msra.mxu0 0.0
        %2920 = vmatpush.msra.mxu0 0.0
        %2921 = vmatpush.msra.mxu0 0.0
        %2922 = vmatpush.msra.mxu0 0.0
        %2923 = vmatpush.msra.mxu0 0.0
        %2924 = vmatpush.msra.mxu0 0.0
        %2925 = vmatpush.msra.mxu0 %v2277
        %2926 = vmatpush.msra.mxu0 %v2276
        %2927 = vmatmul.f32.gmra.mxu0 %v2864
        %v2928 = vpop.f32.mrf.mxu0
        %v2929 = vadd.f32 0.0, %v2928
        %2930 = vmatmul.f32.gmra.mxu0 %v2867
        %v2931 = vpop.f32.mrf.mxu0
        %v2932 = vadd.f32 0.0, %v2931
        %2933 = vmatmul.f32.gmra.mxu0 %v2870
        %v2934 = vpop.f32.mrf.mxu0
        %v2935 = vadd.f32 0.0, %v2934
        %2936 = vmatmul.f32.gmra.mxu0 %v2873
        %v2937 = vpop.f32.mrf.mxu0
        %v2938 = vadd.f32 0.0, %v2937
        %2939 = vmatmul.f32.gmra.mxu0 %v2876
        %v2940 = vpop.f32.mrf.mxu0
        %v2941 = vadd.f32 0.0, %v2940
        %2942 = vmatmul.f32.gmra.mxu0 %v2879
        %v2943 = vpop.f32.mrf.mxu0
        %v2944 = vadd.f32 0.0, %v2943
        %2945 = vmatmul.f32.gmra.mxu0 %v2882
        %v2946 = vpop.f32.mrf.mxu0
        %v2947 = vadd.f32 0.0, %v2946
        %2948 = vmatmul.f32.gmra.mxu0 %v2885
        %v2949 = vpop.f32.mrf.mxu0
        %v2950 = vadd.f32 0.0, %v2949
        %2951 = vmatmul.f32.gmra.mxu0 %v2888
        %v2952 = vpop.f32.mrf.mxu0
        %v2953 = vadd.f32 0.0, %v2952
        %2954 = vmatmul.f32.gmra.mxu0 %v2891
        %v2955 = vpop.f32.mrf.mxu0
        %v2956 = vadd.f32 0.0, %v2955
        %2957 = vmatmul.f32.gmra.mxu0 %v2894
        %v2958 = vpop.f32.mrf.mxu0
        %v2959 = vadd.f32 0.0, %v2958
        %2960 = vmatmul.f32.gmra.mxu0 %v2897
        %v2961 = vpop.f32.mrf.mxu0
        %v2962 = vadd.f32 0.0, %v2961
        %2963 = vmatmul.f32.gmra.mxu0 %v2900
        %v2964 = vpop.f32.mrf.mxu0
        %v2965 = vadd.f32 0.0, %v2964
        %2966 = vmatmul.f32.gmra.mxu0 %v2903
        %v2967 = vpop.f32.mrf.mxu0
        %v2968 = vadd.f32 0.0, %v2967
        %2969 = vmatmul.f32.gmra.mxu0 %v2906
        %v2970 = vpop.f32.mrf.mxu0
        %v2971 = vadd.f32 0.0, %v2970
        %2972 = vmatmul.f32.gmra.mxu0 %v2909
        %v2973 = vpop.f32.mrf.mxu0
        %v2974 = vadd.f32 0.0, %v2973
        %2975 = vdwg.mxu0
        %v2977 = vsel %vm457, %v1202, 0
        %v2980 = vsel %vm457, %v1205, 0
        %v2983 = vsel %vm457, %v1208, 0
        %v2986 = vsel %vm457, %v1211, 0
        %v2989 = vsel %vm457, %v1214, 0
        %v2992 = vsel %vm457, %v1217, 0
        %v2995 = vsel %vm457, %v1220, 0
        %v2998 = vsel %vm457, %v1223, 0
        %v3001 = vsel %vm457, %v1226, 0
        %v3004 = vsel %vm457, %v1229, 0
        %v3007 = vsel %vm457, %v1232, 0
        %v3010 = vsel %vm457, %v1235, 0
        %v3013 = vsel %vm457, %v1238, 0
        %v3016 = vsel %vm457, %v1241, 0
        %v3019 = vsel %vm457, %v1244, 0
        %v3022 = vsel %vm457, %v1247, 0
        %3024 = vmatpush.msra.mxu0 0.0
        %3025 = vmatpush.msra.mxu0 0.0
        %3026 = vmatpush.msra.mxu0 0.0
        %3027 = vmatpush.msra.mxu0 0.0
        %3028 = vmatpush.msra.mxu0 0.0
        %3029 = vmatpush.msra.mxu0 0.0
        %3030 = vmatpush.msra.mxu0 0.0
        %3031 = vmatpush.msra.mxu0 0.0
        %3032 = vmatpush.msra.mxu0 0.0
        %3033 = vmatpush.msra.mxu0 0.0
        %3034 = vmatpush.msra.mxu0 0.0
        %3035 = vmatpush.msra.mxu0 0.0
        %3036 = vmatpush.msra.mxu0 0.0
        %3037 = vmatpush.msra.mxu0 0.0
        %3038 = vmatpush.msra.mxu0 %v2279
        %3039 = vmatpush.msra.mxu0 %v2278
        %3040 = vmatmul.f32.gmra.mxu0 %v2977
        %v3041 = vpop.f32.mrf.mxu0
        %v3042 = vadd.f32 0.0, %v3041
        %3043 = vmatmul.f32.gmra.mxu0 %v2980
        %v3044 = vpop.f32.mrf.mxu0
        %v3045 = vadd.f32 0.0, %v3044
        %3046 = vmatmul.f32.gmra.mxu0 %v2983
        %v3047 = vpop.f32.mrf.mxu0
        %v3048 = vadd.f32 0.0, %v3047
        %3049 = vmatmul.f32.gmra.mxu0 %v2986
        %v3050 = vpop.f32.mrf.mxu0
        %v3051 = vadd.f32 0.0, %v3050
        %3052 = vmatmul.f32.gmra.mxu0 %v2989
        %v3053 = vpop.f32.mrf.mxu0
        %v3054 = vadd.f32 0.0, %v3053
        %3055 = vmatmul.f32.gmra.mxu0 %v2992
        %v3056 = vpop.f32.mrf.mxu0
        %v3057 = vadd.f32 0.0, %v3056
        %3058 = vmatmul.f32.gmra.mxu0 %v2995
        %v3059 = vpop.f32.mrf.mxu0
        %v3060 = vadd.f32 0.0, %v3059
        %3061 = vmatmul.f32.gmra.mxu0 %v2998
        %v3062 = vpop.f32.mrf.mxu0
        %v3063 = vadd.f32 0.0, %v3062
        %3064 = vmatmul.f32.gmra.mxu0 %v3001
        %v3065 = vpop.f32.mrf.mxu0
        %v3066 = vadd.f32 0.0, %v3065
        %3067 = vmatmul.f32.gmra.mxu0 %v3004
        %v3068 = vpop.f32.mrf.mxu0
        %v3069 = vadd.f32 0.0, %v3068
        %3070 = vmatmul.f32.gmra.mxu0 %v3007
        %v3071 = vpop.f32.mrf.mxu0
        %v3072 = vadd.f32 0.0, %v3071
        %3073 = vmatmul.f32.gmra.mxu0 %v3010
        %v3074 = vpop.f32.mrf.mxu0
        %v3075 = vadd.f32 0.0, %v3074
        %3076 = vmatmul.f32.gmra.mxu0 %v3013
        %v3077 = vpop.f32.mrf.mxu0
        %v3078 = vadd.f32 0.0, %v3077
        %3079 = vmatmul.f32.gmra.mxu0 %v3016
        %v3080 = vpop.f32.mrf.mxu0
        %v3081 = vadd.f32 0.0, %v3080
        %3082 = vmatmul.f32.gmra.mxu0 %v3019
        %v3083 = vpop.f32.mrf.mxu0
        %v3084 = vadd.f32 0.0, %v3083
        %3085 = vmatmul.f32.gmra.mxu0 %v3022
        %v3086 = vpop.f32.mrf.mxu0
        %v3087 = vadd.f32 0.0, %v3086
        %3088 = vdwg.mxu0
        %v3090 = vsel %vm457, %v1315, 0
        %v3093 = vsel %vm457, %v1318, 0
        %v3096 = vsel %vm457, %v1321, 0
        %v3099 = vsel %vm457, %v1324, 0
        %v3102 = vsel %vm457, %v1327, 0
        %v3105 = vsel %vm457, %v1330, 0
        %v3108 = vsel %vm457, %v1333, 0
        %v3111 = vsel %vm457, %v1336, 0
        %v3114 = vsel %vm457, %v1339, 0
        %v3117 = vsel %vm457, %v1342, 0
        %v3120 = vsel %vm457, %v1345, 0
        %v3123 = vsel %vm457, %v1348, 0
        %v3126 = vsel %vm457, %v1351, 0
        %v3129 = vsel %vm457, %v1354, 0
        %v3132 = vsel %vm457, %v1357, 0
        %v3135 = vsel %vm457, %v1360, 0
        %3137 = vmatpush.msra.mxu0 0.0
        %3138 = vmatpush.msra.mxu0 0.0
        %3139 = vmatpush.msra.mxu0 0.0
        %3140 = vmatpush.msra.mxu0 0.0
        %3141 = vmatpush.msra.mxu0 0.0
        %3142 = vmatpush.msra.mxu0 0.0
        %3143 = vmatpush.msra.mxu0 0.0
        %3144 = vmatpush.msra.mxu0 0.0
        %3145 = vmatpush.msra.mxu0 0.0
        %3146 = vmatpush.msra.mxu0 0.0
        %3147 = vmatpush.msra.mxu0 0.0
        %3148 = vmatpush.msra.mxu0 0.0
        %3149 = vmatpush.msra.mxu0 0.0
        %3150 = vmatpush.msra.mxu0 0.0
        %3151 = vmatpush.msra.mxu0 %v2281
        %3152 = vmatpush.msra.mxu0 %v2280
        %3153 = vmatmul.f32.gmra.mxu0 %v3090
        %v3154 = vpop.f32.mrf.mxu0
        %v3155 = vadd.f32 0.0, %v3154
        %3156 = vmatmul.f32.gmra.mxu0 %v3093
        %v3157 = vpop.f32.mrf.mxu0
        %v3158 = vadd.f32 0.0, %v3157
        %3159 = vmatmul.f32.gmra.mxu0 %v3096
        %v3160 = vpop.f32.mrf.mxu0
        %v3161 = vadd.f32 0.0, %v3160
        %3162 = vmatmul.f32.gmra.mxu0 %v3099
        %v3163 = vpop.f32.mrf.mxu0
        %v3164 = vadd.f32 0.0, %v3163
        %3165 = vmatmul.f32.gmra.mxu0 %v3102
        %v3166 = vpop.f32.mrf.mxu0
        %v3167 = vadd.f32 0.0, %v3166
        %3168 = vmatmul.f32.gmra.mxu0 %v3105
        %v3169 = vpop.f32.mrf.mxu0
        %v3170 = vadd.f32 0.0, %v3169
        %3171 = vmatmul.f32.gmra.mxu0 %v3108
        %v3172 = vpop.f32.mrf.mxu0
        %v3173 = vadd.f32 0.0, %v3172
        %3174 = vmatmul.f32.gmra.mxu0 %v3111
        %v3175 = vpop.f32.mrf.mxu0
        %v3176 = vadd.f32 0.0, %v3175
        %3177 = vmatmul.f32.gmra.mxu0 %v3114
        %v3178 = vpop.f32.mrf.mxu0
        %v3179 = vadd.f32 0.0, %v3178
        %3180 = vmatmul.f32.gmra.mxu0 %v3117
        %v3181 = vpop.f32.mrf.mxu0
        %v3182 = vadd.f32 0.0, %v3181
        %3183 = vmatmul.f32.gmra.mxu0 %v3120
        %v3184 = vpop.f32.mrf.mxu0
        %v3185 = vadd.f32 0.0, %v3184
        %3186 = vmatmul.f32.gmra.mxu0 %v3123
        %v3187 = vpop.f32.mrf.mxu0
        %v3188 = vadd.f32 0.0, %v3187
        %3189 = vmatmul.f32.gmra.mxu0 %v3126
        %v3190 = vpop.f32.mrf.mxu0
        %v3191 = vadd.f32 0.0, %v3190
        %3192 = vmatmul.f32.gmra.mxu0 %v3129
        %v3193 = vpop.f32.mrf.mxu0
        %v3194 = vadd.f32 0.0, %v3193
        %3195 = vmatmul.f32.gmra.mxu0 %v3132
        %v3196 = vpop.f32.mrf.mxu0
        %v3197 = vadd.f32 0.0, %v3196
        %3198 = vmatmul.f32.gmra.mxu0 %v3135
        %v3199 = vpop.f32.mrf.mxu0
        %v3200 = vadd.f32 0.0, %v3199
        %3201 = vdwg.mxu0
        %v3203 = vsel %vm457, %v1428, 0
        %v3206 = vsel %vm457, %v1431, 0
        %v3209 = vsel %vm457, %v1434, 0
        %v3212 = vsel %vm457, %v1437, 0
        %v3215 = vsel %vm457, %v1440, 0
        %v3218 = vsel %vm457, %v1443, 0
        %v3221 = vsel %vm457, %v1446, 0
        %v3224 = vsel %vm457, %v1449, 0
        %v3227 = vsel %vm457, %v1452, 0
        %v3230 = vsel %vm457, %v1455, 0
        %v3233 = vsel %vm457, %v1458, 0
        %v3236 = vsel %vm457, %v1461, 0
        %v3239 = vsel %vm457, %v1464, 0
        %v3242 = vsel %vm457, %v1467, 0
        %v3245 = vsel %vm457, %v1470, 0
        %v3248 = vsel %vm457, %v1473, 0
        %3250 = vmatpush.msra.mxu0 0.0
        %3251 = vmatpush.msra.mxu0 0.0
        %3252 = vmatpush.msra.mxu0 0.0
        %3253 = vmatpush.msra.mxu0 0.0
        %3254 = vmatpush.msra.mxu0 0.0
        %3255 = vmatpush.msra.mxu0 0.0
        %3256 = vmatpush.msra.mxu0 0.0
        %3257 = vmatpush.msra.mxu0 0.0
        %3258 = vmatpush.msra.mxu0 0.0
        %3259 = vmatpush.msra.mxu0 0.0
        %3260 = vmatpush.msra.mxu0 0.0
        %3261 = vmatpush.msra.mxu0 0.0
        %3262 = vmatpush.msra.mxu0 0.0
        %3263 = vmatpush.msra.mxu0 0.0
        %3264 = vmatpush.msra.mxu0 %v2283
        %3265 = vmatpush.msra.mxu0 %v2282
        %3266 = vmatmul.f32.gmra.mxu0 %v3203
        %v3267 = vpop.f32.mrf.mxu0
        %v3268 = vadd.f32 0.0, %v3267
        %3269 = vmatmul.f32.gmra.mxu0 %v3206
        %v3270 = vpop.f32.mrf.mxu0
        %v3271 = vadd.f32 0.0, %v3270
        %3272 = vmatmul.f32.gmra.mxu0 %v3209
        %v3273 = vpop.f32.mrf.mxu0
        %v3274 = vadd.f32 0.0, %v3273
        %3275 = vmatmul.f32.gmra.mxu0 %v3212
        %v3276 = vpop.f32.mrf.mxu0
        %v3277 = vadd.f32 0.0, %v3276
        %3278 = vmatmul.f32.gmra.mxu0 %v3215
        %v3279 = vpop.f32.mrf.mxu0
        %v3280 = vadd.f32 0.0, %v3279
        %3281 = vmatmul.f32.gmra.mxu0 %v3218
        %v3282 = vpop.f32.mrf.mxu0
        %v3283 = vadd.f32 0.0, %v3282
        %3284 = vmatmul.f32.gmra.mxu0 %v3221
        %v3285 = vpop.f32.mrf.mxu0
        %v3286 = vadd.f32 0.0, %v3285
        %3287 = vmatmul.f32.gmra.mxu0 %v3224
        %v3288 = vpop.f32.mrf.mxu0
        %v3289 = vadd.f32 0.0, %v3288
        %3290 = vmatmul.f32.gmra.mxu0 %v3227
        %v3291 = vpop.f32.mrf.mxu0
        %v3292 = vadd.f32 0.0, %v3291
        %3293 = vmatmul.f32.gmra.mxu0 %v3230
        %v3294 = vpop.f32.mrf.mxu0
        %v3295 = vadd.f32 0.0, %v3294
        %3296 = vmatmul.f32.gmra.mxu0 %v3233
        %v3297 = vpop.f32.mrf.mxu0
        %v3298 = vadd.f32 0.0, %v3297
        %3299 = vmatmul.f32.gmra.mxu0 %v3236
        %v3300 = vpop.f32.mrf.mxu0
        %v3301 = vadd.f32 0.0, %v3300
        %3302 = vmatmul.f32.gmra.mxu0 %v3239
        %v3303 = vpop.f32.mrf.mxu0
        %v3304 = vadd.f32 0.0, %v3303
        %3305 = vmatmul.f32.gmra.mxu0 %v3242
        %v3306 = vpop.f32.mrf.mxu0
        %v3307 = vadd.f32 0.0, %v3306
        %3308 = vmatmul.f32.gmra.mxu0 %v3245
        %v3309 = vpop.f32.mrf.mxu0
        %v3310 = vadd.f32 0.0, %v3309
        %3311 = vmatmul.f32.gmra.mxu0 %v3248
        %v3312 = vpop.f32.mrf.mxu0
        %v3313 = vadd.f32 0.0, %v3312
        %3314 = vdwg.mxu0
        %v3316 = vsel %vm457, %v1541, 0
        %v3319 = vsel %vm457, %v1544, 0
        %v3322 = vsel %vm457, %v1547, 0
        %v3325 = vsel %vm457, %v1550, 0
        %v3328 = vsel %vm457, %v1553, 0
        %v3331 = vsel %vm457, %v1556, 0
        %v3334 = vsel %vm457, %v1559, 0
        %v3337 = vsel %vm457, %v1562, 0
        %v3340 = vsel %vm457, %v1565, 0
        %v3343 = vsel %vm457, %v1568, 0
        %v3346 = vsel %vm457, %v1571, 0
        %v3349 = vsel %vm457, %v1574, 0
        %v3352 = vsel %vm457, %v1577, 0
        %v3355 = vsel %vm457, %v1580, 0
        %v3358 = vsel %vm457, %v1583, 0
        %v3361 = vsel %vm457, %v1586, 0
        %3363 = vmatpush.msra.mxu0 0.0
        %3364 = vmatpush.msra.mxu0 0.0
        %3365 = vmatpush.msra.mxu0 0.0
        %3366 = vmatpush.msra.mxu0 0.0
        %3367 = vmatpush.msra.mxu0 0.0
        %3368 = vmatpush.msra.mxu0 0.0
        %3369 = vmatpush.msra.mxu0 0.0
        %3370 = vmatpush.msra.mxu0 0.0
        %3371 = vmatpush.msra.mxu0 0.0
        %3372 = vmatpush.msra.mxu0 0.0
        %3373 = vmatpush.msra.mxu0 0.0
        %3374 = vmatpush.msra.mxu0 0.0
        %3375 = vmatpush.msra.mxu0 0.0
        %3376 = vmatpush.msra.mxu0 0.0
        %3377 = vmatpush.msra.mxu0 %v2285
        %3378 = vmatpush.msra.mxu0 %v2284
        %3379 = vmatmul.f32.gmra.mxu0 %v3316
        %v3380 = vpop.f32.mrf.mxu0
        %v3381 = vadd.f32 0.0, %v3380
        %3382 = vmatmul.f32.gmra.mxu0 %v3319
        %v3383 = vpop.f32.mrf.mxu0
        %v3384 = vadd.f32 0.0, %v3383
        %3385 = vmatmul.f32.gmra.mxu0 %v3322
        %v3386 = vpop.f32.mrf.mxu0
        %v3387 = vadd.f32 0.0, %v3386
        %3388 = vmatmul.f32.gmra.mxu0 %v3325
        %v3389 = vpop.f32.mrf.mxu0
        %v3390 = vadd.f32 0.0, %v3389
        %3391 = vmatmul.f32.gmra.mxu0 %v3328
        %v3392 = vpop.f32.mrf.mxu0
        %v3393 = vadd.f32 0.0, %v3392
        %3394 = vmatmul.f32.gmra.mxu0 %v3331
        %v3395 = vpop.f32.mrf.mxu0
        %v3396 = vadd.f32 0.0, %v3395
        %3397 = vmatmul.f32.gmra.mxu0 %v3334
        %v3398 = vpop.f32.mrf.mxu0
        %v3399 = vadd.f32 0.0, %v3398
        %3400 = vmatmul.f32.gmra.mxu0 %v3337
        %v3401 = vpop.f32.mrf.mxu0
        %v3402 = vadd.f32 0.0, %v3401
        %3403 = vmatmul.f32.gmra.mxu0 %v3340
        %v3404 = vpop.f32.mrf.mxu0
        %v3405 = vadd.f32 0.0, %v3404
        %3406 = vmatmul.f32.gmra.mxu0 %v3343
        %v3407 = vpop.f32.mrf.mxu0
        %v3408 = vadd.f32 0.0, %v3407
        %3409 = vmatmul.f32.gmra.mxu0 %v3346
        %v3410 = vpop.f32.mrf.mxu0
        %v3411 = vadd.f32 0.0, %v3410
        %3412 = vmatmul.f32.gmra.mxu0 %v3349
        %v3413 = vpop.f32.mrf.mxu0
        %v3414 = vadd.f32 0.0, %v3413
        %3415 = vmatmul.f32.gmra.mxu0 %v3352
        %v3416 = vpop.f32.mrf.mxu0
        %v3417 = vadd.f32 0.0, %v3416
        %3418 = vmatmul.f32.gmra.mxu0 %v3355
        %v3419 = vpop.f32.mrf.mxu0
        %v3420 = vadd.f32 0.0, %v3419
        %3421 = vmatmul.f32.gmra.mxu0 %v3358
        %v3422 = vpop.f32.mrf.mxu0
        %v3423 = vadd.f32 0.0, %v3422
        %3424 = vmatmul.f32.gmra.mxu0 %v3361
        %v3425 = vpop.f32.mrf.mxu0
        %v3426 = vadd.f32 0.0, %v3425
        %3427 = vdwg.mxu0
        %v3429 = vsel %vm457, %v1654, 0
        %v3432 = vsel %vm457, %v1657, 0
        %v3435 = vsel %vm457, %v1660, 0
        %v3438 = vsel %vm457, %v1663, 0
        %v3441 = vsel %vm457, %v1666, 0
        %v3444 = vsel %vm457, %v1669, 0
        %v3447 = vsel %vm457, %v1672, 0
        %v3450 = vsel %vm457, %v1675, 0
        %v3453 = vsel %vm457, %v1678, 0
        %v3456 = vsel %vm457, %v1681, 0
        %v3459 = vsel %vm457, %v1684, 0
        %v3462 = vsel %vm457, %v1687, 0
        %v3465 = vsel %vm457, %v1690, 0
        %v3468 = vsel %vm457, %v1693, 0
        %v3471 = vsel %vm457, %v1696, 0
        %v3474 = vsel %vm457, %v1699, 0
        %3476 = vmatpush.msra.mxu0 0.0
        %3477 = vmatpush.msra.mxu0 0.0
        %3478 = vmatpush.msra.mxu0 0.0
        %3479 = vmatpush.msra.mxu0 0.0
        %3480 = vmatpush.msra.mxu0 0.0
        %3481 = vmatpush.msra.mxu0 0.0
        %3482 = vmatpush.msra.mxu0 0.0
        %3483 = vmatpush.msra.mxu0 0.0
        %3484 = vmatpush.msra.mxu0 0.0
        %3485 = vmatpush.msra.mxu0 0.0
        %3486 = vmatpush.msra.mxu0 0.0
        %3487 = vmatpush.msra.mxu0 0.0
        %3488 = vmatpush.msra.mxu0 0.0
        %3489 = vmatpush.msra.mxu0 0.0
        %3490 = vmatpush.msra.mxu0 %v2287
        %3491 = vmatpush.msra.mxu0 %v2286
        %3492 = vmatmul.f32.gmra.mxu0 %v3429
        %v3493 = vpop.f32.mrf.mxu0
        %v3494 = vadd.f32 0.0, %v3493
        %3495 = vmatmul.f32.gmra.mxu0 %v3432
        %v3496 = vpop.f32.mrf.mxu0
        %v3497 = vadd.f32 0.0, %v3496
        %3498 = vmatmul.f32.gmra.mxu0 %v3435
        %v3499 = vpop.f32.mrf.mxu0
        %v3500 = vadd.f32 0.0, %v3499
        %3501 = vmatmul.f32.gmra.mxu0 %v3438
        %v3502 = vpop.f32.mrf.mxu0
        %v3503 = vadd.f32 0.0, %v3502
        %3504 = vmatmul.f32.gmra.mxu0 %v3441
        %v3505 = vpop.f32.mrf.mxu0
        %v3506 = vadd.f32 0.0, %v3505
        %3507 = vmatmul.f32.gmra.mxu0 %v3444
        %v3508 = vpop.f32.mrf.mxu0
        %v3509 = vadd.f32 0.0, %v3508
        %3510 = vmatmul.f32.gmra.mxu0 %v3447
        %v3511 = vpop.f32.mrf.mxu0
        %v3512 = vadd.f32 0.0, %v3511
        %3513 = vmatmul.f32.gmra.mxu0 %v3450
        %v3514 = vpop.f32.mrf.mxu0
        %v3515 = vadd.f32 0.0, %v3514
        %3516 = vmatmul.f32.gmra.mxu0 %v3453
        %v3517 = vpop.f32.mrf.mxu0
        %v3518 = vadd.f32 0.0, %v3517
        %3519 = vmatmul.f32.gmra.mxu0 %v3456
        %v3520 = vpop.f32.mrf.mxu0
        %v3521 = vadd.f32 0.0, %v3520
        %3522 = vmatmul.f32.gmra.mxu0 %v3459
        %v3523 = vpop.f32.mrf.mxu0
        %v3524 = vadd.f32 0.0, %v3523
        %3525 = vmatmul.f32.gmra.mxu0 %v3462
        %v3526 = vpop.f32.mrf.mxu0
        %v3527 = vadd.f32 0.0, %v3526
        %3528 = vmatmul.f32.gmra.mxu0 %v3465
        %v3529 = vpop.f32.mrf.mxu0
        %v3530 = vadd.f32 0.0, %v3529
        %3531 = vmatmul.f32.gmra.mxu0 %v3468
        %v3532 = vpop.f32.mrf.mxu0
        %v3533 = vadd.f32 0.0, %v3532
        %3534 = vmatmul.f32.gmra.mxu0 %v3471
        %v3535 = vpop.f32.mrf.mxu0
        %v3536 = vadd.f32 0.0, %v3535
        %3537 = vmatmul.f32.gmra.mxu0 %v3474
        %v3538 = vpop.f32.mrf.mxu0
        %v3539 = vadd.f32 0.0, %v3538
        %3540 = vdwg.mxu0
        %v3542 = vsel %vm457, %v1767, 0
        %v3545 = vsel %vm457, %v1770, 0
        %v3548 = vsel %vm457, %v1773, 0
        %v3551 = vsel %vm457, %v1776, 0
        %v3554 = vsel %vm457, %v1779, 0
        %v3557 = vsel %vm457, %v1782, 0
        %v3560 = vsel %vm457, %v1785, 0
        %v3563 = vsel %vm457, %v1788, 0
        %v3566 = vsel %vm457, %v1791, 0
        %v3569 = vsel %vm457, %v1794, 0
        %v3572 = vsel %vm457, %v1797, 0
        %v3575 = vsel %vm457, %v1800, 0
        %v3578 = vsel %vm457, %v1803, 0
        %v3581 = vsel %vm457, %v1806, 0
        %v3584 = vsel %vm457, %v1809, 0
        %v3587 = vsel %vm457, %v1812, 0
        %3589 = vmatpush.msra.mxu0 0.0
        %3590 = vmatpush.msra.mxu0 0.0
        %3591 = vmatpush.msra.mxu0 0.0
        %3592 = vmatpush.msra.mxu0 0.0
        %3593 = vmatpush.msra.mxu0 0.0
        %3594 = vmatpush.msra.mxu0 0.0
        %3595 = vmatpush.msra.mxu0 0.0
        %3596 = vmatpush.msra.mxu0 0.0
        %3597 = vmatpush.msra.mxu0 0.0
        %3598 = vmatpush.msra.mxu0 0.0
        %3599 = vmatpush.msra.mxu0 0.0
        %3600 = vmatpush.msra.mxu0 0.0
        %3601 = vmatpush.msra.mxu0 0.0
        %3602 = vmatpush.msra.mxu0 0.0
        %3603 = vmatpush.msra.mxu0 %v2289
        %3604 = vmatpush.msra.mxu0 %v2288
        %3605 = vmatmul.f32.gmra.mxu0 %v3542
        %v3606 = vpop.f32.mrf.mxu0
        %v3607 = vadd.f32 0.0, %v3606
        %3608 = vmatmul.f32.gmra.mxu0 %v3545
        %v3609 = vpop.f32.mrf.mxu0
        %v3610 = vadd.f32 0.0, %v3609
        %3611 = vmatmul.f32.gmra.mxu0 %v3548
        %v3612 = vpop.f32.mrf.mxu0
        %v3613 = vadd.f32 0.0, %v3612
        %3614 = vmatmul.f32.gmra.mxu0 %v3551
        %v3615 = vpop.f32.mrf.mxu0
        %v3616 = vadd.f32 0.0, %v3615
        %3617 = vmatmul.f32.gmra.mxu0 %v3554
        %v3618 = vpop.f32.mrf.mxu0
        %v3619 = vadd.f32 0.0, %v3618
        %3620 = vmatmul.f32.gmra.mxu0 %v3557
        %v3621 = vpop.f32.mrf.mxu0
        %v3622 = vadd.f32 0.0, %v3621
        %3623 = vmatmul.f32.gmra.mxu0 %v3560
        %v3624 = vpop.f32.mrf.mxu0
        %v3625 = vadd.f32 0.0, %v3624
        %3626 = vmatmul.f32.gmra.mxu0 %v3563
        %v3627 = vpop.f32.mrf.mxu0
        %v3628 = vadd.f32 0.0, %v3627
        %3629 = vmatmul.f32.gmra.mxu0 %v3566
        %v3630 = vpop.f32.mrf.mxu0
        %v3631 = vadd.f32 0.0, %v3630
        %3632 = vmatmul.f32.gmra.mxu0 %v3569
        %v3633 = vpop.f32.mrf.mxu0
        %v3634 = vadd.f32 0.0, %v3633
        %3635 = vmatmul.f32.gmra.mxu0 %v3572
        %v3636 = vpop.f32.mrf.mxu0
        %v3637 = vadd.f32 0.0, %v3636
        %3638 = vmatmul.f32.gmra.mxu0 %v3575
        %v3639 = vpop.f32.mrf.mxu0
        %v3640 = vadd.f32 0.0, %v3639
        %3641 = vmatmul.f32.gmra.mxu0 %v3578
        %v3642 = vpop.f32.mrf.mxu0
        %v3643 = vadd.f32 0.0, %v3642
        %3644 = vmatmul.f32.gmra.mxu0 %v3581
        %v3645 = vpop.f32.mrf.mxu0
        %v3646 = vadd.f32 0.0, %v3645
        %3647 = vmatmul.f32.gmra.mxu0 %v3584
        %v3648 = vpop.f32.mrf.mxu0
        %v3649 = vadd.f32 0.0, %v3648
        %3650 = vmatmul.f32.gmra.mxu0 %v3587
        %v3651 = vpop.f32.mrf.mxu0
        %v3652 = vadd.f32 0.0, %v3651
        %3653 = vdwg.mxu0
        %v3655 = vsel %vm457, %v1880, 0
        %v3658 = vsel %vm457, %v1883, 0
        %v3661 = vsel %vm457, %v1886, 0
        %v3664 = vsel %vm457, %v1889, 0
        %v3667 = vsel %vm457, %v1892, 0
        %v3670 = vsel %vm457, %v1895, 0
        %v3673 = vsel %vm457, %v1898, 0
        %v3676 = vsel %vm457, %v1901, 0
        %v3679 = vsel %vm457, %v1904, 0
        %v3682 = vsel %vm457, %v1907, 0
        %v3685 = vsel %vm457, %v1910, 0
        %v3688 = vsel %vm457, %v1913, 0
        %v3691 = vsel %vm457, %v1916, 0
        %v3694 = vsel %vm457, %v1919, 0
        %v3697 = vsel %vm457, %v1922, 0
        %v3700 = vsel %vm457, %v1925, 0
        %3702 = vmatpush.msra.mxu0 0.0
        %3703 = vmatpush.msra.mxu0 0.0
        %3704 = vmatpush.msra.mxu0 0.0
        %3705 = vmatpush.msra.mxu0 0.0
        %3706 = vmatpush.msra.mxu0 0.0
        %3707 = vmatpush.msra.mxu0 0.0
        %3708 = vmatpush.msra.mxu0 0.0
        %3709 = vmatpush.msra.mxu0 0.0
        %3710 = vmatpush.msra.mxu0 0.0
        %3711 = vmatpush.msra.mxu0 0.0
        %3712 = vmatpush.msra.mxu0 0.0
        %3713 = vmatpush.msra.mxu0 0.0
        %3714 = vmatpush.msra.mxu0 0.0
        %3715 = vmatpush.msra.mxu0 0.0
        %3716 = vmatpush.msra.mxu0 %v2291
        %3717 = vmatpush.msra.mxu0 %v2290
        %3718 = vmatmul.f32.gmra.mxu0 %v3655
        %v3719 = vpop.f32.mrf.mxu0
        %v3720 = vadd.f32 0.0, %v3719
        %3721 = vmatmul.f32.gmra.mxu0 %v3658
        %v3722 = vpop.f32.mrf.mxu0
        %v3723 = vadd.f32 0.0, %v3722
        %3724 = vmatmul.f32.gmra.mxu0 %v3661
        %v3725 = vpop.f32.mrf.mxu0
        %v3726 = vadd.f32 0.0, %v3725
        %3727 = vmatmul.f32.gmra.mxu0 %v3664
        %v3728 = vpop.f32.mrf.mxu0
        %v3729 = vadd.f32 0.0, %v3728
        %3730 = vmatmul.f32.gmra.mxu0 %v3667
        %v3731 = vpop.f32.mrf.mxu0
        %v3732 = vadd.f32 0.0, %v3731
        %3733 = vmatmul.f32.gmra.mxu0 %v3670
        %v3734 = vpop.f32.mrf.mxu0
        %v3735 = vadd.f32 0.0, %v3734
        %3736 = vmatmul.f32.gmra.mxu0 %v3673
        %v3737 = vpop.f32.mrf.mxu0
        %v3738 = vadd.f32 0.0, %v3737
        %3739 = vmatmul.f32.gmra.mxu0 %v3676
        %v3740 = vpop.f32.mrf.mxu0
        %v3741 = vadd.f32 0.0, %v3740
        %3742 = vmatmul.f32.gmra.mxu0 %v3679
        %v3743 = vpop.f32.mrf.mxu0
        %v3744 = vadd.f32 0.0, %v3743
        %3745 = vmatmul.f32.gmra.mxu0 %v3682
        %v3746 = vpop.f32.mrf.mxu0
        %v3747 = vadd.f32 0.0, %v3746
        %3748 = vmatmul.f32.gmra.mxu0 %v3685
        %v3749 = vpop.f32.mrf.mxu0
        %v3750 = vadd.f32 0.0, %v3749
        %3751 = vmatmul.f32.gmra.mxu0 %v3688
        %v3752 = vpop.f32.mrf.mxu0
        %v3753 = vadd.f32 0.0, %v3752
        %3754 = vmatmul.f32.gmra.mxu0 %v3691
        %v3755 = vpop.f32.mrf.mxu0
        %v3756 = vadd.f32 0.0, %v3755
        %3757 = vmatmul.f32.gmra.mxu0 %v3694
        %v3758 = vpop.f32.mrf.mxu0
        %v3759 = vadd.f32 0.0, %v3758
        %3760 = vmatmul.f32.gmra.mxu0 %v3697
        %v3761 = vpop.f32.mrf.mxu0
        %v3762 = vadd.f32 0.0, %v3761
        %3763 = vmatmul.f32.gmra.mxu0 %v3700
        %v3764 = vpop.f32.mrf.mxu0
        %v3765 = vadd.f32 0.0, %v3764
        %3766 = vdwg.mxu0
        %v3768 = vsel %vm457, %v1993, 0
        %v3771 = vsel %vm457, %v1996, 0
        %v3774 = vsel %vm457, %v1999, 0
        %v3777 = vsel %vm457, %v2002, 0
        %v3780 = vsel %vm457, %v2005, 0
        %v3783 = vsel %vm457, %v2008, 0
        %v3786 = vsel %vm457, %v2011, 0
        %v3789 = vsel %vm457, %v2014, 0
        %v3792 = vsel %vm457, %v2017, 0
        %v3795 = vsel %vm457, %v2020, 0
        %v3798 = vsel %vm457, %v2023, 0
        %v3801 = vsel %vm457, %v2026, 0
        %v3804 = vsel %vm457, %v2029, 0
        %v3807 = vsel %vm457, %v2032, 0
        %v3810 = vsel %vm457, %v2035, 0
        %v3813 = vsel %vm457, %v2038, 0
        %3815 = vmatpush.msra.mxu0 0.0
        %3816 = vmatpush.msra.mxu0 0.0
        %3817 = vmatpush.msra.mxu0 0.0
        %3818 = vmatpush.msra.mxu0 0.0
        %3819 = vmatpush.msra.mxu0 0.0
        %3820 = vmatpush.msra.mxu0 0.0
        %3821 = vmatpush.msra.mxu0 0.0
        %3822 = vmatpush.msra.mxu0 0.0
        %3823 = vmatpush.msra.mxu0 0.0
        %3824 = vmatpush.msra.mxu0 0.0
        %3825 = vmatpush.msra.mxu0 0.0
        %3826 = vmatpush.msra.mxu0 0.0
        %3827 = vmatpush.msra.mxu0 0.0
        %3828 = vmatpush.msra.mxu0 0.0
        %3829 = vmatpush.msra.mxu0 %v2293
        %3830 = vmatpush.msra.mxu0 %v2292
        %3831 = vmatmul.f32.gmra.mxu0 %v3768
        %v3832 = vpop.f32.mrf.mxu0
        %v3833 = vadd.f32 0.0, %v3832
        %3834 = vmatmul.f32.gmra.mxu0 %v3771
        %v3835 = vpop.f32.mrf.mxu0
        %v3836 = vadd.f32 0.0, %v3835
        %3837 = vmatmul.f32.gmra.mxu0 %v3774
        %v3838 = vpop.f32.mrf.mxu0
        %v3839 = vadd.f32 0.0, %v3838
        %3840 = vmatmul.f32.gmra.mxu0 %v3777
        %v3841 = vpop.f32.mrf.mxu0
        %v3842 = vadd.f32 0.0, %v3841
        %3843 = vmatmul.f32.gmra.mxu0 %v3780
        %v3844 = vpop.f32.mrf.mxu0
        %v3845 = vadd.f32 0.0, %v3844
        %3846 = vmatmul.f32.gmra.mxu0 %v3783
        %v3847 = vpop.f32.mrf.mxu0
        %v3848 = vadd.f32 0.0, %v3847
        %3849 = vmatmul.f32.gmra.mxu0 %v3786
        %v3850 = vpop.f32.mrf.mxu0
        %v3851 = vadd.f32 0.0, %v3850
        %3852 = vmatmul.f32.gmra.mxu0 %v3789
        %v3853 = vpop.f32.mrf.mxu0
        %v3854 = vadd.f32 0.0, %v3853
        %3855 = vmatmul.f32.gmra.mxu0 %v3792
        %v3856 = vpop.f32.mrf.mxu0
        %v3857 = vadd.f32 0.0, %v3856
        %3858 = vmatmul.f32.gmra.mxu0 %v3795
        %v3859 = vpop.f32.mrf.mxu0
        %v3860 = vadd.f32 0.0, %v3859
        %3861 = vmatmul.f32.gmra.mxu0 %v3798
        %v3862 = vpop.f32.mrf.mxu0
        %v3863 = vadd.f32 0.0, %v3862
        %3864 = vmatmul.f32.gmra.mxu0 %v3801
        %v3865 = vpop.f32.mrf.mxu0
        %v3866 = vadd.f32 0.0, %v3865
        %3867 = vmatmul.f32.gmra.mxu0 %v3804
        %v3868 = vpop.f32.mrf.mxu0
        %v3869 = vadd.f32 0.0, %v3868
        %3870 = vmatmul.f32.gmra.mxu0 %v3807
        %v3871 = vpop.f32.mrf.mxu0
        %v3872 = vadd.f32 0.0, %v3871
        %3873 = vmatmul.f32.gmra.mxu0 %v3810
        %v3874 = vpop.f32.mrf.mxu0
        %v3875 = vadd.f32 0.0, %v3874
        %3876 = vmatmul.f32.gmra.mxu0 %v3813
        %v3877 = vpop.f32.mrf.mxu0
        %v3878 = vadd.f32 0.0, %v3877
        %3879 = vdwg.mxu0
        %v3881 = vsel %vm457, %v2106, 0
        %v3884 = vsel %vm457, %v2109, 0
        %v3887 = vsel %vm457, %v2112, 0
        %v3890 = vsel %vm457, %v2115, 0
        %v3893 = vsel %vm457, %v2118, 0
        %v3896 = vsel %vm457, %v2121, 0
        %v3899 = vsel %vm457, %v2124, 0
        %v3902 = vsel %vm457, %v2127, 0
        %v3905 = vsel %vm457, %v2130, 0
        %v3908 = vsel %vm457, %v2133, 0
        %v3911 = vsel %vm457, %v2136, 0
        %v3914 = vsel %vm457, %v2139, 0
        %v3917 = vsel %vm457, %v2142, 0
        %v3920 = vsel %vm457, %v2145, 0
        %v3923 = vsel %vm457, %v2148, 0
        %v3926 = vsel %vm457, %v2151, 0
        %3928 = vmatpush.msra.mxu0 0.0
        %3929 = vmatpush.msra.mxu0 0.0
        %3930 = vmatpush.msra.mxu0 0.0
        %3931 = vmatpush.msra.mxu0 0.0
        %3932 = vmatpush.msra.mxu0 0.0
        %3933 = vmatpush.msra.mxu0 0.0
        %3934 = vmatpush.msra.mxu0 0.0
        %3935 = vmatpush.msra.mxu0 0.0
        %3936 = vmatpush.msra.mxu0 0.0
        %3937 = vmatpush.msra.mxu0 0.0
        %3938 = vmatpush.msra.mxu0 0.0
        %3939 = vmatpush.msra.mxu0 0.0
        %3940 = vmatpush.msra.mxu0 0.0
        %3941 = vmatpush.msra.mxu0 0.0
        %3942 = vmatpush.msra.mxu0 %v2295
        %3943 = vmatpush.msra.mxu0 %v2294
        %3944 = vmatmul.f32.gmra.mxu0 %v3881
        %v3945 = vpop.f32.mrf.mxu0
        %v3946 = vadd.f32 0.0, %v3945
        %3947 = vmatmul.f32.gmra.mxu0 %v3884
        %v3948 = vpop.f32.mrf.mxu0
        %v3949 = vadd.f32 0.0, %v3948
        %3950 = vmatmul.f32.gmra.mxu0 %v3887
        %v3951 = vpop.f32.mrf.mxu0
        %v3952 = vadd.f32 0.0, %v3951
        %3953 = vmatmul.f32.gmra.mxu0 %v3890
        %v3954 = vpop.f32.mrf.mxu0
        %v3955 = vadd.f32 0.0, %v3954
        %3956 = vmatmul.f32.gmra.mxu0 %v3893
        %v3957 = vpop.f32.mrf.mxu0
        %v3958 = vadd.f32 0.0, %v3957
        %3959 = vmatmul.f32.gmra.mxu0 %v3896
        %v3960 = vpop.f32.mrf.mxu0
        %v3961 = vadd.f32 0.0, %v3960
        %3962 = vmatmul.f32.gmra.mxu0 %v3899
        %v3963 = vpop.f32.mrf.mxu0
        %v3964 = vadd.f32 0.0, %v3963
        %3965 = vmatmul.f32.gmra.mxu0 %v3902
        %v3966 = vpop.f32.mrf.mxu0
        %v3967 = vadd.f32 0.0, %v3966
        %3968 = vmatmul.f32.gmra.mxu0 %v3905
        %v3969 = vpop.f32.mrf.mxu0
        %v3970 = vadd.f32 0.0, %v3969
        %3971 = vmatmul.f32.gmra.mxu0 %v3908
        %v3972 = vpop.f32.mrf.mxu0
        %v3973 = vadd.f32 0.0, %v3972
        %3974 = vmatmul.f32.gmra.mxu0 %v3911
        %v3975 = vpop.f32.mrf.mxu0
        %v3976 = vadd.f32 0.0, %v3975
        %3977 = vmatmul.f32.gmra.mxu0 %v3914
        %v3978 = vpop.f32.mrf.mxu0
        %v3979 = vadd.f32 0.0, %v3978
        %3980 = vmatmul.f32.gmra.mxu0 %v3917
        %v3981 = vpop.f32.mrf.mxu0
        %v3982 = vadd.f32 0.0, %v3981
        %3983 = vmatmul.f32.gmra.mxu0 %v3920
        %v3984 = vpop.f32.mrf.mxu0
        %v3985 = vadd.f32 0.0, %v3984
        %3986 = vmatmul.f32.gmra.mxu0 %v3923
        %v3987 = vpop.f32.mrf.mxu0
        %v3988 = vadd.f32 0.0, %v3987
        %3989 = vmatmul.f32.gmra.mxu0 %v3926
        %v3990 = vpop.f32.mrf.mxu0
        %v3991 = vadd.f32 0.0, %v3990
        %3992 = vdwg.mxu0
        %v3994 = vsel %vm457, %v2219, 0
        %v3997 = vsel %vm457, %v2222, 0
        %v4000 = vsel %vm457, %v2225, 0
        %v4003 = vsel %vm457, %v2228, 0
        %v4006 = vsel %vm457, %v2231, 0
        %v4009 = vsel %vm457, %v2234, 0
        %v4012 = vsel %vm457, %v2237, 0
        %v4015 = vsel %vm457, %v2240, 0
        %v4018 = vsel %vm457, %v2243, 0
        %v4021 = vsel %vm457, %v2246, 0
        %v4024 = vsel %vm457, %v2249, 0
        %v4027 = vsel %vm457, %v2252, 0
        %v4030 = vsel %vm457, %v2255, 0
        %v4033 = vsel %vm457, %v2258, 0
        %v4036 = vsel %vm457, %v2261, 0
        %v4039 = vsel %vm457, %v2264, 0
        %4041 = vmatpush.msra.mxu0 0.0
        %4042 = vmatpush.msra.mxu0 0.0
        %4043 = vmatpush.msra.mxu0 0.0
        %4044 = vmatpush.msra.mxu0 0.0
        %4045 = vmatpush.msra.mxu0 0.0
        %4046 = vmatpush.msra.mxu0 0.0
        %4047 = vmatpush.msra.mxu0 0.0
        %4048 = vmatpush.msra.mxu0 0.0
        %4049 = vmatpush.msra.mxu0 0.0
        %4050 = vmatpush.msra.mxu0 0.0
        %4051 = vmatpush.msra.mxu0 0.0
        %4052 = vmatpush.msra.mxu0 0.0
        %4053 = vmatpush.msra.mxu0 0.0
        %4054 = vmatpush.msra.mxu0 0.0
        %4055 = vmatpush.msra.mxu0 %v2297
        %4056 = vmatpush.msra.mxu0 %v2296
        %4057 = vmatmul.f32.gmra.mxu0 %v3994
        %v4058 = vpop.f32.mrf.mxu0
        %v4059 = vadd.f32 0.0, %v4058
        %4060 = vmatmul.f32.gmra.mxu0 %v3997
        %v4061 = vpop.f32.mrf.mxu0
        %v4062 = vadd.f32 0.0, %v4061
        %4063 = vmatmul.f32.gmra.mxu0 %v4000
        %v4064 = vpop.f32.mrf.mxu0
        %v4065 = vadd.f32 0.0, %v4064
        %4066 = vmatmul.f32.gmra.mxu0 %v4003
        %v4067 = vpop.f32.mrf.mxu0
        %v4068 = vadd.f32 0.0, %v4067
        %4069 = vmatmul.f32.gmra.mxu0 %v4006
        %v4070 = vpop.f32.mrf.mxu0
        %v4071 = vadd.f32 0.0, %v4070
        %4072 = vmatmul.f32.gmra.mxu0 %v4009
        %v4073 = vpop.f32.mrf.mxu0
        %v4074 = vadd.f32 0.0, %v4073
        %4075 = vmatmul.f32.gmra.mxu0 %v4012
        %v4076 = vpop.f32.mrf.mxu0
        %v4077 = vadd.f32 0.0, %v4076
        %4078 = vmatmul.f32.gmra.mxu0 %v4015
        %v4079 = vpop.f32.mrf.mxu0
        %v4080 = vadd.f32 0.0, %v4079
        %4081 = vmatmul.f32.gmra.mxu0 %v4018
        %v4082 = vpop.f32.mrf.mxu0
        %v4083 = vadd.f32 0.0, %v4082
        %4084 = vmatmul.f32.gmra.mxu0 %v4021
        %v4085 = vpop.f32.mrf.mxu0
        %v4086 = vadd.f32 0.0, %v4085
        %4087 = vmatmul.f32.gmra.mxu0 %v4024
        %v4088 = vpop.f32.mrf.mxu0
        %v4089 = vadd.f32 0.0, %v4088
        %4090 = vmatmul.f32.gmra.mxu0 %v4027
        %v4091 = vpop.f32.mrf.mxu0
        %v4092 = vadd.f32 0.0, %v4091
        %4093 = vmatmul.f32.gmra.mxu0 %v4030
        %v4094 = vpop.f32.mrf.mxu0
        %v4095 = vadd.f32 0.0, %v4094
        %4096 = vmatmul.f32.gmra.mxu0 %v4033
        %v4097 = vpop.f32.mrf.mxu0
        %v4098 = vadd.f32 0.0, %v4097
        %4099 = vmatmul.f32.gmra.mxu0 %v4036
        %v4100 = vpop.f32.mrf.mxu0
        %v4101 = vadd.f32 0.0, %v4100
        %4102 = vmatmul.f32.gmra.mxu0 %v4039
        %v4103 = vpop.f32.mrf.mxu0
        %v4104 = vadd.f32 0.0, %v4103
        %4105 = vdwg.mxu0
        %v4106 = vadd.f32 %v2364, %v2816
        %v4107 = vadd.f32 %v2367, %v2819
        %v4108 = vadd.f32 %v2370, %v2822
        %v4109 = vadd.f32 %v2373, %v2825
        %v4110 = vadd.f32 %v2376, %v2828
        %v4111 = vadd.f32 %v2379, %v2831
        %v4112 = vadd.f32 %v2382, %v2834
        %v4113 = vadd.f32 %v2385, %v2837
        %v4114 = vadd.f32 %v2388, %v2840
        %v4115 = vadd.f32 %v2391, %v2843
        %v4116 = vadd.f32 %v2394, %v2846
        %v4117 = vadd.f32 %v2397, %v2849
        %v4118 = vadd.f32 %v2400, %v2852
        %v4119 = vadd.f32 %v2403, %v2855
        %v4120 = vadd.f32 %v2406, %v2858
        %v4121 = vadd.f32 %v2409, %v2861
        %v4122 = vadd.f32 %v2477, %v2929
        %v4123 = vadd.f32 %v2480, %v2932
        %v4124 = vadd.f32 %v2483, %v2935
        %v4125 = vadd.f32 %v2486, %v2938
        %v4126 = vadd.f32 %v2489, %v2941
        %v4127 = vadd.f32 %v2492, %v2944
        %v4128 = vadd.f32 %v2495, %v2947
        %v4129 = vadd.f32 %v2498, %v2950
        %v4130 = vadd.f32 %v2501, %v2953
        %v4131 = vadd.f32 %v2504, %v2956
        %v4132 = vadd.f32 %v2507, %v2959
        %v4133 = vadd.f32 %v2510, %v2962
        %v4134 = vadd.f32 %v2513, %v2965
        %v4135 = vadd.f32 %v2516, %v2968
        %v4136 = vadd.f32 %v2519, %v2971
        %v4137 = vadd.f32 %v2522, %v2974
        %v4138 = vadd.f32 %v2590, %v3042
        %v4139 = vadd.f32 %v2593, %v3045
        %v4140 = vadd.f32 %v2596, %v3048
        %v4141 = vadd.f32 %v2599, %v3051
        %v4142 = vadd.f32 %v2602, %v3054
        %v4143 = vadd.f32 %v2605, %v3057
        %v4144 = vadd.f32 %v2608, %v3060
        %v4145 = vadd.f32 %v2611, %v3063
        %v4146 = vadd.f32 %v2614, %v3066
        %v4147 = vadd.f32 %v2617, %v3069
        %v4148 = vadd.f32 %v2620, %v3072
        %v4149 = vadd.f32 %v2623, %v3075
        %v4150 = vadd.f32 %v2626, %v3078
        %v4151 = vadd.f32 %v2629, %v3081
        %v4152 = vadd.f32 %v2632, %v3084
        %v4153 = vadd.f32 %v2635, %v3087
        %v4154 = vadd.f32 %v2703, %v3155
        %v4155 = vadd.f32 %v2706, %v3158
        %v4156 = vadd.f32 %v2709, %v3161
        %v4157 = vadd.f32 %v2712, %v3164
        %v4158 = vadd.f32 %v2715, %v3167
        %v4159 = vadd.f32 %v2718, %v3170
        %v4160 = vadd.f32 %v2721, %v3173
        %v4161 = vadd.f32 %v2724, %v3176
        %v4162 = vadd.f32 %v2727, %v3179
        %v4163 = vadd.f32 %v2730, %v3182
        %v4164 = vadd.f32 %v2733, %v3185
        %v4165 = vadd.f32 %v2736, %v3188
        %v4166 = vadd.f32 %v2739, %v3191
        %v4167 = vadd.f32 %v2742, %v3194
        %v4168 = vadd.f32 %v2745, %v3197
        %v4169 = vadd.f32 %v2748, %v3200
        %v4170 = vadd.f32 %v4106, %v3268
        %v4171 = vadd.f32 %v4107, %v3271
        %v4172 = vadd.f32 %v4108, %v3274
        %v4173 = vadd.f32 %v4109, %v3277
        %v4174 = vadd.f32 %v4110, %v3280
        %v4175 = vadd.f32 %v4111, %v3283
        %v4176 = vadd.f32 %v4112, %v3286
        %v4177 = vadd.f32 %v4113, %v3289
        %v4178 = vadd.f32 %v4114, %v3292
        %v4179 = vadd.f32 %v4115, %v3295
        %v4180 = vadd.f32 %v4116, %v3298
        %v4181 = vadd.f32 %v4117, %v3301
        %v4182 = vadd.f32 %v4118, %v3304
        %v4183 = vadd.f32 %v4119, %v3307
        %v4184 = vadd.f32 %v4120, %v3310
        %v4185 = vadd.f32 %v4121, %v3313
        %v4186 = vadd.f32 %v4122, %v3381
        %v4187 = vadd.f32 %v4123, %v3384
        %v4188 = vadd.f32 %v4124, %v3387
        %v4189 = vadd.f32 %v4125, %v3390
        %v4190 = vadd.f32 %v4126, %v3393
        %v4191 = vadd.f32 %v4127, %v3396
        %v4192 = vadd.f32 %v4128, %v3399
        %v4193 = vadd.f32 %v4129, %v3402
        %v4194 = vadd.f32 %v4130, %v3405
        %v4195 = vadd.f32 %v4131, %v3408
        %v4196 = vadd.f32 %v4132, %v3411
        %v4197 = vadd.f32 %v4133, %v3414
        %v4198 = vadd.f32 %v4134, %v3417
        %v4199 = vadd.f32 %v4135, %v3420
        %v4200 = vadd.f32 %v4136, %v3423
        %v4201 = vadd.f32 %v4137, %v3426
        %v4202 = vadd.f32 %v4138, %v3494
        %v4203 = vadd.f32 %v4139, %v3497
        %v4204 = vadd.f32 %v4140, %v3500
        %v4205 = vadd.f32 %v4141, %v3503
        %v4206 = vadd.f32 %v4142, %v3506
        %v4207 = vadd.f32 %v4143, %v3509
        %v4208 = vadd.f32 %v4144, %v3512
        %v4209 = vadd.f32 %v4145, %v3515
        %v4210 = vadd.f32 %v4146, %v3518
        %v4211 = vadd.f32 %v4147, %v3521
        %v4212 = vadd.f32 %v4148, %v3524
        %v4213 = vadd.f32 %v4149, %v3527
        %v4214 = vadd.f32 %v4150, %v3530
        %v4215 = vadd.f32 %v4151, %v3533
        %v4216 = vadd.f32 %v4152, %v3536
        %v4217 = vadd.f32 %v4153, %v3539
        %v4218 = vadd.f32 %v4154, %v3607
        %v4219 = vadd.f32 %v4155, %v3610
        %v4220 = vadd.f32 %v4156, %v3613
        %v4221 = vadd.f32 %v4157, %v3616
        %v4222 = vadd.f32 %v4158, %v3619
        %v4223 = vadd.f32 %v4159, %v3622
        %v4224 = vadd.f32 %v4160, %v3625
        %v4225 = vadd.f32 %v4161, %v3628
        %v4226 = vadd.f32 %v4162, %v3631
        %v4227 = vadd.f32 %v4163, %v3634
        %v4228 = vadd.f32 %v4164, %v3637
        %v4229 = vadd.f32 %v4165, %v3640
        %v4230 = vadd.f32 %v4166, %v3643
        %v4231 = vadd.f32 %v4167, %v3646
        %v4232 = vadd.f32 %v4168, %v3649
        %v4233 = vadd.f32 %v4169, %v3652
        %v4234 = vadd.f32 %v4170, %v3720
        %v4235 = vadd.f32 %v4171, %v3723
        %v4236 = vadd.f32 %v4172, %v3726
        %v4237 = vadd.f32 %v4173, %v3729
        %v4238 = vadd.f32 %v4174, %v3732
        %v4239 = vadd.f32 %v4175, %v3735
        %v4240 = vadd.f32 %v4176, %v3738
        %v4241 = vadd.f32 %v4177, %v3741
        %v4242 = vadd.f32 %v4178, %v3744
        %v4243 = vadd.f32 %v4179, %v3747
        %v4244 = vadd.f32 %v4180, %v3750
        %v4245 = vadd.f32 %v4181, %v3753
        %v4246 = vadd.f32 %v4182, %v3756
        %v4247 = vadd.f32 %v4183, %v3759
        %v4248 = vadd.f32 %v4184, %v3762
        %v4249 = vadd.f32 %v4185, %v3765
        %v4250 = vadd.f32 %v4186, %v3833
        %v4251 = vadd.f32 %v4187, %v3836
        %v4252 = vadd.f32 %v4188, %v3839
        %v4253 = vadd.f32 %v4189, %v3842
        %v4254 = vadd.f32 %v4190, %v3845
        %v4255 = vadd.f32 %v4191, %v3848
        %v4256 = vadd.f32 %v4192, %v3851
        %v4257 = vadd.f32 %v4193, %v3854
        %v4258 = vadd.f32 %v4194, %v3857
        %v4259 = vadd.f32 %v4195, %v3860
        %v4260 = vadd.f32 %v4196, %v3863
        %v4261 = vadd.f32 %v4197, %v3866
        %v4262 = vadd.f32 %v4198, %v3869
        %v4263 = vadd.f32 %v4199, %v3872
        %v4264 = vadd.f32 %v4200, %v3875
        %v4265 = vadd.f32 %v4201, %v3878
        %v4266 = vadd.f32 %v4202, %v3946
        %v4267 = vadd.f32 %v4203, %v3949
        %v4268 = vadd.f32 %v4204, %v3952
        %v4269 = vadd.f32 %v4205, %v3955
        %v4270 = vadd.f32 %v4206, %v3958
        %v4271 = vadd.f32 %v4207, %v3961
        %v4272 = vadd.f32 %v4208, %v3964
        %v4273 = vadd.f32 %v4209, %v3967
        %v4274 = vadd.f32 %v4210, %v3970
        %v4275 = vadd.f32 %v4211, %v3973
        %v4276 = vadd.f32 %v4212, %v3976
        %v4277 = vadd.f32 %v4213, %v3979
        %v4278 = vadd.f32 %v4214, %v3982
        %v4279 = vadd.f32 %v4215, %v3985
        %v4280 = vadd.f32 %v4216, %v3988
        %v4281 = vadd.f32 %v4217, %v3991
        %v4282 = vadd.f32 %v4218, %v4059
        %v4283 = vadd.f32 %v4219, %v4062
        %v4284 = vadd.f32 %v4220, %v4065
        %v4285 = vadd.f32 %v4221, %v4068
        %v4286 = vadd.f32 %v4222, %v4071
        %v4287 = vadd.f32 %v4223, %v4074
        %v4288 = vadd.f32 %v4224, %v4077
        %v4289 = vadd.f32 %v4225, %v4080
        %v4290 = vadd.f32 %v4226, %v4083
        %v4291 = vadd.f32 %v4227, %v4086
        %v4292 = vadd.f32 %v4228, %v4089
        %v4293 = vadd.f32 %v4229, %v4092
        %v4294 = vadd.f32 %v4230, %v4095
        %v4295 = vadd.f32 %v4231, %v4098
        %v4296 = vadd.f32 %v4232, %v4101
        %v4297 = vadd.f32 %v4233, %v4104
        %4298 = vst [vmem:[%s163] sm:$0xff] %v4234
        %4299 = vst [vmem:[%s163 + $0x8] sm:$0xff] %v4235
        %4300 = vst [vmem:[%s163 + $0x10] sm:$0xff] %v4236
        %4301 = vst [vmem:[%s163 + $0x18] sm:$0xff] %v4237
        %4302 = vst [vmem:[%s163 + $0x20] sm:$0xff] %v4238
        %4303 = vst [vmem:[%s163 + $0x28] sm:$0xff] %v4239
        %4304 = vst [vmem:[%s163 + $0x30] sm:$0xff] %v4240
        %4305 = vst [vmem:[%s163 + $0x38] sm:$0xff] %v4241
        %4306 = vst [vmem:[%s163 + $0x40] sm:$0xff] %v4242
        %4307 = vst [vmem:[%s163 + $0x48] sm:$0xff] %v4243
        %4308 = vst [vmem:[%s163 + $0x50] sm:$0xff] %v4244
        %4309 = vst [vmem:[%s163 + $0x58] sm:$0xff] %v4245
        %4310 = vst [vmem:[%s163 + $0x60] sm:$0xff] %v4246
        %4311 = vst [vmem:[%s163 + $0x68] sm:$0xff] %v4247
        %4312 = vst [vmem:[%s163 + $0x70] sm:$0xff] %v4248
        %4313 = vst [vmem:[%s163 + $0x78] sm:$0xff] %v4249
        %4314 = vst [vmem:[%s163 + $0x80] sm:$0xff] %v4250
        %4315 = vst [vmem:[%s163 + $0x88] sm:$0xff] %v4251
        %4316 = vst [vmem:[%s163 + $0x90] sm:$0xff] %v4252
        %4317 = vst [vmem:[%s163 + $0x98] sm:$0xff] %v4253
        %4318 = vst [vmem:[%s163 + $0xa0] sm:$0xff] %v4254
        %4319 = vst [vmem:[%s163 + $0xa8] sm:$0xff] %v4255
        %4320 = vst [vmem:[%s163 + $0xb0] sm:$0xff] %v4256
        %4321 = vst [vmem:[%s163 + $0xb8] sm:$0xff] %v4257
        %4322 = vst [vmem:[%s163 + $0xc0] sm:$0xff] %v4258
        %4323 = vst [vmem:[%s163 + $0xc8] sm:$0xff] %v4259
        %4324 = vst [vmem:[%s163 + $0xd0] sm:$0xff] %v4260
        %4325 = vst [vmem:[%s163 + $0xd8] sm:$0xff] %v4261
        %4326 = vst [vmem:[%s163 + $0xe0] sm:$0xff] %v4262
        %4327 = vst [vmem:[%s163 + $0xe8] sm:$0xff] %v4263
        %4328 = vst [vmem:[%s163 + $0xf0] sm:$0xff] %v4264
        %4329 = vst [vmem:[%s163 + $0xf8] sm:$0xff] %v4265
        %4330 = vst [vmem:[%s163 + $0x100] sm:$0xff] %v4266
        %4331 = vst [vmem:[%s163 + $0x108] sm:$0xff] %v4267
        %4332 = vst [vmem:[%s163 + $0x110] sm:$0xff] %v4268
        %4333 = vst [vmem:[%s163 + $0x118] sm:$0xff] %v4269
        %4334 = vst [vmem:[%s163 + $0x120] sm:$0xff] %v4270
        %4335 = vst [vmem:[%s163 + $0x128] sm:$0xff] %v4271
        %4336 = vst [vmem:[%s163 + $0x130] sm:$0xff] %v4272
        %4337 = vst [vmem:[%s163 + $0x138] sm:$0xff] %v4273
        %4338 = vst [vmem:[%s163 + $0x140] sm:$0xff] %v4274
        %4339 = vst [vmem:[%s163 + $0x148] sm:$0xff] %v4275
        %4340 = vst [vmem:[%s163 + $0x150] sm:$0xff] %v4276
        %4341 = vst [vmem:[%s163 + $0x158] sm:$0xff] %v4277
        %4342 = vst [vmem:[%s163 + $0x160] sm:$0xff] %v4278
        %4343 = vst [vmem:[%s163 + $0x168] sm:$0xff] %v4279
        %4344 = vst [vmem:[%s163 + $0x170] sm:$0xff] %v4280
        %4345 = vst [vmem:[%s163 + $0x178] sm:$0xff] %v4281
        %4346 = vst [vmem:[%s163 + $0x180] sm:$0xff] %v4282
        %4347 = vst [vmem:[%s163 + $0x188] sm:$0xff] %v4283
        %4348 = vst [vmem:[%s163 + $0x190] sm:$0xff] %v4284
        %4349 = vst [vmem:[%s163 + $0x198] sm:$0xff] %v4285
        %4350 = vst [vmem:[%s163 + $0x1a0] sm:$0xff] %v4286
        %4351 = vst [vmem:[%s163 + $0x1a8] sm:$0xff] %v4287
        %4352 = vst [vmem:[%s163 + $0x1b0] sm:$0xff] %v4288
        %4353 = vst [vmem:[%s163 + $0x1b8] sm:$0xff] %v4289
        %4354 = vst [vmem:[%s163 + $0x1c0] sm:$0xff] %v4290
        %4355 = vst [vmem:[%s163 + $0x1c8] sm:$0xff] %v4291
        %4356 = vst [vmem:[%s163 + $0x1d0] sm:$0xff] %v4292
        %4357 = vst [vmem:[%s163 + $0x1d8] sm:$0xff] %v4293
        %4358 = vst [vmem:[%s163 + $0x1e0] sm:$0xff] %v4294
        %4359 = vst [vmem:[%s163 + $0x1e8] sm:$0xff] %v4295
        %4360 = vst [vmem:[%s163 + $0x1f0] sm:$0xff] %v4296
        %4361 = vst [vmem:[%s163 + $0x1f8] sm:$0xff] %v4297
        %s4362 = sand.u32 %s93, 1
        %s4363 = scalar_lea.sflag [#allocation3], %s4362
        %s4364 = sand.u32 %s93, 1
        %s4365 = smul.addr %s4364, 512
        %s4366 = scalar_lea.vmem [#allocation2], %s4365
        // Predicated region
        $region33: #{segment_head_forward.3} parent=31 // pred_check
          %p4367 = pneg %p103
        $region34: #{segment_head_forward.3} parent=31 // pred_check_branch
          %4369 = sbr.rel (%p4367) target = $region36
        $region35: #{segment_head_forward.3} parent=31 // pred_region
          %4371 = vsyncadd %s4363, 0
          %s4372 = smul.addr %s17, 64
          %s4373 = smul.addr %s4372, 8
          %s4374 = scalar_lea.hbm %s3, %s4373
          %s4375 = sshll.u32 %s4366, 4
          %s4376 = int_to_ptr.vmem [resolvable:$true] %s4375
          %s4377 = sshll.u32 %s4374, 4
          %s4378 = int_to_ptr.hbm [resolvable:$true] %s4377
          %4383 = dma.vmem_to_hbm [thread:$0]  %s4376, 8192, %s4378, %s4363, 128, 128, 8
        $region36: #{segment_head_forward.3} parent=31 // pred_fallthru
          _
      $region32: #{segment_head_forward.3} parent=5 // pred_fallthru
        _
      %p4384 = scmp.le.s32.totalorder 2, %s12
      // Predicated region
      $region37: #{segment_head_forward.3} parent=5 // pred_check
        %p4385 = pneg %p4384
      $region38: #{segment_head_forward.3} parent=5 // pred_check_branch
        %4387 = sbr.rel (%p4385) target = $region40
      $region39: #{segment_head_forward.3} parent=5 // pred_region
        %s4388 = ssub.s32 %s12, 2
        // Predicated region
        $region41: #{segment_head_forward.3} parent=39 // pred_check
          %p4389 = pneg %p109
        $region42: #{segment_head_forward.3} parent=39 // pred_check_branch
          %4391 = sbr.rel (%p4389) target = $region44
        $region43: #{segment_head_forward.3} parent=39 // pred_region
          %s4392 = sand.u32 %s94, 1
          %s4393 = scalar_lea.sflag [#allocation3], %s4392
          %s4394 = sand.u32 %s94, 1
          %s4395 = smul.addr %s4394, 512
          %s4396 = scalar_lea.vmem [#allocation2], %s4395
          %4398 = dma.done %s4393, 8192
        $region44: #{segment_head_forward.3} parent=39 // pred_fallthru
          _
      $region40: #{segment_head_forward.3} parent=5 // pred_fallthru
        _
    $region6: #{segment_head_forward.3} parent=1 // loop_footer
      %s16 = sadd.s32 1, %s12
    $region7: #{segment_head_forward.3} parent=1 // loop_footer_branch
      %11 = sbr.rel target = $region3
    $region8: #{segment_head_forward.3} parent=1 // loop_exit
      _
    %4399 = vsyncpa [#allocation3], 1
    %s4400 = scalar_lea.sflag [#allocation3], 1
    %4401 = vsyncpa %s4400, 1

// kernel: segment_head_forward.2
$region0: #{segment_head_forward.2}
  #allocation0 [shape = 'u32[]', space=smem, size = 0x4, offset = 0x4, fixed_abs, tag = 'smem constant byte address 0x4 - core index']
  #allocation1 [shape = 'u32[72,128]{1,0:T(1,128)}', space=vmem, size = 0x9000, scoped, tag = 'internal scratch']
  #allocation2 [shape = 'f32[18,18,4]{2,1,0:T(8,128)}', space=vmem, size = 0x36000, scoped, tag = 'scratch operand']
  #allocation3 [shape = 'f32[18,18,8]{2,1,0:T(8,128)}', space=vmem, size = 0x36000, scoped, tag = 'scratch operand']
  %s0 = inlined_call_operand.vmem [shape: f32[2,16,16,4], index: 0, kind: input, shape index: {}]
  %s1 = inlined_call_operand.vmem [shape: f32[36,8], index: 1, kind: input, shape index: {}]
  %s2 = inlined_call_operand.vmem [shape: f32[1,8], index: 2, kind: input, shape index: {}]
  %s3 = inlined_call_operand.vmem [shape: f32[72,256], index: 3, kind: input, shape index: {}]
  %s4 = inlined_call_operand.vmem [shape: f32[1,256], index: 4, kind: input, shape index: {}]
  %s5 = inlined_call_operand.vmem [shape: f32[256,16], index: 5, kind: input, shape index: {}]
  %s6 = inlined_call_operand.vmem [shape: f32[1,16], index: 6, kind: input, shape index: {}]
  %s7 = inlined_call_operand.vmem [shape: f32[2,16,256], index: 7, kind: output, shape index: {}]
  %s8 = sld [smem:[#allocation0]]
  $region61: #{segment_head_forward.2} parent=0
    _
  %s10 = ssub.s32 1, %s8
  %s11 = scalar_select 0, %s10, %s8
  loop: start=0, step=1, limit=4
  $region2: #{segment_head_forward.2} parent=0 // loop_pre_header
    _
  $region3: #{segment_head_forward.2} parent=0 // loop_header
    %s13 = sphi 0, %s17
    %p14 = scmp.ge.s32.totalorder %s13, 4
    %s23 = sphi 0, %s25
    %s26 = sphi 0, %s23
    %s27 = sphi 0, %s26
    %s43 = sphi 0, %s27
    %s47 = sphi 0, %s47
    %s49 = sphi 0, %s47
    %s50 = sphi 0, %s49
    %s64 = sphi 0, %s50
    %s68 = sphi 0, %s68
    %s70 = sphi 0, %s68
    %s71 = sphi 0, %s70
    %s85 = sphi 0, %s71
    %s89 = sphi 0, %s89
    %s91 = sphi 0, %s89
    %s92 = sphi 0, %s91
    %s106 = sphi 0, %s92
    %s110 = sphi 0, %s110
    %s112 = sphi 0, %s110
    %s113 = sphi 0, %s112
    %s127 = sphi 0, %s113
    %s131 = sphi 0, %s131
    %s133 = sphi 0, %s131
    %s134 = sphi 0, %s133
    %s148 = sphi 0, %s134
    %s152 = sphi 0, %s152
    %s154 = sphi 0, %s152
    %s155 = sphi 0, %s154
    %s169 = sphi 0, %s155
    %s175 = sphi 0, %s177
    %s178 = sphi 0, %s175
    %s179 = sphi 0, %s178
    %s195 = sphi 0, %s179
  $region4: #{segment_head_forward.2} parent=0 // loop_header_branch
    %16 = sbr.rel (%p14) target = $region8
  $region5: #{segment_head_forward.2} parent=0 // loop_body
    %s18 = ssub.s32 %s13, 1
    %s19 = ssub.s32 %s13, 2
    %s20 = sadd.s32 %s13, 1
    %s21 = ssub.s32 %s13, %s20
    %p22 = scmp.eq.s32.totalorder %s21, 0
    %s24 = sadd.s32 %s23, 1
    %s25 = scalar_select %p22, %s23, %s24
    %p28 = pneg %p22
    %p29 = scmp.eq.s32.totalorder %s13, 1
    %p30 = por %p28, %p29
    %p31 = scmp.ne.s32.totalorder %s23, %s26
    %p32 = scmp.eq.s32.totalorder %s13, 0
    %p33 = por %p31, %p32
    %p34 = scmp.ne.s32.totalorder %s23, %s26
    %p35 = scmp.eq.s32.totalorder %s18, 1
    %p36 = por %p34, %p35
    %p37 = scmp.ne.s32.totalorder %s26, %s27
    %p38 = scmp.eq.s32.totalorder %s18, 0
    %p39 = por %p37, %p38
    %p40 = scmp.ne.s32.totalorder %s26, %s27
    %p41 = scmp.eq.s32.totalorder %s19, 1
    %p42 = por %p40, %p41
    %p44 = scmp.ne.s32.totalorder %s27, %s43
    %p45 = scmp.eq.s32.totalorder %s19, 0
    %p46 = por %p44, %p45
    %s48 = sadd.s32 %s47, 1
    %p51 = scmp.eq.s32.totalorder %s13, 1
    %p52 = scmp.ne.s32.totalorder %s47, %s49
    %p53 = scmp.eq.s32.totalorder %s13, 0
    %p54 = por %p52, %p53
    %p55 = scmp.ne.s32.totalorder %s47, %s49
    %p56 = scmp.eq.s32.totalorder %s18, 1
    %p57 = por %p55, %p56
    %p58 = scmp.ne.s32.totalorder %s49, %s50
    %p59 = scmp.eq.s32.totalorder %s18, 0
    %p60 = por %p58, %p59
    %p61 = scmp.ne.s32.totalorder %s49, %s50
    %p62 = scmp.eq.s32.totalorder %s19, 1
    %p63 = por %p61, %p62
    %p65 = scmp.ne.s32.totalorder %s50, %s64
    %p66 = scmp.eq.s32.totalorder %s19, 0
    %p67 = por %p65, %p66
    %s69 = sadd.s32 %s68, 1
    %p72 = scmp.eq.s32.totalorder %s13, 1
    %p73 = scmp.ne.s32.totalorder %s68, %s70
    %p74 = scmp.eq.s32.totalorder %s13, 0
    %p75 = por %p73, %p74
    %p76 = scmp.ne.s32.totalorder %s68, %s70
    %p77 = scmp.eq.s32.totalorder %s18, 1
    %p78 = por %p76, %p77
    %p79 = scmp.ne.s32.totalorder %s70, %s71
    %p80 = scmp.eq.s32.totalorder %s18, 0
    %p81 = por %p79, %p80
    %p82 = scmp.ne.s32.totalorder %s70, %s71
    %p83 = scmp.eq.s32.totalorder %s19, 1
    %p84 = por %p82, %p83
    %p86 = scmp.ne.s32.totalorder %s71, %s85
    %p87 = scmp.eq.s32.totalorder %s19, 0
    %p88 = por %p86, %p87
    %s90 = sadd.s32 %s89, 1
    %p93 = scmp.eq.s32.totalorder %s13, 1
    %p94 = scmp.ne.s32.totalorder %s89, %s91
    %p95 = scmp.eq.s32.totalorder %s13, 0
    %p96 = por %p94, %p95
    %p97 = scmp.ne.s32.totalorder %s89, %s91
    %p98 = scmp.eq.s32.totalorder %s18, 1
    %p99 = por %p97, %p98
    %p100 = scmp.ne.s32.totalorder %s91, %s92
    %p101 = scmp.eq.s32.totalorder %s18, 0
    %p102 = por %p100, %p101
    %p103 = scmp.ne.s32.totalorder %s91, %s92
    %p104 = scmp.eq.s32.totalorder %s19, 1
    %p105 = por %p103, %p104
    %p107 = scmp.ne.s32.totalorder %s92, %s106
    %p108 = scmp.eq.s32.totalorder %s19, 0
    %p109 = por %p107, %p108
    %s111 = sadd.s32 %s110, 1
    %p114 = scmp.eq.s32.totalorder %s13, 1
    %p115 = scmp.ne.s32.totalorder %s110, %s112
    %p116 = scmp.eq.s32.totalorder %s13, 0
    %p117 = por %p115, %p116
    %p118 = scmp.ne.s32.totalorder %s110, %s112
    %p119 = scmp.eq.s32.totalorder %s18, 1
    %p120 = por %p118, %p119
    %p121 = scmp.ne.s32.totalorder %s112, %s113
    %p122 = scmp.eq.s32.totalorder %s18, 0
    %p123 = por %p121, %p122
    %p124 = scmp.ne.s32.totalorder %s112, %s113
    %p125 = scmp.eq.s32.totalorder %s19, 1
    %p126 = por %p124, %p125
    %p128 = scmp.ne.s32.totalorder %s113, %s127
    %p129 = scmp.eq.s32.totalorder %s19, 0
    %p130 = por %p128, %p129
    %s132 = sadd.s32 %s131, 1
    %p135 = scmp.eq.s32.totalorder %s13, 1
    %p136 = scmp.ne.s32.totalorder %s131, %s133
    %p137 = scmp.eq.s32.totalorder %s13, 0
    %p138 = por %p136, %p137
    %p139 = scmp.ne.s32.totalorder %s131, %s133
    %p140 = scmp.eq.s32.totalorder %s18, 1
    %p141 = por %p139, %p140
    %p142 = scmp.ne.s32.totalorder %s133, %s134
    %p143 = scmp.eq.s32.totalorder %s18, 0
    %p144 = por %p142, %p143
    %p145 = scmp.ne.s32.totalorder %s133, %s134
    %p146 = scmp.eq.s32.totalorder %s19, 1
    %p147 = por %p145, %p146
    %p149 = scmp.ne.s32.totalorder %s134, %s148
    %p150 = scmp.eq.s32.totalorder %s19, 0
    %p151 = por %p149, %p150
    %s153 = sadd.s32 %s152, 1
    %p156 = scmp.eq.s32.totalorder %s13, 1
    %p157 = scmp.ne.s32.totalorder %s152, %s154
    %p158 = scmp.eq.s32.totalorder %s13, 0
    %p159 = por %p157, %p158
    %p160 = scmp.ne.s32.totalorder %s152, %s154
    %p161 = scmp.eq.s32.totalorder %s18, 1
    %p162 = por %p160, %p161
    %p163 = scmp.ne.s32.totalorder %s154, %s155
    %p164 = scmp.eq.s32.totalorder %s18, 0
    %p165 = por %p163, %p164
    %p166 = scmp.ne.s32.totalorder %s154, %s155
    %p167 = scmp.eq.s32.totalorder %s19, 1
    %p168 = por %p166, %p167
    %p170 = scmp.ne.s32.totalorder %s155, %s169
    %p171 = scmp.eq.s32.totalorder %s19, 0
    %p172 = por %p170, %p171
    %s173 = ssub.s32 %s13, %s20
    %p174 = scmp.eq.s32.totalorder %s173, 0
    %s176 = sadd.s32 %s175, 1
    %s177 = scalar_select %p174, %s175, %s176
    %p180 = pneg %p174
    %p181 = scmp.eq.s32.totalorder %s13, 1
    %p182 = por %p180, %p181
    %p183 = scmp.ne.s32.totalorder %s175, %s178
    %p184 = scmp.eq.s32.totalorder %s13, 0
    %p185 = por %p183, %p184
    %p186 = scmp.ne.s32.totalorder %s175, %s178
    %p187 = scmp.eq.s32.totalorder %s18, 1
    %p188 = por %p186, %p187
    %p189 = scmp.ne.s32.totalorder %s178, %s179
    %p190 = scmp.eq.s32.totalorder %s18, 0
    %p191 = por %p189, %p190
    %p192 = scmp.ne.s32.totalorder %s178, %s179
    %p193 = scmp.eq.s32.totalorder %s19, 1
    %p194 = por %p192, %p193
    %p196 = scmp.ne.s32.totalorder %s179, %s195
    %p197 = scmp.eq.s32.totalorder %s19, 0
    %p198 = por %p196, %p197
    %p199 = scmp.le.s32.totalorder 1, %s13
    %p200 = scmp.lt.s32.totalorder %s13, 3
    %p201 = pnand %p199, %p200
    %p202 = pneg %p201
    // Predicated region
    $region9: #{segment_head_forward.2} parent=5 // pred_check
      _
    $region10: #{segment_head_forward.2} parent=5 // pred_check_branch
      %204 = sbr.rel (%p201) target = $region12
    $region11: #{segment_head_forward.2} parent=5 // pred_region
      %s205 = ssub.s32 %s13, 1
      // Predicated region
      $region13: #{segment_head_forward.2} parent=11 // pred_check
        %p206 = pneg %p60
      $region14: #{segment_head_forward.2} parent=11 // pred_check_branch
        %208 = sbr.rel (%p206) target = $region16
      $region15: #{segment_head_forward.2} parent=11 // pred_region
        _
      $region16: #{segment_head_forward.2} parent=11 // pred_fallthru
        _
      // Predicated region
      $region17: #{segment_head_forward.2} parent=11 // pred_check
        %p209 = pneg %p81
      $region18: #{segment_head_forward.2} parent=11 // pred_check_branch
        %211 = sbr.rel (%p209) target = $region20
      $region19: #{segment_head_forward.2} parent=11 // pred_region
        _
      $region20: #{segment_head_forward.2} parent=11 // pred_fallthru
        _
      // Predicated region
      $region21: #{segment_head_forward.2} parent=11 // pred_check
        %p212 = pneg %p102
      $region22: #{segment_head_forward.2} parent=11 // pred_check_branch
        %214 = sbr.rel (%p212) target = $region24
      $region23: #{segment_head_forward.2} parent=11 // pred_region
        _
      $region24: #{segment_head_forward.2} parent=11 // pred_fallthru
        _
      // Predicated region
      $region25: #{segment_head_forward.2} parent=11 // pred_check
        %p215 = pneg %p123
      $region26: #{segment_head_forward.2} parent=11 // pred_check_branch
        %217 = sbr.rel (%p215) target = $region28
      $region27: #{segment_head_forward.2} parent=11 // pred_region
        _
      $region28: #{segment_head_forward.2} parent=11 // pred_fallthru
        _
      // Predicated region
      $region29: #{segment_head_forward.2} parent=11 // pred_check
        %p218 = pneg %p144
      $region30: #{segment_head_forward.2} parent=11 // pred_check_branch
        %220 = sbr.rel (%p218) target = $region32
      $region31: #{segment_head_forward.2} parent=11 // pred_region
        _
      $region32: #{segment_head_forward.2} parent=11 // pred_fallthru
        _
      // Predicated region
      $region33: #{segment_head_forward.2} parent=11 // pred_check
        %p221 = pneg %p165
      $region34: #{segment_head_forward.2} parent=11 // pred_check_branch
        %223 = sbr.rel (%p221) target = $region36
      $region35: #{segment_head_forward.2} parent=11 // pred_region
        _
      $region36: #{segment_head_forward.2} parent=11 // pred_fallthru
        _
    $region12: #{segment_head_forward.2} parent=5 // pred_fallthru
      _
    %p224 = scmp.lt.s32.totalorder %s13, 2
    // Predicated region
    $region37: #{segment_head_forward.2} parent=5 // pred_check
      %p225 = pneg %p224
    $region38: #{segment_head_forward.2} parent=5 // pred_check_branch
      %227 = sbr.rel (%p225) target = $region40
    $region39: #{segment_head_forward.2} parent=5 // pred_region
      // Predicated region
      $region41: #{segment_head_forward.2} parent=39 // pred_check
        %p228 = pneg %p33
      $region42: #{segment_head_forward.2} parent=39 // pred_check_branch
        %230 = sbr.rel (%p228) target = $region44
      $region43: #{segment_head_forward.2} parent=39 // pred_region
        %p231 = scmp.lt.s32.totalorder %s13, 1
        %s232 = scalar_select %p231, %s13, 1
        %s233 = smul.addr %s232, 32
        %s234 = smul.addr %s233, 8
        %s235 = scalar_lea.vmem %s0, %s234
      $region44: #{segment_head_forward.2} parent=39 // pred_fallthru
        _
    $region40: #{segment_head_forward.2} parent=5 // pred_fallthru
      _
    %p236 = scmp.le.s32.totalorder 1, %s13
    %p237 = scmp.lt.s32.totalorder %s13, 3
    %p238 = pnand %p236, %p237
    %p239 = pneg %p238
    // Predicated region
    $region45: #{segment_head_forward.2} parent=5 // pred_check
      _
    $region46: #{segment_head_forward.2} parent=5 // pred_check_branch
      %241 = sbr.rel (%p238) target = $region48
    $region47: #{segment_head_forward.2} parent=5 // pred_region
      %s242 = ssub.s32 %s13, 1
      %p243 = scmp.lt.s32.totalorder %s18, 1
      %s244 = scalar_select %p243, %s18, 1
      %s245 = smul.addr %s244, 32
      %s246 = smul.addr %s245, 8
      %s247 = scalar_lea.vmem %s0, %s246
      %p248 = pneg %p39
      %p249 = pneg %p36
      %p250 = pneg %p60
      %p251 = pneg %p57
      %p252 = pneg %p81
      %p253 = pneg %p78
      %p254 = pneg %p102
      %p255 = pneg %p99
      %p256 = pneg %p123
      %p257 = pneg %p120
      %p258 = pneg %p144
      %p259 = pneg %p141
      %p260 = pneg %p165
      %p261 = pneg %p162
      %p262 = pneg %p191
      %p263 = pneg %p188
      %p264 = scmp.lt.s32.totalorder %s18, 1
      %s265 = scalar_select %p264, %s18, 1
      %s266 = smul.addr %s265, 4
      %s267 = smul.addr %s266, 8
      %s268 = scalar_lea.vmem %s7, %s267
      %p269 = scmp.lt.s32.totalorder %s18, 1
      %s270 = scalar_select %p269, %s18, 1
      %s271 = smul.addr %s270, 32
      %s272 = smul.addr %s271, 8
      %s273 = scalar_lea.vmem %s0, %s272
      %p274 = scmp.lt.s32.totalorder %s18, 1
      %s275 = scalar_select %p274, %s18, 1
      %s276 = smul.addr %s275, 4
      %s277 = smul.addr %s276, 8
      %s278 = scalar_lea.vmem %s7, %s277
      %vm279 = vcmask 31744
      %280 = vst.msk [vmem:[#allocation2] sm:$0xff] %vm279, 0.0
      %281 = vst.msk [vmem:[#allocation2 + $0x8] sm:$0xff] %vm279, 0.0
      %vm282 = vcmask 25600
      %283 = vst.msk [vmem:[#allocation2 + $0x10] sm:$0x3] %vm282, 0.0
      %284 = vst.msk [vmem:[#allocation2 + $0x18] sm:$0xff] %vm279, 0.0
      %285 = vst.msk [vmem:[#allocation2 + $0x20] sm:$0xff] %vm279, 0.0
      %286 = vst.msk [vmem:[#allocation2 + $0x28] sm:$0x3] %vm282, 0.0
      %287 = vst.msk [vmem:[#allocation2 + $0x30] sm:$0xff] %vm279, 0.0
      %288 = vst.msk [vmem:[#allocation2 + $0x38] sm:$0xff] %vm279, 0.0
      %289 = vst.msk [vmem:[#allocation2 + $0x40] sm:$0x3] %vm282, 0.0
      %290 = vst.msk [vmem:[#allocation2 + $0x48] sm:$0xff] %vm279, 0.0
      %291 = vst.msk [vmem:[#allocation2 + $0x50] sm:$0xff] %vm279, 0.0
      %292 = vst.msk [vmem:[#allocation2 + $0x58] sm:$0x3] %vm282, 0.0
      %293 = vst.msk [vmem:[#allocation2 + $0x60] sm:$0xff] %vm279, 0.0
      %294 = vst.msk [vmem:[#allocation2 + $0x68] sm:$0xff] %vm279, 0.0
      %295 = vst.msk [vmem:[#allocation2 + $0x70] sm:$0x3] %vm282, 0.0
      %296 = vst.msk [vmem:[#allocation2 + $0x78] sm:$0xff] %vm279, 0.0
      %297 = vst.msk [vmem:[#allocation2 + $0x80] sm:$0xff] %vm279, 0.0
      %298 = vst.msk [vmem:[#allocation2 + $0x88] sm:$0x3] %vm282, 0.0
      %299 = vst.msk [vmem:[#allocation2 + $0x90] sm:$0xff] %vm279, 0.0
      %300 = vst.msk [vmem:[#allocation2 + $0x98] sm:$0xff] %vm279, 0.0
      %301 = vst.msk [vmem:[#allocation2 + $0xa0] sm:$0x3] %vm282, 0.0
      %302 = vst.msk [vmem:[#allocation2 + $0xa8] sm:$0xff] %vm279, 0.0
      %303 = vst.msk [vmem:[#allocation2 + $0xb0] sm:$0xff] %vm279, 0.0
      %304 = vst.msk [vmem:[#allocation2 + $0xb8] sm:$0x3] %vm282, 0.0
      %305 = vst.msk [vmem:[#allocation2 + $0xc0] sm:$0xff] %vm279, 0.0
      %306 = vst.msk [vmem:[#allocation2 + $0xc8] sm:$0xff] %vm279, 0.0
      %307 = vst.msk [vmem:[#allocation2 + $0xd0] sm:$0x3] %vm282, 0.0
      %308 = vst.msk [vmem:[#allocation2 + $0xd8] sm:$0xff] %vm279, 0.0
      %309 = vst.msk [vmem:[#allocation2 + $0xe0] sm:$0xff] %vm279, 0.0
      %310 = vst.msk [vmem:[#allocation2 + $0xe8] sm:$0x3] %vm282, 0.0
      %311 = vst.msk [vmem:[#allocation2 + $0xf0] sm:$0xff] %vm279, 0.0
      %312 = vst.msk [vmem:[#allocation2 + $0xf8] sm:$0xff] %vm279, 0.0
      %313 = vst.msk [vmem:[#allocation2 + $0x100] sm:$0x3] %vm282, 0.0
      %314 = vst.msk [vmem:[#allocation2 + $0x108] sm:$0xff] %vm279, 0.0
      %315 = vst.msk [vmem:[#allocation2 + $0x110] sm:$0xff] %vm279, 0.0
      %316 = vst.msk [vmem:[#allocation2 + $0x118] sm:$0x3] %vm282, 0.0
      %317 = vst.msk [vmem:[#allocation2 + $0x120] sm:$0xff] %vm279, 0.0
      %318 = vst.msk [vmem:[#allocation2 + $0x128] sm:$0xff] %vm279, 0.0
      %319 = vst.msk [vmem:[#allocation2 + $0x130] sm:$0x3] %vm282, 0.0
      %320 = vst.msk [vmem:[#allocation2 + $0x138] sm:$0xff] %vm279, 0.0
      %321 = vst.msk [vmem:[#allocation2 + $0x140] sm:$0xff] %vm279, 0.0
      %322 = vst.msk [vmem:[#allocation2 + $0x148] sm:$0x3] %vm282, 0.0
      %323 = vst.msk [vmem:[#allocation2 + $0x150] sm:$0xff] %vm279, 0.0
      %324 = vst.msk [vmem:[#allocation2 + $0x158] sm:$0xff] %vm279, 0.0
      %325 = vst.msk [vmem:[#allocation2 + $0x160] sm:$0x3] %vm282, 0.0
      %326 = vst.msk [vmem:[#allocation2 + $0x168] sm:$0xff] %vm279, 0.0
      %327 = vst.msk [vmem:[#allocation2 + $0x170] sm:$0xff] %vm279, 0.0
      %328 = vst.msk [vmem:[#allocation2 + $0x178] sm:$0x3] %vm282, 0.0
      %329 = vst.msk [vmem:[#allocation2 + $0x180] sm:$0xff] %vm279, 0.0
      %330 = vst.msk [vmem:[#allocation2 + $0x188] sm:$0xff] %vm279, 0.0
      %331 = vst.msk [vmem:[#allocation2 + $0x190] sm:$0x3] %vm282, 0.0
      %332 = vst.msk [vmem:[#allocation2 + $0x198] sm:$0xff] %vm279, 0.0
      %333 = vst.msk [vmem:[#allocation2 + $0x1a0] sm:$0xff] %vm279, 0.0
      %334 = vst.msk [vmem:[#allocation2 + $0x1a8] sm:$0x3] %vm282, 0.0
      %v335 = vld [vmem:[%s273] sm:$0xff]
      %v336 = vld [vmem:[%s273 + $0x8] sm:$0xff]
      %v337 = vld [vmem:[%s273 + $0x10] sm:$0xff]
      %v338 = vld [vmem:[%s273 + $0x18] sm:$0xff]
      %v339 = vld [vmem:[%s273 + $0x20] sm:$0xff]
      %v340 = vld [vmem:[%s273 + $0x28] sm:$0xff]
      %v341 = vld [vmem:[%s273 + $0x30] sm:$0xff]
      %v342 = vld [vmem:[%s273 + $0x38] sm:$0xff]
      %v343 = vld [vmem:[%s273 + $0x40] sm:$0xff]
      %v344 = vld [vmem:[%s273 + $0x48] sm:$0xff]
      %v345 = vld [vmem:[%s273 + $0x50] sm:$0xff]
      %v346 = vld [vmem:[%s273 + $0x58] sm:$0xff]
      %v347 = vld [vmem:[%s273 + $0x60] sm:$0xff]
      %v348 = vld [vmem:[%s273 + $0x68] sm:$0xff]
      %v349 = vld [vmem:[%s273 + $0x70] sm:$0xff]
      %v350 = vld [vmem:[%s273 + $0x78] sm:$0xff]
      %v351 = vld [vmem:[%s273 + $0x80] sm:$0xff]
      %v352 = vld [vmem:[%s273 + $0x88] sm:$0xff]
      %v353 = vld [vmem:[%s273 + $0x90] sm:$0xff]
      %v354 = vld [vmem:[%s273 + $0x98] sm:$0xff]
      %v355 = vld [vmem:[%s273 + $0xa0] sm:$0xff]
      %v356 = vld [vmem:[%s273 + $0xa8] sm:$0xff]
      %v357 = vld [vmem:[%s273 + $0xb0] sm:$0xff]
      %v358 = vld [vmem:[%s273 + $0xb8] sm:$0xff]
      %v359 = vld [vmem:[%s273 + $0xc0] sm:$0xff]
      %v360 = vld [vmem:[%s273 + $0xc8] sm:$0xff]
      %v361 = vld [vmem:[%s273 + $0xd0] sm:$0xff]
      %v362 = vld [vmem:[%s273 + $0xd8] sm:$0xff]
      %v363 = vld [vmem:[%s273 + $0xe0] sm:$0xff]
      %v364 = vld [vmem:[%s273 + $0xe8] sm:$0xff]
      %v365 = vld [vmem:[%s273 + $0xf0] sm:$0xff]
      %v366 = vld [vmem:[%s273 + $0xf8] sm:$0xff]
      %s367 = scalar_lea.vmem [#allocation2], 24
      %368 = vst.msk [vmem:[%s367 + $0x1] sm:$0xff] %vm279, %v335
      %369 = vst.msk [vmem:[%s367 + $0x9] sm:$0xff] %vm279, %v336
      %370 = vst.msk [vmem:[%s367 + $0x19] sm:$0xff] %vm279, %v337
      %371 = vst.msk [vmem:[%s367 + $0x21] sm:$0xff] %vm279, %v338
      %372 = vst.msk [vmem:[%s367 + $0x31] sm:$0xff] %vm279, %v339
      %373 = vst.msk [vmem:[%s367 + $0x39] sm:$0xff] %vm279, %v340
      %374 = vst.msk [vmem:[%s367 + $0x49] sm:$0xff] %vm279, %v341
      %375 = vst.msk [vmem:[%s367 + $0x51] sm:$0xff] %vm279, %v342
      %376 = vst.msk [vmem:[%s367 + $0x61] sm:$0xff] %vm279, %v343
      %377 = vst.msk [vmem:[%s367 + $0x69] sm:$0xff] %vm279, %v344
      %378 = vst.msk [vmem:[%s367 + $0x79] sm:$0xff] %vm279, %v345
      %379 = vst.msk [vmem:[%s367 + $0x81] sm:$0xff] %vm279, %v346
      %380 = vst.msk [vmem:[%s367 + $0x91] sm:$0xff] %vm279, %v347
      %381 = vst.msk [vmem:[%s367 + $0x99] sm:$0xff] %vm279, %v348
      %382 = vst.msk [vmem:[%s367 + $0xa9] sm:$0xff] %vm279, %v349
      %383 = vst.msk [vmem:[%s367 + $0xb1] sm:$0xff] %vm279, %v350
      %384 = vst.msk [vmem:[%s367 + $0xc1] sm:$0xff] %vm279, %v351
      %385 = vst.msk [vmem:[%s367 + $0xc9] sm:$0xff] %vm279, %v352
      %386 = vst.msk [vmem:[%s367 + $0xd9] sm:$0xff] %vm279, %v353
      %387 = vst.msk [vmem:[%s367 + $0xe1] sm:$0xff] %vm279, %v354
      %388 = vst.msk [vmem:[%s367 + $0xf1] sm:$0xff] %vm279, %v355
      %389 = vst.msk [vmem:[%s367 + $0xf9] sm:$0xff] %vm279, %v356
      %390 = vst.msk [vmem:[%s367 + $0x109] sm:$0xff] %vm279, %v357
      %391 = vst.msk [vmem:[%s367 + $0x111] sm:$0xff] %vm279, %v358
      %392 = vst.msk [vmem:[%s367 + $0x121] sm:$0xff] %vm279, %v359
      %393 = vst.msk [vmem:[%s367 + $0x129] sm:$0xff] %vm279, %v360
      %394 = vst.msk [vmem:[%s367 + $0x139] sm:$0xff] %vm279, %v361
      %395 = vst.msk [vmem:[%s367 + $0x141] sm:$0xff] %vm279, %v362
      %396 = vst.msk [vmem:[%s367 + $0x151] sm:$0xff] %vm279, %v363
      %397 = vst.msk [vmem:[%s367 + $0x159] sm:$0xff] %vm279, %v364
      %398 = vst.msk [vmem:[%s367 + $0x169] sm:$0xff] %vm279, %v365
      %399 = vst.msk [vmem:[%s367 + $0x171] sm:$0xff] %vm279, %v366
      %v400 = vld [vmem:[#allocation2] sm:$0xff]
      %v401 = vld [vmem:[#allocation2 + $0x8] sm:$0xff]
      %v402 = vld [vmem:[#allocation2 + $0x18] sm:$0xff]
      %v403 = vld [vmem:[#allocation2 + $0x20] sm:$0xff]
      %v404 = vld [vmem:[#allocation2 + $0x30] sm:$0xff]
      %v405 = vld [vmem:[#allocation2 + $0x38] sm:$0xff]
      %v406 = vld [vmem:[#allocation2 + $0x48] sm:$0xff]
      %v407 = vld [vmem:[#allocation2 + $0x50] sm:$0xff]
      %v408 = vld [vmem:[#allocation2 + $0x60] sm:$0xff]
      %v409 = vld [vmem:[#allocation2 + $0x68] sm:$0xff]
      %v410 = vld [vmem:[#allocation2 + $0x78] sm:$0xff]
      %v411 = vld [vmem:[#allocation2 + $0x80] sm:$0xff]
      %v412 = vld [vmem:[#allocation2 + $0x90] sm:$0xff]
      %v413 = vld [vmem:[#allocation2 + $0x98] sm:$0xff]
      %v414 = vld [vmem:[#allocation2 + $0xa8] sm:$0xff]
      %v415 = vld [vmem:[#allocation2 + $0xb0] sm:$0xff]
      %v416 = vld [vmem:[#allocation2 + $0xc0] sm:$0xff]
      %v417 = vld [vmem:[#allocation2 + $0xc8] sm:$0xff]
      %v418 = vld [vmem:[#allocation2 + $0xd8] sm:$0xff]
      %v419 = vld [vmem:[#allocation2 + $0xe0] sm:$0xff]
      %v420 = vld [vmem:[#allocation2 + $0xf0] sm:$0xff]
      %v421 = vld [vmem:[#allocation2 + $0xf8] sm:$0xff]
      %v422 = vld [vmem:[#allocation2 + $0x108] sm:$0xff]
      %v423 = vld [vmem:[#allocation2 + $0x110] sm:$0xff]
      %v424 = vld [vmem:[#allocation2 + $0x120] sm:$0xff]
      %v425 = vld [vmem:[#allocation2 + $0x128] sm:$0xff]
      %v426 = vld [vmem:[#allocation2 + $0x138] sm:$0xff]
      %v427 = vld [vmem:[#allocation2 + $0x140] sm:$0xff]
      %v428 = vld [vmem:[#allocation2 + $0x150] sm:$0xff]
      %v429 = vld [vmem:[#allocation2 + $0x158] sm:$0xff]
      %v430 = vld [vmem:[#allocation2 + $0x168] sm:$0xff]
      %v431 = vld [vmem:[#allocation2 + $0x170] sm:$0xff]
      %v432 = vld [vmem:[#allocation2 + $0x1] sm:$0xff]
      %v433 = vld [vmem:[#allocation2 + $0x9] sm:$0xff]
      %v434 = vld [vmem:[#allocation2 + $0x19] sm:$0xff]
      %v435 = vld [vmem:[#allocation2 + $0x21] sm:$0xff]
      %v436 = vld [vmem:[#allocation2 + $0x31] sm:$0xff]
      %v437 = vld [vmem:[#allocation2 + $0x39] sm:$0xff]
      %v438 = vld [vmem:[#allocation2 + $0x49] sm:$0xff]
      %v439 = vld [vmem:[#allocation2 + $0x51] sm:$0xff]
      %v440 = vld [vmem:[#allocation2 + $0x61] sm:$0xff]
      %v441 = vld [vmem:[#allocation2 + $0x69] sm:$0xff]
      %v442 = vld [vmem:[#allocation2 + $0x79] sm:$0xff]
      %v443 = vld [vmem:[#allocation2 + $0x81] sm:$0xff]
      %v444 = vld [vmem:[#allocation2 + $0x91] sm:$0xff]
      %v445 = vld [vmem:[#allocation2 + $0x99] sm:$0xff]
      %v446 = vld [vmem:[#allocation2 + $0xa9] sm:$0xff]
      %v447 = vld [vmem:[#allocation2 + $0xb1] sm:$0xff]
      %v448 = vld [vmem:[#allocation2 + $0xc1] sm:$0xff]
      %v449 = vld [vmem:[#allocation2 + $0xc9] sm:$0xff]
      %v450 = vld [vmem:[#allocation2 + $0xd9] sm:$0xff]
      %v451 = vld [vmem:[#allocation2 + $0xe1] sm:$0xff]
      %v452 = vld [vmem:[#allocation2 + $0xf1] sm:$0xff]
      %v453 = vld [vmem:[#allocation2 + $0xf9] sm:$0xff]
      %v454 = vld [vmem:[#allocation2 + $0x109] sm:$0xff]
      %v455 = vld [vmem:[#allocation2 + $0x111] sm:$0xff]
      %v456 = vld [vmem:[#allocation2 + $0x121] sm:$0xff]
      %v457 = vld [vmem:[#allocation2 + $0x129] sm:$0xff]
      %v458 = vld [vmem:[#allocation2 + $0x139] sm:$0xff]
      %v459 = vld [vmem:[#allocation2 + $0x141] sm:$0xff]
      %v460 = vld [vmem:[#allocation2 + $0x151] sm:$0xff]
      %v461 = vld [vmem:[#allocation2 + $0x159] sm:$0xff]
      %v462 = vld [vmem:[#allocation2 + $0x169] sm:$0xff]
      %v463 = vld [vmem:[#allocation2 + $0x171] sm:$0xff]
      %v464 = vld [vmem:[#allocation2 + $0x2] sm:$0xff]
      %v465 = vld [vmem:[#allocation2 + $0xa] sm:$0xff]
      %v466 = vld [vmem:[#allocation2 + $0x1a] sm:$0xff]
      %v467 = vld [vmem:[#allocation2 + $0x22] sm:$0xff]
      %v468 = vld [vmem:[#allocation2 + $0x32] sm:$0xff]
      %v469 = vld [vmem:[#allocation2 + $0x3a] sm:$0xff]
      %v470 = vld [vmem:[#allocation2 + $0x4a] sm:$0xff]
      %v471 = vld [vmem:[#allocation2 + $0x52] sm:$0xff]
      %v472 = vld [vmem:[#allocation2 + $0x62] sm:$0xff]
      %v473 = vld [vmem:[#allocation2 + $0x6a] sm:$0xff]
      %v474 = vld [vmem:[#allocation2 + $0x7a] sm:$0xff]
      %v475 = vld [vmem:[#allocation2 + $0x82] sm:$0xff]
      %v476 = vld [vmem:[#allocation2 + $0x92] sm:$0xff]
      %v477 = vld [vmem:[#allocation2 + $0x9a] sm:$0xff]
      %v478 = vld [vmem:[#allocation2 + $0xaa] sm:$0xff]
      %v479 = vld [vmem:[#allocation2 + $0xb2] sm:$0xff]
      %v480 = vld [vmem:[#allocation2 + $0xc2] sm:$0xff]
      %v481 = vld [vmem:[#allocation2 + $0xca] sm:$0xff]
      %v482 = vld [vmem:[#allocation2 + $0xda] sm:$0xff]
      %v483 = vld [vmem:[#allocation2 + $0xe2] sm:$0xff]
      %v484 = vld [vmem:[#allocation2 + $0xf2] sm:$0xff]
      %v485 = vld [vmem:[#allocation2 + $0xfa] sm:$0xff]
      %v486 = vld [vmem:[#allocation2 + $0x10a] sm:$0xff]
      %v487 = vld [vmem:[#allocation2 + $0x112] sm:$0xff]
      %v488 = vld [vmem:[#allocation2 + $0x122] sm:$0xff]
      %v489 = vld [vmem:[#allocation2 + $0x12a] sm:$0xff]
      %v490 = vld [vmem:[#allocation2 + $0x13a] sm:$0xff]
      %v491 = vld [vmem:[#allocation2 + $0x142] sm:$0xff]
      %v492 = vld [vmem:[#allocation2 + $0x152] sm:$0xff]
      %v493 = vld [vmem:[#allocation2 + $0x15a] sm:$0xff]
      %v494 = vld [vmem:[#allocation2 + $0x16a] sm:$0xff]
      %v495 = vld [vmem:[#allocation2 + $0x172] sm:$0xff]
      %v496 = vld [vmem:[%s367] sm:$0xff]
      %v497 = vld [vmem:[%s367 + $0x8] sm:$0xff]
      %v498 = vld [vmem:[%s367 + $0x18] sm:$0xff]
      %v499 = vld [vmem:[%s367 + $0x20] sm:$0xff]
      %v500 = vld [vmem:[%s367 + $0x30] sm:$0xff]
      %v501 = vld [vmem:[%s367 + $0x38] sm:$0xff]
      %v502 = vld [vmem:[%s367 + $0x48] sm:$0xff]
      %v503 = vld [vmem:[%s367 + $0x50] sm:$0xff]
      %v504 = vld [vmem:[%s367 + $0x60] sm:$0xff]
      %v505 = vld [vmem:[%s367 + $0x68] sm:$0xff]
      %v506 = vld [vmem:[%s367 + $0x78] sm:$0xff]
      %v507 = vld [vmem:[%s367 + $0x80] sm:$0xff]
      %v508 = vld [vmem:[%s367 + $0x90] sm:$0xff]
      %v509 = vld [vmem:[%s367 + $0x98] sm:$0xff]
      %v510 = vld [vmem:[%s367 + $0xa8] sm:$0xff]
      %v511 = vld [vmem:[%s367 + $0xb0] sm:$0xff]
      %v512 = vld [vmem:[%s367 + $0xc0] sm:$0xff]
      %v513 = vld [vmem:[%s367 + $0xc8] sm:$0xff]
      %v514 = vld [vmem:[%s367 + $0xd8] sm:$0xff]
      %v515 = vld [vmem:[%s367 + $0xe0] sm:$0xff]
      %v516 = vld [vmem:[%s367 + $0xf0] sm:$0xff]
      %v517 = vld [vmem:[%s367 + $0xf8] sm:$0xff]
      %v518 = vld [vmem:[%s367 + $0x108] sm:$0xff]
      %v519 = vld [vmem:[%s367 + $0x110] sm:$0xff]
      %v520 = vld [vmem:[%s367 + $0x120] sm:$0xff]
      %v521 = vld [vmem:[%s367 + $0x128] sm:$0xff]
      %v522 = vld [vmem:[%s367 + $0x138] sm:$0xff]
      %v523 = vld [vmem:[%s367 + $0x140] sm:$0xff]
      %v524 = vld [vmem:[%s367 + $0x150] sm:$0xff]
      %v525 = vld [vmem:[%s367 + $0x158] sm:$0xff]
      %v526 = vld [vmem:[%s367 + $0x168] sm:$0xff]
      %v527 = vld [vmem:[%s367 + $0x170] sm:$0xff]
      %v528 = vld [vmem:[%s367 + $0x1] sm:$0xff]
      %v529 = vld [vmem:[%s367 + $0x9] sm:$0xff]
      %v530 = vld [vmem:[%s367 + $0x19] sm:$0xff]
      %v531 = vld [vmem:[%s367 + $0x21] sm:$0xff]
      %v532 = vld [vmem:[%s367 + $0x31] sm:$0xff]
      %v533 = vld [vmem:[%s367 + $0x39] sm:$0xff]
      %v534 = vld [vmem:[%s367 + $0x49] sm:$0xff]
      %v535 = vld [vmem:[%s367 + $0x51] sm:$0xff]
      %v536 = vld [vmem:[%s367 + $0x61] sm:$0xff]
      %v537 = vld [vmem:[%s367 + $0x69] sm:$0xff]
      %v538 = vld [vmem:[%s367 + $0x79] sm:$0xff]
      %v539 = vld [vmem:[%s367 + $0x81] sm:$0xff]
      %v540 = vld [vmem:[%s367 + $0x91] sm:$0xff]
      %v541 = vld [vmem:[%s367 + $0x99] sm:$0xff]
      %v542 = vld [vmem:[%s367 + $0xa9] sm:$0xff]
      %v543 = vld [vmem:[%s367 + $0xb1] sm:$0xff]
      %v544 = vld [vmem:[%s367 + $0xc1] sm:$0xff]
      %v545 = vld [vmem:[%s367 + $0xc9] sm:$0xff]
      %v546 = vld [vmem:[%s367 + $0xd9] sm:$0xff]
      %v547 = vld [vmem:[%s367 + $0xe1] sm:$0xff]
      %v548 = vld [vmem:[%s367 + $0xf1] sm:$0xff]
      %v549 = vld [vmem:[%s367 + $0xf9] sm:$0xff]
      %v550 = vld [vmem:[%s367 + $0x109] sm:$0xff]
      %v551 = vld [vmem:[%s367 + $0x111] sm:$0xff]
      %v552 = vld [vmem:[%s367 + $0x121] sm:$0xff]
      %v553 = vld [vmem:[%s367 + $0x129] sm:$0xff]
      %v554 = vld [vmem:[%s367 + $0x139] sm:$0xff]
      %v555 = vld [vmem:[%s367 + $0x141] sm:$0xff]
      %v556 = vld [vmem:[%s367 + $0x151] sm:$0xff]
      %v557 = vld [vmem:[%s367 + $0x159] sm:$0xff]
      %v558 = vld [vmem:[%s367 + $0x169] sm:$0xff]
      %v559 = vld [vmem:[%s367 + $0x171] sm:$0xff]
      %v560 = vld [vmem:[%s367 + $0x2] sm:$0xff]
      %v561 = vld [vmem:[%s367 + $0xa] sm:$0xff]
      %v562 = vld [vmem:[%s367 + $0x1a] sm:$0xff]
      %v563 = vld [vmem:[%s367 + $0x22] sm:$0xff]
      %v564 = vld [vmem:[%s367 + $0x32] sm:$0xff]
      %v565 = vld [vmem:[%s367 + $0x3a] sm:$0xff]
      %v566 = vld [vmem:[%s367 + $0x4a] sm:$0xff]
      %v567 = vld [vmem:[%s367 + $0x52] sm:$0xff]
      %v568 = vld [vmem:[%s367 + $0x62] sm:$0xff]
      %v569 = vld [vmem:[%s367 + $0x6a] sm:$0xff]
      %v570 = vld [vmem:[%s367 + $0x7a] sm:$0xff]
      %v571 = vld [vmem:[%s367 + $0x82] sm:$0xff]
      %v572 = vld [vmem:[%s367 + $0x92] sm:$0xff]
      %v573 = vld [vmem:[%s367 + $0x9a] sm:$0xff]
      %v574 = vld [vmem:[%s367 + $0xaa] sm:$0xff]
      %v575 = vld [vmem:[%s367 + $0xb2] sm:$0xff]
      %v576 = vld [vmem:[%s367 + $0xc2] sm:$0xff]
      %v577 = vld [vmem:[%s367 + $0xca] sm:$0xff]
      %v578 = vld [vmem:[%s367 + $0xda] sm:$0xff]
      %v579 = vld [vmem:[%s367 + $0xe2] sm:$0xff]
      %v580 = vld [vmem:[%s367 + $0xf2] sm:$0xff]
      %v581 = vld [vmem:[%s367 + $0xfa] sm:$0xff]
      %v582 = vld [vmem:[%s367 + $0x10a] sm:$0xff]
      %v583 = vld [vmem:[%s367 + $0x112] sm:$0xff]
      %v584 = vld [vmem:[%s367 + $0x122] sm:$0xff]
      %v585 = vld [vmem:[%s367 + $0x12a] sm:$0xff]
      %v586 = vld [vmem:[%s367 + $0x13a] sm:$0xff]
      %v587 = vld [vmem:[%s367 + $0x142] sm:$0xff]
      %v588 = vld [vmem:[%s367 + $0x152] sm:$0xff]
      %v589 = vld [vmem:[%s367 + $0x15a] sm:$0xff]
      %v590 = vld [vmem:[%s367 + $0x16a] sm:$0xff]
      %v591 = vld [vmem:[%s367 + $0x172] sm:$0xff]
      %s592 = scalar_lea.vmem [#allocation2], 48
      %v593 = vld [vmem:[%s592] sm:$0xff]
      %v594 = vld [vmem:[%s592 + $0x8] sm:$0xff]
      %v595 = vld [vmem:[%s592 + $0x18] sm:$0xff]
      %v596 = vld [vmem:[%s592 + $0x20] sm:$0xff]
      %v597 = vld [vmem:[%s592 + $0x30] sm:$0xff]
      %v598 = vld [vmem:[%s592 + $0x38] sm:$0xff]
      %v599 = vld [vmem:[%s592 + $0x48] sm:$0xff]
      %v600 = vld [vmem:[%s592 + $0x50] sm:$0xff]
      %v601 = vld [vmem:[%s592 + $0x60] sm:$0xff]
      %v602 = vld [vmem:[%s592 + $0x68] sm:$0xff]
      %v603 = vld [vmem:[%s592 + $0x78] sm:$0xff]
      %v604 = vld [vmem:[%s592 + $0x80] sm:$0xff]
      %v605 = vld [vmem:[%s592 + $0x90] sm:$0xff]
      %v606 = vld [vmem:[%s592 + $0x98] sm:$0xff]
      %v607 = vld [vmem:[%s592 + $0xa8] sm:$0xff]
      %v608 = vld [vmem:[%s592 + $0xb0] sm:$0xff]
      %v609 = vld [vmem:[%s592 + $0xc0] sm:$0xff]
      %v610 = vld [vmem:[%s592 + $0xc8] sm:$0xff]
      %v611 = vld [vmem:[%s592 + $0xd8] sm:$0xff]
      %v612 = vld [vmem:[%s592 + $0xe0] sm:$0xff]
      %v613 = vld [vmem:[%s592 + $0xf0] sm:$0xff]
      %v614 = vld [vmem:[%s592 + $0xf8] sm:$0xff]
      %v615 = vld [vmem:[%s592 + $0x108] sm:$0xff]
      %v616 = vld [vmem:[%s592 + $0x110] sm:$0xff]
      %v617 = vld [vmem:[%s592 + $0x120] sm:$0xff]
      %v618 = vld [vmem:[%s592 + $0x128] sm:$0xff]
      %v619 = vld [vmem:[%s592 + $0x138] sm:$0xff]
      %v620 = vld [vmem:[%s592 + $0x140] sm:$0xff]
      %v621 = vld [vmem:[%s592 + $0x150] sm:$0xff]
      %v622 = vld [vmem:[%s592 + $0x158] sm:$0xff]
      %v623 = vld [vmem:[%s592 + $0x168] sm:$0xff]
      %v624 = vld [vmem:[%s592 + $0x170] sm:$0xff]
      %v625 = vld [vmem:[%s592 + $0x1] sm:$0xff]
      %v626 = vld [vmem:[%s592 + $0x9] sm:$0xff]
      %v627 = vld [vmem:[%s592 + $0x19] sm:$0xff]
      %v628 = vld [vmem:[%s592 + $0x21] sm:$0xff]
      %v629 = vld [vmem:[%s592 + $0x31] sm:$0xff]
      %v630 = vld [vmem:[%s592 + $0x39] sm:$0xff]
      %v631 = vld [vmem:[%s592 + $0x49] sm:$0xff]
      %v632 = vld [vmem:[%s592 + $0x51] sm:$0xff]
      %v633 = vld [vmem:[%s592 + $0x61] sm:$0xff]
      %v634 = vld [vmem:[%s592 + $0x69] sm:$0xff]
      %v635 = vld [vmem:[%s592 + $0x79] sm:$0xff]
      %v636 = vld [vmem:[%s592 + $0x81] sm:$0xff]
      %v637 = vld [vmem:[%s592 + $0x91] sm:$0xff]
      %v638 = vld [vmem:[%s592 + $0x99] sm:$0xff]
      %v639 = vld [vmem:[%s592 + $0xa9] sm:$0xff]
      %v640 = vld [vmem:[%s592 + $0xb1] sm:$0xff]
      %v641 = vld [vmem:[%s592 + $0xc1] sm:$0xff]
      %v642 = vld [vmem:[%s592 + $0xc9] sm:$0xff]
      %v643 = vld [vmem:[%s592 + $0xd9] sm:$0xff]
      %v644 = vld [vmem:[%s592 + $0xe1] sm:$0xff]
      %v645 = vld [vmem:[%s592 + $0xf1] sm:$0xff]
      %v646 = vld [vmem:[%s592 + $0xf9] sm:$0xff]
      %v647 = vld [vmem:[%s592 + $0x109] sm:$0xff]
      %v648 = vld [vmem:[%s592 + $0x111] sm:$0xff]
      %v649 = vld [vmem:[%s592 + $0x121] sm:$0xff]
      %v650 = vld [vmem:[%s592 + $0x129] sm:$0xff]
      %v651 = vld [vmem:[%s592 + $0x139] sm:$0xff]
      %v652 = vld [vmem:[%s592 + $0x141] sm:$0xff]
      %v653 = vld [vmem:[%s592 + $0x151] sm:$0xff]
      %v654 = vld [vmem:[%s592 + $0x159] sm:$0xff]
      %v655 = vld [vmem:[%s592 + $0x169] sm:$0xff]
      %v656 = vld [vmem:[%s592 + $0x171] sm:$0xff]
      %v657 = vld [vmem:[%s592 + $0x2] sm:$0xff]
      %v658 = vld [vmem:[%s592 + $0xa] sm:$0xff]
      %v659 = vld [vmem:[%s592 + $0x1a] sm:$0xff]
      %v660 = vld [vmem:[%s592 + $0x22] sm:$0xff]
      %v661 = vld [vmem:[%s592 + $0x32] sm:$0xff]
      %v662 = vld [vmem:[%s592 + $0x3a] sm:$0xff]
      %v663 = vld [vmem:[%s592 + $0x4a] sm:$0xff]
      %v664 = vld [vmem:[%s592 + $0x52] sm:$0xff]
      %v665 = vld [vmem:[%s592 + $0x62] sm:$0xff]
      %v666 = vld [vmem:[%s592 + $0x6a] sm:$0xff]
      %v667 = vld [vmem:[%s592 + $0x7a] sm:$0xff]
      %v668 = vld [vmem:[%s592 + $0x82] sm:$0xff]
      %v669 = vld [vmem:[%s592 + $0x92] sm:$0xff]
      %v670 = vld [vmem:[%s592 + $0x9a] sm:$0xff]
      %v671 = vld [vmem:[%s592 + $0xaa] sm:$0xff]
      %v672 = vld [vmem:[%s592 + $0xb2] sm:$0xff]
      %v673 = vld [vmem:[%s592 + $0xc2] sm:$0xff]
      %v674 = vld [vmem:[%s592 + $0xca] sm:$0xff]
      %v675 = vld [vmem:[%s592 + $0xda] sm:$0xff]
      %v676 = vld [vmem:[%s592 + $0xe2] sm:$0xff]
      %v677 = vld [vmem:[%s592 + $0xf2] sm:$0xff]
      %v678 = vld [vmem:[%s592 + $0xfa] sm:$0xff]
      %v679 = vld [vmem:[%s592 + $0x10a] sm:$0xff]
      %v680 = vld [vmem:[%s592 + $0x112] sm:$0xff]
      %v681 = vld [vmem:[%s592 + $0x122] sm:$0xff]
      %v682 = vld [vmem:[%s592 + $0x12a] sm:$0xff]
      %v683 = vld [vmem:[%s592 + $0x13a] sm:$0xff]
      %v684 = vld [vmem:[%s592 + $0x142] sm:$0xff]
      %v685 = vld [vmem:[%s592 + $0x152] sm:$0xff]
      %v686 = vld [vmem:[%s592 + $0x15a] sm:$0xff]
      %v687 = vld [vmem:[%s592 + $0x16a] sm:$0xff]
      %v688 = vld [vmem:[%s592 + $0x172] sm:$0xff]
      %721 = vrot.lane.b32.xlu0 %v432, 4
      %v722 = vpop.permute.xlu0 %721
      %723 = vrot.lane.b32.xlu0 %v433, 4
      %v724 = vpop.permute.xlu0 %723
      %725 = vrot.lane.b32.xlu0 %v434, 4
      %v726 = vpop.permute.xlu0 %725
      %727 = vrot.lane.b32.xlu0 %v435, 4
      %v728 = vpop.permute.xlu0 %727
      %729 = vrot.lane.b32.xlu0 %v436, 4
      %v730 = vpop.permute.xlu0 %729
      %731 = vrot.lane.b32.xlu0 %v437, 4
      %v732 = vpop.permute.xlu0 %731
      %733 = vrot.lane.b32.xlu0 %v438, 4
      %v734 = vpop.permute.xlu0 %733
      %735 = vrot.lane.b32.xlu0 %v439, 4
      %v736 = vpop.permute.xlu0 %735
      %737 = vrot.lane.b32.xlu0 %v440, 4
      %v738 = vpop.permute.xlu0 %737
      %739 = vrot.lane.b32.xlu0 %v441, 4
      %v740 = vpop.permute.xlu0 %739
      %741 = vrot.lane.b32.xlu0 %v442, 4
      %v742 = vpop.permute.xlu0 %741
      %743 = vrot.lane.b32.xlu0 %v443, 4
      %v744 = vpop.permute.xlu0 %743
      %745 = vrot.lane.b32.xlu0 %v444, 4
      %v746 = vpop.permute.xlu0 %745
      %747 = vrot.lane.b32.xlu0 %v445, 4
      %v748 = vpop.permute.xlu0 %747
      %749 = vrot.lane.b32.xlu0 %v446, 4
      %v750 = vpop.permute.xlu0 %749
      %751 = vrot.lane.b32.xlu0 %v447, 4
      %v752 = vpop.permute.xlu0 %751
      %753 = vrot.lane.b32.xlu0 %v448, 4
      %v754 = vpop.permute.xlu0 %753
      %755 = vrot.lane.b32.xlu0 %v449, 4
      %v756 = vpop.permute.xlu0 %755
      %757 = vrot.lane.b32.xlu0 %v450, 4
      %v758 = vpop.permute.xlu0 %757
      %759 = vrot.lane.b32.xlu0 %v451, 4
      %v760 = vpop.permute.xlu0 %759
      %761 = vrot.lane.b32.xlu0 %v452, 4
      %v762 = vpop.permute.xlu0 %761
      %763 = vrot.lane.b32.xlu0 %v453, 4
      %v764 = vpop.permute.xlu0 %763
      %765 = vrot.lane.b32.xlu0 %v454, 4
      %v766 = vpop.permute.xlu0 %765
      %767 = vrot.lane.b32.xlu0 %v455, 4
      %v768 = vpop.permute.xlu0 %767
      %769 = vrot.lane.b32.xlu0 %v456, 4
      %v770 = vpop.permute.xlu0 %769
      %771 = vrot.lane.b32.xlu0 %v457, 4
      %v772 = vpop.permute.xlu0 %771
      %773 = vrot.lane.b32.xlu0 %v458, 4
      %v774 = vpop.permute.xlu0 %773
      %775 = vrot.lane.b32.xlu0 %v459, 4
      %v776 = vpop.permute.xlu0 %775
      %777 = vrot.lane.b32.xlu0 %v460, 4
      %v778 = vpop.permute.xlu0 %777
      %779 = vrot.lane.b32.xlu0 %v461, 4
      %v780 = vpop.permute.xlu0 %779
      %781 = vrot.lane.b32.xlu0 %v462, 4
      %v782 = vpop.permute.xlu0 %781
      %783 = vrot.lane.b32.xlu0 %v463, 4
      %v784 = vpop.permute.xlu0 %783
      %849 = vrot.lane.b32.xlu0 %v464, 8
      %v850 = vpop.permute.xlu0 %849
      %851 = vrot.lane.b32.xlu0 %v465, 8
      %v852 = vpop.permute.xlu0 %851
      %853 = vrot.lane.b32.xlu0 %v466, 8
      %v854 = vpop.permute.xlu0 %853
      %855 = vrot.lane.b32.xlu0 %v467, 8
      %v856 = vpop.permute.xlu0 %855
      %857 = vrot.lane.b32.xlu0 %v468, 8
      %v858 = vpop.permute.xlu0 %857
      %859 = vrot.lane.b32.xlu0 %v469, 8
      %v860 = vpop.permute.xlu0 %859
      %861 = vrot.lane.b32.xlu0 %v470, 8
      %v862 = vpop.permute.xlu0 %861
      %863 = vrot.lane.b32.xlu0 %v471, 8
      %v864 = vpop.permute.xlu0 %863
      %865 = vrot.lane.b32.xlu0 %v472, 8
      %v866 = vpop.permute.xlu0 %865
      %867 = vrot.lane.b32.xlu0 %v473, 8
      %v868 = vpop.permute.xlu0 %867
      %869 = vrot.lane.b32.xlu0 %v474, 8
      %v870 = vpop.permute.xlu0 %869
      %871 = vrot.lane.b32.xlu0 %v475, 8
      %v872 = vpop.permute.xlu0 %871
      %873 = vrot.lane.b32.xlu0 %v476, 8
      %v874 = vpop.permute.xlu0 %873
      %875 = vrot.lane.b32.xlu0 %v477, 8
      %v876 = vpop.permute.xlu0 %875
      %877 = vrot.lane.b32.xlu0 %v478, 8
      %v878 = vpop.permute.xlu0 %877
      %879 = vrot.lane.b32.xlu0 %v479, 8
      %v880 = vpop.permute.xlu0 %879
      %881 = vrot.lane.b32.xlu0 %v480, 8
      %v882 = vpop.permute.xlu0 %881
      %883 = vrot.lane.b32.xlu0 %v481, 8
      %v884 = vpop.permute.xlu0 %883
      %885 = vrot.lane.b32.xlu0 %v482, 8
      %v886 = vpop.permute.xlu0 %885
      %887 = vrot.lane.b32.xlu0 %v483, 8
      %v888 = vpop.permute.xlu0 %887
      %889 = vrot.lane.b32.xlu0 %v484, 8
      %v890 = vpop.permute.xlu0 %889
      %891 = vrot.lane.b32.xlu0 %v485, 8
      %v892 = vpop.permute.xlu0 %891
      %893 = vrot.lane.b32.xlu0 %v486, 8
      %v894 = vpop.permute.xlu0 %893
      %895 = vrot.lane.b32.xlu0 %v487, 8
      %v896 = vpop.permute.xlu0 %895
      %897 = vrot.lane.b32.xlu0 %v488, 8
      %v898 = vpop.permute.xlu0 %897
      %899 = vrot.lane.b32.xlu0 %v489, 8
      %v900 = vpop.permute.xlu0 %899
      %901 = vrot.lane.b32.xlu0 %v490, 8
      %v902 = vpop.permute.xlu0 %901
      %903 = vrot.lane.b32.xlu0 %v491, 8
      %v904 = vpop.permute.xlu0 %903
      %905 = vrot.lane.b32.xlu0 %v492, 8
      %v906 = vpop.permute.xlu0 %905
      %907 = vrot.lane.b32.xlu0 %v493, 8
      %v908 = vpop.permute.xlu0 %907
      %909 = vrot.lane.b32.xlu0 %v494, 8
      %v910 = vpop.permute.xlu0 %909
      %911 = vrot.lane.b32.xlu0 %v495, 8
      %v912 = vpop.permute.xlu0 %911
      %977 = vrot.lane.b32.xlu0 %v496, 12
      %v978 = vpop.permute.xlu0 %977
      %979 = vrot.lane.b32.xlu0 %v497, 12
      %v980 = vpop.permute.xlu0 %979
      %981 = vrot.lane.b32.xlu0 %v498, 12
      %v982 = vpop.permute.xlu0 %981
      %983 = vrot.lane.b32.xlu0 %v499, 12
      %v984 = vpop.permute.xlu0 %983
      %985 = vrot.lane.b32.xlu0 %v500, 12
      %v986 = vpop.permute.xlu0 %985
      %987 = vrot.lane.b32.xlu0 %v501, 12
      %v988 = vpop.permute.xlu0 %987
      %989 = vrot.lane.b32.xlu0 %v502, 12
      %v990 = vpop.permute.xlu0 %989
      %991 = vrot.lane.b32.xlu0 %v503, 12
      %v992 = vpop.permute.xlu0 %991
      %993 = vrot.lane.b32.xlu0 %v504, 12
      %v994 = vpop.permute.xlu0 %993
      %995 = vrot.lane.b32.xlu0 %v505, 12
      %v996 = vpop.permute.xlu0 %995
      %997 = vrot.lane.b32.xlu0 %v506, 12
      %v998 = vpop.permute.xlu0 %997
      %999 = vrot.lane.b32.xlu0 %v507, 12
      %v1000 = vpop.permute.xlu0 %999
      %1001 = vrot.lane.b32.xlu0 %v508, 12
      %v1002 = vpop.permute.xlu0 %1001
      %1003 = vrot.lane.b32.xlu0 %v509, 12
      %v1004 = vpop.permute.xlu0 %1003
      %1005 = vrot.lane.b32.xlu0 %v510, 12
      %v1006 = vpop.permute.xlu0 %1005
      %1007 = vrot.lane.b32.xlu0 %v511, 12
      %v1008 = vpop.permute.xlu0 %1007
      %1009 = vrot.lane.b32.xlu0 %v512, 12
      %v1010 = vpop.permute.xlu0 %1009
      %1011 = vrot.lane.b32.xlu0 %v513, 12
      %v1012 = vpop.permute.xlu0 %1011
      %1013 = vrot.lane.b32.xlu0 %v514, 12
      %v1014 = vpop.permute.xlu0 %1013
      %1015 = vrot.lane.b32.xlu0 %v515, 12
      %v1016 = vpop.permute.xlu0 %1015
      %1017 = vrot.lane.b32.xlu0 %v516, 12
      %v1018 = vpop.permute.xlu0 %1017
      %1019 = vrot.lane.b32.xlu0 %v517, 12
      %v1020 = vpop.permute.xlu0 %1019
      %1021 = vrot.lane.b32.xlu0 %v518, 12
      %v1022 = vpop.permute.xlu0 %1021
      %1023 = vrot.lane.b32.xlu0 %v519, 12
      %v1024 = vpop.permute.xlu0 %1023
      %1025 = vrot.lane.b32.xlu0 %v520, 12
      %v1026 = vpop.permute.xlu0 %1025
      %1027 = vrot.lane.b32.xlu0 %v521, 12
      %v1028 = vpop.permute.xlu0 %1027
      %1029 = vrot.lane.b32.xlu0 %v522, 12
      %v1030 = vpop.permute.xlu0 %1029
      %1031 = vrot.lane.b32.xlu0 %v523, 12
      %v1032 = vpop.permute.xlu0 %1031
      %1033 = vrot.lane.b32.xlu0 %v524, 12
      %v1034 = vpop.permute.xlu0 %1033
      %1035 = vrot.lane.b32.xlu0 %v525, 12
      %v1036 = vpop.permute.xlu0 %1035
      %1037 = vrot.lane.b32.xlu0 %v526, 12
      %v1038 = vpop.permute.xlu0 %1037
      %1039 = vrot.lane.b32.xlu0 %v527, 12
      %v1040 = vpop.permute.xlu0 %1039
      %1105 = vrot.lane.b32.xlu0 %v528, 16
      %v1106 = vpop.permute.xlu0 %1105
      %1107 = vrot.lane.b32.xlu0 %v529, 16
      %v1108 = vpop.permute.xlu0 %1107
      %1109 = vrot.lane.b32.xlu0 %v530, 16
      %v1110 = vpop.permute.xlu0 %1109
      %1111 = vrot.lane.b32.xlu0 %v531, 16
      %v1112 = vpop.permute.xlu0 %1111
      %1113 = vrot.lane.b32.xlu0 %v532, 16
      %v1114 = vpop.permute.xlu0 %1113
      %1115 = vrot.lane.b32.xlu0 %v533, 16
      %v1116 = vpop.permute.xlu0 %1115
      %1117 = vrot.lane.b32.xlu0 %v534, 16
      %v1118 = vpop.permute.xlu0 %1117
      %1119 = vrot.lane.b32.xlu0 %v535, 16
      %v1120 = vpop.permute.xlu0 %1119
      %1121 = vrot.lane.b32.xlu0 %v536, 16
      %v1122 = vpop.permute.xlu0 %1121
      %1123 = vrot.lane.b32.xlu0 %v537, 16
      %v1124 = vpop.permute.xlu0 %1123
      %1125 = vrot.lane.b32.xlu0 %v538, 16
      %v1126 = vpop.permute.xlu0 %1125
      %1127 = vrot.lane.b32.xlu0 %v539, 16
      %v1128 = vpop.permute.xlu0 %1127
      %1129 = vrot.lane.b32.xlu0 %v540, 16
      %v1130 = vpop.permute.xlu0 %1129
      %1131 = vrot.lane.b32.xlu0 %v541, 16
      %v1132 = vpop.permute.xlu0 %1131
      %1133 = vrot.lane.b32.xlu0 %v542, 16
      %v1134 = vpop.permute.xlu0 %1133
      %1135 = vrot.lane.b32.xlu0 %v543, 16
      %v1136 = vpop.permute.xlu0 %1135
      %1137 = vrot.lane.b32.xlu0 %v544, 16
      %v1138 = vpop.permute.xlu0 %1137
      %1139 = vrot.lane.b32.xlu0 %v545, 16
      %v1140 = vpop.permute.xlu0 %1139
      %1141 = vrot.lane.b32.xlu0 %v546, 16
      %v1142 = vpop.permute.xlu0 %1141
      %1143 = vrot.lane.b32.xlu0 %v547, 16
      %v1144 = vpop.permute.xlu0 %1143
      %1145 = vrot.lane.b32.xlu0 %v548, 16
      %v1146 = vpop.permute.xlu0 %1145
      %1147 = vrot.lane.b32.xlu0 %v549, 16
      %v1148 = vpop.permute.xlu0 %1147
      %1149 = vrot.lane.b32.xlu0 %v550, 16
      %v1150 = vpop.permute.xlu0 %1149
      %1151 = vrot.lane.b32.xlu0 %v551, 16
      %v1152 = vpop.permute.xlu0 %1151
      %1153 = vrot.lane.b32.xlu0 %v552, 16
      %v1154 = vpop.permute.xlu0 %1153
      %1155 = vrot.lane.b32.xlu0 %v553, 16
      %v1156 = vpop.permute.xlu0 %1155
      %1157 = vrot.lane.b32.xlu0 %v554, 16
      %v1158 = vpop.permute.xlu0 %1157
      %1159 = vrot.lane.b32.xlu0 %v555, 16
      %v1160 = vpop.permute.xlu0 %1159
      %1161 = vrot.lane.b32.xlu0 %v556, 16
      %v1162 = vpop.permute.xlu0 %1161
      %1163 = vrot.lane.b32.xlu0 %v557, 16
      %v1164 = vpop.permute.xlu0 %1163
      %1165 = vrot.lane.b32.xlu0 %v558, 16
      %v1166 = vpop.permute.xlu0 %1165
      %1167 = vrot.lane.b32.xlu0 %v559, 16
      %v1168 = vpop.permute.xlu0 %1167
      %1233 = vrot.lane.b32.xlu0 %v560, 20
      %v1234 = vpop.permute.xlu0 %1233
      %1235 = vrot.lane.b32.xlu0 %v561, 20
      %v1236 = vpop.permute.xlu0 %1235
      %1237 = vrot.lane.b32.xlu0 %v562, 20
      %v1238 = vpop.permute.xlu0 %1237
      %1239 = vrot.lane.b32.xlu0 %v563, 20
      %v1240 = vpop.permute.xlu0 %1239
      %1241 = vrot.lane.b32.xlu0 %v564, 20
      %v1242 = vpop.permute.xlu0 %1241
      %1243 = vrot.lane.b32.xlu0 %v565, 20
      %v1244 = vpop.permute.xlu0 %1243
      %1245 = vrot.lane.b32.xlu0 %v566, 20
      %v1246 = vpop.permute.xlu0 %1245
      %1247 = vrot.lane.b32.xlu0 %v567, 20
      %v1248 = vpop.permute.xlu0 %1247
      %1249 = vrot.lane.b32.xlu0 %v568, 20
      %v1250 = vpop.permute.xlu0 %1249
      %1251 = vrot.lane.b32.xlu0 %v569, 20
      %v1252 = vpop.permute.xlu0 %1251
      %1253 = vrot.lane.b32.xlu0 %v570, 20
      %v1254 = vpop.permute.xlu0 %1253
      %1255 = vrot.lane.b32.xlu0 %v571, 20
      %v1256 = vpop.permute.xlu0 %1255
      %1257 = vrot.lane.b32.xlu0 %v572, 20
      %v1258 = vpop.permute.xlu0 %1257
      %1259 = vrot.lane.b32.xlu0 %v573, 20
      %v1260 = vpop.permute.xlu0 %1259
      %1261 = vrot.lane.b32.xlu0 %v574, 20
      %v1262 = vpop.permute.xlu0 %1261
      %1263 = vrot.lane.b32.xlu0 %v575, 20
      %v1264 = vpop.permute.xlu0 %1263
      %1265 = vrot.lane.b32.xlu0 %v576, 20
      %v1266 = vpop.permute.xlu0 %1265
      %1267 = vrot.lane.b32.xlu0 %v577, 20
      %v1268 = vpop.permute.xlu0 %1267
      %1269 = vrot.lane.b32.xlu0 %v578, 20
      %v1270 = vpop.permute.xlu0 %1269
      %1271 = vrot.lane.b32.xlu0 %v579, 20
      %v1272 = vpop.permute.xlu0 %1271
      %1273 = vrot.lane.b32.xlu0 %v580, 20
      %v1274 = vpop.permute.xlu0 %1273
      %1275 = vrot.lane.b32.xlu0 %v581, 20
      %v1276 = vpop.permute.xlu0 %1275
      %1277 = vrot.lane.b32.xlu0 %v582, 20
      %v1278 = vpop.permute.xlu0 %1277
      %1279 = vrot.lane.b32.xlu0 %v583, 20
      %v1280 = vpop.permute.xlu0 %1279
      %1281 = vrot.lane.b32.xlu0 %v584, 20
      %v1282 = vpop.permute.xlu0 %1281
      %1283 = vrot.lane.b32.xlu0 %v585, 20
      %v1284 = vpop.permute.xlu0 %1283
      %1285 = vrot.lane.b32.xlu0 %v586, 20
      %v1286 = vpop.permute.xlu0 %1285
      %1287 = vrot.lane.b32.xlu0 %v587, 20
      %v1288 = vpop.permute.xlu0 %1287
      %1289 = vrot.lane.b32.xlu0 %v588, 20
      %v1290 = vpop.permute.xlu0 %1289
      %1291 = vrot.lane.b32.xlu0 %v589, 20
      %v1292 = vpop.permute.xlu0 %1291
      %1293 = vrot.lane.b32.xlu0 %v590, 20
      %v1294 = vpop.permute.xlu0 %1293
      %1295 = vrot.lane.b32.xlu0 %v591, 20
      %v1296 = vpop.permute.xlu0 %1295
      %1361 = vrot.lane.b32.xlu0 %v593, 24
      %v1362 = vpop.permute.xlu0 %1361
      %1363 = vrot.lane.b32.xlu0 %v594, 24
      %v1364 = vpop.permute.xlu0 %1363
      %1365 = vrot.lane.b32.xlu0 %v595, 24
      %v1366 = vpop.permute.xlu0 %1365
      %1367 = vrot.lane.b32.xlu0 %v596, 24
      %v1368 = vpop.permute.xlu0 %1367
      %1369 = vrot.lane.b32.xlu0 %v597, 24
      %v1370 = vpop.permute.xlu0 %1369
      %1371 = vrot.lane.b32.xlu0 %v598, 24
      %v1372 = vpop.permute.xlu0 %1371
      %1373 = vrot.lane.b32.xlu0 %v599, 24
      %v1374 = vpop.permute.xlu0 %1373
      %1375 = vrot.lane.b32.xlu0 %v600, 24
      %v1376 = vpop.permute.xlu0 %1375
      %1377 = vrot.lane.b32.xlu0 %v601, 24
      %v1378 = vpop.permute.xlu0 %1377
      %1379 = vrot.lane.b32.xlu0 %v602, 24
      %v1380 = vpop.permute.xlu0 %1379
      %1381 = vrot.lane.b32.xlu0 %v603, 24
      %v1382 = vpop.permute.xlu0 %1381
      %1383 = vrot.lane.b32.xlu0 %v604, 24
      %v1384 = vpop.permute.xlu0 %1383
      %1385 = vrot.lane.b32.xlu0 %v605, 24
      %v1386 = vpop.permute.xlu0 %1385
      %1387 = vrot.lane.b32.xlu0 %v606, 24
      %v1388 = vpop.permute.xlu0 %1387
      %1389 = vrot.lane.b32.xlu0 %v607, 24
      %v1390 = vpop.permute.xlu0 %1389
      %1391 = vrot.lane.b32.xlu0 %v608, 24
      %v1392 = vpop.permute.xlu0 %1391
      %1393 = vrot.lane.b32.xlu0 %v609, 24
      %v1394 = vpop.permute.xlu0 %1393
      %1395 = vrot.lane.b32.xlu0 %v610, 24
      %v1396 = vpop.permute.xlu0 %1395
      %1397 = vrot.lane.b32.xlu0 %v611, 24
      %v1398 = vpop.permute.xlu0 %1397
      %1399 = vrot.lane.b32.xlu0 %v612, 24
      %v1400 = vpop.permute.xlu0 %1399
      %1401 = vrot.lane.b32.xlu0 %v613, 24
      %v1402 = vpop.permute.xlu0 %1401
      %1403 = vrot.lane.b32.xlu0 %v614, 24
      %v1404 = vpop.permute.xlu0 %1403
      %1405 = vrot.lane.b32.xlu0 %v615, 24
      %v1406 = vpop.permute.xlu0 %1405
      %1407 = vrot.lane.b32.xlu0 %v616, 24
      %v1408 = vpop.permute.xlu0 %1407
      %1409 = vrot.lane.b32.xlu0 %v617, 24
      %v1410 = vpop.permute.xlu0 %1409
      %1411 = vrot.lane.b32.xlu0 %v618, 24
      %v1412 = vpop.permute.xlu0 %1411
      %1413 = vrot.lane.b32.xlu0 %v619, 24
      %v1414 = vpop.permute.xlu0 %1413
      %1415 = vrot.lane.b32.xlu0 %v620, 24
      %v1416 = vpop.permute.xlu0 %1415
      %1417 = vrot.lane.b32.xlu0 %v621, 24
      %v1418 = vpop.permute.xlu0 %1417
      %1419 = vrot.lane.b32.xlu0 %v622, 24
      %v1420 = vpop.permute.xlu0 %1419
      %1421 = vrot.lane.b32.xlu0 %v623, 24
      %v1422 = vpop.permute.xlu0 %1421
      %1423 = vrot.lane.b32.xlu0 %v624, 24
      %v1424 = vpop.permute.xlu0 %1423
      %1489 = vrot.lane.b32.xlu0 %v625, 28
      %v1490 = vpop.permute.xlu0 %1489
      %1491 = vrot.lane.b32.xlu0 %v626, 28
      %v1492 = vpop.permute.xlu0 %1491
      %1493 = vrot.lane.b32.xlu0 %v627, 28
      %v1494 = vpop.permute.xlu0 %1493
      %1495 = vrot.lane.b32.xlu0 %v628, 28
      %v1496 = vpop.permute.xlu0 %1495
      %1497 = vrot.lane.b32.xlu0 %v629, 28
      %v1498 = vpop.permute.xlu0 %1497
      %1499 = vrot.lane.b32.xlu0 %v630, 28
      %v1500 = vpop.permute.xlu0 %1499
      %1501 = vrot.lane.b32.xlu0 %v631, 28
      %v1502 = vpop.permute.xlu0 %1501
      %1503 = vrot.lane.b32.xlu0 %v632, 28
      %v1504 = vpop.permute.xlu0 %1503
      %1505 = vrot.lane.b32.xlu0 %v633, 28
      %v1506 = vpop.permute.xlu0 %1505
      %1507 = vrot.lane.b32.xlu0 %v634, 28
      %v1508 = vpop.permute.xlu0 %1507
      %1509 = vrot.lane.b32.xlu0 %v635, 28
      %v1510 = vpop.permute.xlu0 %1509
      %1511 = vrot.lane.b32.xlu0 %v636, 28
      %v1512 = vpop.permute.xlu0 %1511
      %1513 = vrot.lane.b32.xlu0 %v637, 28
      %v1514 = vpop.permute.xlu0 %1513
      %1515 = vrot.lane.b32.xlu0 %v638, 28
      %v1516 = vpop.permute.xlu0 %1515
      %1517 = vrot.lane.b32.xlu0 %v639, 28
      %v1518 = vpop.permute.xlu0 %1517
      %1519 = vrot.lane.b32.xlu0 %v640, 28
      %v1520 = vpop.permute.xlu0 %1519
      %1521 = vrot.lane.b32.xlu0 %v641, 28
      %v1522 = vpop.permute.xlu0 %1521
      %1523 = vrot.lane.b32.xlu0 %v642, 28
      %v1524 = vpop.permute.xlu0 %1523
      %1525 = vrot.lane.b32.xlu0 %v643, 28
      %v1526 = vpop.permute.xlu0 %1525
      %1527 = vrot.lane.b32.xlu0 %v644, 28
      %v1528 = vpop.permute.xlu0 %1527
      %1529 = vrot.lane.b32.xlu0 %v645, 28
      %v1530 = vpop.permute.xlu0 %1529
      %1531 = vrot.lane.b32.xlu0 %v646, 28
      %v1532 = vpop.permute.xlu0 %1531
      %1533 = vrot.lane.b32.xlu0 %v647, 28
      %v1534 = vpop.permute.xlu0 %1533
      %1535 = vrot.lane.b32.xlu0 %v648, 28
      %v1536 = vpop.permute.xlu0 %1535
      %1537 = vrot.lane.b32.xlu0 %v649, 28
      %v1538 = vpop.permute.xlu0 %1537
      %1539 = vrot.lane.b32.xlu0 %v650, 28
      %v1540 = vpop.permute.xlu0 %1539
      %1541 = vrot.lane.b32.xlu0 %v651, 28
      %v1542 = vpop.permute.xlu0 %1541
      %1543 = vrot.lane.b32.xlu0 %v652, 28
      %v1544 = vpop.permute.xlu0 %1543
      %1545 = vrot.lane.b32.xlu0 %v653, 28
      %v1546 = vpop.permute.xlu0 %1545
      %1547 = vrot.lane.b32.xlu0 %v654, 28
      %v1548 = vpop.permute.xlu0 %1547
      %1549 = vrot.lane.b32.xlu0 %v655, 28
      %v1550 = vpop.permute.xlu0 %1549
      %1551 = vrot.lane.b32.xlu0 %v656, 28
      %v1552 = vpop.permute.xlu0 %1551
      %1617 = vrot.lane.b32.xlu0 %v657, 32
      %v1618 = vpop.permute.xlu0 %1617
      %1619 = vrot.lane.b32.xlu0 %v658, 32
      %v1620 = vpop.permute.xlu0 %1619
      %1621 = vrot.lane.b32.xlu0 %v659, 32
      %v1622 = vpop.permute.xlu0 %1621
      %1623 = vrot.lane.b32.xlu0 %v660, 32
      %v1624 = vpop.permute.xlu0 %1623
      %1625 = vrot.lane.b32.xlu0 %v661, 32
      %v1626 = vpop.permute.xlu0 %1625
      %1627 = vrot.lane.b32.xlu0 %v662, 32
      %v1628 = vpop.permute.xlu0 %1627
      %1629 = vrot.lane.b32.xlu0 %v663, 32
      %v1630 = vpop.permute.xlu0 %1629
      %1631 = vrot.lane.b32.xlu0 %v664, 32
      %v1632 = vpop.permute.xlu0 %1631
      %1633 = vrot.lane.b32.xlu0 %v665, 32
      %v1634 = vpop.permute.xlu0 %1633
      %1635 = vrot.lane.b32.xlu0 %v666, 32
      %v1636 = vpop.permute.xlu0 %1635
      %1637 = vrot.lane.b32.xlu0 %v667, 32
      %v1638 = vpop.permute.xlu0 %1637
      %1639 = vrot.lane.b32.xlu0 %v668, 32
      %v1640 = vpop.permute.xlu0 %1639
      %1641 = vrot.lane.b32.xlu0 %v669, 32
      %v1642 = vpop.permute.xlu0 %1641
      %1643 = vrot.lane.b32.xlu0 %v670, 32
      %v1644 = vpop.permute.xlu0 %1643
      %1645 = vrot.lane.b32.xlu0 %v671, 32
      %v1646 = vpop.permute.xlu0 %1645
      %1647 = vrot.lane.b32.xlu0 %v672, 32
      %v1648 = vpop.permute.xlu0 %1647
      %1649 = vrot.lane.b32.xlu0 %v673, 32
      %v1650 = vpop.permute.xlu0 %1649
      %1651 = vrot.lane.b32.xlu0 %v674, 32
      %v1652 = vpop.permute.xlu0 %1651
      %1653 = vrot.lane.b32.xlu0 %v675, 32
      %v1654 = vpop.permute.xlu0 %1653
      %1655 = vrot.lane.b32.xlu0 %v676, 32
      %v1656 = vpop.permute.xlu0 %1655
      %1657 = vrot.lane.b32.xlu0 %v677, 32
      %v1658 = vpop.permute.xlu0 %1657
      %1659 = vrot.lane.b32.xlu0 %v678, 32
      %v1660 = vpop.permute.xlu0 %1659
      %1661 = vrot.lane.b32.xlu0 %v679, 32
      %v1662 = vpop.permute.xlu0 %1661
      %1663 = vrot.lane.b32.xlu0 %v680, 32
      %v1664 = vpop.permute.xlu0 %1663
      %1665 = vrot.lane.b32.xlu0 %v681, 32
      %v1666 = vpop.permute.xlu0 %1665
      %1667 = vrot.lane.b32.xlu0 %v682, 32
      %v1668 = vpop.permute.xlu0 %1667
      %1669 = vrot.lane.b32.xlu0 %v683, 32
      %v1670 = vpop.permute.xlu0 %1669
      %1671 = vrot.lane.b32.xlu0 %v684, 32
      %v1672 = vpop.permute.xlu0 %1671
      %1673 = vrot.lane.b32.xlu0 %v685, 32
      %v1674 = vpop.permute.xlu0 %1673
      %1675 = vrot.lane.b32.xlu0 %v686, 32
      %v1676 = vpop.permute.xlu0 %1675
      %1677 = vrot.lane.b32.xlu0 %v687, 32
      %v1678 = vpop.permute.xlu0 %1677
      %1679 = vrot.lane.b32.xlu0 %v688, 32
      %v1680 = vpop.permute.xlu0 %1679
      %v1713 = vsel %vm279, %v400, %v722
      %v1714 = vsel %vm279, %v401, %v724
      %v1715 = vsel %vm279, %v402, %v726
      %v1716 = vsel %vm279, %v403, %v728
      %v1717 = vsel %vm279, %v404, %v730
      %v1718 = vsel %vm279, %v405, %v732
      %v1719 = vsel %vm279, %v406, %v734
      %v1720 = vsel %vm279, %v407, %v736
      %v1721 = vsel %vm279, %v408, %v738
      %v1722 = vsel %vm279, %v409, %v740
      %v1723 = vsel %vm279, %v410, %v742
      %v1724 = vsel %vm279, %v411, %v744
      %v1725 = vsel %vm279, %v412, %v746
      %v1726 = vsel %vm279, %v413, %v748
      %v1727 = vsel %vm279, %v414, %v750
      %v1728 = vsel %vm279, %v415, %v752
      %v1729 = vsel %vm279, %v416, %v754
      %v1730 = vsel %vm279, %v417, %v756
      %v1731 = vsel %vm279, %v418, %v758
      %v1732 = vsel %vm279, %v419, %v760
      %v1733 = vsel %vm279, %v420, %v762
      %v1734 = vsel %vm279, %v421, %v764
      %v1735 = vsel %vm279, %v422, %v766
      %v1736 = vsel %vm279, %v423, %v768
      %v1737 = vsel %vm279, %v424, %v770
      %v1738 = vsel %vm279, %v425, %v772
      %v1739 = vsel %vm279, %v426, %v774
      %v1740 = vsel %vm279, %v427, %v776
      %v1741 = vsel %vm279, %v428, %v778
      %v1742 = vsel %vm279, %v429, %v780
      %v1743 = vsel %vm279, %v430, %v782
      %v1744 = vsel %vm279, %v431, %v784
      %vm1745 = vcmask 64512
      %v1746 = vsel %vm1745, %v1713, %v850
      %v1747 = vsel %vm1745, %v1714, %v852
      %v1748 = vsel %vm1745, %v1715, %v854
      %v1749 = vsel %vm1745, %v1716, %v856
      %v1750 = vsel %vm1745, %v1717, %v858
      %v1751 = vsel %vm1745, %v1718, %v860
      %v1752 = vsel %vm1745, %v1719, %v862
      %v1753 = vsel %vm1745, %v1720, %v864
      %v1754 = vsel %vm1745, %v1721, %v866
      %v1755 = vsel %vm1745, %v1722, %v868
      %v1756 = vsel %vm1745, %v1723, %v870
      %v1757 = vsel %vm1745, %v1724, %v872
      %v1758 = vsel %vm1745, %v1725, %v874
      %v1759 = vsel %vm1745, %v1726, %v876
      %v1760 = vsel %vm1745, %v1727, %v878
      %v1761 = vsel %vm1745, %v1728, %v880
      %v1762 = vsel %vm1745, %v1729, %v882
      %v1763 = vsel %vm1745, %v1730, %v884
      %v1764 = vsel %vm1745, %v1731, %v886
      %v1765 = vsel %vm1745, %v1732, %v888
      %v1766 = vsel %vm1745, %v1733, %v890
      %v1767 = vsel %vm1745, %v1734, %v892
      %v1768 = vsel %vm1745, %v1735, %v894
      %v1769 = vsel %vm1745, %v1736, %v896
      %v1770 = vsel %vm1745, %v1737, %v898
      %v1771 = vsel %vm1745, %v1738, %v900
      %v1772 = vsel %vm1745, %v1739, %v902
      %v1773 = vsel %vm1745, %v1740, %v904
      %v1774 = vsel %vm1745, %v1741, %v906
      %v1775 = vsel %vm1745, %v1742, %v908
      %v1776 = vsel %vm1745, %v1743, %v910
      %v1777 = vsel %vm1745, %v1744, %v912
      %vm1778 = vcmask 97280
      %v1779 = vsel %vm1778, %v1746, %v978
      %v1780 = vsel %vm1778, %v1747, %v980
      %v1781 = vsel %vm1778, %v1748, %v982
      %v1782 = vsel %vm1778, %v1749, %v984
      %v1783 = vsel %vm1778, %v1750, %v986
      %v1784 = vsel %vm1778, %v1751, %v988
      %v1785 = vsel %vm1778, %v1752, %v990
      %v1786 = vsel %vm1778, %v1753, %v992
      %v1787 = vsel %vm1778, %v1754, %v994
      %v1788 = vsel %vm1778, %v1755, %v996
      %v1789 = vsel %vm1778, %v1756, %v998
      %v1790 = vsel %vm1778, %v1757, %v1000
      %v1791 = vsel %vm1778, %v1758, %v1002
      %v1792 = vsel %vm1778, %v1759, %v1004
      %v1793 = vsel %vm1778, %v1760, %v1006
      %v1794 = vsel %vm1778, %v1761, %v1008
      %v1795 = vsel %vm1778, %v1762, %v1010
      %v1796 = vsel %vm1778, %v1763, %v1012
      %v1797 = vsel %vm1778, %v1764, %v1014
      %v1798 = vsel %vm1778, %v1765, %v1016
      %v1799 = vsel %vm1778, %v1766, %v1018
      %v1800 = vsel %vm1778, %v1767, %v1020
      %v1801 = vsel %vm1778, %v1768, %v1022
      %v1802 = vsel %vm1778, %v1769, %v1024
      %v1803 = vsel %vm1778, %v1770, %v1026
      %v1804 = vsel %vm1778, %v1771, %v1028
      %v1805 = vsel %vm1778, %v1772, %v1030
      %v1806 = vsel %vm1778, %v1773, %v1032
      %v1807 = vsel %vm1778, %v1774, %v1034
      %v1808 = vsel %vm1778, %v1775, %v1036
      %v1809 = vsel %vm1778, %v1776, %v1038
      %v1810 = vsel %vm1778, %v1777, %v1040
      %vm1811 = vcmask 130048
      %v1812 = vsel %vm1811, %v1779, %v1106
      %v1813 = vsel %vm1811, %v1780, %v1108
      %v1814 = vsel %vm1811, %v1781, %v1110
      %v1815 = vsel %vm1811, %v1782, %v1112
      %v1816 = vsel %vm1811, %v1783, %v1114
      %v1817 = vsel %vm1811, %v1784, %v1116
      %v1818 = vsel %vm1811, %v1785, %v1118
      %v1819 = vsel %vm1811, %v1786, %v1120
      %v1820 = vsel %vm1811, %v1787, %v1122
      %v1821 = vsel %vm1811, %v1788, %v1124
      %v1822 = vsel %vm1811, %v1789, %v1126
      %v1823 = vsel %vm1811, %v1790, %v1128
      %v1824 = vsel %vm1811, %v1791, %v1130
      %v1825 = vsel %vm1811, %v1792, %v1132
      %v1826 = vsel %vm1811, %v1793, %v1134
      %v1827 = vsel %vm1811, %v1794, %v1136
      %v1828 = vsel %vm1811, %v1795, %v1138
      %v1829 = vsel %vm1811, %v1796, %v1140
      %v1830 = vsel %vm1811, %v1797, %v1142
      %v1831 = vsel %vm1811, %v1798, %v1144
      %v1832 = vsel %vm1811, %v1799, %v1146
      %v1833 = vsel %vm1811, %v1800, %v1148
      %v1834 = vsel %vm1811, %v1801, %v1150
      %v1835 = vsel %vm1811, %v1802, %v1152
      %v1836 = vsel %vm1811, %v1803, %v1154
      %v1837 = vsel %vm1811, %v1804, %v1156
      %v1838 = vsel %vm1811, %v1805, %v1158
      %v1839 = vsel %vm1811, %v1806, %v1160
      %v1840 = vsel %vm1811, %v1807, %v1162
      %v1841 = vsel %vm1811, %v1808, %v1164
      %v1842 = vsel %vm1811, %v1809, %v1166
      %v1843 = vsel %vm1811, %v1810, %v1168
      %vm1844 = vcmask 162816
      %v1845 = vsel %vm1844, %v1812, %v1234
      %v1846 = vsel %vm1844, %v1813, %v1236
      %v1847 = vsel %vm1844, %v1814, %v1238
      %v1848 = vsel %vm1844, %v1815, %v1240
      %v1849 = vsel %vm1844, %v1816, %v1242
      %v1850 = vsel %vm1844, %v1817, %v1244
      %v1851 = vsel %vm1844, %v1818, %v1246
      %v1852 = vsel %vm1844, %v1819, %v1248
      %v1853 = vsel %vm1844, %v1820, %v1250
      %v1854 = vsel %vm1844, %v1821, %v1252
      %v1855 = vsel %vm1844, %v1822, %v1254
      %v1856 = vsel %vm1844, %v1823, %v1256
      %v1857 = vsel %vm1844, %v1824, %v1258
      %v1858 = vsel %vm1844, %v1825, %v1260
      %v1859 = vsel %vm1844, %v1826, %v1262
      %v1860 = vsel %vm1844, %v1827, %v1264
      %v1861 = vsel %vm1844, %v1828, %v1266
      %v1862 = vsel %vm1844, %v1829, %v1268
      %v1863 = vsel %vm1844, %v1830, %v1270
      %v1864 = vsel %vm1844, %v1831, %v1272
      %v1865 = vsel %vm1844, %v1832, %v1274
      %v1866 = vsel %vm1844, %v1833, %v1276
      %v1867 = vsel %vm1844, %v1834, %v1278
      %v1868 = vsel %vm1844, %v1835, %v1280
      %v1869 = vsel %vm1844, %v1836, %v1282
      %v1870 = vsel %vm1844, %v1837, %v1284
      %v1871 = vsel %vm1844, %v1838, %v1286
      %v1872 = vsel %vm1844, %v1839, %v1288
      %v1873 = vsel %vm1844, %v1840, %v1290
      %v1874 = vsel %vm1844, %v1841, %v1292
      %v1875 = vsel %vm1844, %v1842, %v1294
      %v1876 = vsel %vm1844, %v1843, %v1296
      %vm1877 = vcmask 195584
      %v1878 = vsel %vm1877, %v1845, %v1362
      %v1879 = vsel %vm1877, %v1846, %v1364
      %v1880 = vsel %vm1877, %v1847, %v1366
      %v1881 = vsel %vm1877, %v1848, %v1368
      %v1882 = vsel %vm1877, %v1849, %v1370
      %v1883 = vsel %vm1877, %v1850, %v1372
      %v1884 = vsel %vm1877, %v1851, %v1374
      %v1885 = vsel %vm1877, %v1852, %v1376
      %v1886 = vsel %vm1877, %v1853, %v1378
      %v1887 = vsel %vm1877, %v1854, %v1380
      %v1888 = vsel %vm1877, %v1855, %v1382
      %v1889 = vsel %vm1877, %v1856, %v1384
      %v1890 = vsel %vm1877, %v1857, %v1386
      %v1891 = vsel %vm1877, %v1858, %v1388
      %v1892 = vsel %vm1877, %v1859, %v1390
      %v1893 = vsel %vm1877, %v1860, %v1392
      %v1894 = vsel %vm1877, %v1861, %v1394
      %v1895 = vsel %vm1877, %v1862, %v1396
      %v1896 = vsel %vm1877, %v1863, %v1398
      %v1897 = vsel %vm1877, %v1864, %v1400
      %v1898 = vsel %vm1877, %v1865, %v1402
      %v1899 = vsel %vm1877, %v1866, %v1404
      %v1900 = vsel %vm1877, %v1867, %v1406
      %v1901 = vsel %vm1877, %v1868, %v1408
      %v1902 = vsel %vm1877, %v1869, %v1410
      %v1903 = vsel %vm1877, %v1870, %v1412
      %v1904 = vsel %vm1877, %v1871, %v1414
      %v1905 = vsel %vm1877, %v1872, %v1416
      %v1906 = vsel %vm1877, %v1873, %v1418
      %v1907 = vsel %vm1877, %v1874, %v1420
      %v1908 = vsel %vm1877, %v1875, %v1422
      %v1909 = vsel %vm1877, %v1876, %v1424
      %vm1910 = vcmask 228352
      %v1911 = vsel %vm1910, %v1878, %v1490
      %v1912 = vsel %vm1910, %v1879, %v1492
      %v1913 = vsel %vm1910, %v1880, %v1494
      %v1914 = vsel %vm1910, %v1881, %v1496
      %v1915 = vsel %vm1910, %v1882, %v1498
      %v1916 = vsel %vm1910, %v1883, %v1500
      %v1917 = vsel %vm1910, %v1884, %v1502
      %v1918 = vsel %vm1910, %v1885, %v1504
      %v1919 = vsel %vm1910, %v1886, %v1506
      %v1920 = vsel %vm1910, %v1887, %v1508
      %v1921 = vsel %vm1910, %v1888, %v1510
      %v1922 = vsel %vm1910, %v1889, %v1512
      %v1923 = vsel %vm1910, %v1890, %v1514
      %v1924 = vsel %vm1910, %v1891, %v1516
      %v1925 = vsel %vm1910, %v1892, %v1518
      %v1926 = vsel %vm1910, %v1893, %v1520
      %v1927 = vsel %vm1910, %v1894, %v1522
      %v1928 = vsel %vm1910, %v1895, %v1524
      %v1929 = vsel %vm1910, %v1896, %v1526
      %v1930 = vsel %vm1910, %v1897, %v1528
      %v1931 = vsel %vm1910, %v1898, %v1530
      %v1932 = vsel %vm1910, %v1899, %v1532
      %v1933 = vsel %vm1910, %v1900, %v1534
      %v1934 = vsel %vm1910, %v1901, %v1536
      %v1935 = vsel %vm1910, %v1902, %v1538
      %v1936 = vsel %vm1910, %v1903, %v1540
      %v1937 = vsel %vm1910, %v1904, %v1542
      %v1938 = vsel %vm1910, %v1905, %v1544
      %v1939 = vsel %vm1910, %v1906, %v1546
      %v1940 = vsel %vm1910, %v1907, %v1548
      %v1941 = vsel %vm1910, %v1908, %v1550
      %v1942 = vsel %vm1910, %v1909, %v1552
      %vm1943 = vcmask 261120
      %v1944 = vsel %vm1943, %v1911, %v1618
      %v1945 = vsel %vm1943, %v1912, %v1620
      %v1946 = vsel %vm1943, %v1913, %v1622
      %v1947 = vsel %vm1943, %v1914, %v1624
      %v1948 = vsel %vm1943, %v1915, %v1626
      %v1949 = vsel %vm1943, %v1916, %v1628
      %v1950 = vsel %vm1943, %v1917, %v1630
      %v1951 = vsel %vm1943, %v1918, %v1632
      %v1952 = vsel %vm1943, %v1919, %v1634
      %v1953 = vsel %vm1943, %v1920, %v1636
      %v1954 = vsel %vm1943, %v1921, %v1638
      %v1955 = vsel %vm1943, %v1922, %v1640
      %v1956 = vsel %vm1943, %v1923, %v1642
      %v1957 = vsel %vm1943, %v1924, %v1644
      %v1958 = vsel %vm1943, %v1925, %v1646
      %v1959 = vsel %vm1943, %v1926, %v1648
      %v1960 = vsel %vm1943, %v1927, %v1650
      %v1961 = vsel %vm1943, %v1928, %v1652
      %v1962 = vsel %vm1943, %v1929, %v1654
      %v1963 = vsel %vm1943, %v1930, %v1656
      %v1964 = vsel %vm1943, %v1931, %v1658
      %v1965 = vsel %vm1943, %v1932, %v1660
      %v1966 = vsel %vm1943, %v1933, %v1662
      %v1967 = vsel %vm1943, %v1934, %v1664
      %v1968 = vsel %vm1943, %v1935, %v1666
      %v1969 = vsel %vm1943, %v1936, %v1668
      %v1970 = vsel %vm1943, %v1937, %v1670
      %v1971 = vsel %vm1943, %v1938, %v1672
      %v1972 = vsel %vm1943, %v1939, %v1674
      %v1973 = vsel %vm1943, %v1940, %v1676
      %v1974 = vsel %vm1943, %v1941, %v1678
      %v1975 = vsel %vm1943, %v1942, %v1680
      %v1976 = vld [vmem:[%s1] sm:$0xff]
      %v1977 = vld [vmem:[%s1 + $0x8] sm:$0xff]
      %v1978 = vld [vmem:[%s1 + $0x10] sm:$0xff]
      %v1979 = vld [vmem:[%s1 + $0x18] sm:$0xff]
      %v1980 = vld [vmem:[%s1 + $0x20] sm:$0xf]
      %v1981 = vld [vmem:[%s2] sm:$0x1]
      %v1983 = vperm.slane %v1981, 0
      %vm1985 = vcmask 293888
      %v1987 = vsel %vm1985, %v1944, 0
      %v1990 = vsel %vm1985, %v1945, 0
      %v1993 = vsel %vm1985, %v1946, 0
      %v1996 = vsel %vm1985, %v1947, 0
      %v1999 = vsel %vm1985, %v1948, 0
      %v2002 = vsel %vm1985, %v1949, 0
      %v2005 = vsel %vm1985, %v1950, 0
      %v2008 = vsel %vm1985, %v1951, 0
      %v2011 = vsel %vm1985, %v1952, 0
      %v2014 = vsel %vm1985, %v1953, 0
      %v2017 = vsel %vm1985, %v1954, 0
      %v2020 = vsel %vm1985, %v1955, 0
      %v2023 = vsel %vm1985, %v1956, 0
      %v2026 = vsel %vm1985, %v1957, 0
      %v2029 = vsel %vm1985, %v1958, 0
      %v2032 = vsel %vm1985, %v1959, 0
      %v2035 = vsel %vm1985, %v1960, 0
      %v2038 = vsel %vm1985, %v1961, 0
      %v2041 = vsel %vm1985, %v1962, 0
      %v2044 = vsel %vm1985, %v1963, 0
      %v2047 = vsel %vm1985, %v1964, 0
      %v2050 = vsel %vm1985, %v1965, 0
      %v2053 = vsel %vm1985, %v1966, 0
      %v2056 = vsel %vm1985, %v1967, 0
      %v2059 = vsel %vm1985, %v1968, 0
      %v2062 = vsel %vm1985, %v1969, 0
      %v2065 = vsel %vm1985, %v1970, 0
      %v2068 = vsel %vm1985, %v1971, 0
      %v2071 = vsel %vm1985, %v1972, 0
      %v2074 = vsel %vm1985, %v1973, 0
      %v2077 = vsel %vm1985, %v1974, 0
      %v2080 = vsel %vm1985, %v1975, 0
      %vm2082 = vcmask 1043456
      %v2084 = vsel %vm2082, %v1980, 0
      %2086 = vmatpush.msra.mxu0 0.0
      %2087 = vmatpush.msra.mxu0 0.0
      %2088 = vmatpush.msra.mxu0 0.0
      %2089 = vmatpush.msra.mxu0 0.0
      %2090 = vmatpush.msra.mxu0 0.0
      %2091 = vmatpush.msra.mxu0 0.0
      %2092 = vmatpush.msra.mxu0 0.0
      %2093 = vmatpush.msra.mxu0 0.0
      %2094 = vmatpush.msra.mxu0 0.0
      %2095 = vmatpush.msra.mxu0 0.0
      %2096 = vmatpush.msra.mxu0 0.0
      %2097 = vmatpush.msra.mxu0 %v2084
      %2098 = vmatpush.msra.mxu0 %v1979
      %2099 = vmatpush.msra.mxu0 %v1978
      %2100 = vmatpush.msra.mxu0 %v1977
      %2101 = vmatpush.msra.mxu0 %v1976
      %2102 = vmatmul.f32.gmra.mxu0 %v1987
      %v2103 = vpop.f32.mrf.mxu0
      %v2104 = vadd.f32 %v1983, %v2103
      %2105 = vmatmul.f32.gmra.mxu0 %v1990
      %v2106 = vpop.f32.mrf.mxu0
      %v2107 = vadd.f32 %v1983, %v2106
      %2108 = vmatmul.f32.gmra.mxu0 %v1993
      %v2109 = vpop.f32.mrf.mxu0
      %v2110 = vadd.f32 %v1983, %v2109
      %2111 = vmatmul.f32.gmra.mxu0 %v1996
      %v2112 = vpop.f32.mrf.mxu0
      %v2113 = vadd.f32 %v1983, %v2112
      %2114 = vmatmul.f32.gmra.mxu0 %v1999
      %v2115 = vpop.f32.mrf.mxu0
      %v2116 = vadd.f32 %v1983, %v2115
      %2117 = vmatmul.f32.gmra.mxu0 %v2002
      %v2118 = vpop.f32.mrf.mxu0
      %v2119 = vadd.f32 %v1983, %v2118
      %2120 = vmatmul.f32.gmra.mxu0 %v2005
      %v2121 = vpop.f32.mrf.mxu0
      %v2122 = vadd.f32 %v1983, %v2121
      %2123 = vmatmul.f32.gmra.mxu0 %v2008
      %v2124 = vpop.f32.mrf.mxu0
      %v2125 = vadd.f32 %v1983, %v2124
      %2126 = vmatmul.f32.gmra.mxu0 %v2011
      %v2127 = vpop.f32.mrf.mxu0
      %v2128 = vadd.f32 %v1983, %v2127
      %2129 = vmatmul.f32.gmra.mxu0 %v2014
      %v2130 = vpop.f32.mrf.mxu0
      %v2131 = vadd.f32 %v1983, %v2130
      %2132 = vmatmul.f32.gmra.mxu0 %v2017
      %v2133 = vpop.f32.mrf.mxu0
      %v2134 = vadd.f32 %v1983, %v2133
      %2135 = vmatmul.f32.gmra.mxu0 %v2020
      %v2136 = vpop.f32.mrf.mxu0
      %v2137 = vadd.f32 %v1983, %v2136
      %2138 = vmatmul.f32.gmra.mxu0 %v2023
      %v2139 = vpop.f32.mrf.mxu0
      %v2140 = vadd.f32 %v1983, %v2139
      %2141 = vmatmul.f32.gmra.mxu0 %v2026
      %v2142 = vpop.f32.mrf.mxu0
      %v2143 = vadd.f32 %v1983, %v2142
      %2144 = vmatmul.f32.gmra.mxu0 %v2029
      %v2145 = vpop.f32.mrf.mxu0
      %v2146 = vadd.f32 %v1983, %v2145
      %2147 = vmatmul.f32.gmra.mxu0 %v2032
      %v2148 = vpop.f32.mrf.mxu0
      %v2149 = vadd.f32 %v1983, %v2148
      %2150 = vmatmul.f32.gmra.mxu0 %v2035
      %v2151 = vpop.f32.mrf.mxu0
      %v2152 = vadd.f32 %v1983, %v2151
      %2153 = vmatmul.f32.gmra.mxu0 %v2038
      %v2154 = vpop.f32.mrf.mxu0
      %v2155 = vadd.f32 %v1983, %v2154
      %2156 = vmatmul.f32.gmra.mxu0 %v2041
      %v2157 = vpop.f32.mrf.mxu0
      %v2158 = vadd.f32 %v1983, %v2157
      %2159 = vmatmul.f32.gmra.mxu0 %v2044
      %v2160 = vpop.f32.mrf.mxu0
      %v2161 = vadd.f32 %v1983, %v2160
      %2162 = vmatmul.f32.gmra.mxu0 %v2047
      %v2163 = vpop.f32.mrf.mxu0
      %v2164 = vadd.f32 %v1983, %v2163
      %2165 = vmatmul.f32.gmra.mxu0 %v2050
      %v2166 = vpop.f32.mrf.mxu0
      %v2167 = vadd.f32 %v1983, %v2166
      %2168 = vmatmul.f32.gmra.mxu0 %v2053
      %v2169 = vpop.f32.mrf.mxu0
      %v2170 = vadd.f32 %v1983, %v2169
      %2171 = vmatmul.f32.gmra.mxu0 %v2056
      %v2172 = vpop.f32.mrf.mxu0
      %v2173 = vadd.f32 %v1983, %v2172
      %2174 = vmatmul.f32.gmra.mxu0 %v2059
      %v2175 = vpop.f32.mrf.mxu0
      %v2176 = vadd.f32 %v1983, %v2175
      %2177 = vmatmul.f32.gmra.mxu0 %v2062
      %v2178 = vpop.f32.mrf.mxu0
      %v2179 = vadd.f32 %v1983, %v2178
      %2180 = vmatmul.f32.gmra.mxu0 %v2065
      %v2181 = vpop.f32.mrf.mxu0
      %v2182 = vadd.f32 %v1983, %v2181
      %2183 = vmatmul.f32.gmra.mxu0 %v2068
      %v2184 = vpop.f32.mrf.mxu0
      %v2185 = vadd.f32 %v1983, %v2184
      %2186 = vmatmul.f32.gmra.mxu0 %v2071
      %v2187 = vpop.f32.mrf.mxu0
      %v2188 = vadd.f32 %v1983, %v2187
      %2189 = vmatmul.f32.gmra.mxu0 %v2074
      %v2190 = vpop.f32.mrf.mxu0
      %v2191 = vadd.f32 %v1983, %v2190
      %2192 = vmatmul.f32.gmra.mxu0 %v2077
      %v2193 = vpop.f32.mrf.mxu0
      %v2194 = vadd.f32 %v1983, %v2193
      %2195 = vmatmul.f32.gmra.mxu0 %v2080
      %v2196 = vpop.f32.mrf.mxu0
      %v2197 = vadd.f32 %v1983, %v2196
      %2198 = vdwg.mxu0
      %v2199 = vmax.f32 %v2104, 0.0
      %v2200 = vmax.f32 %v2107, 0.0
      %v2201 = vmax.f32 %v2110, 0.0
      %v2202 = vmax.f32 %v2113, 0.0
      %v2203 = vmax.f32 %v2116, 0.0
      %v2204 = vmax.f32 %v2119, 0.0
      %v2205 = vmax.f32 %v2122, 0.0
      %v2206 = vmax.f32 %v2125, 0.0
      %v2207 = vmax.f32 %v2128, 0.0
      %v2208 = vmax.f32 %v2131, 0.0
      %v2209 = vmax.f32 %v2134, 0.0
      %v2210 = vmax.f32 %v2137, 0.0
      %v2211 = vmax.f32 %v2140, 0.0
      %v2212 = vmax.f32 %v2143, 0.0
      %v2213 = vmax.f32 %v2146, 0.0
      %v2214 = vmax.f32 %v2149, 0.0
      %v2215 = vmax.f32 %v2152, 0.0
      %v2216 = vmax.f32 %v2155, 0.0
      %v2217 = vmax.f32 %v2158, 0.0
      %v2218 = vmax.f32 %v2161, 0.0
      %v2219 = vmax.f32 %v2164, 0.0
      %v2220 = vmax.f32 %v2167, 0.0
      %v2221 = vmax.f32 %v2170, 0.0
      %v2222 = vmax.f32 %v2173, 0.0
      %v2223 = vmax.f32 %v2176, 0.0
      %v2224 = vmax.f32 %v2179, 0.0
      %v2225 = vmax.f32 %v2182, 0.0
      %v2226 = vmax.f32 %v2185, 0.0
      %v2227 = vmax.f32 %v2188, 0.0
      %v2228 = vmax.f32 %v2191, 0.0
      %v2229 = vmax.f32 %v2194, 0.0
      %v2230 = vmax.f32 %v2197, 0.0
      %2231 = vst.msk [vmem:[#allocation3] sm:$0xff] %vm1745, 0.0
      %2232 = vst.msk [vmem:[#allocation3 + $0x8] sm:$0xff] %vm1745, 0.0
      %vm2233 = vcmask 58368
      %2234 = vst.msk [vmem:[#allocation3 + $0x10] sm:$0x3] %vm2233, 0.0
      %2235 = vst.msk [vmem:[#allocation3 + $0x18] sm:$0xff] %vm1745, 0.0
      %2236 = vst.msk [vmem:[#allocation3 + $0x20] sm:$0xff] %vm1745, 0.0
      %2237 = vst.msk [vmem:[#allocation3 + $0x28] sm:$0x3] %vm2233, 0.0
      %2238 = vst.msk [vmem:[#allocation3 + $0x30] sm:$0xff] %vm1745, 0.0
      %2239 = vst.msk [vmem:[#allocation3 + $0x38] sm:$0xff] %vm1745, 0.0
      %2240 = vst.msk [vmem:[#allocation3 + $0x40] sm:$0x3] %vm2233, 0.0
      %2241 = vst.msk [vmem:[#allocation3 + $0x48] sm:$0xff] %vm1745, 0.0
      %2242 = vst.msk [vmem:[#allocation3 + $0x50] sm:$0xff] %vm1745, 0.0
      %2243 = vst.msk [vmem:[#allocation3 + $0x58] sm:$0x3] %vm2233, 0.0
      %2244 = vst.msk [vmem:[#allocation3 + $0x60] sm:$0xff] %vm1745, 0.0
      %2245 = vst.msk [vmem:[#allocation3 + $0x68] sm:$0xff] %vm1745, 0.0
      %2246 = vst.msk [vmem:[#allocation3 + $0x70] sm:$0x3] %vm2233, 0.0
      %2247 = vst.msk [vmem:[#allocation3 + $0x78] sm:$0xff] %vm1745, 0.0
      %2248 = vst.msk [vmem:[#allocation3 + $0x80] sm:$0xff] %vm1745, 0.0
      %2249 = vst.msk [vmem:[#allocation3 + $0x88] sm:$0x3] %vm2233, 0.0
      %2250 = vst.msk [vmem:[#allocation3 + $0x90] sm:$0xff] %vm1745, 0.0
      %2251 = vst.msk [vmem:[#allocation3 + $0x98] sm:$0xff] %vm1745, 0.0
      %2252 = vst.msk [vmem:[#allocation3 + $0xa0] sm:$0x3] %vm2233, 0.0
      %2253 = vst.msk [vmem:[#allocation3 + $0xa8] sm:$0xff] %vm1745, 0.0
      %2254 = vst.msk [vmem:[#allocation3 + $0xb0] sm:$0xff] %vm1745, 0.0
      %2255 = vst.msk [vmem:[#allocation3 + $0xb8] sm:$0x3] %vm2233, 0.0
      %2256 = vst.msk [vmem:[#allocation3 + $0xc0] sm:$0xff] %vm1745, 0.0
      %2257 = vst.msk [vmem:[#allocation3 + $0xc8] sm:$0xff] %vm1745, 0.0
      %2258 = vst.msk [vmem:[#allocation3 + $0xd0] sm:$0x3] %vm2233, 0.0
      %2259 = vst.msk [vmem:[#allocation3 + $0xd8] sm:$0xff] %vm1745, 0.0
      %2260 = vst.msk [vmem:[#allocation3 + $0xe0] sm:$0xff] %vm1745, 0.0
      %2261 = vst.msk [vmem:[#allocation3 + $0xe8] sm:$0x3] %vm2233, 0.0
      %2262 = vst.msk [vmem:[#allocation3 + $0xf0] sm:$0xff] %vm1745, 0.0
      %2263 = vst.msk [vmem:[#allocation3 + $0xf8] sm:$0xff] %vm1745, 0.0
      %2264 = vst.msk [vmem:[#allocation3 + $0x100] sm:$0x3] %vm2233, 0.0
      %2265 = vst.msk [vmem:[#allocation3 + $0x108] sm:$0xff] %vm1745, 0.0
      %2266 = vst.msk [vmem:[#allocation3 + $0x110] sm:$0xff] %vm1745, 0.0
      %2267 = vst.msk [vmem:[#allocation3 + $0x118] sm:$0x3] %vm2233, 0.0
      %2268 = vst.msk [vmem:[#allocation3 + $0x120] sm:$0xff] %vm1745, 0.0
      %2269 = vst.msk [vmem:[#allocation3 + $0x128] sm:$0xff] %vm1745, 0.0
      %2270 = vst.msk [vmem:[#allocation3 + $0x130] sm:$0x3] %vm2233, 0.0
      %2271 = vst.msk [vmem:[#allocation3 + $0x138] sm:$0xff] %vm1745, 0.0
      %2272 = vst.msk [vmem:[#allocation3 + $0x140] sm:$0xff] %vm1745, 0.0
      %2273 = vst.msk [vmem:[#allocation3 + $0x148] sm:$0x3] %vm2233, 0.0
      %2274 = vst.msk [vmem:[#allocation3 + $0x150] sm:$0xff] %vm1745, 0.0
      %2275 = vst.msk [vmem:[#allocation3 + $0x158] sm:$0xff] %vm1745, 0.0
      %2276 = vst.msk [vmem:[#allocation3 + $0x160] sm:$0x3] %vm2233, 0.0
      %2277 = vst.msk [vmem:[#allocation3 + $0x168] sm:$0xff] %vm1745, 0.0
      %2278 = vst.msk [vmem:[#allocation3 + $0x170] sm:$0xff] %vm1745, 0.0
      %2279 = vst.msk [vmem:[#allocation3 + $0x178] sm:$0x3] %vm2233, 0.0
      %2280 = vst.msk [vmem:[#allocation3 + $0x180] sm:$0xff] %vm1745, 0.0
      %2281 = vst.msk [vmem:[#allocation3 + $0x188] sm:$0xff] %vm1745, 0.0
      %2282 = vst.msk [vmem:[#allocation3 + $0x190] sm:$0x3] %vm2233, 0.0
      %2283 = vst.msk [vmem:[#allocation3 + $0x198] sm:$0xff] %vm1745, 0.0
      %2284 = vst.msk [vmem:[#allocation3 + $0x1a0] sm:$0xff] %vm1745, 0.0
      %2285 = vst.msk [vmem:[#allocation3 + $0x1a8] sm:$0x3] %vm2233, 0.0
      %s2286 = scalar_lea.vmem [#allocation3], 24
      %2287 = vst.msk [vmem:[%s2286 + $0x1] sm:$0xff] %vm1745, %v2199
      %2288 = vst.msk [vmem:[%s2286 + $0x9] sm:$0xff] %vm1745, %v2200
      %2289 = vst.msk [vmem:[%s2286 + $0x19] sm:$0xff] %vm1745, %v2201
      %2290 = vst.msk [vmem:[%s2286 + $0x21] sm:$0xff] %vm1745, %v2202
      %2291 = vst.msk [vmem:[%s2286 + $0x31] sm:$0xff] %vm1745, %v2203
      %2292 = vst.msk [vmem:[%s2286 + $0x39] sm:$0xff] %vm1745, %v2204
      %2293 = vst.msk [vmem:[%s2286 + $0x49] sm:$0xff] %vm1745, %v2205
      %2294 = vst.msk [vmem:[%s2286 + $0x51] sm:$0xff] %vm1745, %v2206
      %2295 = vst.msk [vmem:[%s2286 + $0x61] sm:$0xff] %vm1745, %v2207
      %2296 = vst.msk [vmem:[%s2286 + $0x69] sm:$0xff] %vm1745, %v2208
      %2297 = vst.msk [vmem:[%s2286 + $0x79] sm:$0xff] %vm1745, %v2209
      %2298 = vst.msk [vmem:[%s2286 + $0x81] sm:$0xff] %vm1745, %v2210
      %2299 = vst.msk [vmem:[%s2286 + $0x91] sm:$0xff] %vm1745, %v2211
      %2300 = vst.msk [vmem:[%s2286 + $0x99] sm:$0xff] %vm1745, %v2212
      %2301 = vst.msk [vmem:[%s2286 + $0xa9] sm:$0xff] %vm1745, %v2213
      %2302 = vst.msk [vmem:[%s2286 + $0xb1] sm:$0xff] %vm1745, %v2214
      %2303 = vst.msk [vmem:[%s2286 + $0xc1] sm:$0xff] %vm1745, %v2215
      %2304 = vst.msk [vmem:[%s2286 + $0xc9] sm:$0xff] %vm1745, %v2216
      %2305 = vst.msk [vmem:[%s2286 + $0xd9] sm:$0xff] %vm1745, %v2217
      %2306 = vst.msk [vmem:[%s2286 + $0xe1] sm:$0xff] %vm1745, %v2218
      %2307 = vst.msk [vmem:[%s2286 + $0xf1] sm:$0xff] %vm1745, %v2219
      %2308 = vst.msk [vmem:[%s2286 + $0xf9] sm:$0xff] %vm1745, %v2220
      %2309 = vst.msk [vmem:[%s2286 + $0x109] sm:$0xff] %vm1745, %v2221
      %2310 = vst.msk [vmem:[%s2286 + $0x111] sm:$0xff] %vm1745, %v2222
      %2311 = vst.msk [vmem:[%s2286 + $0x121] sm:$0xff] %vm1745, %v2223
      %2312 = vst.msk [vmem:[%s2286 + $0x129] sm:$0xff] %vm1745, %v2224
      %2313 = vst.msk [vmem:[%s2286 + $0x139] sm:$0xff] %vm1745, %v2225
      %2314 = vst.msk [vmem:[%s2286 + $0x141] sm:$0xff] %vm1745, %v2226
      %2315 = vst.msk [vmem:[%s2286 + $0x151] sm:$0xff] %vm1745, %v2227
      %2316 = vst.msk [vmem:[%s2286 + $0x159] sm:$0xff] %vm1745, %v2228
      %2317 = vst.msk [vmem:[%s2286 + $0x169] sm:$0xff] %vm1745, %v2229
      %2318 = vst.msk [vmem:[%s2286 + $0x171] sm:$0xff] %vm1745, %v2230
      %v2319 = vld [vmem:[#allocation3] sm:$0xff]
      %v2320 = vld [vmem:[#allocation3 + $0x8] sm:$0xff]
      %v2321 = vld [vmem:[#allocation3 + $0x18] sm:$0xff]
      %v2322 = vld [vmem:[#allocation3 + $0x20] sm:$0xff]
      %v2323 = vld [vmem:[#allocation3 + $0x30] sm:$0xff]
      %v2324 = vld [vmem:[#allocation3 + $0x38] sm:$0xff]
      %v2325 = vld [vmem:[#allocation3 + $0x48] sm:$0xff]
      %v2326 = vld [vmem:[#allocation3 + $0x50] sm:$0xff]
      %v2327 = vld [vmem:[#allocation3 + $0x60] sm:$0xff]
      %v2328 = vld [vmem:[#allocation3 + $0x68] sm:$0xff]
      %v2329 = vld [vmem:[#allocation3 + $0x78] sm:$0xff]
      %v2330 = vld [vmem:[#allocation3 + $0x80] sm:$0xff]
      %v2331 = vld [vmem:[#allocation3 + $0x90] sm:$0xff]
      %v2332 = vld [vmem:[#allocation3 + $0x98] sm:$0xff]
      %v2333 = vld [vmem:[#allocation3 + $0xa8] sm:$0xff]
      %v2334 = vld [vmem:[#allocation3 + $0xb0] sm:$0xff]
      %v2335 = vld [vmem:[#allocation3 + $0xc0] sm:$0xff]
      %v2336 = vld [vmem:[#allocation3 + $0xc8] sm:$0xff]
      %v2337 = vld [vmem:[#allocation3 + $0xd8] sm:$0xff]
      %v2338 = vld [vmem:[#allocation3 + $0xe0] sm:$0xff]
      %v2339 = vld [vmem:[#allocation3 + $0xf0] sm:$0xff]
      %v2340 = vld [vmem:[#allocation3 + $0xf8] sm:$0xff]
      %v2341 = vld [vmem:[#allocation3 + $0x108] sm:$0xff]
      %v2342 = vld [vmem:[#allocation3 + $0x110] sm:$0xff]
      %v2343 = vld [vmem:[#allocation3 + $0x120] sm:$0xff]
      %v2344 = vld [vmem:[#allocation3 + $0x128] sm:$0xff]
      %v2345 = vld [vmem:[#allocation3 + $0x138] sm:$0xff]
      %v2346 = vld [vmem:[#allocation3 + $0x140] sm:$0xff]
      %v2347 = vld [vmem:[#allocation3 + $0x150] sm:$0xff]
      %v2348 = vld [vmem:[#allocation3 + $0x158] sm:$0xff]
      %v2349 = vld [vmem:[#allocation3 + $0x168] sm:$0xff]
      %v2350 = vld [vmem:[#allocation3 + $0x170] sm:$0xff]
      %v2351 = vld [vmem:[#allocation3 + $0x1] sm:$0xff]
      %v2352 = vld [vmem:[#allocation3 + $0x9] sm:$0xff]
      %v2353 = vld [vmem:[#allocation3 + $0x19] sm:$0xff]
      %v2354 = vld [vmem:[#allocation3 + $0x21] sm:$0xff]
      %v2355 = vld [vmem:[#allocation3 + $0x31] sm:$0xff]
      %v2356 = vld [vmem:[#allocation3 + $0x39] sm:$0xff]
      %v2357 = vld [vmem:[#allocation3 + $0x49] sm:$0xff]
      %v2358 = vld [vmem:[#allocation3 + $0x51] sm:$0xff]
      %v2359 = vld [vmem:[#allocation3 + $0x61] sm:$0xff]
      %v2360 = vld [vmem:[#allocation3 + $0x69] sm:$0xff]
      %v2361 = vld [vmem:[#allocation3 + $0x79] sm:$0xff]
      %v2362 = vld [vmem:[#allocation3 + $0x81] sm:$0xff]
      %v2363 = vld [vmem:[#allocation3 + $0x91] sm:$0xff]
      %v2364 = vld [vmem:[#allocation3 + $0x99] sm:$0xff]
      %v2365 = vld [vmem:[#allocation3 + $0xa9] sm:$0xff]
      %v2366 = vld [vmem:[#allocation3 + $0xb1] sm:$0xff]
      %v2367 = vld [vmem:[#allocation3 + $0xc1] sm:$0xff]
      %v2368 = vld [vmem:[#allocation3 + $0xc9] sm:$0xff]
      %v2369 = vld [vmem:[#allocation3 + $0xd9] sm:$0xff]
      %v2370 = vld [vmem:[#allocation3 + $0xe1] sm:$0xff]
      %v2371 = vld [vmem:[#allocation3 + $0xf1] sm:$0xff]
      %v2372 = vld [vmem:[#allocation3 + $0xf9] sm:$0xff]
      %v2373 = vld [vmem:[#allocation3 + $0x109] sm:$0xff]
      %v2374 = vld [vmem:[#allocation3 + $0x111] sm:$0xff]
      %v2375 = vld [vmem:[#allocation3 + $0x121] sm:$0xff]
      %v2376 = vld [vmem:[#allocation3 + $0x129] sm:$0xff]
      %v2377 = vld [vmem:[#allocation3 + $0x139] sm:$0xff]
      %v2378 = vld [vmem:[#allocation3 + $0x141] sm:$0xff]
      %v2379 = vld [vmem:[#allocation3 + $0x151] sm:$0xff]
      %v2380 = vld [vmem:[#allocation3 + $0x159] sm:$0xff]
      %v2381 = vld [vmem:[#allocation3 + $0x169] sm:$0xff]
      %v2382 = vld [vmem:[#allocation3 + $0x171] sm:$0xff]
      %v2383 = vld [vmem:[#allocation3 + $0x2] sm:$0xff]
      %v2384 = vld [vmem:[#allocation3 + $0xa] sm:$0xff]
      %v2385 = vld [vmem:[#allocation3 + $0x1a] sm:$0xff]
      %v2386 = vld [vmem:[#allocation3 + $0x22] sm:$0xff]
      %v2387 = vld [vmem:[#allocation3 + $0x32] sm:$0xff]
      %v2388 = vld [vmem:[#allocation3 + $0x3a] sm:$0xff]
      %v2389 = vld [vmem:[#allocation3 + $0x4a] sm:$0xff]
      %v2390 = vld [vmem:[#allocation3 + $0x52] sm:$0xff]
      %v2391 = vld [vmem:[#allocation3 + $0x62] sm:$0xff]
      %v2392 = vld [vmem:[#allocation3 + $0x6a] sm:$0xff]
      %v2393 = vld [vmem:[#allocation3 + $0x7a] sm:$0xff]
      %v2394 = vld [vmem:[#allocation3 + $0x82] sm:$0xff]
      %v2395 = vld [vmem:[#allocation3 + $0x92] sm:$0xff]
      %v2396 = vld [vmem:[#allocation3 + $0x9a] sm:$0xff]
      %v2397 = vld [vmem:[#allocation3 + $0xaa] sm:$0xff]
      %v2398 = vld [vmem:[#allocation3 + $0xb2] sm:$0xff]
      %v2399 = vld [vmem:[#allocation3 + $0xc2] sm:$0xff]
      %v2400 = vld [vmem:[#allocation3 + $0xca] sm:$0xff]
      %v2401 = vld [vmem:[#allocation3 + $0xda] sm:$0xff]
      %v2402 = vld [vmem:[#allocation3 + $0xe2] sm:$0xff]
      %v2403 = vld [vmem:[#allocation3 + $0xf2] sm:$0xff]
      %v2404 = vld [vmem:[#allocation3 + $0xfa] sm:$0xff]
      %v2405 = vld [vmem:[#allocation3 + $0x10a] sm:$0xff]
      %v2406 = vld [vmem:[#allocation3 + $0x112] sm:$0xff]
      %v2407 = vld [vmem:[#allocation3 + $0x122] sm:$0xff]
      %v2408 = vld [vmem:[#allocation3 + $0x12a] sm:$0xff]
      %v2409 = vld [vmem:[#allocation3 + $0x13a] sm:$0xff]
      %v2410 = vld [vmem:[#allocation3 + $0x142] sm:$0xff]
      %v2411 = vld [vmem:[#allocation3 + $0x152] sm:$0xff]
      %v2412 = vld [vmem:[#allocation3 + $0x15a] sm:$0xff]
      %v2413 = vld [vmem:[#allocation3 + $0x16a] sm:$0xff]
      %v2414 = vld [vmem:[#allocation3 + $0x172] sm:$0xff]
      %v2415 = vld [vmem:[%s2286] sm:$0xff]
      %v2416 = vld [vmem:[%s2286 + $0x8] sm:$0xff]
      %v2417 = vld [vmem:[%s2286 + $0x18] sm:$0xff]
      %v2418 = vld [vmem:[%s2286 + $0x20] sm:$0xff]
      %v2419 = vld [vmem:[%s2286 + $0x30] sm:$0xff]
      %v2420 = vld [vmem:[%s2286 + $0x38] sm:$0xff]
      %v2421 = vld [vmem:[%s2286 + $0x48] sm:$0xff]
      %v2422 = vld [vmem:[%s2286 + $0x50] sm:$0xff]
      %v2423 = vld [vmem:[%s2286 + $0x60] sm:$0xff]
      %v2424 = vld [vmem:[%s2286 + $0x68] sm:$0xff]
      %v2425 = vld [vmem:[%s2286 + $0x78] sm:$0xff]
      %v2426 = vld [vmem:[%s2286 + $0x80] sm:$0xff]
      %v2427 = vld [vmem:[%s2286 + $0x90] sm:$0xff]
      %v2428 = vld [vmem:[%s2286 + $0x98] sm:$0xff]
      %v2429 = vld [vmem:[%s2286 + $0xa8] sm:$0xff]
      %v2430 = vld [vmem:[%s2286 + $0xb0] sm:$0xff]
      %v2431 = vld [vmem:[%s2286 + $0xc0] sm:$0xff]
      %v2432 = vld [vmem:[%s2286 + $0xc8] sm:$0xff]
      %v2433 = vld [vmem:[%s2286 + $0xd8] sm:$0xff]
      %v2434 = vld [vmem:[%s2286 + $0xe0] sm:$0xff]
      %v2435 = vld [vmem:[%s2286 + $0xf0] sm:$0xff]
      %v2436 = vld [vmem:[%s2286 + $0xf8] sm:$0xff]
      %v2437 = vld [vmem:[%s2286 + $0x108] sm:$0xff]
      %v2438 = vld [vmem:[%s2286 + $0x110] sm:$0xff]
      %v2439 = vld [vmem:[%s2286 + $0x120] sm:$0xff]
      %v2440 = vld [vmem:[%s2286 + $0x128] sm:$0xff]
      %v2441 = vld [vmem:[%s2286 + $0x138] sm:$0xff]
      %v2442 = vld [vmem:[%s2286 + $0x140] sm:$0xff]
      %v2443 = vld [vmem:[%s2286 + $0x150] sm:$0xff]
      %v2444 = vld [vmem:[%s2286 + $0x158] sm:$0xff]
      %v2445 = vld [vmem:[%s2286 + $0x168] sm:$0xff]
      %v2446 = vld [vmem:[%s2286 + $0x170] sm:$0xff]
      %v2447 = vld [vmem:[%s2286 + $0x1] sm:$0xff]
      %v2448 = vld [vmem:[%s2286 + $0x9] sm:$0xff]
      %v2449 = vld [vmem:[%s2286 + $0x19] sm:$0xff]
      %v2450 = vld [vmem:[%s2286 + $0x21] sm:$0xff]
      %v2451 = vld [vmem:[%s2286 + $0x31] sm:$0xff]
      %v2452 = vld [vmem:[%s2286 + $0x39] sm:$0xff]
      %v2453 = vld [vmem:[%s2286 + $0x49] sm:$0xff]
      %v2454 = vld [vmem:[%s2286 + $0x51] sm:$0xff]
      %v2455 = vld [vmem:[%s2286 + $0x61] sm:$0xff]
      %v2456 = vld [vmem:[%s2286 + $0x69] sm:$0xff]
      %v2457 = vld [vmem:[%s2286 + $0x79] sm:$0xff]
      %v2458 = vld [vmem:[%s2286 + $0x81] sm:$0xff]
      %v2459 = vld [vmem:[%s2286 + $0x91] sm:$0xff]
      %v2460 = vld [vmem:[%s2286 + $0x99] sm:$0xff]
      %v2461 = vld [vmem:[%s2286 + $0xa9] sm:$0xff]
      %v2462 = vld [vmem:[%s2286 + $0xb1] sm:$0xff]
      %v2463 = vld [vmem:[%s2286 + $0xc1] sm:$0xff]
      %v2464 = vld [vmem:[%s2286 + $0xc9] sm:$0xff]
      %v2465 = vld [vmem:[%s2286 + $0xd9] sm:$0xff]
      %v2466 = vld [vmem:[%s2286 + $0xe1] sm:$0xff]
      %v2467 = vld [vmem:[%s2286 + $0xf1] sm:$0xff]
      %v2468 = vld [vmem:[%s2286 + $0xf9] sm:$0xff]
      %v2469 = vld [vmem:[%s2286 + $0x109] sm:$0xff]
      %v2470 = vld [vmem:[%s2286 + $0x111] sm:$0xff]
      %v2471 = vld [vmem:[%s2286 + $0x121] sm:$0xff]
      %v2472 = vld [vmem:[%s2286 + $0x129] sm:$0xff]
      %v2473 = vld [vmem:[%s2286 + $0x139] sm:$0xff]
      %v2474 = vld [vmem:[%s2286 + $0x141] sm:$0xff]
      %v2475 = vld [vmem:[%s2286 + $0x151] sm:$0xff]
      %v2476 = vld [vmem:[%s2286 + $0x159] sm:$0xff]
      %v2477 = vld [vmem:[%s2286 + $0x169] sm:$0xff]
      %v2478 = vld [vmem:[%s2286 + $0x171] sm:$0xff]
      %v2479 = vld [vmem:[%s2286 + $0x2] sm:$0xff]
      %v2480 = vld [vmem:[%s2286 + $0xa] sm:$0xff]
      %v2481 = vld [vmem:[%s2286 + $0x1a] sm:$0xff]
      %v2482 = vld [vmem:[%s2286 + $0x22] sm:$0xff]
      %v2483 = vld [vmem:[%s2286 + $0x32] sm:$0xff]
      %v2484 = vld [vmem:[%s2286 + $0x3a] sm:$0xff]
      %v2485 = vld [vmem:[%s2286 + $0x4a] sm:$0xff]
      %v2486 = vld [vmem:[%s2286 + $0x52] sm:$0xff]
      %v2487 = vld [vmem:[%s2286 + $0x62] sm:$0xff]
      %v2488 = vld [vmem:[%s2286 + $0x6a] sm:$0xff]
      %v2489 = vld [vmem:[%s2286 + $0x7a] sm:$0xff]
      %v2490 = vld [vmem:[%s2286 + $0x82] sm:$0xff]
      %v2491 = vld [vmem:[%s2286 + $0x92] sm:$0xff]
      %v2492 = vld [vmem:[%s2286 + $0x9a] sm:$0xff]
      %v2493 = vld [vmem:[%s2286 + $0xaa] sm:$0xff]
      %v2494 = vld [vmem:[%s2286 + $0xb2] sm:$0xff]
      %v2495 = vld [vmem:[%s2286 + $0xc2] sm:$0xff]
      %v2496 = vld [vmem:[%s2286 + $0xca] sm:$0xff]
      %v2497 = vld [vmem:[%s2286 + $0xda] sm:$0xff]
      %v2498 = vld [vmem:[%s2286 + $0xe2] sm:$0xff]
      %v2499 = vld [vmem:[%s2286 + $0xf2] sm:$0xff]
      %v2500 = vld [vmem:[%s2286 + $0xfa] sm:$0xff]
      %v2501 = vld [vmem:[%s2286 + $0x10a] sm:$0xff]
      %v2502 = vld [vmem:[%s2286 + $0x112] sm:$0xff]
      %v2503 = vld [vmem:[%s2286 + $0x122] sm:$0xff]
      %v2504 = vld [vmem:[%s2286 + $0x12a] sm:$0xff]
      %v2505 = vld [vmem:[%s2286 + $0x13a] sm:$0xff]
      %v2506 = vld [vmem:[%s2286 + $0x142] sm:$0xff]
      %v2507 = vld [vmem:[%s2286 + $0x152] sm:$0xff]
      %v2508 = vld [vmem:[%s2286 + $0x15a] sm:$0xff]
      %v2509 = vld [vmem:[%s2286 + $0x16a] sm:$0xff]
      %v2510 = vld [vmem:[%s2286 + $0x172] sm:$0xff]
      %s2511 = scalar_lea.vmem [#allocation3], 48
      %v2512 = vld [vmem:[%s2511] sm:$0xff]
      %v2513 = vld [vmem:[%s2511 + $0x8] sm:$0xff]
      %v2514 = vld [vmem:[%s2511 + $0x18] sm:$0xff]
      %v2515 = vld [vmem:[%s2511 + $0x20] sm:$0xff]
      %v2516 = vld [vmem:[%s2511 + $0x30] sm:$0xff]
      %v2517 = vld [vmem:[%s2511 + $0x38] sm:$0xff]
      %v2518 = vld [vmem:[%s2511 + $0x48] sm:$0xff]
      %v2519 = vld [vmem:[%s2511 + $0x50] sm:$0xff]
      %v2520 = vld [vmem:[%s2511 + $0x60] sm:$0xff]
      %v2521 = vld [vmem:[%s2511 + $0x68] sm:$0xff]
      %v2522 = vld [vmem:[%s2511 + $0x78] sm:$0xff]
      %v2523 = vld [vmem:[%s2511 + $0x80] sm:$0xff]
      %v2524 = vld [vmem:[%s2511 + $0x90] sm:$0xff]
      %v2525 = vld [vmem:[%s2511 + $0x98] sm:$0xff]
      %v2526 = vld [vmem:[%s2511 + $0xa8] sm:$0xff]
      %v2527 = vld [vmem:[%s2511 + $0xb0] sm:$0xff]
      %v2528 = vld [vmem:[%s2511 + $0xc0] sm:$0xff]
      %v2529 = vld [vmem:[%s2511 + $0xc8] sm:$0xff]
      %v2530 = vld [vmem:[%s2511 + $0xd8] sm:$0xff]
      %v2531 = vld [vmem:[%s2511 + $0xe0] sm:$0xff]
      %v2532 = vld [vmem:[%s2511 + $0xf0] sm:$0xff]
      %v2533 = vld [vmem:[%s2511 + $0xf8] sm:$0xff]
      %v2534 = vld [vmem:[%s2511 + $0x108] sm:$0xff]
      %v2535 = vld [vmem:[%s2511 + $0x110] sm:$0xff]
      %v2536 = vld [vmem:[%s2511 + $0x120] sm:$0xff]
      %v2537 = vld [vmem:[%s2511 + $0x128] sm:$0xff]
      %v2538 = vld [vmem:[%s2511 + $0x138] sm:$0xff]
      %v2539 = vld [vmem:[%s2511 + $0x140] sm:$0xff]
      %v2540 = vld [vmem:[%s2511 + $0x150] sm:$0xff]
      %v2541 = vld [vmem:[%s2511 + $0x158] sm:$0xff]
      %v2542 = vld [vmem:[%s2511 + $0x168] sm:$0xff]
      %v2543 = vld [vmem:[%s2511 + $0x170] sm:$0xff]
      %v2544 = vld [vmem:[%s2511 + $0x1] sm:$0xff]
      %v2545 = vld [vmem:[%s2511 + $0x9] sm:$0xff]
      %v2546 = vld [vmem:[%s2511 + $0x19] sm:$0xff]
      %v2547 = vld [vmem:[%s2511 + $0x21] sm:$0xff]
      %v2548 = vld [vmem:[%s2511 + $0x31] sm:$0xff]
      %v2549 = vld [vmem:[%s2511 + $0x39] sm:$0xff]
      %v2550 = vld [vmem:[%s2511 + $0x49] sm:$0xff]
      %v2551 = vld [vmem:[%s2511 + $0x51] sm:$0xff]
      %v2552 = vld [vmem:[%s2511 + $0x61] sm:$0xff]
      %v2553 = vld [vmem:[%s2511 + $0x69] sm:$0xff]
      %v2554 = vld [vmem:[%s2511 + $0x79] sm:$0xff]
      %v2555 = vld [vmem:[%s2511 + $0x81] sm:$0xff]
      %v2556 = vld [vmem:[%s2511 + $0x91] sm:$0xff]
      %v2557 = vld [vmem:[%s2511 + $0x99] sm:$0xff]
      %v2558 = vld [vmem:[%s2511 + $0xa9] sm:$0xff]
      %v2559 = vld [vmem:[%s2511 + $0xb1] sm:$0xff]
      %v2560 = vld [vmem:[%s2511 + $0xc1] sm:$0xff]
      %v2561 = vld [vmem:[%s2511 + $0xc9] sm:$0xff]
      %v2562 = vld [vmem:[%s2511 + $0xd9] sm:$0xff]
      %v2563 = vld [vmem:[%s2511 + $0xe1] sm:$0xff]
      %v2564 = vld [vmem:[%s2511 + $0xf1] sm:$0xff]
      %v2565 = vld [vmem:[%s2511 + $0xf9] sm:$0xff]
      %v2566 = vld [vmem:[%s2511 + $0x109] sm:$0xff]
      %v2567 = vld [vmem:[%s2511 + $0x111] sm:$0xff]
      %v2568 = vld [vmem:[%s2511 + $0x121] sm:$0xff]
      %v2569 = vld [vmem:[%s2511 + $0x129] sm:$0xff]
      %v2570 = vld [vmem:[%s2511 + $0x139] sm:$0xff]
      %v2571 = vld [vmem:[%s2511 + $0x141] sm:$0xff]
      %v2572 = vld [vmem:[%s2511 + $0x151] sm:$0xff]
      %v2573 = vld [vmem:[%s2511 + $0x159] sm:$0xff]
      %v2574 = vld [vmem:[%s2511 + $0x169] sm:$0xff]
      %v2575 = vld [vmem:[%s2511 + $0x171] sm:$0xff]
      %v2576 = vld [vmem:[%s2511 + $0x2] sm:$0xff]
      %v2577 = vld [vmem:[%s2511 + $0xa] sm:$0xff]
      %v2578 = vld [vmem:[%s2511 + $0x1a] sm:$0xff]
      %v2579 = vld [vmem:[%s2511 + $0x22] sm:$0xff]
      %v2580 = vld [vmem:[%s2511 + $0x32] sm:$0xff]
      %v2581 = vld [vmem:[%s2511 + $0x3a] sm:$0xff]
      %v2582 = vld [vmem:[%s2511 + $0x4a] sm:$0xff]
      %v2583 = vld [vmem:[%s2511 + $0x52] sm:$0xff]
      %v2584 = vld [vmem:[%s2511 + $0x62] sm:$0xff]
      %v2585 = vld [vmem:[%s2511 + $0x6a] sm:$0xff]
      %v2586 = vld [vmem:[%s2511 + $0x7a] sm:$0xff]
      %v2587 = vld [vmem:[%s2511 + $0x82] sm:$0xff]
      %v2588 = vld [vmem:[%s2511 + $0x92] sm:$0xff]
      %v2589 = vld [vmem:[%s2511 + $0x9a] sm:$0xff]
      %v2590 = vld [vmem:[%s2511 + $0xaa] sm:$0xff]
      %v2591 = vld [vmem:[%s2511 + $0xb2] sm:$0xff]
      %v2592 = vld [vmem:[%s2511 + $0xc2] sm:$0xff]
      %v2593 = vld [vmem:[%s2511 + $0xca] sm:$0xff]
      %v2594 = vld [vmem:[%s2511 + $0xda] sm:$0xff]
      %v2595 = vld [vmem:[%s2511 + $0xe2] sm:$0xff]
      %v2596 = vld [vmem:[%s2511 + $0xf2] sm:$0xff]
      %v2597 = vld [vmem:[%s2511 + $0xfa] sm:$0xff]
      %v2598 = vld [vmem:[%s2511 + $0x10a] sm:$0xff]
      %v2599 = vld [vmem:[%s2511 + $0x112] sm:$0xff]
      %v2600 = vld [vmem:[%s2511 + $0x122] sm:$0xff]
      %v2601 = vld [vmem:[%s2511 + $0x12a] sm:$0xff]
      %v2602 = vld [vmem:[%s2511 + $0x13a] sm:$0xff]
      %v2603 = vld [vmem:[%s2511 + $0x142] sm:$0xff]
      %v2604 = vld [vmem:[%s2511 + $0x152] sm:$0xff]
      %v2605 = vld [vmem:[%s2511 + $0x15a] sm:$0xff]
      %v2606 = vld [vmem:[%s2511 + $0x16a] sm:$0xff]
      %v2607 = vld [vmem:[%s2511 + $0x172] sm:$0xff]
      %2640 = vrot.lane.b32.xlu0 %v2351, 8
      %v2641 = vpop.permute.xlu0 %2640
      %2642 = vrot.lane.b32.xlu0 %v2352, 8
      %v2643 = vpop.permute.xlu0 %2642
      %2644 = vrot.lane.b32.xlu0 %v2353, 8
      %v2645 = vpop.permute.xlu0 %2644
      %2646 = vrot.lane.b32.xlu0 %v2354, 8
      %v2647 = vpop.permute.xlu0 %2646
      %2648 = vrot.lane.b32.xlu0 %v2355, 8
      %v2649 = vpop.permute.xlu0 %2648
      %2650 = vrot.lane.b32.xlu0 %v2356, 8
      %v2651 = vpop.permute.xlu0 %2650
      %2652 = vrot.lane.b32.xlu0 %v2357, 8
      %v2653 = vpop.permute.xlu0 %2652
      %2654 = vrot.lane.b32.xlu0 %v2358, 8
      %v2655 = vpop.permute.xlu0 %2654
      %2656 = vrot.lane.b32.xlu0 %v2359, 8
      %v2657 = vpop.permute.xlu0 %2656
      %2658 = vrot.lane.b32.xlu0 %v2360, 8
      %v2659 = vpop.permute.xlu0 %2658
      %2660 = vrot.lane.b32.xlu0 %v2361, 8
      %v2661 = vpop.permute.xlu0 %2660
      %2662 = vrot.lane.b32.xlu0 %v2362, 8
      %v2663 = vpop.permute.xlu0 %2662
      %2664 = vrot.lane.b32.xlu0 %v2363, 8
      %v2665 = vpop.permute.xlu0 %2664
      %2666 = vrot.lane.b32.xlu0 %v2364, 8
      %v2667 = vpop.permute.xlu0 %2666
      %2668 = vrot.lane.b32.xlu0 %v2365, 8
      %v2669 = vpop.permute.xlu0 %2668
      %2670 = vrot.lane.b32.xlu0 %v2366, 8
      %v2671 = vpop.permute.xlu0 %2670
      %2672 = vrot.lane.b32.xlu0 %v2367, 8
      %v2673 = vpop.permute.xlu0 %2672
      %2674 = vrot.lane.b32.xlu0 %v2368, 8
      %v2675 = vpop.permute.xlu0 %2674
      %2676 = vrot.lane.b32.xlu0 %v2369, 8
      %v2677 = vpop.permute.xlu0 %2676
      %2678 = vrot.lane.b32.xlu0 %v2370, 8
      %v2679 = vpop.permute.xlu0 %2678
      %2680 = vrot.lane.b32.xlu0 %v2371, 8
      %v2681 = vpop.permute.xlu0 %2680
      %2682 = vrot.lane.b32.xlu0 %v2372, 8
      %v2683 = vpop.permute.xlu0 %2682
      %2684 = vrot.lane.b32.xlu0 %v2373, 8
      %v2685 = vpop.permute.xlu0 %2684
      %2686 = vrot.lane.b32.xlu0 %v2374, 8
      %v2687 = vpop.permute.xlu0 %2686
      %2688 = vrot.lane.b32.xlu0 %v2375, 8
      %v2689 = vpop.permute.xlu0 %2688
      %2690 = vrot.lane.b32.xlu0 %v2376, 8
      %v2691 = vpop.permute.xlu0 %2690
      %2692 = vrot.lane.b32.xlu0 %v2377, 8
      %v2693 = vpop.permute.xlu0 %2692
      %2694 = vrot.lane.b32.xlu0 %v2378, 8
      %v2695 = vpop.permute.xlu0 %2694
      %2696 = vrot.lane.b32.xlu0 %v2379, 8
      %v2697 = vpop.permute.xlu0 %2696
      %2698 = vrot.lane.b32.xlu0 %v2380, 8
      %v2699 = vpop.permute.xlu0 %2698
      %2700 = vrot.lane.b32.xlu0 %v2381, 8
      %v2701 = vpop.permute.xlu0 %2700
      %2702 = vrot.lane.b32.xlu0 %v2382, 8
      %v2703 = vpop.permute.xlu0 %2702
      %2768 = vrot.lane.b32.xlu0 %v2383, 16
      %v2769 = vpop.permute.xlu0 %2768
      %2770 = vrot.lane.b32.xlu0 %v2384, 16
      %v2771 = vpop.permute.xlu0 %2770
      %2772 = vrot.lane.b32.xlu0 %v2385, 16
      %v2773 = vpop.permute.xlu0 %2772
      %2774 = vrot.lane.b32.xlu0 %v2386, 16
      %v2775 = vpop.permute.xlu0 %2774
      %2776 = vrot.lane.b32.xlu0 %v2387, 16
      %v2777 = vpop.permute.xlu0 %2776
      %2778 = vrot.lane.b32.xlu0 %v2388, 16
      %v2779 = vpop.permute.xlu0 %2778
      %2780 = vrot.lane.b32.xlu0 %v2389, 16
      %v2781 = vpop.permute.xlu0 %2780
      %2782 = vrot.lane.b32.xlu0 %v2390, 16
      %v2783 = vpop.permute.xlu0 %2782
      %2784 = vrot.lane.b32.xlu0 %v2391, 16
      %v2785 = vpop.permute.xlu0 %2784
      %2786 = vrot.lane.b32.xlu0 %v2392, 16
      %v2787 = vpop.permute.xlu0 %2786
      %2788 = vrot.lane.b32.xlu0 %v2393, 16
      %v2789 = vpop.permute.xlu0 %2788
      %2790 = vrot.lane.b32.xlu0 %v2394, 16
      %v2791 = vpop.permute.xlu0 %2790
      %2792 = vrot.lane.b32.xlu0 %v2395, 16
      %v2793 = vpop.permute.xlu0 %2792
      %2794 = vrot.lane.b32.xlu0 %v2396, 16
      %v2795 = vpop.permute.xlu0 %2794
      %2796 = vrot.lane.b32.xlu0 %v2397, 16
      %v2797 = vpop.permute.xlu0 %2796
      %2798 = vrot.lane.b32.xlu0 %v2398, 16
      %v2799 = vpop.permute.xlu0 %2798
      %2800 = vrot.lane.b32.xlu0 %v2399, 16
      %v2801 = vpop.permute.xlu0 %2800
      %2802 = vrot.lane.b32.xlu0 %v2400, 16
      %v2803 = vpop.permute.xlu0 %2802
      %2804 = vrot.lane.b32.xlu0 %v2401, 16
      %v2805 = vpop.permute.xlu0 %2804
      %2806 = vrot.lane.b32.xlu0 %v2402, 16
      %v2807 = vpop.permute.xlu0 %2806
      %2808 = vrot.lane.b32.xlu0 %v2403, 16
      %v2809 = vpop.permute.xlu0 %2808
      %2810 = vrot.lane.b32.xlu0 %v2404, 16
      %v2811 = vpop.permute.xlu0 %2810
      %2812 = vrot.lane.b32.xlu0 %v2405, 16
      %v2813 = vpop.permute.xlu0 %2812
      %2814 = vrot.lane.b32.xlu0 %v2406, 16
      %v2815 = vpop.permute.xlu0 %2814
      %2816 = vrot.lane.b32.xlu0 %v2407, 16
      %v2817 = vpop.permute.xlu0 %2816
      %2818 = vrot.lane.b32.xlu0 %v2408, 16
      %v2819 = vpop.permute.xlu0 %2818
      %2820 = vrot.lane.b32.xlu0 %v2409, 16
      %v2821 = vpop.permute.xlu0 %2820
      %2822 = vrot.lane.b32.xlu0 %v2410, 16
      %v2823 = vpop.permute.xlu0 %2822
      %2824 = vrot.lane.b32.xlu0 %v2411, 16
      %v2825 = vpop.permute.xlu0 %2824
      %2826 = vrot.lane.b32.xlu0 %v2412, 16
      %v2827 = vpop.permute.xlu0 %2826
      %2828 = vrot.lane.b32.xlu0 %v2413, 16
      %v2829 = vpop.permute.xlu0 %2828
      %2830 = vrot.lane.b32.xlu0 %v2414, 16
      %v2831 = vpop.permute.xlu0 %2830
      %2896 = vrot.lane.b32.xlu0 %v2415, 24
      %v2897 = vpop.permute.xlu0 %2896
      %2898 = vrot.lane.b32.xlu0 %v2416, 24
      %v2899 = vpop.permute.xlu0 %2898
      %2900 = vrot.lane.b32.xlu0 %v2417, 24
      %v2901 = vpop.permute.xlu0 %2900
      %2902 = vrot.lane.b32.xlu0 %v2418, 24
      %v2903 = vpop.permute.xlu0 %2902
      %2904 = vrot.lane.b32.xlu0 %v2419, 24
      %v2905 = vpop.permute.xlu0 %2904
      %2906 = vrot.lane.b32.xlu0 %v2420, 24
      %v2907 = vpop.permute.xlu0 %2906
      %2908 = vrot.lane.b32.xlu0 %v2421, 24
      %v2909 = vpop.permute.xlu0 %2908
      %2910 = vrot.lane.b32.xlu0 %v2422, 24
      %v2911 = vpop.permute.xlu0 %2910
      %2912 = vrot.lane.b32.xlu0 %v2423, 24
      %v2913 = vpop.permute.xlu0 %2912
      %2914 = vrot.lane.b32.xlu0 %v2424, 24
      %v2915 = vpop.permute.xlu0 %2914
      %2916 = vrot.lane.b32.xlu0 %v2425, 24
      %v2917 = vpop.permute.xlu0 %2916
      %2918 = vrot.lane.b32.xlu0 %v2426, 24
      %v2919 = vpop.permute.xlu0 %2918
      %2920 = vrot.lane.b32.xlu0 %v2427, 24
      %v2921 = vpop.permute.xlu0 %2920
      %2922 = vrot.lane.b32.xlu0 %v2428, 24
      %v2923 = vpop.permute.xlu0 %2922
      %2924 = vrot.lane.b32.xlu0 %v2429, 24
      %v2925 = vpop.permute.xlu0 %2924
      %2926 = vrot.lane.b32.xlu0 %v2430, 24
      %v2927 = vpop.permute.xlu0 %2926
      %2928 = vrot.lane.b32.xlu0 %v2431, 24
      %v2929 = vpop.permute.xlu0 %2928
      %2930 = vrot.lane.b32.xlu0 %v2432, 24
      %v2931 = vpop.permute.xlu0 %2930
      %2932 = vrot.lane.b32.xlu0 %v2433, 24
      %v2933 = vpop.permute.xlu0 %2932
      %2934 = vrot.lane.b32.xlu0 %v2434, 24
      %v2935 = vpop.permute.xlu0 %2934
      %2936 = vrot.lane.b32.xlu0 %v2435, 24
      %v2937 = vpop.permute.xlu0 %2936
      %2938 = vrot.lane.b32.xlu0 %v2436, 24
      %v2939 = vpop.permute.xlu0 %2938
      %2940 = vrot.lane.b32.xlu0 %v2437, 24
      %v2941 = vpop.permute.xlu0 %2940
      %2942 = vrot.lane.b32.xlu0 %v2438, 24
      %v2943 = vpop.permute.xlu0 %2942
      %2944 = vrot.lane.b32.xlu0 %v2439, 24
      %v2945 = vpop.permute.xlu0 %2944
      %2946 = vrot.lane.b32.xlu0 %v2440, 24
      %v2947 = vpop.permute.xlu0 %2946
      %2948 = vrot.lane.b32.xlu0 %v2441, 24
      %v2949 = vpop.permute.xlu0 %2948
      %2950 = vrot.lane.b32.xlu0 %v2442, 24
      %v2951 = vpop.permute.xlu0 %2950
      %2952 = vrot.lane.b32.xlu0 %v2443, 24
      %v2953 = vpop.permute.xlu0 %2952
      %2954 = vrot.lane.b32.xlu0 %v2444, 24
      %v2955 = vpop.permute.xlu0 %2954
      %2956 = vrot.lane.b32.xlu0 %v2445, 24
      %v2957 = vpop.permute.xlu0 %2956
      %2958 = vrot.lane.b32.xlu0 %v2446, 24
      %v2959 = vpop.permute.xlu0 %2958
      %3024 = vrot.lane.b32.xlu0 %v2447, 32
      %v3025 = vpop.permute.xlu0 %3024
      %3026 = vrot.lane.b32.xlu0 %v2448, 32
      %v3027 = vpop.permute.xlu0 %3026
      %3028 = vrot.lane.b32.xlu0 %v2449, 32
      %v3029 = vpop.permute.xlu0 %3028
      %3030 = vrot.lane.b32.xlu0 %v2450, 32
      %v3031 = vpop.permute.xlu0 %3030
      %3032 = vrot.lane.b32.xlu0 %v2451, 32
      %v3033 = vpop.permute.xlu0 %3032
      %3034 = vrot.lane.b32.xlu0 %v2452, 32
      %v3035 = vpop.permute.xlu0 %3034
      %3036 = vrot.lane.b32.xlu0 %v2453, 32
      %v3037 = vpop.permute.xlu0 %3036
      %3038 = vrot.lane.b32.xlu0 %v2454, 32
      %v3039 = vpop.permute.xlu0 %3038
      %3040 = vrot.lane.b32.xlu0 %v2455, 32
      %v3041 = vpop.permute.xlu0 %3040
      %3042 = vrot.lane.b32.xlu0 %v2456, 32
      %v3043 = vpop.permute.xlu0 %3042
      %3044 = vrot.lane.b32.xlu0 %v2457, 32
      %v3045 = vpop.permute.xlu0 %3044
      %3046 = vrot.lane.b32.xlu0 %v2458, 32
      %v3047 = vpop.permute.xlu0 %3046
      %3048 = vrot.lane.b32.xlu0 %v2459, 32
      %v3049 = vpop.permute.xlu0 %3048
      %3050 = vrot.lane.b32.xlu0 %v2460, 32
      %v3051 = vpop.permute.xlu0 %3050
      %3052 = vrot.lane.b32.xlu0 %v2461, 32
      %v3053 = vpop.permute.xlu0 %3052
      %3054 = vrot.lane.b32.xlu0 %v2462, 32
      %v3055 = vpop.permute.xlu0 %3054
      %3056 = vrot.lane.b32.xlu0 %v2463, 32
      %v3057 = vpop.permute.xlu0 %3056
      %3058 = vrot.lane.b32.xlu0 %v2464, 32
      %v3059 = vpop.permute.xlu0 %3058
      %3060 = vrot.lane.b32.xlu0 %v2465, 32
      %v3061 = vpop.permute.xlu0 %3060
      %3062 = vrot.lane.b32.xlu0 %v2466, 32
      %v3063 = vpop.permute.xlu0 %3062
      %3064 = vrot.lane.b32.xlu0 %v2467, 32
      %v3065 = vpop.permute.xlu0 %3064
      %3066 = vrot.lane.b32.xlu0 %v2468, 32
      %v3067 = vpop.permute.xlu0 %3066
      %3068 = vrot.lane.b32.xlu0 %v2469, 32
      %v3069 = vpop.permute.xlu0 %3068
      %3070 = vrot.lane.b32.xlu0 %v2470, 32
      %v3071 = vpop.permute.xlu0 %3070
      %3072 = vrot.lane.b32.xlu0 %v2471, 32
      %v3073 = vpop.permute.xlu0 %3072
      %3074 = vrot.lane.b32.xlu0 %v2472, 32
      %v3075 = vpop.permute.xlu0 %3074
      %3076 = vrot.lane.b32.xlu0 %v2473, 32
      %v3077 = vpop.permute.xlu0 %3076
      %3078 = vrot.lane.b32.xlu0 %v2474, 32
      %v3079 = vpop.permute.xlu0 %3078
      %3080 = vrot.lane.b32.xlu0 %v2475, 32
      %v3081 = vpop.permute.xlu0 %3080
      %3082 = vrot.lane.b32.xlu0 %v2476, 32
      %v3083 = vpop.permute.xlu0 %3082
      %3084 = vrot.lane.b32.xlu0 %v2477, 32
      %v3085 = vpop.permute.xlu0 %3084
      %3086 = vrot.lane.b32.xlu0 %v2478, 32
      %v3087 = vpop.permute.xlu0 %3086
      %3152 = vrot.lane.b32.xlu0 %v2479, 40
      %v3153 = vpop.permute.xlu0 %3152
      %3154 = vrot.lane.b32.xlu0 %v2480, 40
      %v3155 = vpop.permute.xlu0 %3154
      %3156 = vrot.lane.b32.xlu0 %v2481, 40
      %v3157 = vpop.permute.xlu0 %3156
      %3158 = vrot.lane.b32.xlu0 %v2482, 40
      %v3159 = vpop.permute.xlu0 %3158
      %3160 = vrot.lane.b32.xlu0 %v2483, 40
      %v3161 = vpop.permute.xlu0 %3160
      %3162 = vrot.lane.b32.xlu0 %v2484, 40
      %v3163 = vpop.permute.xlu0 %3162
      %3164 = vrot.lane.b32.xlu0 %v2485, 40
      %v3165 = vpop.permute.xlu0 %3164
      %3166 = vrot.lane.b32.xlu0 %v2486, 40
      %v3167 = vpop.permute.xlu0 %3166
      %3168 = vrot.lane.b32.xlu0 %v2487, 40
      %v3169 = vpop.permute.xlu0 %3168
      %3170 = vrot.lane.b32.xlu0 %v2488, 40
      %v3171 = vpop.permute.xlu0 %3170
      %3172 = vrot.lane.b32.xlu0 %v2489, 40
      %v3173 = vpop.permute.xlu0 %3172
      %3174 = vrot.lane.b32.xlu0 %v2490, 40
      %v3175 = vpop.permute.xlu0 %3174
      %3176 = vrot.lane.b32.xlu0 %v2491, 40
      %v3177 = vpop.permute.xlu0 %3176
      %3178 = vrot.lane.b32.xlu0 %v2492, 40
      %v3179 = vpop.permute.xlu0 %3178
      %3180 = vrot.lane.b32.xlu0 %v2493, 40
      %v3181 = vpop.permute.xlu0 %3180
      %3182 = vrot.lane.b32.xlu0 %v2494, 40
      %v3183 = vpop.permute.xlu0 %3182
      %3184 = vrot.lane.b32.xlu0 %v2495, 40
      %v3185 = vpop.permute.xlu0 %3184
      %3186 = vrot.lane.b32.xlu0 %v2496, 40
      %v3187 = vpop.permute.xlu0 %3186
      %3188 = vrot.lane.b32.xlu0 %v2497, 40
      %v3189 = vpop.permute.xlu0 %3188
      %3190 = vrot.lane.b32.xlu0 %v2498, 40
      %v3191 = vpop.permute.xlu0 %3190
      %3192 = vrot.lane.b32.xlu0 %v2499, 40
      %v3193 = vpop.permute.xlu0 %3192
      %3194 = vrot.lane.b32.xlu0 %v2500, 40
      %v3195 = vpop.permute.xlu0 %3194
      %3196 = vrot.lane.b32.xlu0 %v2501, 40
      %v3197 = vpop.permute.xlu0 %3196
      %3198 = vrot.lane.b32.xlu0 %v2502, 40
      %v3199 = vpop.permute.xlu0 %3198
      %3200 = vrot.lane.b32.xlu0 %v2503, 40
      %v3201 = vpop.permute.xlu0 %3200
      %3202 = vrot.lane.b32.xlu0 %v2504, 40
      %v3203 = vpop.permute.xlu0 %3202
      %3204 = vrot.lane.b32.xlu0 %v2505, 40
      %v3205 = vpop.permute.xlu0 %3204
      %3206 = vrot.lane.b32.xlu0 %v2506, 40
      %v3207 = vpop.permute.xlu0 %3206
      %3208 = vrot.lane.b32.xlu0 %v2507, 40
      %v3209 = vpop.permute.xlu0 %3208
      %3210 = vrot.lane.b32.xlu0 %v2508, 40
      %v3211 = vpop.permute.xlu0 %3210
      %3212 = vrot.lane.b32.xlu0 %v2509, 40
      %v3213 = vpop.permute.xlu0 %3212
      %3214 = vrot.lane.b32.xlu0 %v2510, 40
      %v3215 = vpop.permute.xlu0 %3214
      %3280 = vrot.lane.b32.xlu0 %v2512, 48
      %v3281 = vpop.permute.xlu0 %3280
      %3282 = vrot.lane.b32.xlu0 %v2513, 48
      %v3283 = vpop.permute.xlu0 %3282
      %3284 = vrot.lane.b32.xlu0 %v2514, 48
      %v3285 = vpop.permute.xlu0 %3284
      %3286 = vrot.lane.b32.xlu0 %v2515, 48
      %v3287 = vpop.permute.xlu0 %3286
      %3288 = vrot.lane.b32.xlu0 %v2516, 48
      %v3289 = vpop.permute.xlu0 %3288
      %3290 = vrot.lane.b32.xlu0 %v2517, 48
      %v3291 = vpop.permute.xlu0 %3290
      %3292 = vrot.lane.b32.xlu0 %v2518, 48
      %v3293 = vpop.permute.xlu0 %3292
      %3294 = vrot.lane.b32.xlu0 %v2519, 48
      %v3295 = vpop.permute.xlu0 %3294
      %3296 = vrot.lane.b32.xlu0 %v2520, 48
      %v3297 = vpop.permute.xlu0 %3296
      %3298 = vrot.lane.b32.xlu0 %v2521, 48
      %v3299 = vpop.permute.xlu0 %3298
      %3300 = vrot.lane.b32.xlu0 %v2522, 48
      %v3301 = vpop.permute.xlu0 %3300
      %3302 = vrot.lane.b32.xlu0 %v2523, 48
      %v3303 = vpop.permute.xlu0 %3302
      %3304 = vrot.lane.b32.xlu0 %v2524, 48
      %v3305 = vpop.permute.xlu0 %3304
      %3306 = vrot.lane.b32.xlu0 %v2525, 48
      %v3307 = vpop.permute.xlu0 %3306
      %3308 = vrot.lane.b32.xlu0 %v2526, 48
      %v3309 = vpop.permute.xlu0 %3308
      %3310 = vrot.lane.b32.xlu0 %v2527, 48
      %v3311 = vpop.permute.xlu0 %3310
      %3312 = vrot.lane.b32.xlu0 %v2528, 48
      %v3313 = vpop.permute.xlu0 %3312
      %3314 = vrot.lane.b32.xlu0 %v2529, 48
      %v3315 = vpop.permute.xlu0 %3314
      %3316 = vrot.lane.b32.xlu0 %v2530, 48
      %v3317 = vpop.permute.xlu0 %3316
      %3318 = vrot.lane.b32.xlu0 %v2531, 48
      %v3319 = vpop.permute.xlu0 %3318
      %3320 = vrot.lane.b32.xlu0 %v2532, 48
      %v3321 = vpop.permute.xlu0 %3320
      %3322 = vrot.lane.b32.xlu0 %v2533, 48
      %v3323 = vpop.permute.xlu0 %3322
      %3324 = vrot.lane.b32.xlu0 %v2534, 48
      %v3325 = vpop.permute.xlu0 %3324
      %3326 = vrot.lane.b32.xlu0 %v2535, 48
      %v3327 = vpop.permute.xlu0 %3326
      %3328 = vrot.lane.b32.xlu0 %v2536, 48
      %v3329 = vpop.permute.xlu0 %3328
      %3330 = vrot.lane.b32.xlu0 %v2537, 48
      %v3331 = vpop.permute.xlu0 %3330
      %3332 = vrot.lane.b32.xlu0 %v2538, 48
      %v3333 = vpop.permute.xlu0 %3332
      %3334 = vrot.lane.b32.xlu0 %v2539, 48
      %v3335 = vpop.permute.xlu0 %3334
      %3336 = vrot.lane.b32.xlu0 %v2540, 48
      %v3337 = vpop.permute.xlu0 %3336
      %3338 = vrot.lane.b32.xlu0 %v2541, 48
      %v3339 = vpop.permute.xlu0 %3338
      %3340 = vrot.lane.b32.xlu0 %v2542, 48
      %v3341 = vpop.permute.xlu0 %3340
      %3342 = vrot.lane.b32.xlu0 %v2543, 48
      %v3343 = vpop.permute.xlu0 %3342
      %3408 = vrot.lane.b32.xlu0 %v2544, 56
      %v3409 = vpop.permute.xlu0 %3408
      %3410 = vrot.lane.b32.xlu0 %v2545, 56
      %v3411 = vpop.permute.xlu0 %3410
      %3412 = vrot.lane.b32.xlu0 %v2546, 56
      %v3413 = vpop.permute.xlu0 %3412
      %3414 = vrot.lane.b32.xlu0 %v2547, 56
      %v3415 = vpop.permute.xlu0 %3414
      %3416 = vrot.lane.b32.xlu0 %v2548, 56
      %v3417 = vpop.permute.xlu0 %3416
      %3418 = vrot.lane.b32.xlu0 %v2549, 56
      %v3419 = vpop.permute.xlu0 %3418
      %3420 = vrot.lane.b32.xlu0 %v2550, 56
      %v3421 = vpop.permute.xlu0 %3420
      %3422 = vrot.lane.b32.xlu0 %v2551, 56
      %v3423 = vpop.permute.xlu0 %3422
      %3424 = vrot.lane.b32.xlu0 %v2552, 56
      %v3425 = vpop.permute.xlu0 %3424
      %3426 = vrot.lane.b32.xlu0 %v2553, 56
      %v3427 = vpop.permute.xlu0 %3426
      %3428 = vrot.lane.b32.xlu0 %v2554, 56
      %v3429 = vpop.permute.xlu0 %3428
      %3430 = vrot.lane.b32.xlu0 %v2555, 56
      %v3431 = vpop.permute.xlu0 %3430
      %3432 = vrot.lane.b32.xlu0 %v2556, 56
      %v3433 = vpop.permute.xlu0 %3432
      %3434 = vrot.lane.b32.xlu0 %v2557, 56
      %v3435 = vpop.permute.xlu0 %3434
      %3436 = vrot.lane.b32.xlu0 %v2558, 56
      %v3437 = vpop.permute.xlu0 %3436
      %3438 = vrot.lane.b32.xlu0 %v2559, 56
      %v3439 = vpop.permute.xlu0 %3438
      %3440 = vrot.lane.b32.xlu0 %v2560, 56
      %v3441 = vpop.permute.xlu0 %3440
      %3442 = vrot.lane.b32.xlu0 %v2561, 56
      %v3443 = vpop.permute.xlu0 %3442
      %3444 = vrot.lane.b32.xlu0 %v2562, 56
      %v3445 = vpop.permute.xlu0 %3444
      %3446 = vrot.lane.b32.xlu0 %v2563, 56
      %v3447 = vpop.permute.xlu0 %3446
      %3448 = vrot.lane.b32.xlu0 %v2564, 56
      %v3449 = vpop.permute.xlu0 %3448
      %3450 = vrot.lane.b32.xlu0 %v2565, 56
      %v3451 = vpop.permute.xlu0 %3450
      %3452 = vrot.lane.b32.xlu0 %v2566, 56
      %v3453 = vpop.permute.xlu0 %3452
      %3454 = vrot.lane.b32.xlu0 %v2567, 56
      %v3455 = vpop.permute.xlu0 %3454
      %3456 = vrot.lane.b32.xlu0 %v2568, 56
      %v3457 = vpop.permute.xlu0 %3456
      %3458 = vrot.lane.b32.xlu0 %v2569, 56
      %v3459 = vpop.permute.xlu0 %3458
      %3460 = vrot.lane.b32.xlu0 %v2570, 56
      %v3461 = vpop.permute.xlu0 %3460
      %3462 = vrot.lane.b32.xlu0 %v2571, 56
      %v3463 = vpop.permute.xlu0 %3462
      %3464 = vrot.lane.b32.xlu0 %v2572, 56
      %v3465 = vpop.permute.xlu0 %3464
      %3466 = vrot.lane.b32.xlu0 %v2573, 56
      %v3467 = vpop.permute.xlu0 %3466
      %3468 = vrot.lane.b32.xlu0 %v2574, 56
      %v3469 = vpop.permute.xlu0 %3468
      %3470 = vrot.lane.b32.xlu0 %v2575, 56
      %v3471 = vpop.permute.xlu0 %3470
      %3536 = vrot.lane.b32.xlu0 %v2576, 64
      %v3537 = vpop.permute.xlu0 %3536
      %3538 = vrot.lane.b32.xlu0 %v2577, 64
      %v3539 = vpop.permute.xlu0 %3538
      %3540 = vrot.lane.b32.xlu0 %v2578, 64
      %v3541 = vpop.permute.xlu0 %3540
      %3542 = vrot.lane.b32.xlu0 %v2579, 64
      %v3543 = vpop.permute.xlu0 %3542
      %3544 = vrot.lane.b32.xlu0 %v2580, 64
      %v3545 = vpop.permute.xlu0 %3544
      %3546 = vrot.lane.b32.xlu0 %v2581, 64
      %v3547 = vpop.permute.xlu0 %3546
      %3548 = vrot.lane.b32.xlu0 %v2582, 64
      %v3549 = vpop.permute.xlu0 %3548
      %3550 = vrot.lane.b32.xlu0 %v2583, 64
      %v3551 = vpop.permute.xlu0 %3550
      %3552 = vrot.lane.b32.xlu0 %v2584, 64
      %v3553 = vpop.permute.xlu0 %3552
      %3554 = vrot.lane.b32.xlu0 %v2585, 64
      %v3555 = vpop.permute.xlu0 %3554
      %3556 = vrot.lane.b32.xlu0 %v2586, 64
      %v3557 = vpop.permute.xlu0 %3556
      %3558 = vrot.lane.b32.xlu0 %v2587, 64
      %v3559 = vpop.permute.xlu0 %3558
      %3560 = vrot.lane.b32.xlu0 %v2588, 64
      %v3561 = vpop.permute.xlu0 %3560
      %3562 = vrot.lane.b32.xlu0 %v2589, 64
      %v3563 = vpop.permute.xlu0 %3562
      %3564 = vrot.lane.b32.xlu0 %v2590, 64
      %v3565 = vpop.permute.xlu0 %3564
      %3566 = vrot.lane.b32.xlu0 %v2591, 64
      %v3567 = vpop.permute.xlu0 %3566
      %3568 = vrot.lane.b32.xlu0 %v2592, 64
      %v3569 = vpop.permute.xlu0 %3568
      %3570 = vrot.lane.b32.xlu0 %v2593, 64
      %v3571 = vpop.permute.xlu0 %3570
      %3572 = vrot.lane.b32.xlu0 %v2594, 64
      %v3573 = vpop.permute.xlu0 %3572
      %3574 = vrot.lane.b32.xlu0 %v2595, 64
      %v3575 = vpop.permute.xlu0 %3574
      %3576 = vrot.lane.b32.xlu0 %v2596, 64
      %v3577 = vpop.permute.xlu0 %3576
      %3578 = vrot.lane.b32.xlu0 %v2597, 64
      %v3579 = vpop.permute.xlu0 %3578
      %3580 = vrot.lane.b32.xlu0 %v2598, 64
      %v3581 = vpop.permute.xlu0 %3580
      %3582 = vrot.lane.b32.xlu0 %v2599, 64
      %v3583 = vpop.permute.xlu0 %3582
      %3584 = vrot.lane.b32.xlu0 %v2600, 64
      %v3585 = vpop.permute.xlu0 %3584
      %3586 = vrot.lane.b32.xlu0 %v2601, 64
      %v3587 = vpop.permute.xlu0 %3586
      %3588 = vrot.lane.b32.xlu0 %v2602, 64
      %v3589 = vpop.permute.xlu0 %3588
      %3590 = vrot.lane.b32.xlu0 %v2603, 64
      %v3591 = vpop.permute.xlu0 %3590
      %3592 = vrot.lane.b32.xlu0 %v2604, 64
      %v3593 = vpop.permute.xlu0 %3592
      %3594 = vrot.lane.b32.xlu0 %v2605, 64
      %v3595 = vpop.permute.xlu0 %3594
      %3596 = vrot.lane.b32.xlu0 %v2606, 64
      %v3597 = vpop.permute.xlu0 %3596
      %3598 = vrot.lane.b32.xlu0 %v2607, 64
      %v3599 = vpop.permute.xlu0 %3598
      %v3632 = vsel %vm1745, %v2319, %v2641
      %v3633 = vsel %vm1745, %v2320, %v2643
      %v3634 = vsel %vm1745, %v2321, %v2645
      %v3635 = vsel %vm1745, %v2322, %v2647
      %v3636 = vsel %vm1745, %v2323, %v2649
      %v3637 = vsel %vm1745, %v2324, %v2651
      %v3638 = vsel %vm1745, %v2325, %v2653
      %v3639 = vsel %vm1745, %v2326, %v2655
      %v3640 = vsel %vm1745, %v2327, %v2657
      %v3641 = vsel %vm1745, %v2328, %v2659
      %v3642 = vsel %vm1745, %v2329, %v2661
      %v3643 = vsel %vm1745, %v2330, %v2663
      %v3644 = vsel %vm1745, %v2331, %v2665
      %v3645 = vsel %vm1745, %v2332, %v2667
      %v3646 = vsel %vm1745, %v2333, %v2669
      %v3647 = vsel %vm1745, %v2334, %v2671
      %v3648 = vsel %vm1745, %v2335, %v2673
      %v3649 = vsel %vm1745, %v2336, %v2675
      %v3650 = vsel %vm1745, %v2337, %v2677
      %v3651 = vsel %vm1745, %v2338, %v2679
      %v3652 = vsel %vm1745, %v2339, %v2681
      %v3653 = vsel %vm1745, %v2340, %v2683
      %v3654 = vsel %vm1745, %v2341, %v2685
      %v3655 = vsel %vm1745, %v2342, %v2687
      %v3656 = vsel %vm1745, %v2343, %v2689
      %v3657 = vsel %vm1745, %v2344, %v2691
      %v3658 = vsel %vm1745, %v2345, %v2693
      %v3659 = vsel %vm1745, %v2346, %v2695
      %v3660 = vsel %vm1745, %v2347, %v2697
      %v3661 = vsel %vm1745, %v2348, %v2699
      %v3662 = vsel %vm1745, %v2349, %v2701
      %v3663 = vsel %vm1745, %v2350, %v2703
      %v3664 = vsel %vm1811, %v3632, %v2769
      %v3665 = vsel %vm1811, %v3633, %v2771
      %v3666 = vsel %vm1811, %v3634, %v2773
      %v3667 = vsel %vm1811, %v3635, %v2775
      %v3668 = vsel %vm1811, %v3636, %v2777
      %v3669 = vsel %vm1811, %v3637, %v2779
      %v3670 = vsel %vm1811, %v3638, %v2781
      %v3671 = vsel %vm1811, %v3639, %v2783
      %v3672 = vsel %vm1811, %v3640, %v2785
      %v3673 = vsel %vm1811, %v3641, %v2787
      %v3674 = vsel %vm1811, %v3642, %v2789
      %v3675 = vsel %vm1811, %v3643, %v2791
      %v3676 = vsel %vm1811, %v3644, %v2793
      %v3677 = vsel %vm1811, %v3645, %v2795
      %v3678 = vsel %vm1811, %v3646, %v2797
      %v3679 = vsel %vm1811, %v3647, %v2799
      %v3680 = vsel %vm1811, %v3648, %v2801
      %v3681 = vsel %vm1811, %v3649, %v2803
      %v3682 = vsel %vm1811, %v3650, %v2805
      %v3683 = vsel %vm1811, %v3651, %v2807
      %v3684 = vsel %vm1811, %v3652, %v2809
      %v3685 = vsel %vm1811, %v3653, %v2811
      %v3686 = vsel %vm1811, %v3654, %v2813
      %v3687 = vsel %vm1811, %v3655, %v2815
      %v3688 = vsel %vm1811, %v3656, %v2817
      %v3689 = vsel %vm1811, %v3657, %v2819
      %v3690 = vsel %vm1811, %v3658, %v2821
      %v3691 = vsel %vm1811, %v3659, %v2823
      %v3692 = vsel %vm1811, %v3660, %v2825
      %v3693 = vsel %vm1811, %v3661, %v2827
      %v3694 = vsel %vm1811, %v3662, %v2829
      %v3695 = vsel %vm1811, %v3663, %v2831
      %v3696 = vsel %vm1877, %v3664, %v2897
      %v3697 = vsel %vm1877, %v3665, %v2899
      %v3698 = vsel %vm1877, %v3666, %v2901
      %v3699 = vsel %vm1877, %v3667, %v2903
      %v3700 = vsel %vm1877, %v3668, %v2905
      %v3701 = vsel %vm1877, %v3669, %v2907
      %v3702 = vsel %vm1877, %v3670, %v2909
      %v3703 = vsel %vm1877, %v3671, %v2911
      %v3704 = vsel %vm1877, %v3672, %v2913
      %v3705 = vsel %vm1877, %v3673, %v2915
      %v3706 = vsel %vm1877, %v3674, %v2917
      %v3707 = vsel %vm1877, %v3675, %v2919
      %v3708 = vsel %vm1877, %v3676, %v2921
      %v3709 = vsel %vm1877, %v3677, %v2923
      %v3710 = vsel %vm1877, %v3678, %v2925
      %v3711 = vsel %vm1877, %v3679, %v2927
      %v3712 = vsel %vm1877, %v3680, %v2929
      %v3713 = vsel %vm1877, %v3681, %v2931
      %v3714 = vsel %vm1877, %v3682, %v2933
      %v3715 = vsel %vm1877, %v3683, %v2935
      %v3716 = vsel %vm1877, %v3684, %v2937
      %v3717 = vsel %vm1877, %v3685, %v2939
      %v3718 = vsel %vm1877, %v3686, %v2941
      %v3719 = vsel %vm1877, %v3687, %v2943
      %v3720 = vsel %vm1877, %v3688, %v2945
      %v3721 = vsel %vm1877, %v3689, %v2947
      %v3722 = vsel %vm1877, %v3690, %v2949
      %v3723 = vsel %vm1877, %v3691, %v2951
      %v3724 = vsel %vm1877, %v3692, %v2953
      %v3725 = vsel %vm1877, %v3693, %v2955
      %v3726 = vsel %vm1877, %v3694, %v2957
      %v3727 = vsel %vm1877, %v3695, %v2959
      %v3728 = vsel %vm1943, %v3696, %v3025
      %v3729 = vsel %vm1943, %v3697, %v3027
      %v3730 = vsel %vm1943, %v3698, %v3029
      %v3731 = vsel %vm1943, %v3699, %v3031
      %v3732 = vsel %vm1943, %v3700, %v3033
      %v3733 = vsel %vm1943, %v3701, %v3035
      %v3734 = vsel %vm1943, %v3702, %v3037
      %v3735 = vsel %vm1943, %v3703, %v3039
      %v3736 = vsel %vm1943, %v3704, %v3041
      %v3737 = vsel %vm1943, %v3705, %v3043
      %v3738 = vsel %vm1943, %v3706, %v3045
      %v3739 = vsel %vm1943, %v3707, %v3047
      %v3740 = vsel %vm1943, %v3708, %v3049
      %v3741 = vsel %vm1943, %v3709, %v3051
      %v3742 = vsel %vm1943, %v3710, %v3053
      %v3743 = vsel %vm1943, %v3711, %v3055
      %v3744 = vsel %vm1943, %v3712, %v3057
      %v3745 = vsel %vm1943, %v3713, %v3059
      %v3746 = vsel %vm1943, %v3714, %v3061
      %v3747 = vsel %vm1943, %v3715, %v3063
      %v3748 = vsel %vm1943, %v3716, %v3065
      %v3749 = vsel %vm1943, %v3717, %v3067
      %v3750 = vsel %vm1943, %v3718, %v3069
      %v3751 = vsel %vm1943, %v3719, %v3071
      %v3752 = vsel %vm1943, %v3720, %v3073
      %v3753 = vsel %vm1943, %v3721, %v3075
      %v3754 = vsel %vm1943, %v3722, %v3077
      %v3755 = vsel %vm1943, %v3723, %v3079
      %v3756 = vsel %vm1943, %v3724, %v3081
      %v3757 = vsel %vm1943, %v3725, %v3083
      %v3758 = vsel %vm1943, %v3726, %v3085
      %v3759 = vsel %vm1943, %v3727, %v3087
      %vm3760 = vcmask 326656
      %v3761 = vsel %vm3760, %v3728, %v3153
      %v3762 = vsel %vm3760, %v3729, %v3155
      %v3763 = vsel %vm3760, %v3730, %v3157
      %v3764 = vsel %vm3760, %v3731, %v3159
      %v3765 = vsel %vm3760, %v3732, %v3161
      %v3766 = vsel %vm3760, %v3733, %v3163
      %v3767 = vsel %vm3760, %v3734, %v3165
      %v3768 = vsel %vm3760, %v3735, %v3167
      %v3769 = vsel %vm3760, %v3736, %v3169
      %v3770 = vsel %vm3760, %v3737, %v3171
      %v3771 = vsel %vm3760, %v3738, %v3173
      %v3772 = vsel %vm3760, %v3739, %v3175
      %v3773 = vsel %vm3760, %v3740, %v3177
      %v3774 = vsel %vm3760, %v3741, %v3179
      %v3775 = vsel %vm3760, %v3742, %v3181
      %v3776 = vsel %vm3760, %v3743, %v3183
      %v3777 = vsel %vm3760, %v3744, %v3185
      %v3778 = vsel %vm3760, %v3745, %v3187
      %v3779 = vsel %vm3760, %v3746, %v3189
      %v3780 = vsel %vm3760, %v3747, %v3191
      %v3781 = vsel %vm3760, %v3748, %v3193
      %v3782 = vsel %vm3760, %v3749, %v3195
      %v3783 = vsel %vm3760, %v3750, %v3197
      %v3784 = vsel %vm3760, %v3751, %v3199
      %v3785 = vsel %vm3760, %v3752, %v3201
      %v3786 = vsel %vm3760, %v3753, %v3203
      %v3787 = vsel %vm3760, %v3754, %v3205
      %v3788 = vsel %vm3760, %v3755, %v3207
      %v3789 = vsel %vm3760, %v3756, %v3209
      %v3790 = vsel %vm3760, %v3757, %v3211
      %v3791 = vsel %vm3760, %v3758, %v3213
      %v3792 = vsel %vm3760, %v3759, %v3215
      %vm3793 = vcmask 392192
      %v3794 = vsel %vm3793, %v3761, %v3281
      %v3795 = vsel %vm3793, %v3762, %v3283
      %v3796 = vsel %vm3793, %v3763, %v3285
      %v3797 = vsel %vm3793, %v3764, %v3287
      %v3798 = vsel %vm3793, %v3765, %v3289
      %v3799 = vsel %vm3793, %v3766, %v3291
      %v3800 = vsel %vm3793, %v3767, %v3293
      %v3801 = vsel %vm3793, %v3768, %v3295
      %v3802 = vsel %vm3793, %v3769, %v3297
      %v3803 = vsel %vm3793, %v3770, %v3299
      %v3804 = vsel %vm3793, %v3771, %v3301
      %v3805 = vsel %vm3793, %v3772, %v3303
      %v3806 = vsel %vm3793, %v3773, %v3305
      %v3807 = vsel %vm3793, %v3774, %v3307
      %v3808 = vsel %vm3793, %v3775, %v3309
      %v3809 = vsel %vm3793, %v3776, %v3311
      %v3810 = vsel %vm3793, %v3777, %v3313
      %v3811 = vsel %vm3793, %v3778, %v3315
      %v3812 = vsel %vm3793, %v3779, %v3317
      %v3813 = vsel %vm3793, %v3780, %v3319
      %v3814 = vsel %vm3793, %v3781, %v3321
      %v3815 = vsel %vm3793, %v3782, %v3323
      %v3816 = vsel %vm3793, %v3783, %v3325
      %v3817 = vsel %vm3793, %v3784, %v3327
      %v3818 = vsel %vm3793, %v3785, %v3329
      %v3819 = vsel %vm3793, %v3786, %v3331
      %v3820 = vsel %vm3793, %v3787, %v3333
      %v3821 = vsel %vm3793, %v3788, %v3335
      %v3822 = vsel %vm3793, %v3789, %v3337
      %v3823 = vsel %vm3793, %v3790, %v3339
      %v3824 = vsel %vm3793, %v3791, %v3341
      %v3825 = vsel %vm3793, %v3792, %v3343
      %vm3826 = vcmask 457728
      %v3827 = vsel %vm3826, %v3794, %v3409
      %v3828 = vsel %vm3826, %v3795, %v3411
      %v3829 = vsel %vm3826, %v3796, %v3413
      %v3830 = vsel %vm3826, %v3797, %v3415
      %v3831 = vsel %vm3826, %v3798, %v3417
      %v3832 = vsel %vm3826, %v3799, %v3419
      %v3833 = vsel %vm3826, %v3800, %v3421
      %v3834 = vsel %vm3826, %v3801, %v3423
      %v3835 = vsel %vm3826, %v3802, %v3425
      %v3836 = vsel %vm3826, %v3803, %v3427
      %v3837 = vsel %vm3826, %v3804, %v3429
      %v3838 = vsel %vm3826, %v3805, %v3431
      %v3839 = vsel %vm3826, %v3806, %v3433
      %v3840 = vsel %vm3826, %v3807, %v3435
      %v3841 = vsel %vm3826, %v3808, %v3437
      %v3842 = vsel %vm3826, %v3809, %v3439
      %v3843 = vsel %vm3826, %v3810, %v3441
      %v3844 = vsel %vm3826, %v3811, %v3443
      %v3845 = vsel %vm3826, %v3812, %v3445
      %v3846 = vsel %vm3826, %v3813, %v3447
      %v3847 = vsel %vm3826, %v3814, %v3449
      %v3848 = vsel %vm3826, %v3815, %v3451
      %v3849 = vsel %vm3826, %v3816, %v3453
      %v3850 = vsel %vm3826, %v3817, %v3455
      %v3851 = vsel %vm3826, %v3818, %v3457
      %v3852 = vsel %vm3826, %v3819, %v3459
      %v3853 = vsel %vm3826, %v3820, %v3461
      %v3854 = vsel %vm3826, %v3821, %v3463
      %v3855 = vsel %vm3826, %v3822, %v3465
      %v3856 = vsel %vm3826, %v3823, %v3467
      %v3857 = vsel %vm3826, %v3824, %v3469
      %v3858 = vsel %vm3826, %v3825, %v3471
      %vm3859 = vcmask 523264
      %v3860 = vsel %vm3859, %v3827, %v3537
      %v3861 = vsel %vm3859, %v3828, %v3539
      %v3862 = vsel %vm3859, %v3829, %v3541
      %v3863 = vsel %vm3859, %v3830, %v3543
      %v3864 = vsel %vm3859, %v3831, %v3545
      %v3865 = vsel %vm3859, %v3832, %v3547
      %v3866 = vsel %vm3859, %v3833, %v3549
      %v3867 = vsel %vm3859, %v3834, %v3551
      %v3868 = vsel %vm3859, %v3835, %v3553
      %v3869 = vsel %vm3859, %v3836, %v3555
      %v3870 = vsel %vm3859, %v3837, %v3557
      %v3871 = vsel %vm3859, %v3838, %v3559
      %v3872 = vsel %vm3859, %v3839, %v3561
      %v3873 = vsel %vm3859, %v3840, %v3563
      %v3874 = vsel %vm3859, %v3841, %v3565
      %v3875 = vsel %vm3859, %v3842, %v3567
      %v3876 = vsel %vm3859, %v3843, %v3569
      %v3877 = vsel %vm3859, %v3844, %v3571
      %v3878 = vsel %vm3859, %v3845, %v3573
      %v3879 = vsel %vm3859, %v3846, %v3575
      %v3880 = vsel %vm3859, %v3847, %v3577
      %v3881 = vsel %vm3859, %v3848, %v3579
      %v3882 = vsel %vm3859, %v3849, %v3581
      %v3883 = vsel %vm3859, %v3850, %v3583
      %v3884 = vsel %vm3859, %v3851, %v3585
      %v3885 = vsel %vm3859, %v3852, %v3587
      %v3886 = vsel %vm3859, %v3853, %v3589
      %v3887 = vsel %vm3859, %v3854, %v3591
      %v3888 = vsel %vm3859, %v3855, %v3593
      %v3889 = vsel %vm3859, %v3856, %v3595
      %v3890 = vsel %vm3859, %v3857, %v3597
      %v3891 = vsel %vm3859, %v3858, %v3599
      %v3892 = vld [vmem:[%s3] sm:$0xff]
      %v3893 = vld [vmem:[%s3 + $0x8] sm:$0xff]
      %v3894 = vld [vmem:[%s3 + $0x10] sm:$0xff]
      %v3895 = vld [vmem:[%s3 + $0x18] sm:$0xff]
      %v3896 = vld [vmem:[%s3 + $0x20] sm:$0xff]
      %v3897 = vld [vmem:[%s3 + $0x28] sm:$0xff]
      %v3898 = vld [vmem:[%s3 + $0x30] sm:$0xff]
      %v3899 = vld [vmem:[%s3 + $0x38] sm:$0xff]
      %v3900 = vld [vmem:[%s3 + $0x40] sm:$0xff]
      %v3901 = vld [vmem:[%s3 + $0x48] sm:$0xff]
      %v3902 = vld [vmem:[%s3 + $0x50] sm:$0xff]
      %v3903 = vld [vmem:[%s3 + $0x58] sm:$0xff]
      %v3904 = vld [vmem:[%s3 + $0x60] sm:$0xff]
      %v3905 = vld [vmem:[%s3 + $0x68] sm:$0xff]
      %v3906 = vld [vmem:[%s3 + $0x70] sm:$0xff]
      %v3907 = vld [vmem:[%s3 + $0x78] sm:$0xff]
      %v3908 = vld [vmem:[%s3 + $0x80] sm:$0xff]
      %v3909 = vld [vmem:[%s3 + $0x88] sm:$0xff]
      %v3910 = vld [vmem:[%s4] sm:$0x3]
      %v3912 = vperm.slane %v3910, 0
      %v3913 = vperm.slane %v3910, 1
      %vm3916 = vcmask 588800
      %v3918 = vsel %vm3916, %v3860, 0
      %v3921 = vsel %vm3916, %v3861, 0
      %v3924 = vsel %vm3916, %v3862, 0
      %v3927 = vsel %vm3916, %v3863, 0
      %v3930 = vsel %vm3916, %v3864, 0
      %v3933 = vsel %vm3916, %v3865, 0
      %v3936 = vsel %vm3916, %v3866, 0
      %v3939 = vsel %vm3916, %v3867, 0
      %v3942 = vsel %vm3916, %v3868, 0
      %v3945 = vsel %vm3916, %v3869, 0
      %v3948 = vsel %vm3916, %v3870, 0
      %v3951 = vsel %vm3916, %v3871, 0
      %v3954 = vsel %vm3916, %v3872, 0
      %v3957 = vsel %vm3916, %v3873, 0
      %v3960 = vsel %vm3916, %v3874, 0
      %v3963 = vsel %vm3916, %v3875, 0
      %v3966 = vsel %vm3916, %v3876, 0
      %v3969 = vsel %vm3916, %v3877, 0
      %v3972 = vsel %vm3916, %v3878, 0
      %v3975 = vsel %vm3916, %v3879, 0
      %v3978 = vsel %vm3916, %v3880, 0
      %v3981 = vsel %vm3916, %v3881, 0
      %v3984 = vsel %vm3916, %v3882, 0
      %v3987 = vsel %vm3916, %v3883, 0
      %v3990 = vsel %vm3916, %v3884, 0
      %v3993 = vsel %vm3916, %v3885, 0
      %v3996 = vsel %vm3916, %v3886, 0
      %v3999 = vsel %vm3916, %v3887, 0
      %v4002 = vsel %vm3916, %v3888, 0
      %v4005 = vsel %vm3916, %v3889, 0
      %v4008 = vsel %vm3916, %v3890, 0
      %v4011 = vsel %vm3916, %v3891, 0
      %4013 = vmatpush.msra.mxu0 0.0
      %4014 = vmatpush.msra.mxu0 0.0
      %4015 = vmatpush.msra.mxu0 0.0
      %4016 = vmatpush.msra.mxu0 0.0
      %4017 = vmatpush.msra.mxu0 0.0
      %4018 = vmatpush.msra.mxu0 0.0
      %4019 = vmatpush.msra.mxu0 0.0
      %4020 = vmatpush.msra.mxu0 %v3908
      %4021 = vmatpush.msra.mxu0 %v3906
      %4022 = vmatpush.msra.mxu0 %v3904
      %4023 = vmatpush.msra.mxu0 %v3902
      %4024 = vmatpush.msra.mxu0 %v3900
      %4025 = vmatpush.msra.mxu0 %v3898
      %4026 = vmatpush.msra.mxu0 %v3896
      %4027 = vmatpush.msra.mxu0 %v3894
      %4028 = vmatpush.msra.mxu0 %v3892
      %4029 = vmatmul.f32.gmra.mxu0 %v3918
      %v4030 = vpop.f32.mrf.mxu0
      %v4031 = vadd.f32 %v3912, %v4030
      %4032 = vmatmul.f32.gmra.mxu0 %v3921
      %v4033 = vpop.f32.mrf.mxu0
      %v4034 = vadd.f32 %v3912, %v4033
      %4035 = vmatmul.f32.gmra.mxu0 %v3924
      %v4036 = vpop.f32.mrf.mxu0
      %v4037 = vadd.f32 %v3912, %v4036
      %4038 = vmatmul.f32.gmra.mxu0 %v3927
      %v4039 = vpop.f32.mrf.mxu0
      %v4040 = vadd.f32 %v3912, %v4039
      %4041 = vmatmul.f32.gmra.mxu0 %v3930
      %v4042 = vpop.f32.mrf.mxu0
      %v4043 = vadd.f32 %v3912, %v4042
      %4044 = vmatmul.f32.gmra.mxu0 %v3933
      %v4045 = vpop.f32.mrf.mxu0
      %v4046 = vadd.f32 %v3912, %v4045
      %4047 = vmatmul.f32.gmra.mxu0 %v3936
      %v4048 = vpop.f32.mrf.mxu0
      %v4049 = vadd.f32 %v3912, %v4048
      %4050 = vmatmul.f32.gmra.mxu0 %v3939
      %v4051 = vpop.f32.mrf.mxu0
      %v4052 = vadd.f32 %v3912, %v4051
      %4053 = vmatmul.f32.gmra.mxu0 %v3942
      %v4054 = vpop.f32.mrf.mxu0
      %v4055 = vadd.f32 %v3912, %v4054
      %4056 = vmatmul.f32.gmra.mxu0 %v3945
      %v4057 = vpop.f32.mrf.mxu0
      %v4058 = vadd.f32 %v3912, %v4057
      %4059 = vmatmul.f32.gmra.mxu0 %v3948
      %v4060 = vpop.f32.mrf.mxu0
      %v4061 = vadd.f32 %v3912, %v4060
      %4062 = vmatmul.f32.gmra.mxu0 %v3951
      %v4063 = vpop.f32.mrf.mxu0
      %v4064 = vadd.f32 %v3912, %v4063
      %4065 = vmatmul.f32.gmra.mxu0 %v3954
      %v4066 = vpop.f32.mrf.mxu0
      %v4067 = vadd.f32 %v3912, %v4066
      %4068 = vmatmul.f32.gmra.mxu0 %v3957
      %v4069 = vpop.f32.mrf.mxu0
      %v4070 = vadd.f32 %v3912, %v4069
      %4071 = vmatmul.f32.gmra.mxu0 %v3960
      %v4072 = vpop.f32.mrf.mxu0
      %v4073 = vadd.f32 %v3912, %v4072
      %4074 = vmatmul.f32.gmra.mxu0 %v3963
      %v4075 = vpop.f32.mrf.mxu0
      %v4076 = vadd.f32 %v3912, %v4075
      %4077 = vmatmul.f32.gmra.mxu0 %v3966
      %v4078 = vpop.f32.mrf.mxu0
      %v4079 = vadd.f32 %v3912, %v4078
      %4080 = vmatmul.f32.gmra.mxu0 %v3969
      %v4081 = vpop.f32.mrf.mxu0
      %v4082 = vadd.f32 %v3912, %v4081
      %4083 = vmatmul.f32.gmra.mxu0 %v3972
      %v4084 = vpop.f32.mrf.mxu0
      %v4085 = vadd.f32 %v3912, %v4084
      %4086 = vmatmul.f32.gmra.mxu0 %v3975
      %v4087 = vpop.f32.mrf.mxu0
      %v4088 = vadd.f32 %v3912, %v4087
      %4089 = vmatmul.f32.gmra.mxu0 %v3978
      %v4090 = vpop.f32.mrf.mxu0
      %v4091 = vadd.f32 %v3912, %v4090
      %4092 = vmatmul.f32.gmra.mxu0 %v3981
      %v4093 = vpop.f32.mrf.mxu0
      %v4094 = vadd.f32 %v3912, %v4093
      %4095 = vmatmul.f32.gmra.mxu0 %v3984
      %v4096 = vpop.f32.mrf.mxu0
      %v4097 = vadd.f32 %v3912, %v4096
      %4098 = vmatmul.f32.gmra.mxu0 %v3987
      %v4099 = vpop.f32.mrf.mxu0
      %v4100 = vadd.f32 %v3912, %v4099
      %4101 = vmatmul.f32.gmra.mxu0 %v3990
      %v4102 = vpop.f32.mrf.mxu0
      %v4103 = vadd.f32 %v3912, %v4102
      %4104 = vmatmul.f32.gmra.mxu0 %v3993
      %v4105 = vpop.f32.mrf.mxu0
      %v4106 = vadd.f32 %v3912, %v4105
      %4107 = vmatmul.f32.gmra.mxu0 %v3996
      %v4108 = vpop.f32.mrf.mxu0
      %v4109 = vadd.f32 %v3912, %v4108
      %4110 = vmatmul.f32.gmra.mxu0 %v3999
      %v4111 = vpop.f32.mrf.mxu0
      %v4112 = vadd.f32 %v3912, %v4111
      %4113 = vmatmul.f32.gmra.mxu0 %v4002
      %v4114 = vpop.f32.mrf.mxu0
      %v4115 = vadd.f32 %v3912, %v4114
      %4116 = vmatmul.f32.gmra.mxu0 %v4005
      %v4117 = vpop.f32.mrf.mxu0
      %v4118 = vadd.f32 %v3912, %v4117
      %4119 = vmatmul.f32.gmra.mxu0 %v4008
      %v4120 = vpop.f32.mrf.mxu0
      %v4121 = vadd.f32 %v3912, %v4120
      %4122 = vmatmul.f32.gmra.mxu0 %v4011
      %v4123 = vpop.f32.mrf.mxu0
      %v4124 = vadd.f32 %v3912, %v4123
      %4125 = vdwg.mxu0
      %4126 = vmatpush.msra.mxu0 0.0
      %4127 = vmatpush.msra.mxu0 0.0
      %4128 = vmatpush.msra.mxu0 0.0
      %4129 = vmatpush.msra.mxu0 0.0
      %4130 = vmatpush.msra.mxu0 0.0
      %4131 = vmatpush.msra.mxu0 0.0
      %4132 = vmatpush.msra.mxu0 0.0
      %4133 = vmatpush.msra.mxu0 %v3909
      %4134 = vmatpush.msra.mxu0 %v3907
      %4135 = vmatpush.msra.mxu0 %v3905
      %4136 = vmatpush.msra.mxu0 %v3903
      %4137 = vmatpush.msra.mxu0 %v3901
      %4138 = vmatpush.msra.mxu0 %v3899
      %4139 = vmatpush.msra.mxu0 %v3897
      %4140 = vmatpush.msra.mxu0 %v3895
      %4141 = vmatpush.msra.mxu0 %v3893
      %4142 = vmatmul.f32.gmra.mxu0 %v3918
      %v4143 = vpop.f32.mrf.mxu0
      %v4144 = vadd.f32 %v3913, %v4143
      %4145 = vmatmul.f32.gmra.mxu0 %v3921
      %v4146 = vpop.f32.mrf.mxu0
      %v4147 = vadd.f32 %v3913, %v4146
      %4148 = vmatmul.f32.gmra.mxu0 %v3924
      %v4149 = vpop.f32.mrf.mxu0
      %v4150 = vadd.f32 %v3913, %v4149
      %4151 = vmatmul.f32.gmra.mxu0 %v3927
      %v4152 = vpop.f32.mrf.mxu0
      %v4153 = vadd.f32 %v3913, %v4152
      %4154 = vmatmul.f32.gmra.mxu0 %v3930
      %v4155 = vpop.f32.mrf.mxu0
      %v4156 = vadd.f32 %v3913, %v4155
      %4157 = vmatmul.f32.gmra.mxu0 %v3933
      %v4158 = vpop.f32.mrf.mxu0
      %v4159 = vadd.f32 %v3913, %v4158
      %4160 = vmatmul.f32.gmra.mxu0 %v3936
      %v4161 = vpop.f32.mrf.mxu0
      %v4162 = vadd.f32 %v3913, %v4161
      %4163 = vmatmul.f32.gmra.mxu0 %v3939
      %v4164 = vpop.f32.mrf.mxu0
      %v4165 = vadd.f32 %v3913, %v4164
      %4166 = vmatmul.f32.gmra.mxu0 %v3942
      %v4167 = vpop.f32.mrf.mxu0
      %v4168 = vadd.f32 %v3913, %v4167
      %4169 = vmatmul.f32.gmra.mxu0 %v3945
      %v4170 = vpop.f32.mrf.mxu0
      %v4171 = vadd.f32 %v3913, %v4170
      %4172 = vmatmul.f32.gmra.mxu0 %v3948
      %v4173 = vpop.f32.mrf.mxu0
      %v4174 = vadd.f32 %v3913, %v4173
      %4175 = vmatmul.f32.gmra.mxu0 %v3951
      %v4176 = vpop.f32.mrf.mxu0
      %v4177 = vadd.f32 %v3913, %v4176
      %4178 = vmatmul.f32.gmra.mxu0 %v3954
      %v4179 = vpop.f32.mrf.mxu0
      %v4180 = vadd.f32 %v3913, %v4179
      %4181 = vmatmul.f32.gmra.mxu0 %v3957
      %v4182 = vpop.f32.mrf.mxu0
      %v4183 = vadd.f32 %v3913, %v4182
      %4184 = vmatmul.f32.gmra.mxu0 %v3960
      %v4185 = vpop.f32.mrf.mxu0
      %v4186 = vadd.f32 %v3913, %v4185
      %4187 = vmatmul.f32.gmra.mxu0 %v3963
      %v4188 = vpop.f32.mrf.mxu0
      %v4189 = vadd.f32 %v3913, %v4188
      %4190 = vmatmul.f32.gmra.mxu0 %v3966
      %v4191 = vpop.f32.mrf.mxu0
      %v4192 = vadd.f32 %v3913, %v4191
      %4193 = vmatmul.f32.gmra.mxu0 %v3969
      %v4194 = vpop.f32.mrf.mxu0
      %v4195 = vadd.f32 %v3913, %v4194
      %4196 = vmatmul.f32.gmra.mxu0 %v3972
      %v4197 = vpop.f32.mrf.mxu0
      %v4198 = vadd.f32 %v3913, %v4197
      %4199 = vmatmul.f32.gmra.mxu0 %v3975
      %v4200 = vpop.f32.mrf.mxu0
      %v4201 = vadd.f32 %v3913, %v4200
      %4202 = vmatmul.f32.gmra.mxu0 %v3978
      %v4203 = vpop.f32.mrf.mxu0
      %v4204 = vadd.f32 %v3913, %v4203
      %4205 = vmatmul.f32.gmra.mxu0 %v3981
      %v4206 = vpop.f32.mrf.mxu0
      %v4207 = vadd.f32 %v3913, %v4206
      %4208 = vmatmul.f32.gmra.mxu0 %v3984
      %v4209 = vpop.f32.mrf.mxu0
      %v4210 = vadd.f32 %v3913, %v4209
      %4211 = vmatmul.f32.gmra.mxu0 %v3987
      %v4212 = vpop.f32.mrf.mxu0
      %v4213 = vadd.f32 %v3913, %v4212
      %4214 = vmatmul.f32.gmra.mxu0 %v3990
      %v4215 = vpop.f32.mrf.mxu0
      %v4216 = vadd.f32 %v3913, %v4215
      %4217 = vmatmul.f32.gmra.mxu0 %v3993
      %v4218 = vpop.f32.mrf.mxu0
      %v4219 = vadd.f32 %v3913, %v4218
      %4220 = vmatmul.f32.gmra.mxu0 %v3996
      %v4221 = vpop.f32.mrf.mxu0
      %v4222 = vadd.f32 %v3913, %v4221
      %4223 = vmatmul.f32.gmra.mxu0 %v3999
      %v4224 = vpop.f32.mrf.mxu0
      %v4225 = vadd.f32 %v3913, %v4224
      %4226 = vmatmul.f32.gmra.mxu0 %v4002
      %v4227 = vpop.f32.mrf.mxu0
      %v4228 = vadd.f32 %v3913, %v4227
      %4229 = vmatmul.f32.gmra.mxu0 %v4005
      %v4230 = vpop.f32.mrf.mxu0
      %v4231 = vadd.f32 %v3913, %v4230
      %4232 = vmatmul.f32.gmra.mxu0 %v4008
      %v4233 = vpop.f32.mrf.mxu0
      %v4234 = vadd.f32 %v3913, %v4233
      %4235 = vmatmul.f32.gmra.mxu0 %v4011
      %v4236 = vpop.f32.mrf.mxu0
      %v4237 = vadd.f32 %v3913, %v4236
      %4238 = vdwg.mxu0
      %v4239 = vmax.f32 %v4031, 0.0
      %v4240 = vmax.f32 %v4144, 0.0
      %v4241 = vmax.f32 %v4034, 0.0
      %v4242 = vmax.f32 %v4147, 0.0
      %v4243 = vmax.f32 %v4037, 0.0
      %v4244 = vmax.f32 %v4150, 0.0
      %v4245 = vmax.f32 %v4040, 0.0
      %v4246 = vmax.f32 %v4153, 0.0
      %v4247 = vmax.f32 %v4043, 0.0
      %v4248 = vmax.f32 %v4156, 0.0
      %v4249 = vmax.f32 %v4046, 0.0
      %v4250 = vmax.f32 %v4159, 0.0
      %v4251 = vmax.f32 %v4049, 0.0
      %v4252 = vmax.f32 %v4162, 0.0
      %v4253 = vmax.f32 %v4052, 0.0
      %v4254 = vmax.f32 %v4165, 0.0
      %v4255 = vmax.f32 %v4055, 0.0
      %v4256 = vmax.f32 %v4168, 0.0
      %v4257 = vmax.f32 %v4058, 0.0
      %v4258 = vmax.f32 %v4171, 0.0
      %v4259 = vmax.f32 %v4061, 0.0
      %v4260 = vmax.f32 %v4174, 0.0
      %v4261 = vmax.f32 %v4064, 0.0
      %v4262 = vmax.f32 %v4177, 0.0
      %v4263 = vmax.f32 %v4067, 0.0
      %v4264 = vmax.f32 %v4180, 0.0
      %v4265 = vmax.f32 %v4070, 0.0
      %v4266 = vmax.f32 %v4183, 0.0
      %v4267 = vmax.f32 %v4073, 0.0
      %v4268 = vmax.f32 %v4186, 0.0
      %v4269 = vmax.f32 %v4076, 0.0
      %v4270 = vmax.f32 %v4189, 0.0
      %v4271 = vmax.f32 %v4079, 0.0
      %v4272 = vmax.f32 %v4192, 0.0
      %v4273 = vmax.f32 %v4082, 0.0
      %v4274 = vmax.f32 %v4195, 0.0
      %v4275 = vmax.f32 %v4085, 0.0
      %v4276 = vmax.f32 %v4198, 0.0
      %v4277 = vmax.f32 %v4088, 0.0
      %v4278 = vmax.f32 %v4201, 0.0
      %v4279 = vmax.f32 %v4091, 0.0
      %v4280 = vmax.f32 %v4204, 0.0
      %v4281 = vmax.f32 %v4094, 0.0
      %v4282 = vmax.f32 %v4207, 0.0
      %v4283 = vmax.f32 %v4097, 0.0
      %v4284 = vmax.f32 %v4210, 0.0
      %v4285 = vmax.f32 %v4100, 0.0
      %v4286 = vmax.f32 %v4213, 0.0
      %v4287 = vmax.f32 %v4103, 0.0
      %v4288 = vmax.f32 %v4216, 0.0
      %v4289 = vmax.f32 %v4106, 0.0
      %v4290 = vmax.f32 %v4219, 0.0
      %v4291 = vmax.f32 %v4109, 0.0
      %v4292 = vmax.f32 %v4222, 0.0
      %v4293 = vmax.f32 %v4112, 0.0
      %v4294 = vmax.f32 %v4225, 0.0
      %v4295 = vmax.f32 %v4115, 0.0
      %v4296 = vmax.f32 %v4228, 0.0
      %v4297 = vmax.f32 %v4118, 0.0
      %v4298 = vmax.f32 %v4231, 0.0
      %v4299 = vmax.f32 %v4121, 0.0
      %v4300 = vmax.f32 %v4234, 0.0
      %v4301 = vmax.f32 %v4124, 0.0
      %v4302 = vmax.f32 %v4237, 0.0
      %v4303 = vld [vmem:[%s5] sm:$0xff]
      %v4304 = vld [vmem:[%s5 + $0x8] sm:$0xff]
      %v4305 = vld [vmem:[%s5 + $0x10] sm:$0xff]
      %v4306 = vld [vmem:[%s5 + $0x18] sm:$0xff]
      %v4307 = vld [vmem:[%s5 + $0x20] sm:$0xff]
      %v4308 = vld [vmem:[%s5 + $0x28] sm:$0xff]
      %v4309 = vld [vmem:[%s5 + $0x30] sm:$0xff]
      %v4310 = vld [vmem:[%s5 + $0x38] sm:$0xff]
      %v4311 = vld [vmem:[%s5 + $0x40] sm:$0xff]
      %v4312 = vld [vmem:[%s5 + $0x48] sm:$0xff]
      %v4313 = vld [vmem:[%s5 + $0x50] sm:$0xff]
      %v4314 = vld [vmem:[%s5 + $0x58] sm:$0xff]
      %v4315 = vld [vmem:[%s5 + $0x60] sm:$0xff]
      %v4316 = vld [vmem:[%s5 + $0x68] sm:$0xff]
      %v4317 = vld [vmem:[%s5 + $0x70] sm:$0xff]
      %v4318 = vld [vmem:[%s5 + $0x78] sm:$0xff]
      %v4319 = vld [vmem:[%s5 + $0x80] sm:$0xff]
      %v4320 = vld [vmem:[%s5 + $0x88] sm:$0xff]
      %v4321 = vld [vmem:[%s5 + $0x90] sm:$0xff]
      %v4322 = vld [vmem:[%s5 + $0x98] sm:$0xff]
      %v4323 = vld [vmem:[%s5 + $0xa0] sm:$0xff]
      %v4324 = vld [vmem:[%s5 + $0xa8] sm:$0xff]
      %v4325 = vld [vmem:[%s5 + $0xb0] sm:$0xff]
      %v4326 = vld [vmem:[%s5 + $0xb8] sm:$0xff]
      %v4327 = vld [vmem:[%s5 + $0xc0] sm:$0xff]
      %v4328 = vld [vmem:[%s5 + $0xc8] sm:$0xff]
      %v4329 = vld [vmem:[%s5 + $0xd0] sm:$0xff]
      %v4330 = vld [vmem:[%s5 + $0xd8] sm:$0xff]
      %v4331 = vld [vmem:[%s5 + $0xe0] sm:$0xff]
      %v4332 = vld [vmem:[%s5 + $0xe8] sm:$0xff]
      %v4333 = vld [vmem:[%s5 + $0xf0] sm:$0xff]
      %v4334 = vld [vmem:[%s5 + $0xf8] sm:$0xff]
      %v4335 = vld [vmem:[%s6] sm:$0x1]
      %v4337 = vperm.slane %v4335, 0
      %4339 = vmatpush.msra.mxu0 %v4318
      %4340 = vmatpush.msra.mxu0 %v4317
      %4341 = vmatpush.msra.mxu0 %v4316
      %4342 = vmatpush.msra.mxu0 %v4315
      %4343 = vmatpush.msra.mxu0 %v4314
      %4344 = vmatpush.msra.mxu0 %v4313
      %4345 = vmatpush.msra.mxu0 %v4312
      %4346 = vmatpush.msra.mxu0 %v4311
      %4347 = vmatpush.msra.mxu0 %v4310
      %4348 = vmatpush.msra.mxu0 %v4309
      %4349 = vmatpush.msra.mxu0 %v4308
      %4350 = vmatpush.msra.mxu0 %v4307
      %4351 = vmatpush.msra.mxu0 %v4306
      %4352 = vmatpush.msra.mxu0 %v4305
      %4353 = vmatpush.msra.mxu0 %v4304
      %4354 = vmatpush.msra.mxu0 %v4303
      %4355 = vmatmul.f32.gmra.mxu0 %v4239
      %v4356 = vpop.f32.mrf.mxu0
      %v4357 = vadd.f32 %v4337, %v4356
      %4358 = vmatmul.f32.gmra.mxu0 %v4241
      %v4359 = vpop.f32.mrf.mxu0
      %v4360 = vadd.f32 %v4337, %v4359
      %4361 = vmatmul.f32.gmra.mxu0 %v4243
      %v4362 = vpop.f32.mrf.mxu0
      %v4363 = vadd.f32 %v4337, %v4362
      %4364 = vmatmul.f32.gmra.mxu0 %v4245
      %v4365 = vpop.f32.mrf.mxu0
      %v4366 = vadd.f32 %v4337, %v4365
      %4367 = vmatmul.f32.gmra.mxu0 %v4247
      %v4368 = vpop.f32.mrf.mxu0
      %v4369 = vadd.f32 %v4337, %v4368
      %4370 = vmatmul.f32.gmra.mxu0 %v4249
      %v4371 = vpop.f32.mrf.mxu0
      %v4372 = vadd.f32 %v4337, %v4371
      %4373 = vmatmul.f32.gmra.mxu0 %v4251
      %v4374 = vpop.f32.mrf.mxu0
      %v4375 = vadd.f32 %v4337, %v4374
      %4376 = vmatmul.f32.gmra.mxu0 %v4253
      %v4377 = vpop.f32.mrf.mxu0
      %v4378 = vadd.f32 %v4337, %v4377
      %4379 = vmatmul.f32.gmra.mxu0 %v4255
      %v4380 = vpop.f32.mrf.mxu0
      %v4381 = vadd.f32 %v4337, %v4380
      %4382 = vmatmul.f32.gmra.mxu0 %v4257
      %v4383 = vpop.f32.mrf.mxu0
      %v4384 = vadd.f32 %v4337, %v4383
      %4385 = vmatmul.f32.gmra.mxu0 %v4259
      %v4386 = vpop.f32.mrf.mxu0
      %v4387 = vadd.f32 %v4337, %v4386
      %4388 = vmatmul.f32.gmra.mxu0 %v4261
      %v4389 = vpop.f32.mrf.mxu0
      %v4390 = vadd.f32 %v4337, %v4389
      %4391 = vmatmul.f32.gmra.mxu0 %v4263
      %v4392 = vpop.f32.mrf.mxu0
      %v4393 = vadd.f32 %v4337, %v4392
      %4394 = vmatmul.f32.gmra.mxu0 %v4265
      %v4395 = vpop.f32.mrf.mxu0
      %v4396 = vadd.f32 %v4337, %v4395
      %4397 = vmatmul.f32.gmra.mxu0 %v4267
      %v4398 = vpop.f32.mrf.mxu0
      %v4399 = vadd.f32 %v4337, %v4398
      %4400 = vmatmul.f32.gmra.mxu0 %v4269
      %v4401 = vpop.f32.mrf.mxu0
      %v4402 = vadd.f32 %v4337, %v4401
      %4403 = vmatmul.f32.gmra.mxu0 %v4271
      %v4404 = vpop.f32.mrf.mxu0
      %v4405 = vadd.f32 %v4337, %v4404
      %4406 = vmatmul.f32.gmra.mxu0 %v4273
      %v4407 = vpop.f32.mrf.mxu0
      %v4408 = vadd.f32 %v4337, %v4407
      %4409 = vmatmul.f32.gmra.mxu0 %v4275
      %v4410 = vpop.f32.mrf.mxu0
      %v4411 = vadd.f32 %v4337, %v4410
      %4412 = vmatmul.f32.gmra.mxu0 %v4277
      %v4413 = vpop.f32.mrf.mxu0
      %v4414 = vadd.f32 %v4337, %v4413
      %4415 = vmatmul.f32.gmra.mxu0 %v4279
      %v4416 = vpop.f32.mrf.mxu0
      %v4417 = vadd.f32 %v4337, %v4416
      %4418 = vmatmul.f32.gmra.mxu0 %v4281
      %v4419 = vpop.f32.mrf.mxu0
      %v4420 = vadd.f32 %v4337, %v4419
      %4421 = vmatmul.f32.gmra.mxu0 %v4283
      %v4422 = vpop.f32.mrf.mxu0
      %v4423 = vadd.f32 %v4337, %v4422
      %4424 = vmatmul.f32.gmra.mxu0 %v4285
      %v4425 = vpop.f32.mrf.mxu0
      %v4426 = vadd.f32 %v4337, %v4425
      %4427 = vmatmul.f32.gmra.mxu0 %v4287
      %v4428 = vpop.f32.mrf.mxu0
      %v4429 = vadd.f32 %v4337, %v4428
      %4430 = vmatmul.f32.gmra.mxu0 %v4289
      %v4431 = vpop.f32.mrf.mxu0
      %v4432 = vadd.f32 %v4337, %v4431
      %4433 = vmatmul.f32.gmra.mxu0 %v4291
      %v4434 = vpop.f32.mrf.mxu0
      %v4435 = vadd.f32 %v4337, %v4434
      %4436 = vmatmul.f32.gmra.mxu0 %v4293
      %v4437 = vpop.f32.mrf.mxu0
      %v4438 = vadd.f32 %v4337, %v4437
      %4439 = vmatmul.f32.gmra.mxu0 %v4295
      %v4440 = vpop.f32.mrf.mxu0
      %v4441 = vadd.f32 %v4337, %v4440
      %4442 = vmatmul.f32.gmra.mxu0 %v4297
      %v4443 = vpop.f32.mrf.mxu0
      %v4444 = vadd.f32 %v4337, %v4443
      %4445 = vmatmul.f32.gmra.mxu0 %v4299
      %v4446 = vpop.f32.mrf.mxu0
      %v4447 = vadd.f32 %v4337, %v4446
      %4448 = vmatmul.f32.gmra.mxu0 %v4301
      %v4449 = vpop.f32.mrf.mxu0
      %v4450 = vadd.f32 %v4337, %v4449
      %4451 = vdwg.mxu0
      %4452 = vmatpush.msra.mxu0 %v4334
      %4453 = vmatpush.msra.mxu0 %v4333
      %4454 = vmatpush.msra.mxu0 %v4332
      %4455 = vmatpush.msra.mxu0 %v4331
      %4456 = vmatpush.msra.mxu0 %v4330
      %4457 = vmatpush.msra.mxu0 %v4329
      %4458 = vmatpush.msra.mxu0 %v4328
      %4459 = vmatpush.msra.mxu0 %v4327
      %4460 = vmatpush.msra.mxu0 %v4326
      %4461 = vmatpush.msra.mxu0 %v4325
      %4462 = vmatpush.msra.mxu0 %v4324
      %4463 = vmatpush.msra.mxu0 %v4323
      %4464 = vmatpush.msra.mxu0 %v4322
      %4465 = vmatpush.msra.mxu0 %v4321
      %4466 = vmatpush.msra.mxu0 %v4320
      %4467 = vmatpush.msra.mxu0 %v4319
      %4468 = vmatmul.f32.gmra.mxu0 %v4240
      %v4469 = vpop.f32.mrf.mxu0
      %v4470 = vadd.f32 %v4357, %v4469
      %4471 = vmatmul.f32.gmra.mxu0 %v4242
      %v4472 = vpop.f32.mrf.mxu0
      %v4473 = vadd.f32 %v4360, %v4472
      %4474 = vmatmul.f32.gmra.mxu0 %v4244
      %v4475 = vpop.f32.mrf.mxu0
      %v4476 = vadd.f32 %v4363, %v4475
      %4477 = vmatmul.f32.gmra.mxu0 %v4246
      %v4478 = vpop.f32.mrf.mxu0
      %v4479 = vadd.f32 %v4366, %v4478
      %4480 = vmatmul.f32.gmra.mxu0 %v4248
      %v4481 = vpop.f32.mrf.mxu0
      %v4482 = vadd.f32 %v4369, %v4481
      %4483 = vmatmul.f32.gmra.mxu0 %v4250
      %v4484 = vpop.f32.mrf.mxu0
      %v4485 = vadd.f32 %v4372, %v4484
      %4486 = vmatmul.f32.gmra.mxu0 %v4252
      %v4487 = vpop.f32.mrf.mxu0
      %v4488 = vadd.f32 %v4375, %v4487
      %4489 = vmatmul.f32.gmra.mxu0 %v4254
      %v4490 = vpop.f32.mrf.mxu0
      %v4491 = vadd.f32 %v4378, %v4490
      %4492 = vmatmul.f32.gmra.mxu0 %v4256
      %v4493 = vpop.f32.mrf.mxu0
      %v4494 = vadd.f32 %v4381, %v4493
      %4495 = vmatmul.f32.gmra.mxu0 %v4258
      %v4496 = vpop.f32.mrf.mxu0
      %v4497 = vadd.f32 %v4384, %v4496
      %4498 = vmatmul.f32.gmra.mxu0 %v4260
      %v4499 = vpop.f32.mrf.mxu0
      %v4500 = vadd.f32 %v4387, %v4499
      %4501 = vmatmul.f32.gmra.mxu0 %v4262
      %v4502 = vpop.f32.mrf.mxu0
      %v4503 = vadd.f32 %v4390, %v4502
      %4504 = vmatmul.f32.gmra.mxu0 %v4264
      %v4505 = vpop.f32.mrf.mxu0
      %v4506 = vadd.f32 %v4393, %v4505
      %4507 = vmatmul.f32.gmra.mxu0 %v4266
      %v4508 = vpop.f32.mrf.mxu0
      %v4509 = vadd.f32 %v4396, %v4508
      %4510 = vmatmul.f32.gmra.mxu0 %v4268
      %v4511 = vpop.f32.mrf.mxu0
      %v4512 = vadd.f32 %v4399, %v4511
      %4513 = vmatmul.f32.gmra.mxu0 %v4270
      %v4514 = vpop.f32.mrf.mxu0
      %v4515 = vadd.f32 %v4402, %v4514
      %4516 = vmatmul.f32.gmra.mxu0 %v4272
      %v4517 = vpop.f32.mrf.mxu0
      %v4518 = vadd.f32 %v4405, %v4517
      %4519 = vmatmul.f32.gmra.mxu0 %v4274
      %v4520 = vpop.f32.mrf.mxu0
      %v4521 = vadd.f32 %v4408, %v4520
      %4522 = vmatmul.f32.gmra.mxu0 %v4276
      %v4523 = vpop.f32.mrf.mxu0
      %v4524 = vadd.f32 %v4411, %v4523
      %4525 = vmatmul.f32.gmra.mxu0 %v4278
      %v4526 = vpop.f32.mrf.mxu0
      %v4527 = vadd.f32 %v4414, %v4526
      %4528 = vmatmul.f32.gmra.mxu0 %v4280
      %v4529 = vpop.f32.mrf.mxu0
      %v4530 = vadd.f32 %v4417, %v4529
      %4531 = vmatmul.f32.gmra.mxu0 %v4282
      %v4532 = vpop.f32.mrf.mxu0
      %v4533 = vadd.f32 %v4420, %v4532
      %4534 = vmatmul.f32.gmra.mxu0 %v4284
      %v4535 = vpop.f32.mrf.mxu0
      %v4536 = vadd.f32 %v4423, %v4535
      %4537 = vmatmul.f32.gmra.mxu0 %v4286
      %v4538 = vpop.f32.mrf.mxu0
      %v4539 = vadd.f32 %v4426, %v4538
      %4540 = vmatmul.f32.gmra.mxu0 %v4288
      %v4541 = vpop.f32.mrf.mxu0
      %v4542 = vadd.f32 %v4429, %v4541
      %4543 = vmatmul.f32.gmra.mxu0 %v4290
      %v4544 = vpop.f32.mrf.mxu0
      %v4545 = vadd.f32 %v4432, %v4544
      %4546 = vmatmul.f32.gmra.mxu0 %v4292
      %v4547 = vpop.f32.mrf.mxu0
      %v4548 = vadd.f32 %v4435, %v4547
      %4549 = vmatmul.f32.gmra.mxu0 %v4294
      %v4550 = vpop.f32.mrf.mxu0
      %v4551 = vadd.f32 %v4438, %v4550
      %4552 = vmatmul.f32.gmra.mxu0 %v4296
      %v4553 = vpop.f32.mrf.mxu0
      %v4554 = vadd.f32 %v4441, %v4553
      %4555 = vmatmul.f32.gmra.mxu0 %v4298
      %v4556 = vpop.f32.mrf.mxu0
      %v4557 = vadd.f32 %v4444, %v4556
      %4558 = vmatmul.f32.gmra.mxu0 %v4300
      %v4559 = vpop.f32.mrf.mxu0
      %v4560 = vadd.f32 %v4447, %v4559
      %4561 = vmatmul.f32.gmra.mxu0 %v4302
      %v4562 = vpop.f32.mrf.mxu0
      %v4563 = vadd.f32 %v4450, %v4562
      %4564 = vdwg.mxu0
      %4565 = vxpose.xlu0.b32.start [1/16] %v4470, 128
      %4566 = vxpose.xlu0.b32.cont [2/16] %v4473, 128
      %4567 = vxpose.xlu0.b32.cont [3/16] %v4476, 128
      %4568 = vxpose.xlu0.b32.cont [4/16] %v4479, 128
      %4569 = vxpose.xlu0.b32.cont [5/16] %v4482, 128
      %4570 = vxpose.xlu0.b32.cont [6/16] %v4485, 128
      %4571 = vxpose.xlu0.b32.cont [7/16] %v4488, 128
      %4572 = vxpose.xlu0.b32.cont [8/16] %v4491, 128
      %4573 = vxpose.xlu0.b32.cont [9/16] %v4494, 128
      %4574 = vxpose.xlu0.b32.cont [10/16] %v4497, 128
      %4575 = vxpose.xlu0.b32.cont [11/16] %v4500, 128
      %4576 = vxpose.xlu0.b32.cont [12/16] %v4503, 128
      %4577 = vxpose.xlu0.b32.cont [13/16] %v4506, 128
      %4578 = vxpose.xlu0.b32.cont [14/16] %v4509, 128
      %4579 = vxpose.xlu0.b32.cont [15/16] %v4512, 128
      %4580 = vxpose.xlu0.b32.end [16/16] %v4515, 128
      %v4581 = vpop.trf.xlu0
      %v4582 = vpop.trf.xlu0
      %v4583 = vpop.trf.xlu0
      %v4584 = vpop.trf.xlu0
      %v4585 = vpop.trf.xlu0
      %v4586 = vpop.trf.xlu0
      %v4587 = vpop.trf.xlu0
      %v4588 = vpop.trf.xlu0
      %v4589 = vpop.trf.xlu0
      %v4590 = vpop.trf.xlu0
      %v4591 = vpop.trf.xlu0
      %v4592 = vpop.trf.xlu0
      %v4593 = vpop.trf.xlu0
      %v4594 = vpop.trf.xlu0
      %v4595 = vpop.trf.xlu0
      %v4596 = vpop.trf.xlu0
      %4597 = vxpose.xlu0.b32.start [1/16] %v4518, 128
      %4598 = vxpose.xlu0.b32.cont [2/16] %v4521, 128
      %4599 = vxpose.xlu0.b32.cont [3/16] %v4524, 128
      %4600 = vxpose.xlu0.b32.cont [4/16] %v4527, 128
      %4601 = vxpose.xlu0.b32.cont [5/16] %v4530, 128
      %4602 = vxpose.xlu0.b32.cont [6/16] %v4533, 128
      %4603 = vxpose.xlu0.b32.cont [7/16] %v4536, 128
      %4604 = vxpose.xlu0.b32.cont [8/16] %v4539, 128
      %4605 = vxpose.xlu0.b32.cont [9/16] %v4542, 128
      %4606 = vxpose.xlu0.b32.cont [10/16] %v4545, 128
      %4607 = vxpose.xlu0.b32.cont [11/16] %v4548, 128
      %4608 = vxpose.xlu0.b32.cont [12/16] %v4551, 128
      %4609 = vxpose.xlu0.b32.cont [13/16] %v4554, 128
      %4610 = vxpose.xlu0.b32.cont [14/16] %v4557, 128
      %4611 = vxpose.xlu0.b32.cont [15/16] %v4560, 128
      %4612 = vxpose.xlu0.b32.end [16/16] %v4563, 128
      %v4613 = vpop.trf.xlu0
      %v4614 = vpop.trf.xlu0
      %v4615 = vpop.trf.xlu0
      %v4616 = vpop.trf.xlu0
      %v4617 = vpop.trf.xlu0
      %v4618 = vpop.trf.xlu0
      %v4619 = vpop.trf.xlu0
      %v4620 = vpop.trf.xlu0
      %v4621 = vpop.trf.xlu0
      %v4622 = vpop.trf.xlu0
      %v4623 = vpop.trf.xlu0
      %v4624 = vpop.trf.xlu0
      %v4625 = vpop.trf.xlu0
      %v4626 = vpop.trf.xlu0
      %v4627 = vpop.trf.xlu0
      %v4628 = vpop.trf.xlu0
      %4629 = vst [vmem:[%s278] sm:$0xff] %v4581
      %4630 = vst [vmem:[%s278 + $0x8] sm:$0xff] %v4613
      %4631 = vst [vmem:[%s278 + $0x10] sm:$0xff] %v4582
      %4632 = vst [vmem:[%s278 + $0x18] sm:$0xff] %v4614
      %p4633 = scmp.lt.s32.totalorder %s18, 1
      %s4634 = scalar_select %p4633, %s18, 1
      %s4635 = smul.addr %s4634, 4
      %s4636 = smul.addr %s4635, 8
      %s4637 = scalar_lea.vmem %s7, %s4636
      // Predicated region
      $region49: #{segment_head_forward.2} parent=47 // pred_check
        %p4638 = pneg %p188
      $region50: #{segment_head_forward.2} parent=47 // pred_check_branch
        %4640 = sbr.rel (%p4638) target = $region52
      $region51: #{segment_head_forward.2} parent=47 // pred_region
        _
      $region52: #{segment_head_forward.2} parent=47 // pred_fallthru
        _
    $region48: #{segment_head_forward.2} parent=5 // pred_fallthru
      _
    %p4641 = scmp.le.s32.totalorder 2, %s13
    // Predicated region
    $region53: #{segment_head_forward.2} parent=5 // pred_check
      %p4642 = pneg %p4641
    $region54: #{segment_head_forward.2} parent=5 // pred_check_branch
      %4644 = sbr.rel (%p4642) target = $region56
    $region55: #{segment_head_forward.2} parent=5 // pred_region
      %s4645 = ssub.s32 %s13, 2
      // Predicated region
      $region57: #{segment_head_forward.2} parent=55 // pred_check
        %p4646 = pneg %p194
      $region58: #{segment_head_forward.2} parent=55 // pred_check_branch
        %4648 = sbr.rel (%p4646) target = $region60
      $region59: #{segment_head_forward.2} parent=55 // pred_region
        %p4649 = scmp.lt.s32.totalorder %s19, 1
        %s4650 = scalar_select %p4649, %s19, 1
        %s4651 = smul.addr %s4650, 4
        %s4652 = smul.addr %s4651, 8
        %s4653 = scalar_lea.vmem %s7, %s4652
      $region60: #{segment_head_forward.2} parent=55 // pred_fallthru
        _
    $region56: #{segment_head_forward.2} parent=5 // pred_fallthru
      _
  $region6: #{segment_head_forward.2} parent=0 // loop_footer
    %s17 = sadd.s32 1, %s13
  $region7: #{segment_head_forward.2} parent=0 // loop_footer_branch
    %12 = sbr.rel target = $region3
  $region8: #{segment_head_forward.2} parent=0 // loop_exit
    _

</llo_original>
